<compile_context>
chip_gen: v7x
topology: tpu7x:2x2x1
jax: 0.10.0
libtpu: 0.0.40
codegen_flags: <defaults>
</compile_context>

<pallas_src>
import math
from functools import partial

import jax
import jax.numpy as jnp
from jax.experimental import pallas as pl
from jax.experimental.pallas import tpu as pltpu

_BF16 = jnp.bfloat16
_F32 = jnp.float32


# ---------------------------------------------------------------------------
# In-kernel helpers (operate on values already resident in VMEM / vregs)
# ---------------------------------------------------------------------------
def _bf16_dot(a, b):
    """MXU matmul: bf16 operands, f32 accumulation."""
    return jnp.dot(a.astype(_BF16), b.astype(_BF16), preferred_element_type=_F32)


def _layer_norm(x, g, b, eps):
    mean = jnp.mean(x, axis=-1, keepdims=True)
    xc = x - mean
    var = jnp.mean(xc * xc, axis=-1, keepdims=True)
    return xc * jax.lax.rsqrt(var + eps) * g + b


def _attention(q, k, v, w_refs, num_heads):
    """Multi-head attention on one batch element. q: (Nq, C); k, v: (Nk, C) f32."""
    wq, bq, wk, bk, wv, bv, wo, bo = w_refs
    d_internal = wq.shape[1]
    dh = d_internal // num_heads
    scale = 1.0 / math.sqrt(dh)

    # Q/K/V projections: full-depth (K = C) bf16 matmuls, f32 accumulation.
    qp = _bf16_dot(q, wq[...]) + bq[...]
    kp = _bf16_dot(k, wk[...]) + bk[...]
    vp = _bf16_dot(v, wv[...]) + bv[...]
    wo_bf = wo[...].astype(_BF16)

    n_q = q.shape[0]
    c_out = wo.shape[1]
    # Per-head accumulation into Wo is mathematically identical to
    # concat(heads) @ Wo and avoids an in-kernel lane concatenate/relayout.
    # TODO(synk): for production SAM shapes (Nk = 4096 image tokens) tile the
    # key axis flash-style and batch the heads into one 3-D einsum.
    out = jnp.zeros((n_q, c_out), _F32) + bo[...]
    for h in range(num_heads):
        lo = h * dh
        qh = qp[:, lo:lo + dh].astype(_BF16)
        kh = kp[:, lo:lo + dh].astype(_BF16)
        vh = vp[:, lo:lo + dh].astype(_BF16)
        # logits = qh @ kh^T without materializing a transpose.
        logits = jax.lax.dot_general(
            qh, kh, (((1,), (1,)), ((), ())),
            preferred_element_type=_F32) * scale
        logits = logits - jnp.max(logits, axis=-1, keepdims=True)
        p = jnp.exp(logits)                                     # f32 softmax
        p = p * pl.reciprocal(jnp.sum(p, axis=-1, keepdims=True), approx=True)
        oh = _bf16_dot(p, vh)                                   # (Nq, dh)
        out = out + _bf16_dot(oh, wo_bf[lo:lo + dh, :])
    return out


# ---------------------------------------------------------------------------
# Fused TwoWayAttentionBlock kernel (one grid step == one batch element)
# ---------------------------------------------------------------------------
def _two_way_block_kernel(
        q_ref, k_ref, qpe_ref, kpe_ref,
        sa_wq, sa_bq, sa_wk, sa_bk, sa_wv, sa_bv, sa_wo, sa_bo,
        t_wq, t_bq, t_wk, t_bk, t_wv, t_bv, t_wo, t_bo,
        i_wq, i_bq, i_wk, i_bk, i_wv, i_bv, i_wo, i_bo,
        m_w1, m_b1, m_w2, m_b2,
        n1g, n1b, n2g, n2b, n3g, n3b, n4g, n4b,
        q_out_ref, k_out_ref,
        *, num_heads, skip_first_layer_pe, eps):
    q0 = q_ref[0]        # (Nq, C) original queries
    k0 = k_ref[0]        # (Nk, C) original keys
    qpe = qpe_ref[0]
    kpe = kpe_ref[0]

    sa = (sa_wq, sa_bq, sa_wk, sa_bk, sa_wv, sa_bv, sa_wo, sa_bo)
    t2i = (t_wq, t_bq, t_wk, t_bk, t_wv, t_bv, t_wo, t_bo)
    i2t = (i_wq, i_bq, i_wk, i_bk, i_wv, i_bv, i_wo, i_bo)

    # (1) self-attention of sparse tokens (+ optional PE) + residual + norm1
    if skip_first_layer_pe:
        queries = _attention(q0, q0, q0, sa, num_heads)
    else:
        q_in = q0 + qpe
        queries = q0 + _attention(q_in, q_in, q0, sa, num_heads)
    queries = _layer_norm(queries, n1g[...], n1b[...], eps)

    # (2) cross-attention: tokens -> image + residual + norm2
    k_pe_in = k0 + kpe
    queries = queries + _attention(queries + qpe, k_pe_in, k0, t2i, num_heads)
    queries = _layer_norm(queries, n2g[...], n2b[...], eps)

    # (3) MLP (Linear -> ReLU -> Linear) + residual + norm3
    hidden = jnp.maximum(_bf16_dot(queries, m_w1[...]) + m_b1[...], 0.0)
    queries = queries + _bf16_dot(hidden, m_w2[...]) + m_b2[...]
    queries = _layer_norm(queries, n3g[...], n3b[...], eps)

    # (4) cross-attention: image -> tokens + residual on keys + norm4
    keys = k0 + _attention(k_pe_in, queries + qpe, queries, i2t, num_heads)
    keys = _layer_norm(keys, n4g[...], n4b[...], eps)

    q_out_ref[0] = queries
    k_out_ref[0] = keys


# ---------------------------------------------------------------------------
# Wrapper
# ---------------------------------------------------------------------------
def two_way_attention_block(queries, keys, query_pe, key_pe, params, *,
                            num_heads, skip_first_layer_pe=False, eps=1e-5):
    B, n_q, C = queries.shape
    n_k = keys.shape[1]

    def attn_weights(p):
        return (p['wq'], p['bq'], p['wk'], p['bk'],
                p['wv'], p['bv'], p['wo'], p['bo'])

    weight_args = (
        attn_weights(params['self_attn'])
        + attn_weights(params['cross_attn_t2i'])
        + attn_weights(params['cross_attn_i2t'])
        + (params['mlp']['w1'], params['mlp']['b1'],
           params['mlp']['w2'], params['mlp']['b2'])
        + (params['norm1']['g'], params['norm1']['b'],
           params['norm2']['g'], params['norm2']['b'],
           params['norm3']['g'], params['norm3']['b'],
           params['norm4']['g'], params['norm4']['b'])
    )
    args = (queries, keys, query_pe, key_pe) + weight_args

    # Per-batch blocks for token tensors; weights use constant index_maps so
    # they are fetched once and stay resident across grid steps.
    def token_spec(n_tokens):
        return pl.BlockSpec((1, n_tokens, C), lambda b: (b, 0, 0))

    def resident_spec(x):
        return pl.BlockSpec(x.shape, lambda b, _nd=x.ndim: (0,) * _nd)

    in_specs = ([token_spec(n_q), token_spec(n_k),
                 token_spec(n_q), token_spec(n_k)]
                + [resident_spec(w) for w in weight_args])
    out_specs = (token_spec(n_q), token_spec(n_k))
    out_shape = (jax.ShapeDtypeStruct((B, n_q, C), jnp.float32),
                 jax.ShapeDtypeStruct((B, n_k, C), jnp.float32))

    # Advisory cost estimate so XLA schedules sensibly around the custom call.
    d_self = params['self_attn']['wq'].shape[1]
    d_cross = params['cross_attn_t2i']['wq'].shape[1]
    mlp_dim = params['mlp']['w1'].shape[1]
    flops = 2 * B * (
        4 * n_q * C * d_self + 2 * n_q * n_q * d_self           # self-attn
        + (n_q + 2 * n_k) * C * d_cross + n_q * d_cross * C     # t2i projections
        + 2 * n_q * n_k * d_cross                               # t2i attention
        + (n_k + 2 * n_q) * C * d_cross + n_k * d_cross * C     # i2t projections
        + 2 * n_k * n_q * d_cross                               # i2t attention
        + 2 * n_q * C * mlp_dim)                                # MLP
    transcendentals = B * num_heads * (n_q * n_q + 2 * n_q * n_k)
    bytes_accessed = sum(int(a.size) * a.dtype.itemsize for a in args)
    bytes_accessed += B * (n_q + n_k) * C * 4                   # outputs

    return pl.pallas_call(
        partial(_two_way_block_kernel, num_heads=num_heads,
                skip_first_layer_pe=skip_first_layer_pe, eps=eps),
        grid=(B,),
        out_shape=out_shape,
        in_specs=in_specs,
        out_specs=out_specs,
        compiler_params=pltpu.CompilerParams(
            # Batch elements are independent -> v7x can split across its two
            # TensorCores; harmless on single-TC v5e/v6e.
            dimension_semantics=("parallel",),
            # Headroom under v7x's 64 MiB physical VMEM (v5e/v6e have 128 MiB).
            vmem_limit_bytes=48 * 1024 * 1024,
        ),
        cost_estimate=pl.CostEstimate(
            flops=int(flops),
            transcendentals=int(transcendentals),
            bytes_accessed=int(bytes_accessed)),
    )(*args)


# ---------------------------------------------------------------------------
# Deterministic parameter initialization
# ---------------------------------------------------------------------------
def _init_linear(key, cin, cout):
    kw, kb = jax.random.split(key)
    w = jax.random.normal(kw, (cin, cout), jnp.float32) / math.sqrt(cin)
    b = jax.random.normal(kb, (1, cout), jnp.float32) * 0.02
    return w, b


def _init_attention(key, embedding_dim, internal_dim):
    ks = jax.random.split(key, 4)
    wq, bq = _init_linear(ks[0], embedding_dim, internal_dim)
    wk, bk = _init_linear(ks[1], embedding_dim, internal_dim)
    wv, bv = _init_linear(ks[2], embedding_dim, internal_dim)
    wo, bo = _init_linear(ks[3], internal_dim, embedding_dim)
    return dict(wq=wq, bq=bq, wk=wk, bk=bk, wv=wv, bv=bv, wo=wo, bo=bo)


def _init_layernorm(c):
    return dict(g=jnp.ones((1, c), jnp.float32), b=jnp.zeros((1, c), jnp.float32))


def init_params(key, embedding_dim, num_heads, mlp_dim,
                attention_downsample_rate=2):
    ks = jax.random.split(key, 4)
    k_mlp1, k_mlp2 = jax.random.split(ks[3])
    w1, b1 = _init_linear(k_mlp1, embedding_dim, mlp_dim)
    w2, b2 = _init_linear(k_mlp2, mlp_dim, embedding_dim)
    return dict(
        self_attn=_init_attention(ks[0], embedding_dim, embedding_dim),
        cross_attn_t2i=_init_attention(
            ks[1], embedding_dim, embedding_dim // attention_downsample_rate),
        cross_attn_i2t=_init_attention(
            ks[2], embedding_dim, embedding_dim // attention_downsample_rate),
        mlp=dict(w1=w1, b1=b1, w2=w2, b2=b2),
        norm1=_init_layernorm(embedding_dim),
        norm2=_init_layernorm(embedding_dim),
        norm3=_init_layernorm(embedding_dim),
        norm4=_init_layernorm(embedding_dim),
    )


# ---------------------------------------------------------------------------
# Pure-JAX reference (mirrors the PyTorch module).  dot_dtype lets us build
# both a full-f32 reference and one matching the kernel's bf16-operand /
# f32-accumulate matmul precision.
# ---------------------------------------------------------------------------
def _mm(a, b, dot_dtype):
    return jnp.dot(a.astype(dot_dtype), b.astype(dot_dtype),
                   preferred_element_type=jnp.float32)


def _ref_attention(q, k, v, p, num_heads, dot_dtype):
    qp = _mm(q, p['wq'], dot_dtype) + p['bq'][0]
    kp = _mm(k, p['wk'], dot_dtype) + p['bk'][0]
    vp = _mm(v, p['wv'], dot_dtype) + p['bv'][0]
    B, n_q, D = qp.shape
    n_k = kp.shape[1]
    dh = D // num_heads

    def split(x, n):
        return x.reshape(B, n, num_heads, dh).transpose(0, 2, 1, 3)

    qh, kh, vh = split(qp, n_q), split(kp, n_k), split(vp, n_k)
    attn = jnp.einsum('bhqd,bhkd->bhqk', qh.astype(dot_dtype), kh.astype(dot_dtype),
                      preferred_element_type=jnp.float32) / math.sqrt(dh)
    attn = jax.nn.softmax(attn, axis=-1)
    out = jnp.einsum('bhqk,bhkd->bhqd', attn.astype(dot_dtype), vh.astype(dot_dtype),
                     preferred_element_type=jnp.float32)
    out = out.transpose(0, 2, 1, 3).reshape(B, n_q, D)
    return _mm(out, p['wo'], dot_dtype) + p['bo'][0]


def _ref_ln(x, p, eps=1e-5):
    mean = x.mean(-1, keepdims=True)
    var = ((x - mean) ** 2).mean(-1, keepdims=True)
    return (x - mean) / jnp.sqrt(var + eps) * p['g'][0] + p['b'][0]


def _ref_mlp(x, p, dot_dtype):
    h = jnp.maximum(_mm(x, p['w1'], dot_dtype) + p['b1'][0], 0.0)
    return _mm(h, p['w2'], dot_dtype) + p['b2'][0]


def _ref_block(queries, keys, query_pe, key_pe, params, num_heads,
               skip_first_layer_pe=False, dot_dtype=jnp.float32):
    if skip_first_layer_pe:
        queries = _ref_attention(queries, queries, queries,
                                 params['self_attn'], num_heads, dot_dtype)
    else:
        q = queries + query_pe
        queries = queries + _ref_attention(q, q, queries,
                                           params['self_attn'], num_heads, dot_dtype)
    queries = _ref_ln(queries, params['norm1'])
    q = queries + query_pe
    k = keys + key_pe
    queries = queries + _ref_attention(q, k, keys,
                                       params['cross_attn_t2i'], num_heads, dot_dtype)
    queries = _ref_ln(queries, params['norm2'])
    queries = queries + _ref_mlp(queries, params['mlp'], dot_dtype)
    queries = _ref_ln(queries, params['norm3'])
    q = queries + query_pe
    k = keys + key_pe
    keys = keys + _ref_attention(k, q, queries,
                                 params['cross_attn_i2t'], num_heads, dot_dtype)
    keys = _ref_ln(keys, params['norm4'])
    return queries, keys


# ---------------------------------------------------------------------------
if __name__ == "__main__":
    B, n_q, n_k = 2, 16, 64       # sparse tokens / dense (image) tokens
    C, H, M = 128, 4, 256         # embedding_dim (lane-dense), num_heads, mlp_dim

    key = jax.random.PRNGKey(0)
    kq, kk, kpq, kpk, kparam = jax.random.split(key, 5)
    queries = jax.random.normal(kq, (B, n_q, C), jnp.float32)
    keys_in = jax.random.normal(kk, (B, n_k, C), jnp.float32)
    query_pe = jax.random.normal(kpq, (B, n_q, C), jnp.float32)
    key_pe = jax.random.normal(kpk, (B, n_k, C), jnp.float32)
    params = init_params(kparam, C, H, M, attention_downsample_rate=2)

    fwd = jax.jit(partial(two_way_attention_block,
                          num_heads=H, skip_first_layer_pe=False))
    out_q, out_k = fwd(queries, keys_in, query_pe, key_pe, params)
    jax.block_until_ready((out_q, out_k))

    # Primary check: reference with the same bf16-operand / f32-accumulate
    # matmul precision as the kernel.
    ref_q, ref_k = _ref_block(queries, keys_in, query_pe, key_pe, params, H,
                              dot_dtype=jnp.bfloat16)
    # Sanity check: bf16 matmuls remain close to the full-f32 reference.
    ref_q32, ref_k32 = _ref_block(queries, keys_in, query_pe, key_pe, params, H,
                                  dot_dtype=jnp.float32)

    assert out_q.shape == (B, n_q, C) and out_k.shape == (B, n_k, C)
    assert jnp.allclose(out_q, ref_q, atol=2e-2, rtol=2e-2)
    assert jnp.allclose(out_k, ref_k, atol=2e-2, rtol=2e-2)
    assert jnp.allclose(out_q, ref_q32, atol=2e-1, rtol=2e-1)
    assert jnp.allclose(out_k, ref_k32, atol=2e-1, rtol=2e-1)

    print("KERNEL_OK")
</pallas_src>

<mosaic_0001>
module attributes {stable_mosaic.version = 11 : i64} {
  func.func @_two_way_block_kernel(%arg0: i32, %arg1: memref<1x16x128xf32, #tpu.memory_space<vmem>>, %arg2: memref<1x64x128xf32, #tpu.memory_space<vmem>>, %arg3: memref<1x16x128xf32, #tpu.memory_space<vmem>>, %arg4: memref<1x64x128xf32, #tpu.memory_space<vmem>>, %arg5: memref<128x128xf32, #tpu.memory_space<vmem>>, %arg6: memref<1x128xf32, #tpu.memory_space<vmem>>, %arg7: memref<128x128xf32, #tpu.memory_space<vmem>>, %arg8: memref<1x128xf32, #tpu.memory_space<vmem>>, %arg9: memref<128x128xf32, #tpu.memory_space<vmem>>, %arg10: memref<1x128xf32, #tpu.memory_space<vmem>>, %arg11: memref<128x128xf32, #tpu.memory_space<vmem>>, %arg12: memref<1x128xf32, #tpu.memory_space<vmem>>, %arg13: memref<128x64xf32, #tpu.memory_space<vmem>>, %arg14: memref<1x64xf32, #tpu.memory_space<vmem>>, %arg15: memref<128x64xf32, #tpu.memory_space<vmem>>, %arg16: memref<1x64xf32, #tpu.memory_space<vmem>>, %arg17: memref<128x64xf32, #tpu.memory_space<vmem>>, %arg18: memref<1x64xf32, #tpu.memory_space<vmem>>, %arg19: memref<64x128xf32, #tpu.memory_space<vmem>>, %arg20: memref<1x128xf32, #tpu.memory_space<vmem>>, %arg21: memref<128x64xf32, #tpu.memory_space<vmem>>, %arg22: memref<1x64xf32, #tpu.memory_space<vmem>>, %arg23: memref<128x64xf32, #tpu.memory_space<vmem>>, %arg24: memref<1x64xf32, #tpu.memory_space<vmem>>, %arg25: memref<128x64xf32, #tpu.memory_space<vmem>>, %arg26: memref<1x64xf32, #tpu.memory_space<vmem>>, %arg27: memref<64x128xf32, #tpu.memory_space<vmem>>, %arg28: memref<1x128xf32, #tpu.memory_space<vmem>>, %arg29: memref<128x256xf32, #tpu.memory_space<vmem>>, %arg30: memref<1x256xf32, #tpu.memory_space<vmem>>, %arg31: memref<256x128xf32, #tpu.memory_space<vmem>>, %arg32: memref<1x128xf32, #tpu.memory_space<vmem>>, %arg33: memref<1x128xf32, #tpu.memory_space<vmem>>, %arg34: memref<1x128xf32, #tpu.memory_space<vmem>>, %arg35: memref<1x128xf32, #tpu.memory_space<vmem>>, %arg36: memref<1x128xf32, #tpu.memory_space<vmem>>, %arg37: memref<1x128xf32, #tpu.memory_space<vmem>>, %arg38: memref<1x128xf32, #tpu.memory_space<vmem>>, %arg39: memref<1x128xf32, #tpu.memory_space<vmem>>, %arg40: memref<1x128xf32, #tpu.memory_space<vmem>>, %arg41: memref<1x16x128xf32, #tpu.memory_space<vmem>>, %arg42: memref<1x64x128xf32, #tpu.memory_space<vmem>>) attributes {dimension_semantics = [#tpu.dimension_semantics<parallel>], iteration_bounds = array<i64: 2>, scalar_prefetch = 0 : i64, scratch_operands = 0 : i64, tpu.core_type = #tpu.core_type<tc>, window_params = [{transform_indices = @transform_0, window_bounds = array<i64: 1, 16, 128>}, {transform_indices = @transform_1, window_bounds = array<i64: 1, 64, 128>}, {transform_indices = @transform_2, window_bounds = array<i64: 1, 16, 128>}, {transform_indices = @transform_3, window_bounds = array<i64: 1, 64, 128>}, {pipeline_mode = #tpu.pipeline_mode<synchronous>, transform_indices = @transform_4, window_bounds = array<i64: 128, 128>}, {pipeline_mode = #tpu.pipeline_mode<synchronous>, transform_indices = @transform_5, window_bounds = array<i64: 1, 128>}, {pipeline_mode = #tpu.pipeline_mode<synchronous>, transform_indices = @transform_6, window_bounds = array<i64: 128, 128>}, {pipeline_mode = #tpu.pipeline_mode<synchronous>, transform_indices = @transform_7, window_bounds = array<i64: 1, 128>}, {pipeline_mode = #tpu.pipeline_mode<synchronous>, transform_indices = @transform_8, window_bounds = array<i64: 128, 128>}, {pipeline_mode = #tpu.pipeline_mode<synchronous>, transform_indices = @transform_9, window_bounds = array<i64: 1, 128>}, {pipeline_mode = #tpu.pipeline_mode<synchronous>, transform_indices = @transform_10, window_bounds = array<i64: 128, 128>}, {pipeline_mode = #tpu.pipeline_mode<synchronous>, transform_indices = @transform_11, window_bounds = array<i64: 1, 128>}, {pipeline_mode = #tpu.pipeline_mode<synchronous>, transform_indices = @transform_12, window_bounds = array<i64: 128, 64>}, {pipeline_mode = #tpu.pipeline_mode<synchronous>, transform_indices = @transform_13, window_bounds = array<i64: 1, 64>}, {pipeline_mode = #tpu.pipeline_mode<synchronous>, transform_indices = @transform_14, window_bounds = array<i64: 128, 64>}, {pipeline_mode = #tpu.pipeline_mode<synchronous>, transform_indices = @transform_15, window_bounds = array<i64: 1, 64>}, {pipeline_mode = #tpu.pipeline_mode<synchronous>, transform_indices = @transform_16, window_bounds = array<i64: 128, 64>}, {pipeline_mode = #tpu.pipeline_mode<synchronous>, transform_indices = @transform_17, window_bounds = array<i64: 1, 64>}, {pipeline_mode = #tpu.pipeline_mode<synchronous>, transform_indices = @transform_18, window_bounds = array<i64: 64, 128>}, {pipeline_mode = #tpu.pipeline_mode<synchronous>, transform_indices = @transform_19, window_bounds = array<i64: 1, 128>}, {pipeline_mode = #tpu.pipeline_mode<synchronous>, transform_indices = @transform_20, window_bounds = array<i64: 128, 64>}, {pipeline_mode = #tpu.pipeline_mode<synchronous>, transform_indices = @transform_21, window_bounds = array<i64: 1, 64>}, {pipeline_mode = #tpu.pipeline_mode<synchronous>, transform_indices = @transform_22, window_bounds = array<i64: 128, 64>}, {pipeline_mode = #tpu.pipeline_mode<synchronous>, transform_indices = @transform_23, window_bounds = array<i64: 1, 64>}, {pipeline_mode = #tpu.pipeline_mode<synchronous>, transform_indices = @transform_24, window_bounds = array<i64: 128, 64>}, {pipeline_mode = #tpu.pipeline_mode<synchronous>, transform_indices = @transform_25, window_bounds = array<i64: 1, 64>}, {pipeline_mode = #tpu.pipeline_mode<synchronous>, transform_indices = @transform_26, window_bounds = array<i64: 64, 128>}, {pipeline_mode = #tpu.pipeline_mode<synchronous>, transform_indices = @transform_27, window_bounds = array<i64: 1, 128>}, {pipeline_mode = #tpu.pipeline_mode<synchronous>, transform_indices = @transform_28, window_bounds = array<i64: 128, 256>}, {pipeline_mode = #tpu.pipeline_mode<synchronous>, transform_indices = @transform_29, window_bounds = array<i64: 1, 256>}, {pipeline_mode = #tpu.pipeline_mode<synchronous>, transform_indices = @transform_30, window_bounds = array<i64: 256, 128>}, {pipeline_mode = #tpu.pipeline_mode<synchronous>, transform_indices = @transform_31, window_bounds = array<i64: 1, 128>}, {pipeline_mode = #tpu.pipeline_mode<synchronous>, transform_indices = @transform_32, window_bounds = array<i64: 1, 128>}, {pipeline_mode = #tpu.pipeline_mode<synchronous>, transform_indices = @transform_33, window_bounds = array<i64: 1, 128>}, {pipeline_mode = #tpu.pipeline_mode<synchronous>, transform_indices = @transform_34, window_bounds = array<i64: 1, 128>}, {pipeline_mode = #tpu.pipeline_mode<synchronous>, transform_indices = @transform_35, window_bounds = array<i64: 1, 128>}, {pipeline_mode = #tpu.pipeline_mode<synchronous>, transform_indices = @transform_36, window_bounds = array<i64: 1, 128>}, {pipeline_mode = #tpu.pipeline_mode<synchronous>, transform_indices = @transform_37, window_bounds = array<i64: 1, 128>}, {pipeline_mode = #tpu.pipeline_mode<synchronous>, transform_indices = @transform_38, window_bounds = array<i64: 1, 128>}, {pipeline_mode = #tpu.pipeline_mode<synchronous>, transform_indices = @transform_39, window_bounds = array<i64: 1, 128>}, {transform_indices = @transform_40, window_bounds = array<i64: 1, 16, 128>}, {transform_indices = @transform_41, window_bounds = array<i64: 1, 64, 128>}]} {
    %c0 = arith.constant 0 : index
    %c0_0 = arith.constant 0 : index
    %c0_1 = arith.constant 0 : index
    %0 = vector.load %arg1[%c0, %c0_0, %c0_1] : memref<1x16x128xf32, #tpu.memory_space<vmem>>, vector<1x16x128xf32>
    %1 = vector.shape_cast %0 : vector<1x16x128xf32> to vector<16x128xf32>
    %c0_2 = arith.constant 0 : index
    %c0_3 = arith.constant 0 : index
    %c0_4 = arith.constant 0 : index
    %2 = vector.load %arg2[%c0_2, %c0_3, %c0_4] : memref<1x64x128xf32, #tpu.memory_space<vmem>>, vector<1x64x128xf32>
    %3 = vector.shape_cast %2 : vector<1x64x128xf32> to vector<64x128xf32>
    %c0_5 = arith.constant 0 : index
    %c0_6 = arith.constant 0 : index
    %c0_7 = arith.constant 0 : index
    %4 = vector.load %arg3[%c0_5, %c0_6, %c0_7] : memref<1x16x128xf32, #tpu.memory_space<vmem>>, vector<1x16x128xf32>
    %5 = vector.shape_cast %4 : vector<1x16x128xf32> to vector<16x128xf32>
    %c0_8 = arith.constant 0 : index
    %c0_9 = arith.constant 0 : index
    %c0_10 = arith.constant 0 : index
    %6 = vector.load %arg4[%c0_8, %c0_9, %c0_10] : memref<1x64x128xf32, #tpu.memory_space<vmem>>, vector<1x64x128xf32>
    %7 = vector.shape_cast %6 : vector<1x64x128xf32> to vector<64x128xf32>
    %8 = arith.addf %1, %5 : vector<16x128xf32>
    %c0_11 = arith.constant 0 : index
    %c0_12 = arith.constant 0 : index
    %9 = vector.load %arg5[%c0_11, %c0_12] : memref<128x128xf32, #tpu.memory_space<vmem>>, vector<128x128xf32>
    %10 = arith.truncf %8 : vector<16x128xf32> to vector<16x128xbf16>
    %11 = arith.truncf %9 : vector<128x128xf32> to vector<128x128xbf16>
    %cst = arith.constant dense<0.000000e+00> : vector<16x128xf32>
    %12 = tpu.matmul %10, %11, %cst {dimension_numbers = #tpu.dot_dimension_numbers<[1], [0], [0], [1], [0, 0, 1, 1], [], []>} : vector<16x128xbf16>, vector<128x128xbf16>, vector<16x128xf32> -> vector<16x128xf32>
    %c0_13 = arith.constant 0 : index
    %c0_14 = arith.constant 0 : index
    %13 = vector.load %arg6[%c0_13, %c0_14] : memref<1x128xf32, #tpu.memory_space<vmem>>, vector<1x128xf32>
    %14 = vector.broadcast %13 : vector<1x128xf32> to vector<16x128xf32>
    %15 = arith.addf %12, %14 : vector<16x128xf32>
    %c0_15 = arith.constant 0 : index
    %c0_16 = arith.constant 0 : index
    %16 = vector.load %arg7[%c0_15, %c0_16] : memref<128x128xf32, #tpu.memory_space<vmem>>, vector<128x128xf32>
    %17 = arith.truncf %8 : vector<16x128xf32> to vector<16x128xbf16>
    %18 = arith.truncf %16 : vector<128x128xf32> to vector<128x128xbf16>
    %cst_17 = arith.constant dense<0.000000e+00> : vector<16x128xf32>
    %19 = tpu.matmul %17, %18, %cst_17 {dimension_numbers = #tpu.dot_dimension_numbers<[1], [0], [0], [1], [0, 0, 1, 1], [], []>} : vector<16x128xbf16>, vector<128x128xbf16>, vector<16x128xf32> -> vector<16x128xf32>
    %c0_18 = arith.constant 0 : index
    %c0_19 = arith.constant 0 : index
    %20 = vector.load %arg8[%c0_18, %c0_19] : memref<1x128xf32, #tpu.memory_space<vmem>>, vector<1x128xf32>
    %21 = vector.broadcast %20 : vector<1x128xf32> to vector<16x128xf32>
    %22 = arith.addf %19, %21 : vector<16x128xf32>
    %c0_20 = arith.constant 0 : index
    %c0_21 = arith.constant 0 : index
    %23 = vector.load %arg9[%c0_20, %c0_21] : memref<128x128xf32, #tpu.memory_space<vmem>>, vector<128x128xf32>
    %24 = arith.truncf %1 : vector<16x128xf32> to vector<16x128xbf16>
    %25 = arith.truncf %23 : vector<128x128xf32> to vector<128x128xbf16>
    %cst_22 = arith.constant dense<0.000000e+00> : vector<16x128xf32>
    %26 = tpu.matmul %24, %25, %cst_22 {dimension_numbers = #tpu.dot_dimension_numbers<[1], [0], [0], [1], [0, 0, 1, 1], [], []>} : vector<16x128xbf16>, vector<128x128xbf16>, vector<16x128xf32> -> vector<16x128xf32>
    %c0_23 = arith.constant 0 : index
    %c0_24 = arith.constant 0 : index
    %27 = vector.load %arg10[%c0_23, %c0_24] : memref<1x128xf32, #tpu.memory_space<vmem>>, vector<1x128xf32>
    %28 = vector.broadcast %27 : vector<1x128xf32> to vector<16x128xf32>
    %29 = arith.addf %26, %28 : vector<16x128xf32>
    %c0_25 = arith.constant 0 : index
    %c0_26 = arith.constant 0 : index
    %30 = vector.load %arg11[%c0_25, %c0_26] : memref<128x128xf32, #tpu.memory_space<vmem>>, vector<128x128xf32>
    %31 = arith.truncf %30 : vector<128x128xf32> to vector<128x128xbf16>
    %cst_27 = arith.constant 0.000000e+00 : f32
    %32 = vector.broadcast %cst_27 : f32 to vector<16x128xf32>
    %c0_28 = arith.constant 0 : index
    %c0_29 = arith.constant 0 : index
    %33 = vector.load %arg12[%c0_28, %c0_29] : memref<1x128xf32, #tpu.memory_space<vmem>>, vector<1x128xf32>
    %34 = vector.broadcast %33 : vector<1x128xf32> to vector<16x128xf32>
    %35 = arith.addf %32, %34 : vector<16x128xf32>
    %36 = vector.extract_strided_slice %15 {offsets = [0, 0], sizes = [16, 32], strides = [1, 1]} : vector<16x128xf32> to vector<16x32xf32>
    %37 = arith.truncf %36 : vector<16x32xf32> to vector<16x32xbf16>
    %38 = vector.extract_strided_slice %22 {offsets = [0, 0], sizes = [16, 32], strides = [1, 1]} : vector<16x128xf32> to vector<16x32xf32>
    %39 = arith.truncf %38 : vector<16x32xf32> to vector<16x32xbf16>
    %40 = vector.extract_strided_slice %29 {offsets = [0, 0], sizes = [16, 32], strides = [1, 1]} : vector<16x128xf32> to vector<16x32xf32>
    %41 = arith.truncf %40 : vector<16x32xf32> to vector<16x32xbf16>
    %cst_30 = arith.constant dense<0.000000e+00> : vector<16x16xf32>
    %42 = tpu.matmul %37, %39, %cst_30 {dimension_numbers = #tpu.dot_dimension_numbers<[1], [1], [0], [0], [0, 0, 1, 0], [], []>} : vector<16x32xbf16>, vector<16x32xbf16>, vector<16x16xf32> -> vector<16x16xf32>
    %cst_31 = arith.constant 0.176776692 : f32
    %43 = vector.broadcast %cst_31 : f32 to vector<16x16xf32>
    %44 = arith.mulf %42, %43 : vector<16x16xf32>
    %cst_32 = arith.constant dense<0xFF800000> : vector<16xf32>
    %45 = vector.multi_reduction <maximumf>, %44, %cst_32 [1] : vector<16x16xf32> to vector<16xf32>
    %46 = vector.shape_cast %45 : vector<16xf32> to vector<16x1xf32>
    %47 = vector.broadcast %46 : vector<16x1xf32> to vector<16x16xf32>
    %48 = arith.subf %44, %47 : vector<16x16xf32>
    %49 = math.exp %48 : vector<16x16xf32>
    %cst_33 = arith.constant dense<0.000000e+00> : vector<16xf32>
    %50 = vector.multi_reduction <add>, %49, %cst_33 [1] : vector<16x16xf32> to vector<16xf32>
    %51 = vector.shape_cast %50 : vector<16xf32> to vector<16x1xf32>
    %52 = tpu.reciprocal %51 {approx = true} : vector<16x1xf32> -> vector<16x1xf32>
    %53 = vector.broadcast %52 : vector<16x1xf32> to vector<16x16xf32>
    %54 = arith.mulf %49, %53 : vector<16x16xf32>
    %55 = arith.truncf %54 : vector<16x16xf32> to vector<16x16xbf16>
    %cst_34 = arith.constant dense<0.000000e+00> : vector<16x32xf32>
    %56 = tpu.matmul %55, %41, %cst_34 {dimension_numbers = #tpu.dot_dimension_numbers<[1], [0], [0], [1], [0, 0, 1, 1], [], []>} : vector<16x16xbf16>, vector<16x32xbf16>, vector<16x32xf32> -> vector<16x32xf32>
    %57 = vector.extract_strided_slice %31 {offsets = [0, 0], sizes = [32, 128], strides = [1, 1]} : vector<128x128xbf16> to vector<32x128xbf16>
    %58 = arith.truncf %56 : vector<16x32xf32> to vector<16x32xbf16>
    %cst_35 = arith.constant dense<0.000000e+00> : vector<16x128xf32>
    %59 = tpu.matmul %58, %57, %cst_35 {dimension_numbers = #tpu.dot_dimension_numbers<[1], [0], [0], [1], [0, 0, 1, 1], [], []>} : vector<16x32xbf16>, vector<32x128xbf16>, vector<16x128xf32> -> vector<16x128xf32>
    %60 = arith.addf %35, %59 : vector<16x128xf32>
    %61 = vector.extract_strided_slice %15 {offsets = [0, 32], sizes = [16, 32], strides = [1, 1]} : vector<16x128xf32> to vector<16x32xf32>
    %62 = arith.truncf %61 : vector<16x32xf32> to vector<16x32xbf16>
    %63 = vector.extract_strided_slice %22 {offsets = [0, 32], sizes = [16, 32], strides = [1, 1]} : vector<16x128xf32> to vector<16x32xf32>
    %64 = arith.truncf %63 : vector<16x32xf32> to vector<16x32xbf16>
    %65 = vector.extract_strided_slice %29 {offsets = [0, 32], sizes = [16, 32], strides = [1, 1]} : vector<16x128xf32> to vector<16x32xf32>
    %66 = arith.truncf %65 : vector<16x32xf32> to vector<16x32xbf16>
    %cst_36 = arith.constant dense<0.000000e+00> : vector<16x16xf32>
    %67 = tpu.matmul %62, %64, %cst_36 {dimension_numbers = #tpu.dot_dimension_numbers<[1], [1], [0], [0], [0, 0, 1, 0], [], []>} : vector<16x32xbf16>, vector<16x32xbf16>, vector<16x16xf32> -> vector<16x16xf32>
    %cst_37 = arith.constant 0.176776692 : f32
    %68 = vector.broadcast %cst_37 : f32 to vector<16x16xf32>
    %69 = arith.mulf %67, %68 : vector<16x16xf32>
    %cst_38 = arith.constant dense<0xFF800000> : vector<16xf32>
    %70 = vector.multi_reduction <maximumf>, %69, %cst_38 [1] : vector<16x16xf32> to vector<16xf32>
    %71 = vector.shape_cast %70 : vector<16xf32> to vector<16x1xf32>
    %72 = vector.broadcast %71 : vector<16x1xf32> to vector<16x16xf32>
    %73 = arith.subf %69, %72 : vector<16x16xf32>
    %74 = math.exp %73 : vector<16x16xf32>
    %cst_39 = arith.constant dense<0.000000e+00> : vector<16xf32>
    %75 = vector.multi_reduction <add>, %74, %cst_39 [1] : vector<16x16xf32> to vector<16xf32>
    %76 = vector.shape_cast %75 : vector<16xf32> to vector<16x1xf32>
    %77 = tpu.reciprocal %76 {approx = true} : vector<16x1xf32> -> vector<16x1xf32>
    %78 = vector.broadcast %77 : vector<16x1xf32> to vector<16x16xf32>
    %79 = arith.mulf %74, %78 : vector<16x16xf32>
    %80 = arith.truncf %79 : vector<16x16xf32> to vector<16x16xbf16>
    %cst_40 = arith.constant dense<0.000000e+00> : vector<16x32xf32>
    %81 = tpu.matmul %80, %66, %cst_40 {dimension_numbers = #tpu.dot_dimension_numbers<[1], [0], [0], [1], [0, 0, 1, 1], [], []>} : vector<16x16xbf16>, vector<16x32xbf16>, vector<16x32xf32> -> vector<16x32xf32>
    %82 = vector.extract_strided_slice %31 {offsets = [32, 0], sizes = [32, 128], strides = [1, 1]} : vector<128x128xbf16> to vector<32x128xbf16>
    %83 = arith.truncf %81 : vector<16x32xf32> to vector<16x32xbf16>
    %cst_41 = arith.constant dense<0.000000e+00> : vector<16x128xf32>
    %84 = tpu.matmul %83, %82, %cst_41 {dimension_numbers = #tpu.dot_dimension_numbers<[1], [0], [0], [1], [0, 0, 1, 1], [], []>} : vector<16x32xbf16>, vector<32x128xbf16>, vector<16x128xf32> -> vector<16x128xf32>
    %85 = arith.addf %60, %84 : vector<16x128xf32>
    %86 = vector.extract_strided_slice %15 {offsets = [0, 64], sizes = [16, 32], strides = [1, 1]} : vector<16x128xf32> to vector<16x32xf32>
    %87 = arith.truncf %86 : vector<16x32xf32> to vector<16x32xbf16>
    %88 = vector.extract_strided_slice %22 {offsets = [0, 64], sizes = [16, 32], strides = [1, 1]} : vector<16x128xf32> to vector<16x32xf32>
    %89 = arith.truncf %88 : vector<16x32xf32> to vector<16x32xbf16>
    %90 = vector.extract_strided_slice %29 {offsets = [0, 64], sizes = [16, 32], strides = [1, 1]} : vector<16x128xf32> to vector<16x32xf32>
    %91 = arith.truncf %90 : vector<16x32xf32> to vector<16x32xbf16>
    %cst_42 = arith.constant dense<0.000000e+00> : vector<16x16xf32>
    %92 = tpu.matmul %87, %89, %cst_42 {dimension_numbers = #tpu.dot_dimension_numbers<[1], [1], [0], [0], [0, 0, 1, 0], [], []>} : vector<16x32xbf16>, vector<16x32xbf16>, vector<16x16xf32> -> vector<16x16xf32>
    %cst_43 = arith.constant 0.176776692 : f32
    %93 = vector.broadcast %cst_43 : f32 to vector<16x16xf32>
    %94 = arith.mulf %92, %93 : vector<16x16xf32>
    %cst_44 = arith.constant dense<0xFF800000> : vector<16xf32>
    %95 = vector.multi_reduction <maximumf>, %94, %cst_44 [1] : vector<16x16xf32> to vector<16xf32>
    %96 = vector.shape_cast %95 : vector<16xf32> to vector<16x1xf32>
    %97 = vector.broadcast %96 : vector<16x1xf32> to vector<16x16xf32>
    %98 = arith.subf %94, %97 : vector<16x16xf32>
    %99 = math.exp %98 : vector<16x16xf32>
    %cst_45 = arith.constant dense<0.000000e+00> : vector<16xf32>
    %100 = vector.multi_reduction <add>, %99, %cst_45 [1] : vector<16x16xf32> to vector<16xf32>
    %101 = vector.shape_cast %100 : vector<16xf32> to vector<16x1xf32>
    %102 = tpu.reciprocal %101 {approx = true} : vector<16x1xf32> -> vector<16x1xf32>
    %103 = vector.broadcast %102 : vector<16x1xf32> to vector<16x16xf32>
    %104 = arith.mulf %99, %103 : vector<16x16xf32>
    %105 = arith.truncf %104 : vector<16x16xf32> to vector<16x16xbf16>
    %cst_46 = arith.constant dense<0.000000e+00> : vector<16x32xf32>
    %106 = tpu.matmul %105, %91, %cst_46 {dimension_numbers = #tpu.dot_dimension_numbers<[1], [0], [0], [1], [0, 0, 1, 1], [], []>} : vector<16x16xbf16>, vector<16x32xbf16>, vector<16x32xf32> -> vector<16x32xf32>
    %107 = vector.extract_strided_slice %31 {offsets = [64, 0], sizes = [32, 128], strides = [1, 1]} : vector<128x128xbf16> to vector<32x128xbf16>
    %108 = arith.truncf %106 : vector<16x32xf32> to vector<16x32xbf16>
    %cst_47 = arith.constant dense<0.000000e+00> : vector<16x128xf32>
    %109 = tpu.matmul %108, %107, %cst_47 {dimension_numbers = #tpu.dot_dimension_numbers<[1], [0], [0], [1], [0, 0, 1, 1], [], []>} : vector<16x32xbf16>, vector<32x128xbf16>, vector<16x128xf32> -> vector<16x128xf32>
    %110 = arith.addf %85, %109 : vector<16x128xf32>
    %111 = vector.extract_strided_slice %15 {offsets = [0, 96], sizes = [16, 32], strides = [1, 1]} : vector<16x128xf32> to vector<16x32xf32>
    %112 = arith.truncf %111 : vector<16x32xf32> to vector<16x32xbf16>
    %113 = vector.extract_strided_slice %22 {offsets = [0, 96], sizes = [16, 32], strides = [1, 1]} : vector<16x128xf32> to vector<16x32xf32>
    %114 = arith.truncf %113 : vector<16x32xf32> to vector<16x32xbf16>
    %115 = vector.extract_strided_slice %29 {offsets = [0, 96], sizes = [16, 32], strides = [1, 1]} : vector<16x128xf32> to vector<16x32xf32>
    %116 = arith.truncf %115 : vector<16x32xf32> to vector<16x32xbf16>
    %cst_48 = arith.constant dense<0.000000e+00> : vector<16x16xf32>
    %117 = tpu.matmul %112, %114, %cst_48 {dimension_numbers = #tpu.dot_dimension_numbers<[1], [1], [0], [0], [0, 0, 1, 0], [], []>} : vector<16x32xbf16>, vector<16x32xbf16>, vector<16x16xf32> -> vector<16x16xf32>
    %cst_49 = arith.constant 0.176776692 : f32
    %118 = vector.broadcast %cst_49 : f32 to vector<16x16xf32>
    %119 = arith.mulf %117, %118 : vector<16x16xf32>
    %cst_50 = arith.constant dense<0xFF800000> : vector<16xf32>
    %120 = vector.multi_reduction <maximumf>, %119, %cst_50 [1] : vector<16x16xf32> to vector<16xf32>
    %121 = vector.shape_cast %120 : vector<16xf32> to vector<16x1xf32>
    %122 = vector.broadcast %121 : vector<16x1xf32> to vector<16x16xf32>
    %123 = arith.subf %119, %122 : vector<16x16xf32>
    %124 = math.exp %123 : vector<16x16xf32>
    %cst_51 = arith.constant dense<0.000000e+00> : vector<16xf32>
    %125 = vector.multi_reduction <add>, %124, %cst_51 [1] : vector<16x16xf32> to vector<16xf32>
    %126 = vector.shape_cast %125 : vector<16xf32> to vector<16x1xf32>
    %127 = tpu.reciprocal %126 {approx = true} : vector<16x1xf32> -> vector<16x1xf32>
    %128 = vector.broadcast %127 : vector<16x1xf32> to vector<16x16xf32>
    %129 = arith.mulf %124, %128 : vector<16x16xf32>
    %130 = arith.truncf %129 : vector<16x16xf32> to vector<16x16xbf16>
    %cst_52 = arith.constant dense<0.000000e+00> : vector<16x32xf32>
    %131 = tpu.matmul %130, %116, %cst_52 {dimension_numbers = #tpu.dot_dimension_numbers<[1], [0], [0], [1], [0, 0, 1, 1], [], []>} : vector<16x16xbf16>, vector<16x32xbf16>, vector<16x32xf32> -> vector<16x32xf32>
    %132 = vector.extract_strided_slice %31 {offsets = [96, 0], sizes = [32, 128], strides = [1, 1]} : vector<128x128xbf16> to vector<32x128xbf16>
    %133 = arith.truncf %131 : vector<16x32xf32> to vector<16x32xbf16>
    %cst_53 = arith.constant dense<0.000000e+00> : vector<16x128xf32>
    %134 = tpu.matmul %133, %132, %cst_53 {dimension_numbers = #tpu.dot_dimension_numbers<[1], [0], [0], [1], [0, 0, 1, 1], [], []>} : vector<16x32xbf16>, vector<32x128xbf16>, vector<16x128xf32> -> vector<16x128xf32>
    %135 = arith.addf %110, %134 : vector<16x128xf32>
    %136 = arith.addf %1, %135 : vector<16x128xf32>
    %c0_54 = arith.constant 0 : index
    %c0_55 = arith.constant 0 : index
    %137 = vector.load %arg33[%c0_54, %c0_55] : memref<1x128xf32, #tpu.memory_space<vmem>>, vector<1x128xf32>
    %c0_56 = arith.constant 0 : index
    %c0_57 = arith.constant 0 : index
    %138 = vector.load %arg34[%c0_56, %c0_57] : memref<1x128xf32, #tpu.memory_space<vmem>>, vector<1x128xf32>
    %cst_58 = arith.constant dense<0.000000e+00> : vector<16xf32>
    %139 = vector.multi_reduction <add>, %136, %cst_58 [1] : vector<16x128xf32> to vector<16xf32>
    %140 = vector.shape_cast %139 : vector<16xf32> to vector<16x1xf32>
    %cst_59 = arith.constant 1.280000e+02 : f32
    %141 = vector.broadcast %cst_59 : f32 to vector<16x1xf32>
    %142 = arith.divf %140, %141 : vector<16x1xf32>
    %143 = vector.broadcast %142 : vector<16x1xf32> to vector<16x128xf32>
    %144 = arith.subf %136, %143 : vector<16x128xf32>
    %145 = arith.mulf %144, %144 : vector<16x128xf32>
    %cst_60 = arith.constant dense<0.000000e+00> : vector<16xf32>
    %146 = vector.multi_reduction <add>, %145, %cst_60 [1] : vector<16x128xf32> to vector<16xf32>
    %147 = vector.shape_cast %146 : vector<16xf32> to vector<16x1xf32>
    %cst_61 = arith.constant 1.280000e+02 : f32
    %148 = vector.broadcast %cst_61 : f32 to vector<16x1xf32>
    %149 = arith.divf %147, %148 : vector<16x1xf32>
    %cst_62 = arith.constant 9.99999974E-6 : f32
    %150 = vector.broadcast %cst_62 : f32 to vector<16x1xf32>
    %151 = arith.addf %149, %150 : vector<16x1xf32>
    %152 = math.rsqrt %151 : vector<16x1xf32>
    %153 = vector.broadcast %152 : vector<16x1xf32> to vector<16x128xf32>
    %154 = arith.mulf %144, %153 : vector<16x128xf32>
    %155 = vector.broadcast %137 : vector<1x128xf32> to vector<16x128xf32>
    %156 = arith.mulf %154, %155 : vector<16x128xf32>
    %157 = vector.broadcast %138 : vector<1x128xf32> to vector<16x128xf32>
    %158 = arith.addf %156, %157 : vector<16x128xf32>
    %159 = arith.addf %3, %7 : vector<64x128xf32>
    %160 = arith.addf %158, %5 : vector<16x128xf32>
    %c0_63 = arith.constant 0 : index
    %c0_64 = arith.constant 0 : index
    %161 = vector.load %arg13[%c0_63, %c0_64] : memref<128x64xf32, #tpu.memory_space<vmem>>, vector<128x64xf32>
    %162 = arith.truncf %160 : vector<16x128xf32> to vector<16x128xbf16>
    %163 = arith.truncf %161 : vector<128x64xf32> to vector<128x64xbf16>
    %cst_65 = arith.constant dense<0.000000e+00> : vector<16x64xf32>
    %164 = tpu.matmul %162, %163, %cst_65 {dimension_numbers = #tpu.dot_dimension_numbers<[1], [0], [0], [1], [0, 0, 1, 1], [], []>} : vector<16x128xbf16>, vector<128x64xbf16>, vector<16x64xf32> -> vector<16x64xf32>
    %c0_66 = arith.constant 0 : index
    %c0_67 = arith.constant 0 : index
    %165 = vector.load %arg14[%c0_66, %c0_67] : memref<1x64xf32, #tpu.memory_space<vmem>>, vector<1x64xf32>
    %166 = vector.broadcast %165 : vector<1x64xf32> to vector<16x64xf32>
    %167 = arith.addf %164, %166 : vector<16x64xf32>
    %c0_68 = arith.constant 0 : index
    %c0_69 = arith.constant 0 : index
    %168 = vector.load %arg15[%c0_68, %c0_69] : memref<128x64xf32, #tpu.memory_space<vmem>>, vector<128x64xf32>
    %169 = arith.truncf %159 : vector<64x128xf32> to vector<64x128xbf16>
    %170 = arith.truncf %168 : vector<128x64xf32> to vector<128x64xbf16>
    %cst_70 = arith.constant dense<0.000000e+00> : vector<64x64xf32>
    %171 = tpu.matmul %169, %170, %cst_70 {dimension_numbers = #tpu.dot_dimension_numbers<[1], [0], [0], [1], [0, 0, 1, 1], [], []>} : vector<64x128xbf16>, vector<128x64xbf16>, vector<64x64xf32> -> vector<64x64xf32>
    %c0_71 = arith.constant 0 : index
    %c0_72 = arith.constant 0 : index
    %172 = vector.load %arg16[%c0_71, %c0_72] : memref<1x64xf32, #tpu.memory_space<vmem>>, vector<1x64xf32>
    %173 = vector.broadcast %172 : vector<1x64xf32> to vector<64x64xf32>
    %174 = arith.addf %171, %173 : vector<64x64xf32>
    %c0_73 = arith.constant 0 : index
    %c0_74 = arith.constant 0 : index
    %175 = vector.load %arg17[%c0_73, %c0_74] : memref<128x64xf32, #tpu.memory_space<vmem>>, vector<128x64xf32>
    %176 = arith.truncf %3 : vector<64x128xf32> to vector<64x128xbf16>
    %177 = arith.truncf %175 : vector<128x64xf32> to vector<128x64xbf16>
    %cst_75 = arith.constant dense<0.000000e+00> : vector<64x64xf32>
    %178 = tpu.matmul %176, %177, %cst_75 {dimension_numbers = #tpu.dot_dimension_numbers<[1], [0], [0], [1], [0, 0, 1, 1], [], []>} : vector<64x128xbf16>, vector<128x64xbf16>, vector<64x64xf32> -> vector<64x64xf32>
    %c0_76 = arith.constant 0 : index
    %c0_77 = arith.constant 0 : index
    %179 = vector.load %arg18[%c0_76, %c0_77] : memref<1x64xf32, #tpu.memory_space<vmem>>, vector<1x64xf32>
    %180 = vector.broadcast %179 : vector<1x64xf32> to vector<64x64xf32>
    %181 = arith.addf %178, %180 : vector<64x64xf32>
    %c0_78 = arith.constant 0 : index
    %c0_79 = arith.constant 0 : index
    %182 = vector.load %arg19[%c0_78, %c0_79] : memref<64x128xf32, #tpu.memory_space<vmem>>, vector<64x128xf32>
    %183 = arith.truncf %182 : vector<64x128xf32> to vector<64x128xbf16>
    %cst_80 = arith.constant 0.000000e+00 : f32
    %184 = vector.broadcast %cst_80 : f32 to vector<16x128xf32>
    %c0_81 = arith.constant 0 : index
    %c0_82 = arith.constant 0 : index
    %185 = vector.load %arg20[%c0_81, %c0_82] : memref<1x128xf32, #tpu.memory_space<vmem>>, vector<1x128xf32>
    %186 = vector.broadcast %185 : vector<1x128xf32> to vector<16x128xf32>
    %187 = arith.addf %184, %186 : vector<16x128xf32>
    %188 = vector.extract_strided_slice %167 {offsets = [0, 0], sizes = [16, 16], strides = [1, 1]} : vector<16x64xf32> to vector<16x16xf32>
    %189 = arith.truncf %188 : vector<16x16xf32> to vector<16x16xbf16>
    %190 = vector.extract_strided_slice %174 {offsets = [0, 0], sizes = [64, 16], strides = [1, 1]} : vector<64x64xf32> to vector<64x16xf32>
    %191 = arith.truncf %190 : vector<64x16xf32> to vector<64x16xbf16>
    %192 = vector.extract_strided_slice %181 {offsets = [0, 0], sizes = [64, 16], strides = [1, 1]} : vector<64x64xf32> to vector<64x16xf32>
    %193 = arith.truncf %192 : vector<64x16xf32> to vector<64x16xbf16>
    %cst_83 = arith.constant dense<0.000000e+00> : vector<16x64xf32>
    %194 = tpu.matmul %189, %191, %cst_83 {dimension_numbers = #tpu.dot_dimension_numbers<[1], [1], [0], [0], [0, 0, 1, 0], [], []>} : vector<16x16xbf16>, vector<64x16xbf16>, vector<16x64xf32> -> vector<16x64xf32>
    %cst_84 = arith.constant 2.500000e-01 : f32
    %195 = vector.broadcast %cst_84 : f32 to vector<16x64xf32>
    %196 = arith.mulf %194, %195 : vector<16x64xf32>
    %cst_85 = arith.constant dense<0xFF800000> : vector<16xf32>
    %197 = vector.multi_reduction <maximumf>, %196, %cst_85 [1] : vector<16x64xf32> to vector<16xf32>
    %198 = vector.shape_cast %197 : vector<16xf32> to vector<16x1xf32>
    %199 = vector.broadcast %198 : vector<16x1xf32> to vector<16x64xf32>
    %200 = arith.subf %196, %199 : vector<16x64xf32>
    %201 = math.exp %200 : vector<16x64xf32>
    %cst_86 = arith.constant dense<0.000000e+00> : vector<16xf32>
    %202 = vector.multi_reduction <add>, %201, %cst_86 [1] : vector<16x64xf32> to vector<16xf32>
    %203 = vector.shape_cast %202 : vector<16xf32> to vector<16x1xf32>
    %204 = tpu.reciprocal %203 {approx = true} : vector<16x1xf32> -> vector<16x1xf32>
    %205 = vector.broadcast %204 : vector<16x1xf32> to vector<16x64xf32>
    %206 = arith.mulf %201, %205 : vector<16x64xf32>
    %207 = arith.truncf %206 : vector<16x64xf32> to vector<16x64xbf16>
    %cst_87 = arith.constant dense<0.000000e+00> : vector<16x16xf32>
    %208 = tpu.matmul %207, %193, %cst_87 {dimension_numbers = #tpu.dot_dimension_numbers<[1], [0], [0], [1], [0, 0, 1, 1], [], []>} : vector<16x64xbf16>, vector<64x16xbf16>, vector<16x16xf32> -> vector<16x16xf32>
    %209 = vector.extract_strided_slice %183 {offsets = [0, 0], sizes = [16, 128], strides = [1, 1]} : vector<64x128xbf16> to vector<16x128xbf16>
    %210 = arith.truncf %208 : vector<16x16xf32> to vector<16x16xbf16>
    %cst_88 = arith.constant dense<0.000000e+00> : vector<16x128xf32>
    %211 = tpu.matmul %210, %209, %cst_88 {dimension_numbers = #tpu.dot_dimension_numbers<[1], [0], [0], [1], [0, 0, 1, 1], [], []>} : vector<16x16xbf16>, vector<16x128xbf16>, vector<16x128xf32> -> vector<16x128xf32>
    %212 = arith.addf %187, %211 : vector<16x128xf32>
    %213 = vector.extract_strided_slice %167 {offsets = [0, 16], sizes = [16, 16], strides = [1, 1]} : vector<16x64xf32> to vector<16x16xf32>
    %214 = arith.truncf %213 : vector<16x16xf32> to vector<16x16xbf16>
    %215 = vector.extract_strided_slice %174 {offsets = [0, 16], sizes = [64, 16], strides = [1, 1]} : vector<64x64xf32> to vector<64x16xf32>
    %216 = arith.truncf %215 : vector<64x16xf32> to vector<64x16xbf16>
    %217 = vector.extract_strided_slice %181 {offsets = [0, 16], sizes = [64, 16], strides = [1, 1]} : vector<64x64xf32> to vector<64x16xf32>
    %218 = arith.truncf %217 : vector<64x16xf32> to vector<64x16xbf16>
    %cst_89 = arith.constant dense<0.000000e+00> : vector<16x64xf32>
    %219 = tpu.matmul %214, %216, %cst_89 {dimension_numbers = #tpu.dot_dimension_numbers<[1], [1], [0], [0], [0, 0, 1, 0], [], []>} : vector<16x16xbf16>, vector<64x16xbf16>, vector<16x64xf32> -> vector<16x64xf32>
    %cst_90 = arith.constant 2.500000e-01 : f32
    %220 = vector.broadcast %cst_90 : f32 to vector<16x64xf32>
    %221 = arith.mulf %219, %220 : vector<16x64xf32>
    %cst_91 = arith.constant dense<0xFF800000> : vector<16xf32>
    %222 = vector.multi_reduction <maximumf>, %221, %cst_91 [1] : vector<16x64xf32> to vector<16xf32>
    %223 = vector.shape_cast %222 : vector<16xf32> to vector<16x1xf32>
    %224 = vector.broadcast %223 : vector<16x1xf32> to vector<16x64xf32>
    %225 = arith.subf %221, %224 : vector<16x64xf32>
    %226 = math.exp %225 : vector<16x64xf32>
    %cst_92 = arith.constant dense<0.000000e+00> : vector<16xf32>
    %227 = vector.multi_reduction <add>, %226, %cst_92 [1] : vector<16x64xf32> to vector<16xf32>
    %228 = vector.shape_cast %227 : vector<16xf32> to vector<16x1xf32>
    %229 = tpu.reciprocal %228 {approx = true} : vector<16x1xf32> -> vector<16x1xf32>
    %230 = vector.broadcast %229 : vector<16x1xf32> to vector<16x64xf32>
    %231 = arith.mulf %226, %230 : vector<16x64xf32>
    %232 = arith.truncf %231 : vector<16x64xf32> to vector<16x64xbf16>
    %cst_93 = arith.constant dense<0.000000e+00> : vector<16x16xf32>
    %233 = tpu.matmul %232, %218, %cst_93 {dimension_numbers = #tpu.dot_dimension_numbers<[1], [0], [0], [1], [0, 0, 1, 1], [], []>} : vector<16x64xbf16>, vector<64x16xbf16>, vector<16x16xf32> -> vector<16x16xf32>
    %234 = vector.extract_strided_slice %183 {offsets = [16, 0], sizes = [16, 128], strides = [1, 1]} : vector<64x128xbf16> to vector<16x128xbf16>
    %235 = arith.truncf %233 : vector<16x16xf32> to vector<16x16xbf16>
    %cst_94 = arith.constant dense<0.000000e+00> : vector<16x128xf32>
    %236 = tpu.matmul %235, %234, %cst_94 {dimension_numbers = #tpu.dot_dimension_numbers<[1], [0], [0], [1], [0, 0, 1, 1], [], []>} : vector<16x16xbf16>, vector<16x128xbf16>, vector<16x128xf32> -> vector<16x128xf32>
    %237 = arith.addf %212, %236 : vector<16x128xf32>
    %238 = vector.extract_strided_slice %167 {offsets = [0, 32], sizes = [16, 16], strides = [1, 1]} : vector<16x64xf32> to vector<16x16xf32>
    %239 = arith.truncf %238 : vector<16x16xf32> to vector<16x16xbf16>
    %240 = vector.extract_strided_slice %174 {offsets = [0, 32], sizes = [64, 16], strides = [1, 1]} : vector<64x64xf32> to vector<64x16xf32>
    %241 = arith.truncf %240 : vector<64x16xf32> to vector<64x16xbf16>
    %242 = vector.extract_strided_slice %181 {offsets = [0, 32], sizes = [64, 16], strides = [1, 1]} : vector<64x64xf32> to vector<64x16xf32>
    %243 = arith.truncf %242 : vector<64x16xf32> to vector<64x16xbf16>
    %cst_95 = arith.constant dense<0.000000e+00> : vector<16x64xf32>
    %244 = tpu.matmul %239, %241, %cst_95 {dimension_numbers = #tpu.dot_dimension_numbers<[1], [1], [0], [0], [0, 0, 1, 0], [], []>} : vector<16x16xbf16>, vector<64x16xbf16>, vector<16x64xf32> -> vector<16x64xf32>
    %cst_96 = arith.constant 2.500000e-01 : f32
    %245 = vector.broadcast %cst_96 : f32 to vector<16x64xf32>
    %246 = arith.mulf %244, %245 : vector<16x64xf32>
    %cst_97 = arith.constant dense<0xFF800000> : vector<16xf32>
    %247 = vector.multi_reduction <maximumf>, %246, %cst_97 [1] : vector<16x64xf32> to vector<16xf32>
    %248 = vector.shape_cast %247 : vector<16xf32> to vector<16x1xf32>
    %249 = vector.broadcast %248 : vector<16x1xf32> to vector<16x64xf32>
    %250 = arith.subf %246, %249 : vector<16x64xf32>
    %251 = math.exp %250 : vector<16x64xf32>
    %cst_98 = arith.constant dense<0.000000e+00> : vector<16xf32>
    %252 = vector.multi_reduction <add>, %251, %cst_98 [1] : vector<16x64xf32> to vector<16xf32>
    %253 = vector.shape_cast %252 : vector<16xf32> to vector<16x1xf32>
    %254 = tpu.reciprocal %253 {approx = true} : vector<16x1xf32> -> vector<16x1xf32>
    %255 = vector.broadcast %254 : vector<16x1xf32> to vector<16x64xf32>
    %256 = arith.mulf %251, %255 : vector<16x64xf32>
    %257 = arith.truncf %256 : vector<16x64xf32> to vector<16x64xbf16>
    %cst_99 = arith.constant dense<0.000000e+00> : vector<16x16xf32>
    %258 = tpu.matmul %257, %243, %cst_99 {dimension_numbers = #tpu.dot_dimension_numbers<[1], [0], [0], [1], [0, 0, 1, 1], [], []>} : vector<16x64xbf16>, vector<64x16xbf16>, vector<16x16xf32> -> vector<16x16xf32>
    %259 = vector.extract_strided_slice %183 {offsets = [32, 0], sizes = [16, 128], strides = [1, 1]} : vector<64x128xbf16> to vector<16x128xbf16>
    %260 = arith.truncf %258 : vector<16x16xf32> to vector<16x16xbf16>
    %cst_100 = arith.constant dense<0.000000e+00> : vector<16x128xf32>
    %261 = tpu.matmul %260, %259, %cst_100 {dimension_numbers = #tpu.dot_dimension_numbers<[1], [0], [0], [1], [0, 0, 1, 1], [], []>} : vector<16x16xbf16>, vector<16x128xbf16>, vector<16x128xf32> -> vector<16x128xf32>
    %262 = arith.addf %237, %261 : vector<16x128xf32>
    %263 = vector.extract_strided_slice %167 {offsets = [0, 48], sizes = [16, 16], strides = [1, 1]} : vector<16x64xf32> to vector<16x16xf32>
    %264 = arith.truncf %263 : vector<16x16xf32> to vector<16x16xbf16>
    %265 = vector.extract_strided_slice %174 {offsets = [0, 48], sizes = [64, 16], strides = [1, 1]} : vector<64x64xf32> to vector<64x16xf32>
    %266 = arith.truncf %265 : vector<64x16xf32> to vector<64x16xbf16>
    %267 = vector.extract_strided_slice %181 {offsets = [0, 48], sizes = [64, 16], strides = [1, 1]} : vector<64x64xf32> to vector<64x16xf32>
    %268 = arith.truncf %267 : vector<64x16xf32> to vector<64x16xbf16>
    %cst_101 = arith.constant dense<0.000000e+00> : vector<16x64xf32>
    %269 = tpu.matmul %264, %266, %cst_101 {dimension_numbers = #tpu.dot_dimension_numbers<[1], [1], [0], [0], [0, 0, 1, 0], [], []>} : vector<16x16xbf16>, vector<64x16xbf16>, vector<16x64xf32> -> vector<16x64xf32>
    %cst_102 = arith.constant 2.500000e-01 : f32
    %270 = vector.broadcast %cst_102 : f32 to vector<16x64xf32>
    %271 = arith.mulf %269, %270 : vector<16x64xf32>
    %cst_103 = arith.constant dense<0xFF800000> : vector<16xf32>
    %272 = vector.multi_reduction <maximumf>, %271, %cst_103 [1] : vector<16x64xf32> to vector<16xf32>
    %273 = vector.shape_cast %272 : vector<16xf32> to vector<16x1xf32>
    %274 = vector.broadcast %273 : vector<16x1xf32> to vector<16x64xf32>
    %275 = arith.subf %271, %274 : vector<16x64xf32>
    %276 = math.exp %275 : vector<16x64xf32>
    %cst_104 = arith.constant dense<0.000000e+00> : vector<16xf32>
    %277 = vector.multi_reduction <add>, %276, %cst_104 [1] : vector<16x64xf32> to vector<16xf32>
    %278 = vector.shape_cast %277 : vector<16xf32> to vector<16x1xf32>
    %279 = tpu.reciprocal %278 {approx = true} : vector<16x1xf32> -> vector<16x1xf32>
    %280 = vector.broadcast %279 : vector<16x1xf32> to vector<16x64xf32>
    %281 = arith.mulf %276, %280 : vector<16x64xf32>
    %282 = arith.truncf %281 : vector<16x64xf32> to vector<16x64xbf16>
    %cst_105 = arith.constant dense<0.000000e+00> : vector<16x16xf32>
    %283 = tpu.matmul %282, %268, %cst_105 {dimension_numbers = #tpu.dot_dimension_numbers<[1], [0], [0], [1], [0, 0, 1, 1], [], []>} : vector<16x64xbf16>, vector<64x16xbf16>, vector<16x16xf32> -> vector<16x16xf32>
    %284 = vector.extract_strided_slice %183 {offsets = [48, 0], sizes = [16, 128], strides = [1, 1]} : vector<64x128xbf16> to vector<16x128xbf16>
    %285 = arith.truncf %283 : vector<16x16xf32> to vector<16x16xbf16>
    %cst_106 = arith.constant dense<0.000000e+00> : vector<16x128xf32>
    %286 = tpu.matmul %285, %284, %cst_106 {dimension_numbers = #tpu.dot_dimension_numbers<[1], [0], [0], [1], [0, 0, 1, 1], [], []>} : vector<16x16xbf16>, vector<16x128xbf16>, vector<16x128xf32> -> vector<16x128xf32>
    %287 = arith.addf %262, %286 : vector<16x128xf32>
    %288 = arith.addf %158, %287 : vector<16x128xf32>
    %c0_107 = arith.constant 0 : index
    %c0_108 = arith.constant 0 : index
    %289 = vector.load %arg35[%c0_107, %c0_108] : memref<1x128xf32, #tpu.memory_space<vmem>>, vector<1x128xf32>
    %c0_109 = arith.constant 0 : index
    %c0_110 = arith.constant 0 : index
    %290 = vector.load %arg36[%c0_109, %c0_110] : memref<1x128xf32, #tpu.memory_space<vmem>>, vector<1x128xf32>
    %cst_111 = arith.constant dense<0.000000e+00> : vector<16xf32>
    %291 = vector.multi_reduction <add>, %288, %cst_111 [1] : vector<16x128xf32> to vector<16xf32>
    %292 = vector.shape_cast %291 : vector<16xf32> to vector<16x1xf32>
    %cst_112 = arith.constant 1.280000e+02 : f32
    %293 = vector.broadcast %cst_112 : f32 to vector<16x1xf32>
    %294 = arith.divf %292, %293 : vector<16x1xf32>
    %295 = vector.broadcast %294 : vector<16x1xf32> to vector<16x128xf32>
    %296 = arith.subf %288, %295 : vector<16x128xf32>
    %297 = arith.mulf %296, %296 : vector<16x128xf32>
    %cst_113 = arith.constant dense<0.000000e+00> : vector<16xf32>
    %298 = vector.multi_reduction <add>, %297, %cst_113 [1] : vector<16x128xf32> to vector<16xf32>
    %299 = vector.shape_cast %298 : vector<16xf32> to vector<16x1xf32>
    %cst_114 = arith.constant 1.280000e+02 : f32
    %300 = vector.broadcast %cst_114 : f32 to vector<16x1xf32>
    %301 = arith.divf %299, %300 : vector<16x1xf32>
    %cst_115 = arith.constant 9.99999974E-6 : f32
    %302 = vector.broadcast %cst_115 : f32 to vector<16x1xf32>
    %303 = arith.addf %301, %302 : vector<16x1xf32>
    %304 = math.rsqrt %303 : vector<16x1xf32>
    %305 = vector.broadcast %304 : vector<16x1xf32> to vector<16x128xf32>
    %306 = arith.mulf %296, %305 : vector<16x128xf32>
    %307 = vector.broadcast %289 : vector<1x128xf32> to vector<16x128xf32>
    %308 = arith.mulf %306, %307 : vector<16x128xf32>
    %309 = vector.broadcast %290 : vector<1x128xf32> to vector<16x128xf32>
    %310 = arith.addf %308, %309 : vector<16x128xf32>
    %c0_116 = arith.constant 0 : index
    %c0_117 = arith.constant 0 : index
    %311 = vector.load %arg29[%c0_116, %c0_117] : memref<128x256xf32, #tpu.memory_space<vmem>>, vector<128x256xf32>
    %312 = arith.truncf %310 : vector<16x128xf32> to vector<16x128xbf16>
    %313 = arith.truncf %311 : vector<128x256xf32> to vector<128x256xbf16>
    %cst_118 = arith.constant dense<0.000000e+00> : vector<16x256xf32>
    %314 = tpu.matmul %312, %313, %cst_118 {dimension_numbers = #tpu.dot_dimension_numbers<[1], [0], [0], [1], [0, 0, 1, 1], [], []>} : vector<16x128xbf16>, vector<128x256xbf16>, vector<16x256xf32> -> vector<16x256xf32>
    %c0_119 = arith.constant 0 : index
    %c0_120 = arith.constant 0 : index
    %315 = vector.load %arg30[%c0_119, %c0_120] : memref<1x256xf32, #tpu.memory_space<vmem>>, vector<1x256xf32>
    %316 = vector.broadcast %315 : vector<1x256xf32> to vector<16x256xf32>
    %317 = arith.addf %314, %316 : vector<16x256xf32>
    %cst_121 = arith.constant 0.000000e+00 : f32
    %318 = vector.broadcast %cst_121 : f32 to vector<16x256xf32>
    %319 = arith.maximumf %317, %318 : vector<16x256xf32>
    %c0_122 = arith.constant 0 : index
    %c0_123 = arith.constant 0 : index
    %320 = vector.load %arg31[%c0_122, %c0_123] : memref<256x128xf32, #tpu.memory_space<vmem>>, vector<256x128xf32>
    %321 = arith.truncf %319 : vector<16x256xf32> to vector<16x256xbf16>
    %322 = arith.truncf %320 : vector<256x128xf32> to vector<256x128xbf16>
    %cst_124 = arith.constant dense<0.000000e+00> : vector<16x128xf32>
    %323 = tpu.matmul %321, %322, %cst_124 {dimension_numbers = #tpu.dot_dimension_numbers<[1], [0], [0], [1], [0, 0, 1, 1], [], []>} : vector<16x256xbf16>, vector<256x128xbf16>, vector<16x128xf32> -> vector<16x128xf32>
    %324 = arith.addf %310, %323 : vector<16x128xf32>
    %c0_125 = arith.constant 0 : index
    %c0_126 = arith.constant 0 : index
    %325 = vector.load %arg32[%c0_125, %c0_126] : memref<1x128xf32, #tpu.memory_space<vmem>>, vector<1x128xf32>
    %326 = vector.broadcast %325 : vector<1x128xf32> to vector<16x128xf32>
    %327 = arith.addf %324, %326 : vector<16x128xf32>
    %c0_127 = arith.constant 0 : index
    %c0_128 = arith.constant 0 : index
    %328 = vector.load %arg37[%c0_127, %c0_128] : memref<1x128xf32, #tpu.memory_space<vmem>>, vector<1x128xf32>
    %c0_129 = arith.constant 0 : index
    %c0_130 = arith.constant 0 : index
    %329 = vector.load %arg38[%c0_129, %c0_130] : memref<1x128xf32, #tpu.memory_space<vmem>>, vector<1x128xf32>
    %cst_131 = arith.constant dense<0.000000e+00> : vector<16xf32>
    %330 = vector.multi_reduction <add>, %327, %cst_131 [1] : vector<16x128xf32> to vector<16xf32>
    %331 = vector.shape_cast %330 : vector<16xf32> to vector<16x1xf32>
    %cst_132 = arith.constant 1.280000e+02 : f32
    %332 = vector.broadcast %cst_132 : f32 to vector<16x1xf32>
    %333 = arith.divf %331, %332 : vector<16x1xf32>
    %334 = vector.broadcast %333 : vector<16x1xf32> to vector<16x128xf32>
    %335 = arith.subf %327, %334 : vector<16x128xf32>
    %336 = arith.mulf %335, %335 : vector<16x128xf32>
    %cst_133 = arith.constant dense<0.000000e+00> : vector<16xf32>
    %337 = vector.multi_reduction <add>, %336, %cst_133 [1] : vector<16x128xf32> to vector<16xf32>
    %338 = vector.shape_cast %337 : vector<16xf32> to vector<16x1xf32>
    %cst_134 = arith.constant 1.280000e+02 : f32
    %339 = vector.broadcast %cst_134 : f32 to vector<16x1xf32>
    %340 = arith.divf %338, %339 : vector<16x1xf32>
    %cst_135 = arith.constant 9.99999974E-6 : f32
    %341 = vector.broadcast %cst_135 : f32 to vector<16x1xf32>
    %342 = arith.addf %340, %341 : vector<16x1xf32>
    %343 = math.rsqrt %342 : vector<16x1xf32>
    %344 = vector.broadcast %343 : vector<16x1xf32> to vector<16x128xf32>
    %345 = arith.mulf %335, %344 : vector<16x128xf32>
    %346 = vector.broadcast %328 : vector<1x128xf32> to vector<16x128xf32>
    %347 = arith.mulf %345, %346 : vector<16x128xf32>
    %348 = vector.broadcast %329 : vector<1x128xf32> to vector<16x128xf32>
    %349 = arith.addf %347, %348 : vector<16x128xf32>
    %350 = arith.addf %349, %5 : vector<16x128xf32>
    %c0_136 = arith.constant 0 : index
    %c0_137 = arith.constant 0 : index
    %351 = vector.load %arg21[%c0_136, %c0_137] : memref<128x64xf32, #tpu.memory_space<vmem>>, vector<128x64xf32>
    %352 = arith.truncf %159 : vector<64x128xf32> to vector<64x128xbf16>
    %353 = arith.truncf %351 : vector<128x64xf32> to vector<128x64xbf16>
    %cst_138 = arith.constant dense<0.000000e+00> : vector<64x64xf32>
    %354 = tpu.matmul %352, %353, %cst_138 {dimension_numbers = #tpu.dot_dimension_numbers<[1], [0], [0], [1], [0, 0, 1, 1], [], []>} : vector<64x128xbf16>, vector<128x64xbf16>, vector<64x64xf32> -> vector<64x64xf32>
    %c0_139 = arith.constant 0 : index
    %c0_140 = arith.constant 0 : index
    %355 = vector.load %arg22[%c0_139, %c0_140] : memref<1x64xf32, #tpu.memory_space<vmem>>, vector<1x64xf32>
    %356 = vector.broadcast %355 : vector<1x64xf32> to vector<64x64xf32>
    %357 = arith.addf %354, %356 : vector<64x64xf32>
    %c0_141 = arith.constant 0 : index
    %c0_142 = arith.constant 0 : index
    %358 = vector.load %arg23[%c0_141, %c0_142] : memref<128x64xf32, #tpu.memory_space<vmem>>, vector<128x64xf32>
    %359 = arith.truncf %350 : vector<16x128xf32> to vector<16x128xbf16>
    %360 = arith.truncf %358 : vector<128x64xf32> to vector<128x64xbf16>
    %cst_143 = arith.constant dense<0.000000e+00> : vector<16x64xf32>
    %361 = tpu.matmul %359, %360, %cst_143 {dimension_numbers = #tpu.dot_dimension_numbers<[1], [0], [0], [1], [0, 0, 1, 1], [], []>} : vector<16x128xbf16>, vector<128x64xbf16>, vector<16x64xf32> -> vector<16x64xf32>
    %c0_144 = arith.constant 0 : index
    %c0_145 = arith.constant 0 : index
    %362 = vector.load %arg24[%c0_144, %c0_145] : memref<1x64xf32, #tpu.memory_space<vmem>>, vector<1x64xf32>
    %363 = vector.broadcast %362 : vector<1x64xf32> to vector<16x64xf32>
    %364 = arith.addf %361, %363 : vector<16x64xf32>
    %c0_146 = arith.constant 0 : index
    %c0_147 = arith.constant 0 : index
    %365 = vector.load %arg25[%c0_146, %c0_147] : memref<128x64xf32, #tpu.memory_space<vmem>>, vector<128x64xf32>
    %366 = arith.truncf %349 : vector<16x128xf32> to vector<16x128xbf16>
    %367 = arith.truncf %365 : vector<128x64xf32> to vector<128x64xbf16>
    %cst_148 = arith.constant dense<0.000000e+00> : vector<16x64xf32>
    %368 = tpu.matmul %366, %367, %cst_148 {dimension_numbers = #tpu.dot_dimension_numbers<[1], [0], [0], [1], [0, 0, 1, 1], [], []>} : vector<16x128xbf16>, vector<128x64xbf16>, vector<16x64xf32> -> vector<16x64xf32>
    %c0_149 = arith.constant 0 : index
    %c0_150 = arith.constant 0 : index
    %369 = vector.load %arg26[%c0_149, %c0_150] : memref<1x64xf32, #tpu.memory_space<vmem>>, vector<1x64xf32>
    %370 = vector.broadcast %369 : vector<1x64xf32> to vector<16x64xf32>
    %371 = arith.addf %368, %370 : vector<16x64xf32>
    %c0_151 = arith.constant 0 : index
    %c0_152 = arith.constant 0 : index
    %372 = vector.load %arg27[%c0_151, %c0_152] : memref<64x128xf32, #tpu.memory_space<vmem>>, vector<64x128xf32>
    %373 = arith.truncf %372 : vector<64x128xf32> to vector<64x128xbf16>
    %cst_153 = arith.constant 0.000000e+00 : f32
    %374 = vector.broadcast %cst_153 : f32 to vector<64x128xf32>
    %c0_154 = arith.constant 0 : index
    %c0_155 = arith.constant 0 : index
    %375 = vector.load %arg28[%c0_154, %c0_155] : memref<1x128xf32, #tpu.memory_space<vmem>>, vector<1x128xf32>
    %376 = vector.broadcast %375 : vector<1x128xf32> to vector<64x128xf32>
    %377 = arith.addf %374, %376 : vector<64x128xf32>
    %378 = vector.extract_strided_slice %357 {offsets = [0, 0], sizes = [64, 16], strides = [1, 1]} : vector<64x64xf32> to vector<64x16xf32>
    %379 = arith.truncf %378 : vector<64x16xf32> to vector<64x16xbf16>
    %380 = vector.extract_strided_slice %364 {offsets = [0, 0], sizes = [16, 16], strides = [1, 1]} : vector<16x64xf32> to vector<16x16xf32>
    %381 = arith.truncf %380 : vector<16x16xf32> to vector<16x16xbf16>
    %382 = vector.extract_strided_slice %371 {offsets = [0, 0], sizes = [16, 16], strides = [1, 1]} : vector<16x64xf32> to vector<16x16xf32>
    %383 = arith.truncf %382 : vector<16x16xf32> to vector<16x16xbf16>
    %cst_156 = arith.constant dense<0.000000e+00> : vector<64x16xf32>
    %384 = tpu.matmul %379, %381, %cst_156 {dimension_numbers = #tpu.dot_dimension_numbers<[1], [1], [0], [0], [0, 0, 1, 0], [], []>} : vector<64x16xbf16>, vector<16x16xbf16>, vector<64x16xf32> -> vector<64x16xf32>
    %cst_157 = arith.constant 2.500000e-01 : f32
    %385 = vector.broadcast %cst_157 : f32 to vector<64x16xf32>
    %386 = arith.mulf %384, %385 : vector<64x16xf32>
    %cst_158 = arith.constant dense<0xFF800000> : vector<64xf32>
    %387 = vector.multi_reduction <maximumf>, %386, %cst_158 [1] : vector<64x16xf32> to vector<64xf32>
    %388 = vector.shape_cast %387 : vector<64xf32> to vector<64x1xf32>
    %389 = vector.broadcast %388 : vector<64x1xf32> to vector<64x16xf32>
    %390 = arith.subf %386, %389 : vector<64x16xf32>
    %391 = math.exp %390 : vector<64x16xf32>
    %cst_159 = arith.constant dense<0.000000e+00> : vector<64xf32>
    %392 = vector.multi_reduction <add>, %391, %cst_159 [1] : vector<64x16xf32> to vector<64xf32>
    %393 = vector.shape_cast %392 : vector<64xf32> to vector<64x1xf32>
    %394 = tpu.reciprocal %393 {approx = true} : vector<64x1xf32> -> vector<64x1xf32>
    %395 = vector.broadcast %394 : vector<64x1xf32> to vector<64x16xf32>
    %396 = arith.mulf %391, %395 : vector<64x16xf32>
    %397 = arith.truncf %396 : vector<64x16xf32> to vector<64x16xbf16>
    %cst_160 = arith.constant dense<0.000000e+00> : vector<64x16xf32>
    %398 = tpu.matmul %397, %383, %cst_160 {dimension_numbers = #tpu.dot_dimension_numbers<[1], [0], [0], [1], [0, 0, 1, 1], [], []>} : vector<64x16xbf16>, vector<16x16xbf16>, vector<64x16xf32> -> vector<64x16xf32>
    %399 = vector.extract_strided_slice %373 {offsets = [0, 0], sizes = [16, 128], strides = [1, 1]} : vector<64x128xbf16> to vector<16x128xbf16>
    %400 = arith.truncf %398 : vector<64x16xf32> to vector<64x16xbf16>
    %cst_161 = arith.constant dense<0.000000e+00> : vector<64x128xf32>
    %401 = tpu.matmul %400, %399, %cst_161 {dimension_numbers = #tpu.dot_dimension_numbers<[1], [0], [0], [1], [0, 0, 1, 1], [], []>} : vector<64x16xbf16>, vector<16x128xbf16>, vector<64x128xf32> -> vector<64x128xf32>
    %402 = arith.addf %377, %401 : vector<64x128xf32>
    %403 = vector.extract_strided_slice %357 {offsets = [0, 16], sizes = [64, 16], strides = [1, 1]} : vector<64x64xf32> to vector<64x16xf32>
    %404 = arith.truncf %403 : vector<64x16xf32> to vector<64x16xbf16>
    %405 = vector.extract_strided_slice %364 {offsets = [0, 16], sizes = [16, 16], strides = [1, 1]} : vector<16x64xf32> to vector<16x16xf32>
    %406 = arith.truncf %405 : vector<16x16xf32> to vector<16x16xbf16>
    %407 = vector.extract_strided_slice %371 {offsets = [0, 16], sizes = [16, 16], strides = [1, 1]} : vector<16x64xf32> to vector<16x16xf32>
    %408 = arith.truncf %407 : vector<16x16xf32> to vector<16x16xbf16>
    %cst_162 = arith.constant dense<0.000000e+00> : vector<64x16xf32>
    %409 = tpu.matmul %404, %406, %cst_162 {dimension_numbers = #tpu.dot_dimension_numbers<[1], [1], [0], [0], [0, 0, 1, 0], [], []>} : vector<64x16xbf16>, vector<16x16xbf16>, vector<64x16xf32> -> vector<64x16xf32>
    %cst_163 = arith.constant 2.500000e-01 : f32
    %410 = vector.broadcast %cst_163 : f32 to vector<64x16xf32>
    %411 = arith.mulf %409, %410 : vector<64x16xf32>
    %cst_164 = arith.constant dense<0xFF800000> : vector<64xf32>
    %412 = vector.multi_reduction <maximumf>, %411, %cst_164 [1] : vector<64x16xf32> to vector<64xf32>
    %413 = vector.shape_cast %412 : vector<64xf32> to vector<64x1xf32>
    %414 = vector.broadcast %413 : vector<64x1xf32> to vector<64x16xf32>
    %415 = arith.subf %411, %414 : vector<64x16xf32>
    %416 = math.exp %415 : vector<64x16xf32>
    %cst_165 = arith.constant dense<0.000000e+00> : vector<64xf32>
    %417 = vector.multi_reduction <add>, %416, %cst_165 [1] : vector<64x16xf32> to vector<64xf32>
    %418 = vector.shape_cast %417 : vector<64xf32> to vector<64x1xf32>
    %419 = tpu.reciprocal %418 {approx = true} : vector<64x1xf32> -> vector<64x1xf32>
    %420 = vector.broadcast %419 : vector<64x1xf32> to vector<64x16xf32>
    %421 = arith.mulf %416, %420 : vector<64x16xf32>
    %422 = arith.truncf %421 : vector<64x16xf32> to vector<64x16xbf16>
    %cst_166 = arith.constant dense<0.000000e+00> : vector<64x16xf32>
    %423 = tpu.matmul %422, %408, %cst_166 {dimension_numbers = #tpu.dot_dimension_numbers<[1], [0], [0], [1], [0, 0, 1, 1], [], []>} : vector<64x16xbf16>, vector<16x16xbf16>, vector<64x16xf32> -> vector<64x16xf32>
    %424 = vector.extract_strided_slice %373 {offsets = [16, 0], sizes = [16, 128], strides = [1, 1]} : vector<64x128xbf16> to vector<16x128xbf16>
    %425 = arith.truncf %423 : vector<64x16xf32> to vector<64x16xbf16>
    %cst_167 = arith.constant dense<0.000000e+00> : vector<64x128xf32>
    %426 = tpu.matmul %425, %424, %cst_167 {dimension_numbers = #tpu.dot_dimension_numbers<[1], [0], [0], [1], [0, 0, 1, 1], [], []>} : vector<64x16xbf16>, vector<16x128xbf16>, vector<64x128xf32> -> vector<64x128xf32>
    %427 = arith.addf %402, %426 : vector<64x128xf32>
    %428 = vector.extract_strided_slice %357 {offsets = [0, 32], sizes = [64, 16], strides = [1, 1]} : vector<64x64xf32> to vector<64x16xf32>
    %429 = arith.truncf %428 : vector<64x16xf32> to vector<64x16xbf16>
    %430 = vector.extract_strided_slice %364 {offsets = [0, 32], sizes = [16, 16], strides = [1, 1]} : vector<16x64xf32> to vector<16x16xf32>
    %431 = arith.truncf %430 : vector<16x16xf32> to vector<16x16xbf16>
    %432 = vector.extract_strided_slice %371 {offsets = [0, 32], sizes = [16, 16], strides = [1, 1]} : vector<16x64xf32> to vector<16x16xf32>
    %433 = arith.truncf %432 : vector<16x16xf32> to vector<16x16xbf16>
    %cst_168 = arith.constant dense<0.000000e+00> : vector<64x16xf32>
    %434 = tpu.matmul %429, %431, %cst_168 {dimension_numbers = #tpu.dot_dimension_numbers<[1], [1], [0], [0], [0, 0, 1, 0], [], []>} : vector<64x16xbf16>, vector<16x16xbf16>, vector<64x16xf32> -> vector<64x16xf32>
    %cst_169 = arith.constant 2.500000e-01 : f32
    %435 = vector.broadcast %cst_169 : f32 to vector<64x16xf32>
    %436 = arith.mulf %434, %435 : vector<64x16xf32>
    %cst_170 = arith.constant dense<0xFF800000> : vector<64xf32>
    %437 = vector.multi_reduction <maximumf>, %436, %cst_170 [1] : vector<64x16xf32> to vector<64xf32>
    %438 = vector.shape_cast %437 : vector<64xf32> to vector<64x1xf32>
    %439 = vector.broadcast %438 : vector<64x1xf32> to vector<64x16xf32>
    %440 = arith.subf %436, %439 : vector<64x16xf32>
    %441 = math.exp %440 : vector<64x16xf32>
    %cst_171 = arith.constant dense<0.000000e+00> : vector<64xf32>
    %442 = vector.multi_reduction <add>, %441, %cst_171 [1] : vector<64x16xf32> to vector<64xf32>
    %443 = vector.shape_cast %442 : vector<64xf32> to vector<64x1xf32>
    %444 = tpu.reciprocal %443 {approx = true} : vector<64x1xf32> -> vector<64x1xf32>
    %445 = vector.broadcast %444 : vector<64x1xf32> to vector<64x16xf32>
    %446 = arith.mulf %441, %445 : vector<64x16xf32>
    %447 = arith.truncf %446 : vector<64x16xf32> to vector<64x16xbf16>
    %cst_172 = arith.constant dense<0.000000e+00> : vector<64x16xf32>
    %448 = tpu.matmul %447, %433, %cst_172 {dimension_numbers = #tpu.dot_dimension_numbers<[1], [0], [0], [1], [0, 0, 1, 1], [], []>} : vector<64x16xbf16>, vector<16x16xbf16>, vector<64x16xf32> -> vector<64x16xf32>
    %449 = vector.extract_strided_slice %373 {offsets = [32, 0], sizes = [16, 128], strides = [1, 1]} : vector<64x128xbf16> to vector<16x128xbf16>
    %450 = arith.truncf %448 : vector<64x16xf32> to vector<64x16xbf16>
    %cst_173 = arith.constant dense<0.000000e+00> : vector<64x128xf32>
    %451 = tpu.matmul %450, %449, %cst_173 {dimension_numbers = #tpu.dot_dimension_numbers<[1], [0], [0], [1], [0, 0, 1, 1], [], []>} : vector<64x16xbf16>, vector<16x128xbf16>, vector<64x128xf32> -> vector<64x128xf32>
    %452 = arith.addf %427, %451 : vector<64x128xf32>
    %453 = vector.extract_strided_slice %357 {offsets = [0, 48], sizes = [64, 16], strides = [1, 1]} : vector<64x64xf32> to vector<64x16xf32>
    %454 = arith.truncf %453 : vector<64x16xf32> to vector<64x16xbf16>
    %455 = vector.extract_strided_slice %364 {offsets = [0, 48], sizes = [16, 16], strides = [1, 1]} : vector<16x64xf32> to vector<16x16xf32>
    %456 = arith.truncf %455 : vector<16x16xf32> to vector<16x16xbf16>
    %457 = vector.extract_strided_slice %371 {offsets = [0, 48], sizes = [16, 16], strides = [1, 1]} : vector<16x64xf32> to vector<16x16xf32>
    %458 = arith.truncf %457 : vector<16x16xf32> to vector<16x16xbf16>
    %cst_174 = arith.constant dense<0.000000e+00> : vector<64x16xf32>
    %459 = tpu.matmul %454, %456, %cst_174 {dimension_numbers = #tpu.dot_dimension_numbers<[1], [1], [0], [0], [0, 0, 1, 0], [], []>} : vector<64x16xbf16>, vector<16x16xbf16>, vector<64x16xf32> -> vector<64x16xf32>
    %cst_175 = arith.constant 2.500000e-01 : f32
    %460 = vector.broadcast %cst_175 : f32 to vector<64x16xf32>
    %461 = arith.mulf %459, %460 : vector<64x16xf32>
    %cst_176 = arith.constant dense<0xFF800000> : vector<64xf32>
    %462 = vector.multi_reduction <maximumf>, %461, %cst_176 [1] : vector<64x16xf32> to vector<64xf32>
    %463 = vector.shape_cast %462 : vector<64xf32> to vector<64x1xf32>
    %464 = vector.broadcast %463 : vector<64x1xf32> to vector<64x16xf32>
    %465 = arith.subf %461, %464 : vector<64x16xf32>
    %466 = math.exp %465 : vector<64x16xf32>
    %cst_177 = arith.constant dense<0.000000e+00> : vector<64xf32>
    %467 = vector.multi_reduction <add>, %466, %cst_177 [1] : vector<64x16xf32> to vector<64xf32>
    %468 = vector.shape_cast %467 : vector<64xf32> to vector<64x1xf32>
    %469 = tpu.reciprocal %468 {approx = true} : vector<64x1xf32> -> vector<64x1xf32>
    %470 = vector.broadcast %469 : vector<64x1xf32> to vector<64x16xf32>
    %471 = arith.mulf %466, %470 : vector<64x16xf32>
    %472 = arith.truncf %471 : vector<64x16xf32> to vector<64x16xbf16>
    %cst_178 = arith.constant dense<0.000000e+00> : vector<64x16xf32>
    %473 = tpu.matmul %472, %458, %cst_178 {dimension_numbers = #tpu.dot_dimension_numbers<[1], [0], [0], [1], [0, 0, 1, 1], [], []>} : vector<64x16xbf16>, vector<16x16xbf16>, vector<64x16xf32> -> vector<64x16xf32>
    %474 = vector.extract_strided_slice %373 {offsets = [48, 0], sizes = [16, 128], strides = [1, 1]} : vector<64x128xbf16> to vector<16x128xbf16>
    %475 = arith.truncf %473 : vector<64x16xf32> to vector<64x16xbf16>
    %cst_179 = arith.constant dense<0.000000e+00> : vector<64x128xf32>
    %476 = tpu.matmul %475, %474, %cst_179 {dimension_numbers = #tpu.dot_dimension_numbers<[1], [0], [0], [1], [0, 0, 1, 1], [], []>} : vector<64x16xbf16>, vector<16x128xbf16>, vector<64x128xf32> -> vector<64x128xf32>
    %477 = arith.addf %452, %476 : vector<64x128xf32>
    %478 = arith.addf %3, %477 : vector<64x128xf32>
    %c0_180 = arith.constant 0 : index
    %c0_181 = arith.constant 0 : index
    %479 = vector.load %arg39[%c0_180, %c0_181] : memref<1x128xf32, #tpu.memory_space<vmem>>, vector<1x128xf32>
    %c0_182 = arith.constant 0 : index
    %c0_183 = arith.constant 0 : index
    %480 = vector.load %arg40[%c0_182, %c0_183] : memref<1x128xf32, #tpu.memory_space<vmem>>, vector<1x128xf32>
    %cst_184 = arith.constant dense<0.000000e+00> : vector<64xf32>
    %481 = vector.multi_reduction <add>, %478, %cst_184 [1] : vector<64x128xf32> to vector<64xf32>
    %482 = vector.shape_cast %481 : vector<64xf32> to vector<64x1xf32>
    %cst_185 = arith.constant 1.280000e+02 : f32
    %483 = vector.broadcast %cst_185 : f32 to vector<64x1xf32>
    %484 = arith.divf %482, %483 : vector<64x1xf32>
    %485 = vector.broadcast %484 : vector<64x1xf32> to vector<64x128xf32>
    %486 = arith.subf %478, %485 : vector<64x128xf32>
    %487 = arith.mulf %486, %486 : vector<64x128xf32>
    %cst_186 = arith.constant dense<0.000000e+00> : vector<64xf32>
    %488 = vector.multi_reduction <add>, %487, %cst_186 [1] : vector<64x128xf32> to vector<64xf32>
    %489 = vector.shape_cast %488 : vector<64xf32> to vector<64x1xf32>
    %cst_187 = arith.constant 1.280000e+02 : f32
    %490 = vector.broadcast %cst_187 : f32 to vector<64x1xf32>
    %491 = arith.divf %489, %490 : vector<64x1xf32>
    %cst_188 = arith.constant 9.99999974E-6 : f32
    %492 = vector.broadcast %cst_188 : f32 to vector<64x1xf32>
    %493 = arith.addf %491, %492 : vector<64x1xf32>
    %494 = math.rsqrt %493 : vector<64x1xf32>
    %495 = vector.broadcast %494 : vector<64x1xf32> to vector<64x128xf32>
    %496 = arith.mulf %486, %495 : vector<64x128xf32>
    %497 = vector.broadcast %479 : vector<1x128xf32> to vector<64x128xf32>
    %498 = arith.mulf %496, %497 : vector<64x128xf32>
    %499 = vector.broadcast %480 : vector<1x128xf32> to vector<64x128xf32>
    %500 = arith.addf %498, %499 : vector<64x128xf32>
    %c0_189 = arith.constant 0 : index
    %c0_190 = arith.constant 0 : index
    %c0_191 = arith.constant 0 : index
    %501 = vector.load %arg41[%c0_189, %c0_190, %c0_191] : memref<1x16x128xf32, #tpu.memory_space<vmem>>, vector<1x16x128xf32>
    %502 = vector.shape_cast %501 : vector<1x16x128xf32> to vector<16x128xf32>
    %503 = vector.shape_cast %349 : vector<16x128xf32> to vector<1x16x128xf32>
    tpu.vector_store %arg41[%c0_189, %c0_190, %c0_191], %503 {strides = array<i32>} : memref<1x16x128xf32, #tpu.memory_space<vmem>>, vector<1x16x128xf32>,
    %c0_192 = arith.constant 0 : index
    %c0_193 = arith.constant 0 : index
    %c0_194 = arith.constant 0 : index
    %504 = vector.load %arg42[%c0_192, %c0_193, %c0_194] : memref<1x64x128xf32, #tpu.memory_space<vmem>>, vector<1x64x128xf32>
    %505 = vector.shape_cast %504 : vector<1x64x128xf32> to vector<64x128xf32>
    %506 = vector.shape_cast %500 : vector<64x128xf32> to vector<1x64x128xf32>
    tpu.vector_store %arg42[%c0_192, %c0_193, %c0_194], %506 {strides = array<i32>} : memref<1x64x128xf32, #tpu.memory_space<vmem>>, vector<1x64x128xf32>,
    return
  }
  func.func @transform_0(%arg0: i32) -> (i32, i32, i32) {
    %c0_i32 = arith.constant 0 : i32
    %c0_i32_0 = arith.constant 0 : i32
    %c0_i32_1 = arith.constant 0 : i32
    return %arg0, %c0_i32, %c0_i32_0 : i32, i32, i32
  }
  func.func @transform_1(%arg0: i32) -> (i32, i32, i32) {
    %c0_i32 = arith.constant 0 : i32
    %c0_i32_0 = arith.constant 0 : i32
    %c0_i32_1 = arith.constant 0 : i32
    return %arg0, %c0_i32, %c0_i32_0 : i32, i32, i32
  }
  func.func @transform_2(%arg0: i32) -> (i32, i32, i32) {
    %c0_i32 = arith.constant 0 : i32
    %c0_i32_0 = arith.constant 0 : i32
    %c0_i32_1 = arith.constant 0 : i32
    return %arg0, %c0_i32, %c0_i32_0 : i32, i32, i32
  }
  func.func @transform_3(%arg0: i32) -> (i32, i32, i32) {
    %c0_i32 = arith.constant 0 : i32
    %c0_i32_0 = arith.constant 0 : i32
    %c0_i32_1 = arith.constant 0 : i32
    return %arg0, %c0_i32, %c0_i32_0 : i32, i32, i32
  }
  func.func @transform_4(%arg0: i32) -> (i32, i32) {
    %c0_i32 = arith.constant 0 : i32
    %c0_i32_0 = arith.constant 0 : i32
    %c0_i32_1 = arith.constant 0 : i32
    return %c0_i32, %c0_i32_0 : i32, i32
  }
  func.func @transform_5(%arg0: i32) -> (i32, i32) {
    %c0_i32 = arith.constant 0 : i32
    %c0_i32_0 = arith.constant 0 : i32
    %c0_i32_1 = arith.constant 0 : i32
    return %c0_i32, %c0_i32_0 : i32, i32
  }
  func.func @transform_6(%arg0: i32) -> (i32, i32) {
    %c0_i32 = arith.constant 0 : i32
    %c0_i32_0 = arith.constant 0 : i32
    %c0_i32_1 = arith.constant 0 : i32
    return %c0_i32, %c0_i32_0 : i32, i32
  }
  func.func @transform_7(%arg0: i32) -> (i32, i32) {
    %c0_i32 = arith.constant 0 : i32
    %c0_i32_0 = arith.constant 0 : i32
    %c0_i32_1 = arith.constant 0 : i32
    return %c0_i32, %c0_i32_0 : i32, i32
  }
  func.func @transform_8(%arg0: i32) -> (i32, i32) {
    %c0_i32 = arith.constant 0 : i32
    %c0_i32_0 = arith.constant 0 : i32
    %c0_i32_1 = arith.constant 0 : i32
    return %c0_i32, %c0_i32_0 : i32, i32
  }
  func.func @transform_9(%arg0: i32) -> (i32, i32) {
    %c0_i32 = arith.constant 0 : i32
    %c0_i32_0 = arith.constant 0 : i32
    %c0_i32_1 = arith.constant 0 : i32
    return %c0_i32, %c0_i32_0 : i32, i32
  }
  func.func @transform_10(%arg0: i32) -> (i32, i32) {
    %c0_i32 = arith.constant 0 : i32
    %c0_i32_0 = arith.constant 0 : i32
    %c0_i32_1 = arith.constant 0 : i32
    return %c0_i32, %c0_i32_0 : i32, i32
  }
  func.func @transform_11(%arg0: i32) -> (i32, i32) {
    %c0_i32 = arith.constant 0 : i32
    %c0_i32_0 = arith.constant 0 : i32
    %c0_i32_1 = arith.constant 0 : i32
    return %c0_i32, %c0_i32_0 : i32, i32
  }
  func.func @transform_12(%arg0: i32) -> (i32, i32) {
    %c0_i32 = arith.constant 0 : i32
    %c0_i32_0 = arith.constant 0 : i32
    %c0_i32_1 = arith.constant 0 : i32
    return %c0_i32, %c0_i32_0 : i32, i32
  }
  func.func @transform_13(%arg0: i32) -> (i32, i32) {
    %c0_i32 = arith.constant 0 : i32
    %c0_i32_0 = arith.constant 0 : i32
    %c0_i32_1 = arith.constant 0 : i32
    return %c0_i32, %c0_i32_0 : i32, i32
  }
  func.func @transform_14(%arg0: i32) -> (i32, i32) {
    %c0_i32 = arith.constant 0 : i32
    %c0_i32_0 = arith.constant 0 : i32
    %c0_i32_1 = arith.constant 0 : i32
    return %c0_i32, %c0_i32_0 : i32, i32
  }
  func.func @transform_15(%arg0: i32) -> (i32, i32) {
    %c0_i32 = arith.constant 0 : i32
    %c0_i32_0 = arith.constant 0 : i32
    %c0_i32_1 = arith.constant 0 : i32
    return %c0_i32, %c0_i32_0 : i32, i32
  }
  func.func @transform_16(%arg0: i32) -> (i32, i32) {
    %c0_i32 = arith.constant 0 : i32
    %c0_i32_0 = arith.constant 0 : i32
    %c0_i32_1 = arith.constant 0 : i32
    return %c0_i32, %c0_i32_0 : i32, i32
  }
  func.func @transform_17(%arg0: i32) -> (i32, i32) {
    %c0_i32 = arith.constant 0 : i32
    %c0_i32_0 = arith.constant 0 : i32
    %c0_i32_1 = arith.constant 0 : i32
    return %c0_i32, %c0_i32_0 : i32, i32
  }
  func.func @transform_18(%arg0: i32) -> (i32, i32) {
    %c0_i32 = arith.constant 0 : i32
    %c0_i32_0 = arith.constant 0 : i32
    %c0_i32_1 = arith.constant 0 : i32
    return %c0_i32, %c0_i32_0 : i32, i32
  }
  func.func @transform_19(%arg0: i32) -> (i32, i32) {
    %c0_i32 = arith.constant 0 : i32
    %c0_i32_0 = arith.constant 0 : i32
    %c0_i32_1 = arith.constant 0 : i32
    return %c0_i32, %c0_i32_0 : i32, i32
  }
  func.func @transform_20(%arg0: i32) -> (i32, i32) {
    %c0_i32 = arith.constant 0 : i32
    %c0_i32_0 = arith.constant 0 : i32
    %c0_i32_1 = arith.constant 0 : i32
    return %c0_i32, %c0_i32_0 : i32, i32
  }
  func.func @transform_21(%arg0: i32) -> (i32, i32) {
    %c0_i32 = arith.constant 0 : i32
    %c0_i32_0 = arith.constant 0 : i32
    %c0_i32_1 = arith.constant 0 : i32
    return %c0_i32, %c0_i32_0 : i32, i32
  }
  func.func @transform_22(%arg0: i32) -> (i32, i32) {
    %c0_i32 = arith.constant 0 : i32
    %c0_i32_0 = arith.constant 0 : i32
    %c0_i32_1 = arith.constant 0 : i32
    return %c0_i32, %c0_i32_0 : i32, i32
  }
  func.func @transform_23(%arg0: i32) -> (i32, i32) {
    %c0_i32 = arith.constant 0 : i32
    %c0_i32_0 = arith.constant 0 : i32
    %c0_i32_1 = arith.constant 0 : i32
    return %c0_i32, %c0_i32_0 : i32, i32
  }
  func.func @transform_24(%arg0: i32) -> (i32, i32) {
    %c0_i32 = arith.constant 0 : i32
    %c0_i32_0 = arith.constant 0 : i32
    %c0_i32_1 = arith.constant 0 : i32
    return %c0_i32, %c0_i32_0 : i32, i32
  }
  func.func @transform_25(%arg0: i32) -> (i32, i32) {
    %c0_i32 = arith.constant 0 : i32
    %c0_i32_0 = arith.constant 0 : i32
    %c0_i32_1 = arith.constant 0 : i32
    return %c0_i32, %c0_i32_0 : i32, i32
  }
  func.func @transform_26(%arg0: i32) -> (i32, i32) {
    %c0_i32 = arith.constant 0 : i32
    %c0_i32_0 = arith.constant 0 : i32
    %c0_i32_1 = arith.constant 0 : i32
    return %c0_i32, %c0_i32_0 : i32, i32
  }
  func.func @transform_27(%arg0: i32) -> (i32, i32) {
    %c0_i32 = arith.constant 0 : i32
    %c0_i32_0 = arith.constant 0 : i32
    %c0_i32_1 = arith.constant 0 : i32
    return %c0_i32, %c0_i32_0 : i32, i32
  }
  func.func @transform_28(%arg0: i32) -> (i32, i32) {
    %c0_i32 = arith.constant 0 : i32
    %c0_i32_0 = arith.constant 0 : i32
    %c0_i32_1 = arith.constant 0 : i32
    return %c0_i32, %c0_i32_0 : i32, i32
  }
  func.func @transform_29(%arg0: i32) -> (i32, i32) {
    %c0_i32 = arith.constant 0 : i32
    %c0_i32_0 = arith.constant 0 : i32
    %c0_i32_1 = arith.constant 0 : i32
    return %c0_i32, %c0_i32_0 : i32, i32
  }
  func.func @transform_30(%arg0: i32) -> (i32, i32) {
    %c0_i32 = arith.constant 0 : i32
    %c0_i32_0 = arith.constant 0 : i32
    %c0_i32_1 = arith.constant 0 : i32
    return %c0_i32, %c0_i32_0 : i32, i32
  }
  func.func @transform_31(%arg0: i32) -> (i32, i32) {
    %c0_i32 = arith.constant 0 : i32
    %c0_i32_0 = arith.constant 0 : i32
    %c0_i32_1 = arith.constant 0 : i32
    return %c0_i32, %c0_i32_0 : i32, i32
  }
  func.func @transform_32(%arg0: i32) -> (i32, i32) {
    %c0_i32 = arith.constant 0 : i32
    %c0_i32_0 = arith.constant 0 : i32
    %c0_i32_1 = arith.constant 0 : i32
    return %c0_i32, %c0_i32_0 : i32, i32
  }
  func.func @transform_33(%arg0: i32) -> (i32, i32) {
    %c0_i32 = arith.constant 0 : i32
    %c0_i32_0 = arith.constant 0 : i32
    %c0_i32_1 = arith.constant 0 : i32
    return %c0_i32, %c0_i32_0 : i32, i32
  }
  func.func @transform_34(%arg0: i32) -> (i32, i32) {
    %c0_i32 = arith.constant 0 : i32
    %c0_i32_0 = arith.constant 0 : i32
    %c0_i32_1 = arith.constant 0 : i32
    return %c0_i32, %c0_i32_0 : i32, i32
  }
  func.func @transform_35(%arg0: i32) -> (i32, i32) {
    %c0_i32 = arith.constant 0 : i32
    %c0_i32_0 = arith.constant 0 : i32
    %c0_i32_1 = arith.constant 0 : i32
    return %c0_i32, %c0_i32_0 : i32, i32
  }
  func.func @transform_36(%arg0: i32) -> (i32, i32) {
    %c0_i32 = arith.constant 0 : i32
    %c0_i32_0 = arith.constant 0 : i32
    %c0_i32_1 = arith.constant 0 : i32
    return %c0_i32, %c0_i32_0 : i32, i32
  }
  func.func @transform_37(%arg0: i32) -> (i32, i32) {
    %c0_i32 = arith.constant 0 : i32
    %c0_i32_0 = arith.constant 0 : i32
    %c0_i32_1 = arith.constant 0 : i32
    return %c0_i32, %c0_i32_0 : i32, i32
  }
  func.func @transform_38(%arg0: i32) -> (i32, i32) {
    %c0_i32 = arith.constant 0 : i32
    %c0_i32_0 = arith.constant 0 : i32
    %c0_i32_1 = arith.constant 0 : i32
    return %c0_i32, %c0_i32_0 : i32, i32
  }
  func.func @transform_39(%arg0: i32) -> (i32, i32) {
    %c0_i32 = arith.constant 0 : i32
    %c0_i32_0 = arith.constant 0 : i32
    %c0_i32_1 = arith.constant 0 : i32
    return %c0_i32, %c0_i32_0 : i32, i32
  }
  func.func @transform_40(%arg0: i32) -> (i32, i32, i32) {
    %c0_i32 = arith.constant 0 : i32
    %c0_i32_0 = arith.constant 0 : i32
    %c0_i32_1 = arith.constant 0 : i32
    return %arg0, %c0_i32, %c0_i32_0 : i32, i32, i32
  }
  func.func @transform_41(%arg0: i32) -> (i32, i32, i32) {
    %c0_i32 = arith.constant 0 : i32
    %c0_i32_0 = arith.constant 0 : i32
    %c0_i32_1 = arith.constant 0 : i32
    return %arg0, %c0_i32, %c0_i32_0 : i32, i32, i32
  }
}

</mosaic_0001>

<llo_original>
// kernel: two_way_attention_block.1
$region0: #{two_way_attention_block.1}
  #allocation0 [shape = 'u32[]', space=smem, size = 0x4, offset = 0x4, fixed_abs, tag = 'smem constant byte address 0x4 - core index']
  #allocation1 [shape = 'u32[144,128]{1,0:T(1,128)}', space=vmem, size = 0x12000, scoped, tag = 'internal scratch']
  %s0 = inlined_call_operand.smem [shape: u32[42], index: -1, kind: input, shape index: {}]
  %s1 = sld [smem:[%s0]]
  %s2 = scalar_lea.smem %s0, 1
  %s3 = sld [smem:[%s2]]
  %s4 = scalar_lea.smem %s0, 2
  %s5 = sld [smem:[%s4]]
  %s6 = scalar_lea.smem %s0, 3
  %s7 = sld [smem:[%s6]]
  %s8 = scalar_lea.smem %s0, 4
  %s9 = sld [smem:[%s8]]
  %s10 = scalar_lea.smem %s0, 5
  %s11 = sld [smem:[%s10]]
  %s12 = scalar_lea.smem %s0, 6
  %s13 = sld [smem:[%s12]]
  %s14 = scalar_lea.smem %s0, 7
  %s15 = sld [smem:[%s14]]
  %s16 = scalar_lea.smem %s0, 8
  %s17 = sld [smem:[%s16]]
  %s18 = scalar_lea.smem %s0, 9
  %s19 = sld [smem:[%s18]]
  %s20 = scalar_lea.smem %s0, 10
  %s21 = sld [smem:[%s20]]
  %s22 = scalar_lea.smem %s0, 11
  %s23 = sld [smem:[%s22]]
  %s24 = scalar_lea.smem %s0, 12
  %s25 = sld [smem:[%s24]]
  %s26 = scalar_lea.smem %s0, 13
  %s27 = sld [smem:[%s26]]
  %s28 = scalar_lea.smem %s0, 14
  %s29 = sld [smem:[%s28]]
  %s30 = scalar_lea.smem %s0, 15
  %s31 = sld [smem:[%s30]]
  %s32 = scalar_lea.smem %s0, 16
  %s33 = sld [smem:[%s32]]
  %s34 = scalar_lea.smem %s0, 17
  %s35 = sld [smem:[%s34]]
  %s36 = scalar_lea.smem %s0, 18
  %s37 = sld [smem:[%s36]]
  %s38 = scalar_lea.smem %s0, 19
  %s39 = sld [smem:[%s38]]
  %s40 = scalar_lea.smem %s0, 20
  %s41 = sld [smem:[%s40]]
  %s42 = scalar_lea.smem %s0, 21
  %s43 = sld [smem:[%s42]]
  %s44 = scalar_lea.smem %s0, 22
  %s45 = sld [smem:[%s44]]
  %s46 = scalar_lea.smem %s0, 23
  %s47 = sld [smem:[%s46]]
  %s48 = scalar_lea.smem %s0, 24
  %s49 = sld [smem:[%s48]]
  %s50 = scalar_lea.smem %s0, 25
  %s51 = sld [smem:[%s50]]
  %s52 = scalar_lea.smem %s0, 26
  %s53 = sld [smem:[%s52]]
  %s54 = scalar_lea.smem %s0, 27
  %s55 = sld [smem:[%s54]]
  %s56 = scalar_lea.smem %s0, 28
  %s57 = sld [smem:[%s56]]
  %s58 = scalar_lea.smem %s0, 29
  %s59 = sld [smem:[%s58]]
  %s60 = scalar_lea.smem %s0, 30
  %s61 = sld [smem:[%s60]]
  %s62 = scalar_lea.smem %s0, 31
  %s63 = sld [smem:[%s62]]
  %s64 = scalar_lea.smem %s0, 32
  %s65 = sld [smem:[%s64]]
  %s66 = scalar_lea.smem %s0, 33
  %s67 = sld [smem:[%s66]]
  %s68 = scalar_lea.smem %s0, 34
  %s69 = sld [smem:[%s68]]
  %s70 = scalar_lea.smem %s0, 35
  %s71 = sld [smem:[%s70]]
  %s72 = scalar_lea.smem %s0, 36
  %s73 = sld [smem:[%s72]]
  %s74 = scalar_lea.smem %s0, 37
  %s75 = sld [smem:[%s74]]
  %s76 = scalar_lea.smem %s0, 38
  %s77 = sld [smem:[%s76]]
  %s78 = scalar_lea.smem %s0, 39
  %s79 = sld [smem:[%s78]]
  %s80 = scalar_lea.smem %s0, 40
  %s81 = sld [smem:[%s80]]
  %s82 = scalar_lea.smem %s0, 41
  %s83 = sld [smem:[%s82]]
  %84 = xla_tuple %s81, %s83
  %s85 = sld [smem:[#allocation0]]
  $region277: #{two_way_attention_block.1} parent=0
    _
  %s87 = ssub.s32 1, %s85
  %s88 = scalar_select 0, %s87, %s85
  $region1: #{two_way_attention_block.1} parent=0
    #allocation2 [shape = 'u8[16384]{0}', space=vmem, size = 0x4000, scoped, tag = 'input window, operand 0']
    #allocation3 [shape = 's32[2]{0}', space=sflag, size = 0x8, scoped, tag = 'scoped memory for two_way_attention_block.1']
    #allocation4 [shape = 's32[2]{0}', space=sflag, size = 0x8, scoped, tag = 'scoped memory for two_way_attention_block.1']
    #allocation5 [shape = 'u8[16384]{0}', space=vmem, size = 0x4000, scoped, tag = 'input window, operand 2']
    #allocation6 [shape = 's32[2]{0}', space=sflag, size = 0x8, scoped, tag = 'scoped memory for two_way_attention_block.1']
    #allocation7 [shape = 'u8[512]{0}', space=vmem, size = 0x400, scoped, tag = 'input window, operand 17, single buffered']
    #allocation8 [shape = 'u8[32768]{0}', space=vmem, size = 0x8000, scoped, tag = 'input window, operand 18, single buffered']
    #allocation9 [shape = 's32[1]{0}', space=sflag, size = 0x4, scoped, tag = 'scoped memory for two_way_attention_block.1']
    #allocation10 [shape = 'u8[512]{0}', space=vmem, size = 0x400, scoped, tag = 'input window, operand 19, single buffered']
    #allocation11 [shape = 'u8[512]{0}', space=vmem, size = 0x400, scoped, tag = 'input window, operand 21, single buffered']
    #allocation12 [shape = 's32[1]{0}', space=sflag, size = 0x4, scoped, tag = 'scoped memory for two_way_attention_block.1']
    #allocation13 [shape = 'u8[512]{0}', space=vmem, size = 0x400, scoped, tag = 'input window, operand 23, single buffered']
    #allocation14 [shape = 'u8[512]{0}', space=vmem, size = 0x400, scoped, tag = 'input window, operand 25, single buffered']
    #allocation15 [shape = 's32[1]{0}', space=sflag, size = 0x4, scoped, tag = 'scoped memory for two_way_attention_block.1']
    #allocation16 [shape = 'u8[32768]{0}', space=vmem, size = 0x8000, scoped, tag = 'input window, operand 26, single buffered']
    #allocation17 [shape = 'u8[512]{0}', space=vmem, size = 0x400, scoped, tag = 'input window, operand 27, single buffered']
    #allocation18 [shape = 's32[1]{0}', space=sflag, size = 0x4, scoped, tag = 'scoped memory for two_way_attention_block.1']
    #allocation19 [shape = 'u8[512]{0}', space=vmem, size = 0x400, scoped, tag = 'input window, operand 31, single buffered']
    #allocation20 [shape = 'u8[512]{0}', space=vmem, size = 0x400, scoped, tag = 'input window, operand 32, single buffered']
    #allocation21 [shape = 's32[1]{0}', space=sflag, size = 0x4, scoped, tag = 'scoped memory for two_way_attention_block.1']
    #allocation22 [shape = 'u8[512]{0}', space=vmem, size = 0x400, scoped, tag = 'input window, operand 33, single buffered']
    #allocation23 [shape = 'u8[512]{0}', space=vmem, size = 0x400, scoped, tag = 'input window, operand 34, single buffered']
    #allocation24 [shape = 's32[1]{0}', space=sflag, size = 0x4, scoped, tag = 'scoped memory for two_way_attention_block.1']
    #allocation25 [shape = 'u8[512]{0}', space=vmem, size = 0x400, scoped, tag = 'input window, operand 35, single buffered']
    #allocation26 [shape = 'u8[512]{0}', space=vmem, size = 0x400, scoped, tag = 'input window, operand 36, single buffered']
    #allocation27 [shape = 's32[1]{0}', space=sflag, size = 0x4, scoped, tag = 'scoped memory for two_way_attention_block.1']
    #allocation28 [shape = 'u8[512]{0}', space=vmem, size = 0x400, scoped, tag = 'input window, operand 37, single buffered']
    #allocation29 [shape = 'u8[512]{0}', space=vmem, size = 0x400, scoped, tag = 'input window, operand 38, single buffered']
    #allocation30 [shape = 's32[1]{0}', space=sflag, size = 0x4, scoped, tag = 'scoped memory for two_way_attention_block.1']
    #allocation31 [shape = 'u8[512]{0}', space=vmem, size = 0x400, scoped, tag = 'input window, operand 39, single buffered']
    #allocation32 [shape = 'u8[16384]{0}', space=vmem, size = 0x4000, scoped, tag = 'output window, operand 0']
    #allocation33 [shape = 'u8[65536]{0}', space=vmem, size = 0x10000, scoped, tag = 'output window, operand 1']
    #allocation34 [shape = 's32[2]{0}', space=sflag, size = 0x8, scoped, tag = 'scoped memory for two_way_attention_block.1']
    %89 = vsyncpa [#allocation3], 0
    %s90 = scalar_lea.sflag [#allocation3], 1
    %91 = vsyncpa %s90, 0
    %92 = vsyncpa [#allocation6], 0
    %s93 = scalar_lea.sflag [#allocation6], 1
    %94 = vsyncpa %s93, 0
    %95 = vsyncpa [#allocation9], 0
    %96 = vsyncpa [#allocation12], 0
    %97 = vsyncpa [#allocation15], 0
    %98 = vsyncpa [#allocation18], 0
    %99 = vsyncpa [#allocation21], 0
    %100 = vsyncpa [#allocation24], 0
    %101 = vsyncpa [#allocation27], 0
    %102 = vsyncpa [#allocation30], 0
    %103 = vsyncpa [#allocation4], 0
    %s104 = scalar_lea.sflag [#allocation4], 1
    %105 = vsyncpa %s104, 0
    %106 = vsyncpa [#allocation34], 0
    %s107 = scalar_lea.sflag [#allocation34], 1
    %108 = vsyncpa %s107, 0
    loop: start=0, step=1, limit=4
    $region2: #{two_way_attention_block.1} parent=1 // loop_pre_header
      _
    $region3: #{two_way_attention_block.1} parent=1 // loop_header
      %s110 = sphi 0, %s114
      %p111 = scmp.ge.s32.totalorder %s110, 4
      %s120 = sphi 0, %s122
      %s123 = sphi 0, %s120
      %s124 = sphi 0, %s123
      %s140 = sphi 0, %s124
      %s146 = sphi 0, %s148
      %s149 = sphi 0, %s146
      %s150 = sphi 0, %s149
      %s166 = sphi 0, %s150
      %s172 = sphi 0, %s174
      %s175 = sphi 0, %s172
      %s176 = sphi 0, %s175
      %s192 = sphi 0, %s176
      %s198 = sphi 0, %s200
      %s201 = sphi 0, %s198
      %s202 = sphi 0, %s201
      %s218 = sphi 0, %s202
      %s222 = sphi 0, %s222
      %s224 = sphi 0, %s222
      %s225 = sphi 0, %s224
      %s239 = sphi 0, %s225
      %s243 = sphi 0, %s243
      %s245 = sphi 0, %s243
      %s246 = sphi 0, %s245
      %s260 = sphi 0, %s246
      %s264 = sphi 0, %s264
      %s266 = sphi 0, %s264
      %s267 = sphi 0, %s266
      %s281 = sphi 0, %s267
      %s285 = sphi 0, %s285
      %s287 = sphi 0, %s285
      %s288 = sphi 0, %s287
      %s302 = sphi 0, %s288
      %s306 = sphi 0, %s306
      %s308 = sphi 0, %s306
      %s309 = sphi 0, %s308
      %s323 = sphi 0, %s309
      %s327 = sphi 0, %s327
      %s329 = sphi 0, %s327
      %s330 = sphi 0, %s329
      %s344 = sphi 0, %s330
      %s348 = sphi 0, %s348
      %s350 = sphi 0, %s348
      %s351 = sphi 0, %s350
      %s365 = sphi 0, %s351
      %s369 = sphi 0, %s369
      %s371 = sphi 0, %s369
      %s372 = sphi 0, %s371
      %s386 = sphi 0, %s372
      %s390 = sphi 0, %s390
      %s392 = sphi 0, %s390
      %s393 = sphi 0, %s392
      %s407 = sphi 0, %s393
      %s411 = sphi 0, %s411
      %s413 = sphi 0, %s411
      %s414 = sphi 0, %s413
      %s428 = sphi 0, %s414
      %s432 = sphi 0, %s432
      %s434 = sphi 0, %s432
      %s435 = sphi 0, %s434
      %s449 = sphi 0, %s435
      %s453 = sphi 0, %s453
      %s455 = sphi 0, %s453
      %s456 = sphi 0, %s455
      %s470 = sphi 0, %s456
      %s474 = sphi 0, %s474
      %s476 = sphi 0, %s474
      %s477 = sphi 0, %s476
      %s491 = sphi 0, %s477
      %s495 = sphi 0, %s495
      %s497 = sphi 0, %s495
      %s498 = sphi 0, %s497
      %s512 = sphi 0, %s498
      %s516 = sphi 0, %s516
      %s518 = sphi 0, %s516
      %s519 = sphi 0, %s518
      %s533 = sphi 0, %s519
      %s537 = sphi 0, %s537
      %s539 = sphi 0, %s537
      %s540 = sphi 0, %s539
      %s554 = sphi 0, %s540
      %s558 = sphi 0, %s558
      %s560 = sphi 0, %s558
      %s561 = sphi 0, %s560
      %s575 = sphi 0, %s561
      %s579 = sphi 0, %s579
      %s581 = sphi 0, %s579
      %s582 = sphi 0, %s581
      %s596 = sphi 0, %s582
      %s600 = sphi 0, %s600
      %s602 = sphi 0, %s600
      %s603 = sphi 0, %s602
      %s617 = sphi 0, %s603
      %s621 = sphi 0, %s621
      %s623 = sphi 0, %s621
      %s624 = sphi 0, %s623
      %s638 = sphi 0, %s624
      %s642 = sphi 0, %s642
      %s644 = sphi 0, %s642
      %s645 = sphi 0, %s644
      %s659 = sphi 0, %s645
      %s663 = sphi 0, %s663
      %s665 = sphi 0, %s663
      %s666 = sphi 0, %s665
      %s680 = sphi 0, %s666
      %s684 = sphi 0, %s684
      %s686 = sphi 0, %s684
      %s687 = sphi 0, %s686
      %s701 = sphi 0, %s687
      %s705 = sphi 0, %s705
      %s707 = sphi 0, %s705
      %s708 = sphi 0, %s707
      %s722 = sphi 0, %s708
      %s726 = sphi 0, %s726
      %s728 = sphi 0, %s726
      %s729 = sphi 0, %s728
      %s743 = sphi 0, %s729
      %s747 = sphi 0, %s747
      %s749 = sphi 0, %s747
      %s750 = sphi 0, %s749
      %s764 = sphi 0, %s750
      %s768 = sphi 0, %s768
      %s770 = sphi 0, %s768
      %s771 = sphi 0, %s770
      %s785 = sphi 0, %s771
      %s789 = sphi 0, %s789
      %s791 = sphi 0, %s789
      %s792 = sphi 0, %s791
      %s806 = sphi 0, %s792
      %s810 = sphi 0, %s810
      %s812 = sphi 0, %s810
      %s813 = sphi 0, %s812
      %s827 = sphi 0, %s813
      %s831 = sphi 0, %s831
      %s833 = sphi 0, %s831
      %s834 = sphi 0, %s833
      %s848 = sphi 0, %s834
      %s852 = sphi 0, %s852
      %s854 = sphi 0, %s852
      %s855 = sphi 0, %s854
      %s869 = sphi 0, %s855
      %s873 = sphi 0, %s873
      %s875 = sphi 0, %s873
      %s876 = sphi 0, %s875
      %s890 = sphi 0, %s876
      %s894 = sphi 0, %s894
      %s896 = sphi 0, %s894
      %s897 = sphi 0, %s896
      %s911 = sphi 0, %s897
      %s915 = sphi 0, %s915
      %s917 = sphi 0, %s915
      %s918 = sphi 0, %s917
      %s932 = sphi 0, %s918
      %s936 = sphi 0, %s936
      %s938 = sphi 0, %s936
      %s939 = sphi 0, %s938
      %s953 = sphi 0, %s939
      %s957 = sphi 0, %s957
      %s959 = sphi 0, %s957
      %s960 = sphi 0, %s959
      %s974 = sphi 0, %s960
      %s980 = sphi 0, %s982
      %s983 = sphi 0, %s980
      %s984 = sphi 0, %s983
      %s1000 = sphi 0, %s984
      %s1006 = sphi 0, %s1008
      %s1009 = sphi 0, %s1006
      %s1010 = sphi 0, %s1009
      %s1026 = sphi 0, %s1010
    $region4: #{two_way_attention_block.1} parent=1 // loop_header_branch
      %113 = sbr.rel (%p111) target = $region8
    $region5: #{two_way_attention_block.1} parent=1 // loop_body
      %s115 = ssub.s32 %s110, 1
      %s116 = ssub.s32 %s110, 2
      %s117 = sadd.s32 %s110, 1
      %s118 = ssub.s32 %s110, %s117
      %p119 = scmp.eq.s32.totalorder %s118, 0
      %s121 = sadd.s32 %s120, 1
      %s122 = scalar_select %p119, %s120, %s121
      %p125 = pneg %p119
      %p126 = scmp.eq.s32.totalorder %s110, 1
      %p127 = por %p125, %p126
      %p128 = scmp.ne.s32.totalorder %s120, %s123
      %p129 = scmp.eq.s32.totalorder %s110, 0
      %p130 = por %p128, %p129
      %p131 = scmp.ne.s32.totalorder %s120, %s123
      %p132 = scmp.eq.s32.totalorder %s115, 1
      %p133 = por %p131, %p132
      %p134 = scmp.ne.s32.totalorder %s123, %s124
      %p135 = scmp.eq.s32.totalorder %s115, 0
      %p136 = por %p134, %p135
      %p137 = scmp.ne.s32.totalorder %s123, %s124
      %p138 = scmp.eq.s32.totalorder %s116, 1
      %p139 = por %p137, %p138
      %p141 = scmp.ne.s32.totalorder %s124, %s140
      %p142 = scmp.eq.s32.totalorder %s116, 0
      %p143 = por %p141, %p142
      %s144 = ssub.s32 %s110, %s117
      %p145 = scmp.eq.s32.totalorder %s144, 0
      %s147 = sadd.s32 %s146, 1
      %s148 = scalar_select %p145, %s146, %s147
      %p151 = pneg %p145
      %p152 = scmp.eq.s32.totalorder %s110, 1
      %p153 = por %p151, %p152
      %p154 = scmp.ne.s32.totalorder %s146, %s149
      %p155 = scmp.eq.s32.totalorder %s110, 0
      %p156 = por %p154, %p155
      %p157 = scmp.ne.s32.totalorder %s146, %s149
      %p158 = scmp.eq.s32.totalorder %s115, 1
      %p159 = por %p157, %p158
      %p160 = scmp.ne.s32.totalorder %s149, %s150
      %p161 = scmp.eq.s32.totalorder %s115, 0
      %p162 = por %p160, %p161
      %p163 = scmp.ne.s32.totalorder %s149, %s150
      %p164 = scmp.eq.s32.totalorder %s116, 1
      %p165 = por %p163, %p164
      %p167 = scmp.ne.s32.totalorder %s150, %s166
      %p168 = scmp.eq.s32.totalorder %s116, 0
      %p169 = por %p167, %p168
      %s170 = ssub.s32 %s110, %s117
      %p171 = scmp.eq.s32.totalorder %s170, 0
      %s173 = sadd.s32 %s172, 1
      %s174 = scalar_select %p171, %s172, %s173
      %p177 = pneg %p171
      %p178 = scmp.eq.s32.totalorder %s110, 1
      %p179 = por %p177, %p178
      %p180 = scmp.ne.s32.totalorder %s172, %s175
      %p181 = scmp.eq.s32.totalorder %s110, 0
      %p182 = por %p180, %p181
      %p183 = scmp.ne.s32.totalorder %s172, %s175
      %p184 = scmp.eq.s32.totalorder %s115, 1
      %p185 = por %p183, %p184
      %p186 = scmp.ne.s32.totalorder %s175, %s176
      %p187 = scmp.eq.s32.totalorder %s115, 0
      %p188 = por %p186, %p187
      %p189 = scmp.ne.s32.totalorder %s175, %s176
      %p190 = scmp.eq.s32.totalorder %s116, 1
      %p191 = por %p189, %p190
      %p193 = scmp.ne.s32.totalorder %s176, %s192
      %p194 = scmp.eq.s32.totalorder %s116, 0
      %p195 = por %p193, %p194
      %s196 = ssub.s32 %s110, %s117
      %p197 = scmp.eq.s32.totalorder %s196, 0
      %s199 = sadd.s32 %s198, 1
      %s200 = scalar_select %p197, %s198, %s199
      %p203 = pneg %p197
      %p204 = scmp.eq.s32.totalorder %s110, 1
      %p205 = por %p203, %p204
      %p206 = scmp.ne.s32.totalorder %s198, %s201
      %p207 = scmp.eq.s32.totalorder %s110, 0
      %p208 = por %p206, %p207
      %p209 = scmp.ne.s32.totalorder %s198, %s201
      %p210 = scmp.eq.s32.totalorder %s115, 1
      %p211 = por %p209, %p210
      %p212 = scmp.ne.s32.totalorder %s201, %s202
      %p213 = scmp.eq.s32.totalorder %s115, 0
      %p214 = por %p212, %p213
      %p215 = scmp.ne.s32.totalorder %s201, %s202
      %p216 = scmp.eq.s32.totalorder %s116, 1
      %p217 = por %p215, %p216
      %p219 = scmp.ne.s32.totalorder %s202, %s218
      %p220 = scmp.eq.s32.totalorder %s116, 0
      %p221 = por %p219, %p220
      %s223 = sadd.s32 %s222, 1
      %p226 = scmp.eq.s32.totalorder %s110, 1
      %p227 = scmp.ne.s32.totalorder %s222, %s224
      %p228 = scmp.eq.s32.totalorder %s110, 0
      %p229 = por %p227, %p228
      %p230 = scmp.ne.s32.totalorder %s222, %s224
      %p231 = scmp.eq.s32.totalorder %s115, 1
      %p232 = por %p230, %p231
      %p233 = scmp.ne.s32.totalorder %s224, %s225
      %p234 = scmp.eq.s32.totalorder %s115, 0
      %p235 = por %p233, %p234
      %p236 = scmp.ne.s32.totalorder %s224, %s225
      %p237 = scmp.eq.s32.totalorder %s116, 1
      %p238 = por %p236, %p237
      %p240 = scmp.ne.s32.totalorder %s225, %s239
      %p241 = scmp.eq.s32.totalorder %s116, 0
      %p242 = por %p240, %p241
      %s244 = sadd.s32 %s243, 1
      %p247 = scmp.eq.s32.totalorder %s110, 1
      %p248 = scmp.ne.s32.totalorder %s243, %s245
      %p249 = scmp.eq.s32.totalorder %s110, 0
      %p250 = por %p248, %p249
      %p251 = scmp.ne.s32.totalorder %s243, %s245
      %p252 = scmp.eq.s32.totalorder %s115, 1
      %p253 = por %p251, %p252
      %p254 = scmp.ne.s32.totalorder %s245, %s246
      %p255 = scmp.eq.s32.totalorder %s115, 0
      %p256 = por %p254, %p255
      %p257 = scmp.ne.s32.totalorder %s245, %s246
      %p258 = scmp.eq.s32.totalorder %s116, 1
      %p259 = por %p257, %p258
      %p261 = scmp.ne.s32.totalorder %s246, %s260
      %p262 = scmp.eq.s32.totalorder %s116, 0
      %p263 = por %p261, %p262
      %s265 = sadd.s32 %s264, 1
      %p268 = scmp.eq.s32.totalorder %s110, 1
      %p269 = scmp.ne.s32.totalorder %s264, %s266
      %p270 = scmp.eq.s32.totalorder %s110, 0
      %p271 = por %p269, %p270
      %p272 = scmp.ne.s32.totalorder %s264, %s266
      %p273 = scmp.eq.s32.totalorder %s115, 1
      %p274 = por %p272, %p273
      %p275 = scmp.ne.s32.totalorder %s266, %s267
      %p276 = scmp.eq.s32.totalorder %s115, 0
      %p277 = por %p275, %p276
      %p278 = scmp.ne.s32.totalorder %s266, %s267
      %p279 = scmp.eq.s32.totalorder %s116, 1
      %p280 = por %p278, %p279
      %p282 = scmp.ne.s32.totalorder %s267, %s281
      %p283 = scmp.eq.s32.totalorder %s116, 0
      %p284 = por %p282, %p283
      %s286 = sadd.s32 %s285, 1
      %p289 = scmp.eq.s32.totalorder %s110, 1
      %p290 = scmp.ne.s32.totalorder %s285, %s287
      %p291 = scmp.eq.s32.totalorder %s110, 0
      %p292 = por %p290, %p291
      %p293 = scmp.ne.s32.totalorder %s285, %s287
      %p294 = scmp.eq.s32.totalorder %s115, 1
      %p295 = por %p293, %p294
      %p296 = scmp.ne.s32.totalorder %s287, %s288
      %p297 = scmp.eq.s32.totalorder %s115, 0
      %p298 = por %p296, %p297
      %p299 = scmp.ne.s32.totalorder %s287, %s288
      %p300 = scmp.eq.s32.totalorder %s116, 1
      %p301 = por %p299, %p300
      %p303 = scmp.ne.s32.totalorder %s288, %s302
      %p304 = scmp.eq.s32.totalorder %s116, 0
      %p305 = por %p303, %p304
      %s307 = sadd.s32 %s306, 1
      %p310 = scmp.eq.s32.totalorder %s110, 1
      %p311 = scmp.ne.s32.totalorder %s306, %s308
      %p312 = scmp.eq.s32.totalorder %s110, 0
      %p313 = por %p311, %p312
      %p314 = scmp.ne.s32.totalorder %s306, %s308
      %p315 = scmp.eq.s32.totalorder %s115, 1
      %p316 = por %p314, %p315
      %p317 = scmp.ne.s32.totalorder %s308, %s309
      %p318 = scmp.eq.s32.totalorder %s115, 0
      %p319 = por %p317, %p318
      %p320 = scmp.ne.s32.totalorder %s308, %s309
      %p321 = scmp.eq.s32.totalorder %s116, 1
      %p322 = por %p320, %p321
      %p324 = scmp.ne.s32.totalorder %s309, %s323
      %p325 = scmp.eq.s32.totalorder %s116, 0
      %p326 = por %p324, %p325
      %s328 = sadd.s32 %s327, 1
      %p331 = scmp.eq.s32.totalorder %s110, 1
      %p332 = scmp.ne.s32.totalorder %s327, %s329
      %p333 = scmp.eq.s32.totalorder %s110, 0
      %p334 = por %p332, %p333
      %p335 = scmp.ne.s32.totalorder %s327, %s329
      %p336 = scmp.eq.s32.totalorder %s115, 1
      %p337 = por %p335, %p336
      %p338 = scmp.ne.s32.totalorder %s329, %s330
      %p339 = scmp.eq.s32.totalorder %s115, 0
      %p340 = por %p338, %p339
      %p341 = scmp.ne.s32.totalorder %s329, %s330
      %p342 = scmp.eq.s32.totalorder %s116, 1
      %p343 = por %p341, %p342
      %p345 = scmp.ne.s32.totalorder %s330, %s344
      %p346 = scmp.eq.s32.totalorder %s116, 0
      %p347 = por %p345, %p346
      %s349 = sadd.s32 %s348, 1
      %p352 = scmp.eq.s32.totalorder %s110, 1
      %p353 = scmp.ne.s32.totalorder %s348, %s350
      %p354 = scmp.eq.s32.totalorder %s110, 0
      %p355 = por %p353, %p354
      %p356 = scmp.ne.s32.totalorder %s348, %s350
      %p357 = scmp.eq.s32.totalorder %s115, 1
      %p358 = por %p356, %p357
      %p359 = scmp.ne.s32.totalorder %s350, %s351
      %p360 = scmp.eq.s32.totalorder %s115, 0
      %p361 = por %p359, %p360
      %p362 = scmp.ne.s32.totalorder %s350, %s351
      %p363 = scmp.eq.s32.totalorder %s116, 1
      %p364 = por %p362, %p363
      %p366 = scmp.ne.s32.totalorder %s351, %s365
      %p367 = scmp.eq.s32.totalorder %s116, 0
      %p368 = por %p366, %p367
      %s370 = sadd.s32 %s369, 1
      %p373 = scmp.eq.s32.totalorder %s110, 1
      %p374 = scmp.ne.s32.totalorder %s369, %s371
      %p375 = scmp.eq.s32.totalorder %s110, 0
      %p376 = por %p374, %p375
      %p377 = scmp.ne.s32.totalorder %s369, %s371
      %p378 = scmp.eq.s32.totalorder %s115, 1
      %p379 = por %p377, %p378
      %p380 = scmp.ne.s32.totalorder %s371, %s372
      %p381 = scmp.eq.s32.totalorder %s115, 0
      %p382 = por %p380, %p381
      %p383 = scmp.ne.s32.totalorder %s371, %s372
      %p384 = scmp.eq.s32.totalorder %s116, 1
      %p385 = por %p383, %p384
      %p387 = scmp.ne.s32.totalorder %s372, %s386
      %p388 = scmp.eq.s32.totalorder %s116, 0
      %p389 = por %p387, %p388
      %s391 = sadd.s32 %s390, 1
      %p394 = scmp.eq.s32.totalorder %s110, 1
      %p395 = scmp.ne.s32.totalorder %s390, %s392
      %p396 = scmp.eq.s32.totalorder %s110, 0
      %p397 = por %p395, %p396
      %p398 = scmp.ne.s32.totalorder %s390, %s392
      %p399 = scmp.eq.s32.totalorder %s115, 1
      %p400 = por %p398, %p399
      %p401 = scmp.ne.s32.totalorder %s392, %s393
      %p402 = scmp.eq.s32.totalorder %s115, 0
      %p403 = por %p401, %p402
      %p404 = scmp.ne.s32.totalorder %s392, %s393
      %p405 = scmp.eq.s32.totalorder %s116, 1
      %p406 = por %p404, %p405
      %p408 = scmp.ne.s32.totalorder %s393, %s407
      %p409 = scmp.eq.s32.totalorder %s116, 0
      %p410 = por %p408, %p409
      %s412 = sadd.s32 %s411, 1
      %p415 = scmp.eq.s32.totalorder %s110, 1
      %p416 = scmp.ne.s32.totalorder %s411, %s413
      %p417 = scmp.eq.s32.totalorder %s110, 0
      %p418 = por %p416, %p417
      %p419 = scmp.ne.s32.totalorder %s411, %s413
      %p420 = scmp.eq.s32.totalorder %s115, 1
      %p421 = por %p419, %p420
      %p422 = scmp.ne.s32.totalorder %s413, %s414
      %p423 = scmp.eq.s32.totalorder %s115, 0
      %p424 = por %p422, %p423
      %p425 = scmp.ne.s32.totalorder %s413, %s414
      %p426 = scmp.eq.s32.totalorder %s116, 1
      %p427 = por %p425, %p426
      %p429 = scmp.ne.s32.totalorder %s414, %s428
      %p430 = scmp.eq.s32.totalorder %s116, 0
      %p431 = por %p429, %p430
      %s433 = sadd.s32 %s432, 1
      %p436 = scmp.eq.s32.totalorder %s110, 1
      %p437 = scmp.ne.s32.totalorder %s432, %s434
      %p438 = scmp.eq.s32.totalorder %s110, 0
      %p439 = por %p437, %p438
      %p440 = scmp.ne.s32.totalorder %s432, %s434
      %p441 = scmp.eq.s32.totalorder %s115, 1
      %p442 = por %p440, %p441
      %p443 = scmp.ne.s32.totalorder %s434, %s435
      %p444 = scmp.eq.s32.totalorder %s115, 0
      %p445 = por %p443, %p444
      %p446 = scmp.ne.s32.totalorder %s434, %s435
      %p447 = scmp.eq.s32.totalorder %s116, 1
      %p448 = por %p446, %p447
      %p450 = scmp.ne.s32.totalorder %s435, %s449
      %p451 = scmp.eq.s32.totalorder %s116, 0
      %p452 = por %p450, %p451
      %s454 = sadd.s32 %s453, 1
      %p457 = scmp.eq.s32.totalorder %s110, 1
      %p458 = scmp.ne.s32.totalorder %s453, %s455
      %p459 = scmp.eq.s32.totalorder %s110, 0
      %p460 = por %p458, %p459
      %p461 = scmp.ne.s32.totalorder %s453, %s455
      %p462 = scmp.eq.s32.totalorder %s115, 1
      %p463 = por %p461, %p462
      %p464 = scmp.ne.s32.totalorder %s455, %s456
      %p465 = scmp.eq.s32.totalorder %s115, 0
      %p466 = por %p464, %p465
      %p467 = scmp.ne.s32.totalorder %s455, %s456
      %p468 = scmp.eq.s32.totalorder %s116, 1
      %p469 = por %p467, %p468
      %p471 = scmp.ne.s32.totalorder %s456, %s470
      %p472 = scmp.eq.s32.totalorder %s116, 0
      %p473 = por %p471, %p472
      %s475 = sadd.s32 %s474, 1
      %p478 = scmp.eq.s32.totalorder %s110, 1
      %p479 = scmp.ne.s32.totalorder %s474, %s476
      %p480 = scmp.eq.s32.totalorder %s110, 0
      %p481 = por %p479, %p480
      %p482 = scmp.ne.s32.totalorder %s474, %s476
      %p483 = scmp.eq.s32.totalorder %s115, 1
      %p484 = por %p482, %p483
      %p485 = scmp.ne.s32.totalorder %s476, %s477
      %p486 = scmp.eq.s32.totalorder %s115, 0
      %p487 = por %p485, %p486
      %p488 = scmp.ne.s32.totalorder %s476, %s477
      %p489 = scmp.eq.s32.totalorder %s116, 1
      %p490 = por %p488, %p489
      %p492 = scmp.ne.s32.totalorder %s477, %s491
      %p493 = scmp.eq.s32.totalorder %s116, 0
      %p494 = por %p492, %p493
      %s496 = sadd.s32 %s495, 1
      %p499 = scmp.eq.s32.totalorder %s110, 1
      %p500 = scmp.ne.s32.totalorder %s495, %s497
      %p501 = scmp.eq.s32.totalorder %s110, 0
      %p502 = por %p500, %p501
      %p503 = scmp.ne.s32.totalorder %s495, %s497
      %p504 = scmp.eq.s32.totalorder %s115, 1
      %p505 = por %p503, %p504
      %p506 = scmp.ne.s32.totalorder %s497, %s498
      %p507 = scmp.eq.s32.totalorder %s115, 0
      %p508 = por %p506, %p507
      %p509 = scmp.ne.s32.totalorder %s497, %s498
      %p510 = scmp.eq.s32.totalorder %s116, 1
      %p511 = por %p509, %p510
      %p513 = scmp.ne.s32.totalorder %s498, %s512
      %p514 = scmp.eq.s32.totalorder %s116, 0
      %p515 = por %p513, %p514
      %s517 = sadd.s32 %s516, 1
      %p520 = scmp.eq.s32.totalorder %s110, 1
      %p521 = scmp.ne.s32.totalorder %s516, %s518
      %p522 = scmp.eq.s32.totalorder %s110, 0
      %p523 = por %p521, %p522
      %p524 = scmp.ne.s32.totalorder %s516, %s518
      %p525 = scmp.eq.s32.totalorder %s115, 1
      %p526 = por %p524, %p525
      %p527 = scmp.ne.s32.totalorder %s518, %s519
      %p528 = scmp.eq.s32.totalorder %s115, 0
      %p529 = por %p527, %p528
      %p530 = scmp.ne.s32.totalorder %s518, %s519
      %p531 = scmp.eq.s32.totalorder %s116, 1
      %p532 = por %p530, %p531
      %p534 = scmp.ne.s32.totalorder %s519, %s533
      %p535 = scmp.eq.s32.totalorder %s116, 0
      %p536 = por %p534, %p535
      %s538 = sadd.s32 %s537, 1
      %p541 = scmp.eq.s32.totalorder %s110, 1
      %p542 = scmp.ne.s32.totalorder %s537, %s539
      %p543 = scmp.eq.s32.totalorder %s110, 0
      %p544 = por %p542, %p543
      %p545 = scmp.ne.s32.totalorder %s537, %s539
      %p546 = scmp.eq.s32.totalorder %s115, 1
      %p547 = por %p545, %p546
      %p548 = scmp.ne.s32.totalorder %s539, %s540
      %p549 = scmp.eq.s32.totalorder %s115, 0
      %p550 = por %p548, %p549
      %p551 = scmp.ne.s32.totalorder %s539, %s540
      %p552 = scmp.eq.s32.totalorder %s116, 1
      %p553 = por %p551, %p552
      %p555 = scmp.ne.s32.totalorder %s540, %s554
      %p556 = scmp.eq.s32.totalorder %s116, 0
      %p557 = por %p555, %p556
      %s559 = sadd.s32 %s558, 1
      %p562 = scmp.eq.s32.totalorder %s110, 1
      %p563 = scmp.ne.s32.totalorder %s558, %s560
      %p564 = scmp.eq.s32.totalorder %s110, 0
      %p565 = por %p563, %p564
      %p566 = scmp.ne.s32.totalorder %s558, %s560
      %p567 = scmp.eq.s32.totalorder %s115, 1
      %p568 = por %p566, %p567
      %p569 = scmp.ne.s32.totalorder %s560, %s561
      %p570 = scmp.eq.s32.totalorder %s115, 0
      %p571 = por %p569, %p570
      %p572 = scmp.ne.s32.totalorder %s560, %s561
      %p573 = scmp.eq.s32.totalorder %s116, 1
      %p574 = por %p572, %p573
      %p576 = scmp.ne.s32.totalorder %s561, %s575
      %p577 = scmp.eq.s32.totalorder %s116, 0
      %p578 = por %p576, %p577
      %s580 = sadd.s32 %s579, 1
      %p583 = scmp.eq.s32.totalorder %s110, 1
      %p584 = scmp.ne.s32.totalorder %s579, %s581
      %p585 = scmp.eq.s32.totalorder %s110, 0
      %p586 = por %p584, %p585
      %p587 = scmp.ne.s32.totalorder %s579, %s581
      %p588 = scmp.eq.s32.totalorder %s115, 1
      %p589 = por %p587, %p588
      %p590 = scmp.ne.s32.totalorder %s581, %s582
      %p591 = scmp.eq.s32.totalorder %s115, 0
      %p592 = por %p590, %p591
      %p593 = scmp.ne.s32.totalorder %s581, %s582
      %p594 = scmp.eq.s32.totalorder %s116, 1
      %p595 = por %p593, %p594
      %p597 = scmp.ne.s32.totalorder %s582, %s596
      %p598 = scmp.eq.s32.totalorder %s116, 0
      %p599 = por %p597, %p598
      %s601 = sadd.s32 %s600, 1
      %p604 = scmp.eq.s32.totalorder %s110, 1
      %p605 = scmp.ne.s32.totalorder %s600, %s602
      %p606 = scmp.eq.s32.totalorder %s110, 0
      %p607 = por %p605, %p606
      %p608 = scmp.ne.s32.totalorder %s600, %s602
      %p609 = scmp.eq.s32.totalorder %s115, 1
      %p610 = por %p608, %p609
      %p611 = scmp.ne.s32.totalorder %s602, %s603
      %p612 = scmp.eq.s32.totalorder %s115, 0
      %p613 = por %p611, %p612
      %p614 = scmp.ne.s32.totalorder %s602, %s603
      %p615 = scmp.eq.s32.totalorder %s116, 1
      %p616 = por %p614, %p615
      %p618 = scmp.ne.s32.totalorder %s603, %s617
      %p619 = scmp.eq.s32.totalorder %s116, 0
      %p620 = por %p618, %p619
      %s622 = sadd.s32 %s621, 1
      %p625 = scmp.eq.s32.totalorder %s110, 1
      %p626 = scmp.ne.s32.totalorder %s621, %s623
      %p627 = scmp.eq.s32.totalorder %s110, 0
      %p628 = por %p626, %p627
      %p629 = scmp.ne.s32.totalorder %s621, %s623
      %p630 = scmp.eq.s32.totalorder %s115, 1
      %p631 = por %p629, %p630
      %p632 = scmp.ne.s32.totalorder %s623, %s624
      %p633 = scmp.eq.s32.totalorder %s115, 0
      %p634 = por %p632, %p633
      %p635 = scmp.ne.s32.totalorder %s623, %s624
      %p636 = scmp.eq.s32.totalorder %s116, 1
      %p637 = por %p635, %p636
      %p639 = scmp.ne.s32.totalorder %s624, %s638
      %p640 = scmp.eq.s32.totalorder %s116, 0
      %p641 = por %p639, %p640
      %s643 = sadd.s32 %s642, 1
      %p646 = scmp.eq.s32.totalorder %s110, 1
      %p647 = scmp.ne.s32.totalorder %s642, %s644
      %p648 = scmp.eq.s32.totalorder %s110, 0
      %p649 = por %p647, %p648
      %p650 = scmp.ne.s32.totalorder %s642, %s644
      %p651 = scmp.eq.s32.totalorder %s115, 1
      %p652 = por %p650, %p651
      %p653 = scmp.ne.s32.totalorder %s644, %s645
      %p654 = scmp.eq.s32.totalorder %s115, 0
      %p655 = por %p653, %p654
      %p656 = scmp.ne.s32.totalorder %s644, %s645
      %p657 = scmp.eq.s32.totalorder %s116, 1
      %p658 = por %p656, %p657
      %p660 = scmp.ne.s32.totalorder %s645, %s659
      %p661 = scmp.eq.s32.totalorder %s116, 0
      %p662 = por %p660, %p661
      %s664 = sadd.s32 %s663, 1
      %p667 = scmp.eq.s32.totalorder %s110, 1
      %p668 = scmp.ne.s32.totalorder %s663, %s665
      %p669 = scmp.eq.s32.totalorder %s110, 0
      %p670 = por %p668, %p669
      %p671 = scmp.ne.s32.totalorder %s663, %s665
      %p672 = scmp.eq.s32.totalorder %s115, 1
      %p673 = por %p671, %p672
      %p674 = scmp.ne.s32.totalorder %s665, %s666
      %p675 = scmp.eq.s32.totalorder %s115, 0
      %p676 = por %p674, %p675
      %p677 = scmp.ne.s32.totalorder %s665, %s666
      %p678 = scmp.eq.s32.totalorder %s116, 1
      %p679 = por %p677, %p678
      %p681 = scmp.ne.s32.totalorder %s666, %s680
      %p682 = scmp.eq.s32.totalorder %s116, 0
      %p683 = por %p681, %p682
      %s685 = sadd.s32 %s684, 1
      %p688 = scmp.eq.s32.totalorder %s110, 1
      %p689 = scmp.ne.s32.totalorder %s684, %s686
      %p690 = scmp.eq.s32.totalorder %s110, 0
      %p691 = por %p689, %p690
      %p692 = scmp.ne.s32.totalorder %s684, %s686
      %p693 = scmp.eq.s32.totalorder %s115, 1
      %p694 = por %p692, %p693
      %p695 = scmp.ne.s32.totalorder %s686, %s687
      %p696 = scmp.eq.s32.totalorder %s115, 0
      %p697 = por %p695, %p696
      %p698 = scmp.ne.s32.totalorder %s686, %s687
      %p699 = scmp.eq.s32.totalorder %s116, 1
      %p700 = por %p698, %p699
      %p702 = scmp.ne.s32.totalorder %s687, %s701
      %p703 = scmp.eq.s32.totalorder %s116, 0
      %p704 = por %p702, %p703
      %s706 = sadd.s32 %s705, 1
      %p709 = scmp.eq.s32.totalorder %s110, 1
      %p710 = scmp.ne.s32.totalorder %s705, %s707
      %p711 = scmp.eq.s32.totalorder %s110, 0
      %p712 = por %p710, %p711
      %p713 = scmp.ne.s32.totalorder %s705, %s707
      %p714 = scmp.eq.s32.totalorder %s115, 1
      %p715 = por %p713, %p714
      %p716 = scmp.ne.s32.totalorder %s707, %s708
      %p717 = scmp.eq.s32.totalorder %s115, 0
      %p718 = por %p716, %p717
      %p719 = scmp.ne.s32.totalorder %s707, %s708
      %p720 = scmp.eq.s32.totalorder %s116, 1
      %p721 = por %p719, %p720
      %p723 = scmp.ne.s32.totalorder %s708, %s722
      %p724 = scmp.eq.s32.totalorder %s116, 0
      %p725 = por %p723, %p724
      %s727 = sadd.s32 %s726, 1
      %p730 = scmp.eq.s32.totalorder %s110, 1
      %p731 = scmp.ne.s32.totalorder %s726, %s728
      %p732 = scmp.eq.s32.totalorder %s110, 0
      %p733 = por %p731, %p732
      %p734 = scmp.ne.s32.totalorder %s726, %s728
      %p735 = scmp.eq.s32.totalorder %s115, 1
      %p736 = por %p734, %p735
      %p737 = scmp.ne.s32.totalorder %s728, %s729
      %p738 = scmp.eq.s32.totalorder %s115, 0
      %p739 = por %p737, %p738
      %p740 = scmp.ne.s32.totalorder %s728, %s729
      %p741 = scmp.eq.s32.totalorder %s116, 1
      %p742 = por %p740, %p741
      %p744 = scmp.ne.s32.totalorder %s729, %s743
      %p745 = scmp.eq.s32.totalorder %s116, 0
      %p746 = por %p744, %p745
      %s748 = sadd.s32 %s747, 1
      %p751 = scmp.eq.s32.totalorder %s110, 1
      %p752 = scmp.ne.s32.totalorder %s747, %s749
      %p753 = scmp.eq.s32.totalorder %s110, 0
      %p754 = por %p752, %p753
      %p755 = scmp.ne.s32.totalorder %s747, %s749
      %p756 = scmp.eq.s32.totalorder %s115, 1
      %p757 = por %p755, %p756
      %p758 = scmp.ne.s32.totalorder %s749, %s750
      %p759 = scmp.eq.s32.totalorder %s115, 0
      %p760 = por %p758, %p759
      %p761 = scmp.ne.s32.totalorder %s749, %s750
      %p762 = scmp.eq.s32.totalorder %s116, 1
      %p763 = por %p761, %p762
      %p765 = scmp.ne.s32.totalorder %s750, %s764
      %p766 = scmp.eq.s32.totalorder %s116, 0
      %p767 = por %p765, %p766
      %s769 = sadd.s32 %s768, 1
      %p772 = scmp.eq.s32.totalorder %s110, 1
      %p773 = scmp.ne.s32.totalorder %s768, %s770
      %p774 = scmp.eq.s32.totalorder %s110, 0
      %p775 = por %p773, %p774
      %p776 = scmp.ne.s32.totalorder %s768, %s770
      %p777 = scmp.eq.s32.totalorder %s115, 1
      %p778 = por %p776, %p777
      %p779 = scmp.ne.s32.totalorder %s770, %s771
      %p780 = scmp.eq.s32.totalorder %s115, 0
      %p781 = por %p779, %p780
      %p782 = scmp.ne.s32.totalorder %s770, %s771
      %p783 = scmp.eq.s32.totalorder %s116, 1
      %p784 = por %p782, %p783
      %p786 = scmp.ne.s32.totalorder %s771, %s785
      %p787 = scmp.eq.s32.totalorder %s116, 0
      %p788 = por %p786, %p787
      %s790 = sadd.s32 %s789, 1
      %p793 = scmp.eq.s32.totalorder %s110, 1
      %p794 = scmp.ne.s32.totalorder %s789, %s791
      %p795 = scmp.eq.s32.totalorder %s110, 0
      %p796 = por %p794, %p795
      %p797 = scmp.ne.s32.totalorder %s789, %s791
      %p798 = scmp.eq.s32.totalorder %s115, 1
      %p799 = por %p797, %p798
      %p800 = scmp.ne.s32.totalorder %s791, %s792
      %p801 = scmp.eq.s32.totalorder %s115, 0
      %p802 = por %p800, %p801
      %p803 = scmp.ne.s32.totalorder %s791, %s792
      %p804 = scmp.eq.s32.totalorder %s116, 1
      %p805 = por %p803, %p804
      %p807 = scmp.ne.s32.totalorder %s792, %s806
      %p808 = scmp.eq.s32.totalorder %s116, 0
      %p809 = por %p807, %p808
      %s811 = sadd.s32 %s810, 1
      %p814 = scmp.eq.s32.totalorder %s110, 1
      %p815 = scmp.ne.s32.totalorder %s810, %s812
      %p816 = scmp.eq.s32.totalorder %s110, 0
      %p817 = por %p815, %p816
      %p818 = scmp.ne.s32.totalorder %s810, %s812
      %p819 = scmp.eq.s32.totalorder %s115, 1
      %p820 = por %p818, %p819
      %p821 = scmp.ne.s32.totalorder %s812, %s813
      %p822 = scmp.eq.s32.totalorder %s115, 0
      %p823 = por %p821, %p822
      %p824 = scmp.ne.s32.totalorder %s812, %s813
      %p825 = scmp.eq.s32.totalorder %s116, 1
      %p826 = por %p824, %p825
      %p828 = scmp.ne.s32.totalorder %s813, %s827
      %p829 = scmp.eq.s32.totalorder %s116, 0
      %p830 = por %p828, %p829
      %s832 = sadd.s32 %s831, 1
      %p835 = scmp.eq.s32.totalorder %s110, 1
      %p836 = scmp.ne.s32.totalorder %s831, %s833
      %p837 = scmp.eq.s32.totalorder %s110, 0
      %p838 = por %p836, %p837
      %p839 = scmp.ne.s32.totalorder %s831, %s833
      %p840 = scmp.eq.s32.totalorder %s115, 1
      %p841 = por %p839, %p840
      %p842 = scmp.ne.s32.totalorder %s833, %s834
      %p843 = scmp.eq.s32.totalorder %s115, 0
      %p844 = por %p842, %p843
      %p845 = scmp.ne.s32.totalorder %s833, %s834
      %p846 = scmp.eq.s32.totalorder %s116, 1
      %p847 = por %p845, %p846
      %p849 = scmp.ne.s32.totalorder %s834, %s848
      %p850 = scmp.eq.s32.totalorder %s116, 0
      %p851 = por %p849, %p850
      %s853 = sadd.s32 %s852, 1
      %p856 = scmp.eq.s32.totalorder %s110, 1
      %p857 = scmp.ne.s32.totalorder %s852, %s854
      %p858 = scmp.eq.s32.totalorder %s110, 0
      %p859 = por %p857, %p858
      %p860 = scmp.ne.s32.totalorder %s852, %s854
      %p861 = scmp.eq.s32.totalorder %s115, 1
      %p862 = por %p860, %p861
      %p863 = scmp.ne.s32.totalorder %s854, %s855
      %p864 = scmp.eq.s32.totalorder %s115, 0
      %p865 = por %p863, %p864
      %p866 = scmp.ne.s32.totalorder %s854, %s855
      %p867 = scmp.eq.s32.totalorder %s116, 1
      %p868 = por %p866, %p867
      %p870 = scmp.ne.s32.totalorder %s855, %s869
      %p871 = scmp.eq.s32.totalorder %s116, 0
      %p872 = por %p870, %p871
      %s874 = sadd.s32 %s873, 1
      %p877 = scmp.eq.s32.totalorder %s110, 1
      %p878 = scmp.ne.s32.totalorder %s873, %s875
      %p879 = scmp.eq.s32.totalorder %s110, 0
      %p880 = por %p878, %p879
      %p881 = scmp.ne.s32.totalorder %s873, %s875
      %p882 = scmp.eq.s32.totalorder %s115, 1
      %p883 = por %p881, %p882
      %p884 = scmp.ne.s32.totalorder %s875, %s876
      %p885 = scmp.eq.s32.totalorder %s115, 0
      %p886 = por %p884, %p885
      %p887 = scmp.ne.s32.totalorder %s875, %s876
      %p888 = scmp.eq.s32.totalorder %s116, 1
      %p889 = por %p887, %p888
      %p891 = scmp.ne.s32.totalorder %s876, %s890
      %p892 = scmp.eq.s32.totalorder %s116, 0
      %p893 = por %p891, %p892
      %s895 = sadd.s32 %s894, 1
      %p898 = scmp.eq.s32.totalorder %s110, 1
      %p899 = scmp.ne.s32.totalorder %s894, %s896
      %p900 = scmp.eq.s32.totalorder %s110, 0
      %p901 = por %p899, %p900
      %p902 = scmp.ne.s32.totalorder %s894, %s896
      %p903 = scmp.eq.s32.totalorder %s115, 1
      %p904 = por %p902, %p903
      %p905 = scmp.ne.s32.totalorder %s896, %s897
      %p906 = scmp.eq.s32.totalorder %s115, 0
      %p907 = por %p905, %p906
      %p908 = scmp.ne.s32.totalorder %s896, %s897
      %p909 = scmp.eq.s32.totalorder %s116, 1
      %p910 = por %p908, %p909
      %p912 = scmp.ne.s32.totalorder %s897, %s911
      %p913 = scmp.eq.s32.totalorder %s116, 0
      %p914 = por %p912, %p913
      %s916 = sadd.s32 %s915, 1
      %p919 = scmp.eq.s32.totalorder %s110, 1
      %p920 = scmp.ne.s32.totalorder %s915, %s917
      %p921 = scmp.eq.s32.totalorder %s110, 0
      %p922 = por %p920, %p921
      %p923 = scmp.ne.s32.totalorder %s915, %s917
      %p924 = scmp.eq.s32.totalorder %s115, 1
      %p925 = por %p923, %p924
      %p926 = scmp.ne.s32.totalorder %s917, %s918
      %p927 = scmp.eq.s32.totalorder %s115, 0
      %p928 = por %p926, %p927
      %p929 = scmp.ne.s32.totalorder %s917, %s918
      %p930 = scmp.eq.s32.totalorder %s116, 1
      %p931 = por %p929, %p930
      %p933 = scmp.ne.s32.totalorder %s918, %s932
      %p934 = scmp.eq.s32.totalorder %s116, 0
      %p935 = por %p933, %p934
      %s937 = sadd.s32 %s936, 1
      %p940 = scmp.eq.s32.totalorder %s110, 1
      %p941 = scmp.ne.s32.totalorder %s936, %s938
      %p942 = scmp.eq.s32.totalorder %s110, 0
      %p943 = por %p941, %p942
      %p944 = scmp.ne.s32.totalorder %s936, %s938
      %p945 = scmp.eq.s32.totalorder %s115, 1
      %p946 = por %p944, %p945
      %p947 = scmp.ne.s32.totalorder %s938, %s939
      %p948 = scmp.eq.s32.totalorder %s115, 0
      %p949 = por %p947, %p948
      %p950 = scmp.ne.s32.totalorder %s938, %s939
      %p951 = scmp.eq.s32.totalorder %s116, 1
      %p952 = por %p950, %p951
      %p954 = scmp.ne.s32.totalorder %s939, %s953
      %p955 = scmp.eq.s32.totalorder %s116, 0
      %p956 = por %p954, %p955
      %s958 = sadd.s32 %s957, 1
      %p961 = scmp.eq.s32.totalorder %s110, 1
      %p962 = scmp.ne.s32.totalorder %s957, %s959
      %p963 = scmp.eq.s32.totalorder %s110, 0
      %p964 = por %p962, %p963
      %p965 = scmp.ne.s32.totalorder %s957, %s959
      %p966 = scmp.eq.s32.totalorder %s115, 1
      %p967 = por %p965, %p966
      %p968 = scmp.ne.s32.totalorder %s959, %s960
      %p969 = scmp.eq.s32.totalorder %s115, 0
      %p970 = por %p968, %p969
      %p971 = scmp.ne.s32.totalorder %s959, %s960
      %p972 = scmp.eq.s32.totalorder %s116, 1
      %p973 = por %p971, %p972
      %p975 = scmp.ne.s32.totalorder %s960, %s974
      %p976 = scmp.eq.s32.totalorder %s116, 0
      %p977 = por %p975, %p976
      %s978 = ssub.s32 %s110, %s117
      %p979 = scmp.eq.s32.totalorder %s978, 0
      %s981 = sadd.s32 %s980, 1
      %s982 = scalar_select %p979, %s980, %s981
      %p985 = pneg %p979
      %p986 = scmp.eq.s32.totalorder %s110, 1
      %p987 = por %p985, %p986
      %p988 = scmp.ne.s32.totalorder %s980, %s983
      %p989 = scmp.eq.s32.totalorder %s110, 0
      %p990 = por %p988, %p989
      %p991 = scmp.ne.s32.totalorder %s980, %s983
      %p992 = scmp.eq.s32.totalorder %s115, 1
      %p993 = por %p991, %p992
      %p994 = scmp.ne.s32.totalorder %s983, %s984
      %p995 = scmp.eq.s32.totalorder %s115, 0
      %p996 = por %p994, %p995
      %p997 = scmp.ne.s32.totalorder %s983, %s984
      %p998 = scmp.eq.s32.totalorder %s116, 1
      %p999 = por %p997, %p998
      %p1001 = scmp.ne.s32.totalorder %s984, %s1000
      %p1002 = scmp.eq.s32.totalorder %s116, 0
      %p1003 = por %p1001, %p1002
      %s1004 = ssub.s32 %s110, %s117
      %p1005 = scmp.eq.s32.totalorder %s1004, 0
      %s1007 = sadd.s32 %s1006, 1
      %s1008 = scalar_select %p1005, %s1006, %s1007
      %p1011 = pneg %p1005
      %p1012 = scmp.eq.s32.totalorder %s110, 1
      %p1013 = por %p1011, %p1012
      %p1014 = scmp.ne.s32.totalorder %s1006, %s1009
      %p1015 = scmp.eq.s32.totalorder %s110, 0
      %p1016 = por %p1014, %p1015
      %p1017 = scmp.ne.s32.totalorder %s1006, %s1009
      %p1018 = scmp.eq.s32.totalorder %s115, 1
      %p1019 = por %p1017, %p1018
      %p1020 = scmp.ne.s32.totalorder %s1009, %s1010
      %p1021 = scmp.eq.s32.totalorder %s115, 0
      %p1022 = por %p1020, %p1021
      %p1023 = scmp.ne.s32.totalorder %s1009, %s1010
      %p1024 = scmp.eq.s32.totalorder %s116, 1
      %p1025 = por %p1023, %p1024
      %p1027 = scmp.ne.s32.totalorder %s1010, %s1026
      %p1028 = scmp.eq.s32.totalorder %s116, 0
      %p1029 = por %p1027, %p1028
      %p1030 = scmp.le.s32.totalorder 1, %s110
      %p1031 = scmp.lt.s32.totalorder %s110, 3
      %p1032 = pnand %p1030, %p1031
      %p1033 = pneg %p1032
      // Predicated region
      $region9: #{two_way_attention_block.1} parent=5 // pred_check
        _
      $region10: #{two_way_attention_block.1} parent=5 // pred_check_branch
        %1035 = sbr.rel (%p1032) target = $region12
      $region11: #{two_way_attention_block.1} parent=5 // pred_region
        %s1036 = ssub.s32 %s110, 1
        // Predicated region
        $region13: #{two_way_attention_block.1} parent=11 // pred_check
          %p1037 = pneg %p235
        $region14: #{two_way_attention_block.1} parent=11 // pred_check_branch
          %1039 = sbr.rel (%p1037) target = $region16
        $region15: #{two_way_attention_block.1} parent=11 // pred_region
          _
        $region16: #{two_way_attention_block.1} parent=11 // pred_fallthru
          _
        // Predicated region
        $region17: #{two_way_attention_block.1} parent=11 // pred_check
          %p1040 = pneg %p256
        $region18: #{two_way_attention_block.1} parent=11 // pred_check_branch
          %1042 = sbr.rel (%p1040) target = $region20
        $region19: #{two_way_attention_block.1} parent=11 // pred_region
          _
        $region20: #{two_way_attention_block.1} parent=11 // pred_fallthru
          _
        // Predicated region
        $region21: #{two_way_attention_block.1} parent=11 // pred_check
          %p1043 = pneg %p277
        $region22: #{two_way_attention_block.1} parent=11 // pred_check_branch
          %1045 = sbr.rel (%p1043) target = $region24
        $region23: #{two_way_attention_block.1} parent=11 // pred_region
          _
        $region24: #{two_way_attention_block.1} parent=11 // pred_fallthru
          _
        // Predicated region
        $region25: #{two_way_attention_block.1} parent=11 // pred_check
          %p1046 = pneg %p298
        $region26: #{two_way_attention_block.1} parent=11 // pred_check_branch
          %1048 = sbr.rel (%p1046) target = $region28
        $region27: #{two_way_attention_block.1} parent=11 // pred_region
          _
        $region28: #{two_way_attention_block.1} parent=11 // pred_fallthru
          _
        // Predicated region
        $region29: #{two_way_attention_block.1} parent=11 // pred_check
          %p1049 = pneg %p319
        $region30: #{two_way_attention_block.1} parent=11 // pred_check_branch
          %1051 = sbr.rel (%p1049) target = $region32
        $region31: #{two_way_attention_block.1} parent=11 // pred_region
          _
        $region32: #{two_way_attention_block.1} parent=11 // pred_fallthru
          _
        // Predicated region
        $region33: #{two_way_attention_block.1} parent=11 // pred_check
          %p1052 = pneg %p340
        $region34: #{two_way_attention_block.1} parent=11 // pred_check_branch
          %1054 = sbr.rel (%p1052) target = $region36
        $region35: #{two_way_attention_block.1} parent=11 // pred_region
          _
        $region36: #{two_way_attention_block.1} parent=11 // pred_fallthru
          _
        // Predicated region
        $region37: #{two_way_attention_block.1} parent=11 // pred_check
          %p1055 = pneg %p361
        $region38: #{two_way_attention_block.1} parent=11 // pred_check_branch
          %1057 = sbr.rel (%p1055) target = $region40
        $region39: #{two_way_attention_block.1} parent=11 // pred_region
          _
        $region40: #{two_way_attention_block.1} parent=11 // pred_fallthru
          _
        // Predicated region
        $region41: #{two_way_attention_block.1} parent=11 // pred_check
          %p1058 = pneg %p382
        $region42: #{two_way_attention_block.1} parent=11 // pred_check_branch
          %1060 = sbr.rel (%p1058) target = $region44
        $region43: #{two_way_attention_block.1} parent=11 // pred_region
          _
        $region44: #{two_way_attention_block.1} parent=11 // pred_fallthru
          _
        // Predicated region
        $region45: #{two_way_attention_block.1} parent=11 // pred_check
          %p1061 = pneg %p403
        $region46: #{two_way_attention_block.1} parent=11 // pred_check_branch
          %1063 = sbr.rel (%p1061) target = $region48
        $region47: #{two_way_attention_block.1} parent=11 // pred_region
          _
        $region48: #{two_way_attention_block.1} parent=11 // pred_fallthru
          _
        // Predicated region
        $region49: #{two_way_attention_block.1} parent=11 // pred_check
          %p1064 = pneg %p424
        $region50: #{two_way_attention_block.1} parent=11 // pred_check_branch
          %1066 = sbr.rel (%p1064) target = $region52
        $region51: #{two_way_attention_block.1} parent=11 // pred_region
          _
        $region52: #{two_way_attention_block.1} parent=11 // pred_fallthru
          _
        // Predicated region
        $region53: #{two_way_attention_block.1} parent=11 // pred_check
          %p1067 = pneg %p445
        $region54: #{two_way_attention_block.1} parent=11 // pred_check_branch
          %1069 = sbr.rel (%p1067) target = $region56
        $region55: #{two_way_attention_block.1} parent=11 // pred_region
          _
        $region56: #{two_way_attention_block.1} parent=11 // pred_fallthru
          _
        // Predicated region
        $region57: #{two_way_attention_block.1} parent=11 // pred_check
          %p1070 = pneg %p466
        $region58: #{two_way_attention_block.1} parent=11 // pred_check_branch
          %1072 = sbr.rel (%p1070) target = $region60
        $region59: #{two_way_attention_block.1} parent=11 // pred_region
          _
        $region60: #{two_way_attention_block.1} parent=11 // pred_fallthru
          _
        // Predicated region
        $region61: #{two_way_attention_block.1} parent=11 // pred_check
          %p1073 = pneg %p487
        $region62: #{two_way_attention_block.1} parent=11 // pred_check_branch
          %1075 = sbr.rel (%p1073) target = $region64
        $region63: #{two_way_attention_block.1} parent=11 // pred_region
          _
        $region64: #{two_way_attention_block.1} parent=11 // pred_fallthru
          _
        // Predicated region
        $region65: #{two_way_attention_block.1} parent=11 // pred_check
          %p1076 = pneg %p508
        $region66: #{two_way_attention_block.1} parent=11 // pred_check_branch
          %1078 = sbr.rel (%p1076) target = $region68
        $region67: #{two_way_attention_block.1} parent=11 // pred_region
          %s1080 = ssub.s32 16, 16
          %1081 = vsyncadd [#allocation6], %s1080
          %s1083 = sshll.u32 [#allocation7], 4
          %s1084 = int_to_ptr.vmem [resolvable:$true] %s1083
          %1086 = dma.hbm_to_vmem [thread:$0]  %s35, 16, %s1084, [#allocation6]
        $region68: #{two_way_attention_block.1} parent=11 // pred_fallthru
          _
        // Predicated region
        $region69: #{two_way_attention_block.1} parent=11 // pred_check
          %p1087 = pneg %p529
        $region70: #{two_way_attention_block.1} parent=11 // pred_check_branch
          %1089 = sbr.rel (%p1087) target = $region72
        $region71: #{two_way_attention_block.1} parent=11 // pred_region
          %s1091 = ssub.s32 1024, 1024
          %1092 = vsyncadd [#allocation9], %s1091
          %s1093 = sshll.u32 [#allocation8], 4
          %s1094 = int_to_ptr.vmem [resolvable:$true] %s1093
          %1099 = dma.hbm_to_vmem [thread:$0]  %s37, 1024, %s1094, [#allocation9], 128, 128, 8
        $region72: #{two_way_attention_block.1} parent=11 // pred_fallthru
          _
        // Predicated region
        $region73: #{two_way_attention_block.1} parent=11 // pred_check
          %p1100 = pneg %p550
        $region74: #{two_way_attention_block.1} parent=11 // pred_check_branch
          %1102 = sbr.rel (%p1100) target = $region76
        $region75: #{two_way_attention_block.1} parent=11 // pred_region
          %s1104 = ssub.s32 16, 16
          %1105 = vsyncadd [#allocation9], %s1104
          %s1107 = sshll.u32 [#allocation10], 4
          %s1108 = int_to_ptr.vmem [resolvable:$true] %s1107
          %1110 = dma.hbm_to_vmem [thread:$0]  %s39, 16, %s1108, [#allocation9]
        $region76: #{two_way_attention_block.1} parent=11 // pred_fallthru
          _
        // Predicated region
        $region77: #{two_way_attention_block.1} parent=11 // pred_check
          %p1111 = pneg %p571
        $region78: #{two_way_attention_block.1} parent=11 // pred_check_branch
          %1113 = sbr.rel (%p1111) target = $region80
        $region79: #{two_way_attention_block.1} parent=11 // pred_region
          _
        $region80: #{two_way_attention_block.1} parent=11 // pred_fallthru
          _
        // Predicated region
        $region81: #{two_way_attention_block.1} parent=11 // pred_check
          %p1114 = pneg %p592
        $region82: #{two_way_attention_block.1} parent=11 // pred_check_branch
          %1116 = sbr.rel (%p1114) target = $region84
        $region83: #{two_way_attention_block.1} parent=11 // pred_region
          %s1118 = ssub.s32 16, 16
          %1119 = vsyncadd [#allocation12], %s1118
          %s1121 = sshll.u32 [#allocation11], 4
          %s1122 = int_to_ptr.vmem [resolvable:$true] %s1121
          %1124 = dma.hbm_to_vmem [thread:$0]  %s43, 16, %s1122, [#allocation12]
        $region84: #{two_way_attention_block.1} parent=11 // pred_fallthru
          _
        // Predicated region
        $region85: #{two_way_attention_block.1} parent=11 // pred_check
          %p1125 = pneg %p613
        $region86: #{two_way_attention_block.1} parent=11 // pred_check_branch
          %1127 = sbr.rel (%p1125) target = $region88
        $region87: #{two_way_attention_block.1} parent=11 // pred_region
          _
        $region88: #{two_way_attention_block.1} parent=11 // pred_fallthru
          _
        // Predicated region
        $region89: #{two_way_attention_block.1} parent=11 // pred_check
          %p1128 = pneg %p634
        $region90: #{two_way_attention_block.1} parent=11 // pred_check_branch
          %1130 = sbr.rel (%p1128) target = $region92
        $region91: #{two_way_attention_block.1} parent=11 // pred_region
          %s1132 = ssub.s32 16, 16
          %1133 = vsyncadd [#allocation12], %s1132
          %s1135 = sshll.u32 [#allocation13], 4
          %s1136 = int_to_ptr.vmem [resolvable:$true] %s1135
          %1138 = dma.hbm_to_vmem [thread:$0]  %s47, 16, %s1136, [#allocation12]
        $region92: #{two_way_attention_block.1} parent=11 // pred_fallthru
          _
        // Predicated region
        $region93: #{two_way_attention_block.1} parent=11 // pred_check
          %p1139 = pneg %p655
        $region94: #{two_way_attention_block.1} parent=11 // pred_check_branch
          %1141 = sbr.rel (%p1139) target = $region96
        $region95: #{two_way_attention_block.1} parent=11 // pred_region
          _
        $region96: #{two_way_attention_block.1} parent=11 // pred_fallthru
          _
        // Predicated region
        $region97: #{two_way_attention_block.1} parent=11 // pred_check
          %p1142 = pneg %p676
        $region98: #{two_way_attention_block.1} parent=11 // pred_check_branch
          %1144 = sbr.rel (%p1142) target = $region100
        $region99: #{two_way_attention_block.1} parent=11 // pred_region
          %s1146 = ssub.s32 16, 16
          %1147 = vsyncadd [#allocation15], %s1146
          %s1149 = sshll.u32 [#allocation14], 4
          %s1150 = int_to_ptr.vmem [resolvable:$true] %s1149
          %1152 = dma.hbm_to_vmem [thread:$0]  %s51, 16, %s1150, [#allocation15]
        $region100: #{two_way_attention_block.1} parent=11 // pred_fallthru
          _
        // Predicated region
        $region101: #{two_way_attention_block.1} parent=11 // pred_check
          %p1153 = pneg %p697
        $region102: #{two_way_attention_block.1} parent=11 // pred_check_branch
          %1155 = sbr.rel (%p1153) target = $region104
        $region103: #{two_way_attention_block.1} parent=11 // pred_region
          %s1157 = ssub.s32 1024, 1024
          %1158 = vsyncadd [#allocation15], %s1157
          %s1159 = sshll.u32 [#allocation16], 4
          %s1160 = int_to_ptr.vmem [resolvable:$true] %s1159
          %1165 = dma.hbm_to_vmem [thread:$0]  %s53, 1024, %s1160, [#allocation15], 128, 128, 8
        $region104: #{two_way_attention_block.1} parent=11 // pred_fallthru
          _
        // Predicated region
        $region105: #{two_way_attention_block.1} parent=11 // pred_check
          %p1166 = pneg %p718
        $region106: #{two_way_attention_block.1} parent=11 // pred_check_branch
          %1168 = sbr.rel (%p1166) target = $region108
        $region107: #{two_way_attention_block.1} parent=11 // pred_region
          %s1170 = ssub.s32 16, 16
          %1171 = vsyncadd [#allocation18], %s1170
          %s1173 = sshll.u32 [#allocation17], 4
          %s1174 = int_to_ptr.vmem [resolvable:$true] %s1173
          %1176 = dma.hbm_to_vmem [thread:$0]  %s55, 16, %s1174, [#allocation18]
        $region108: #{two_way_attention_block.1} parent=11 // pred_fallthru
          _
        // Predicated region
        $region109: #{two_way_attention_block.1} parent=11 // pred_check
          %p1177 = pneg %p739
        $region110: #{two_way_attention_block.1} parent=11 // pred_check_branch
          %1179 = sbr.rel (%p1177) target = $region112
        $region111: #{two_way_attention_block.1} parent=11 // pred_region
          _
        $region112: #{two_way_attention_block.1} parent=11 // pred_fallthru
          _
        // Predicated region
        $region113: #{two_way_attention_block.1} parent=11 // pred_check
          %p1180 = pneg %p760
        $region114: #{two_way_attention_block.1} parent=11 // pred_check_branch
          %1182 = sbr.rel (%p1180) target = $region116
        $region115: #{two_way_attention_block.1} parent=11 // pred_region
          _
        $region116: #{two_way_attention_block.1} parent=11 // pred_fallthru
          _
        // Predicated region
        $region117: #{two_way_attention_block.1} parent=11 // pred_check
          %p1183 = pneg %p781
        $region118: #{two_way_attention_block.1} parent=11 // pred_check_branch
          %1185 = sbr.rel (%p1183) target = $region120
        $region119: #{two_way_attention_block.1} parent=11 // pred_region
          _
        $region120: #{two_way_attention_block.1} parent=11 // pred_fallthru
          _
        // Predicated region
        $region121: #{two_way_attention_block.1} parent=11 // pred_check
          %p1186 = pneg %p802
        $region122: #{two_way_attention_block.1} parent=11 // pred_check_branch
          %1188 = sbr.rel (%p1186) target = $region124
        $region123: #{two_way_attention_block.1} parent=11 // pred_region
          %s1190 = ssub.s32 16, 16
          %1191 = vsyncadd [#allocation18], %s1190
          %s1193 = sshll.u32 [#allocation19], 4
          %s1194 = int_to_ptr.vmem [resolvable:$true] %s1193
          %1196 = dma.hbm_to_vmem [thread:$0]  %s63, 16, %s1194, [#allocation18]
        $region124: #{two_way_attention_block.1} parent=11 // pred_fallthru
          _
        // Predicated region
        $region125: #{two_way_attention_block.1} parent=11 // pred_check
          %p1197 = pneg %p823
        $region126: #{two_way_attention_block.1} parent=11 // pred_check_branch
          %1199 = sbr.rel (%p1197) target = $region128
        $region127: #{two_way_attention_block.1} parent=11 // pred_region
          %s1201 = ssub.s32 16, 16
          %1202 = vsyncadd [#allocation21], %s1201
          %s1204 = sshll.u32 [#allocation20], 4
          %s1205 = int_to_ptr.vmem [resolvable:$true] %s1204
          %1207 = dma.hbm_to_vmem [thread:$0]  %s65, 16, %s1205, [#allocation21]
        $region128: #{two_way_attention_block.1} parent=11 // pred_fallthru
          _
        // Predicated region
        $region129: #{two_way_attention_block.1} parent=11 // pred_check
          %p1208 = pneg %p844
        $region130: #{two_way_attention_block.1} parent=11 // pred_check_branch
          %1210 = sbr.rel (%p1208) target = $region132
        $region131: #{two_way_attention_block.1} parent=11 // pred_region
          %s1212 = ssub.s32 16, 16
          %1213 = vsyncadd [#allocation21], %s1212
          %s1215 = sshll.u32 [#allocation22], 4
          %s1216 = int_to_ptr.vmem [resolvable:$true] %s1215
          %1218 = dma.hbm_to_vmem [thread:$0]  %s67, 16, %s1216, [#allocation21]
        $region132: #{two_way_attention_block.1} parent=11 // pred_fallthru
          _
        // Predicated region
        $region133: #{two_way_attention_block.1} parent=11 // pred_check
          %p1219 = pneg %p865
        $region134: #{two_way_attention_block.1} parent=11 // pred_check_branch
          %1221 = sbr.rel (%p1219) target = $region136
        $region135: #{two_way_attention_block.1} parent=11 // pred_region
          %s1223 = ssub.s32 16, 16
          %1224 = vsyncadd [#allocation24], %s1223
          %s1226 = sshll.u32 [#allocation23], 4
          %s1227 = int_to_ptr.vmem [resolvable:$true] %s1226
          %1229 = dma.hbm_to_vmem [thread:$0]  %s69, 16, %s1227, [#allocation24]
        $region136: #{two_way_attention_block.1} parent=11 // pred_fallthru
          _
        // Predicated region
        $region137: #{two_way_attention_block.1} parent=11 // pred_check
          %p1230 = pneg %p886
        $region138: #{two_way_attention_block.1} parent=11 // pred_check_branch
          %1232 = sbr.rel (%p1230) target = $region140
        $region139: #{two_way_attention_block.1} parent=11 // pred_region
          %s1234 = ssub.s32 16, 16
          %1235 = vsyncadd [#allocation24], %s1234
          %s1237 = sshll.u32 [#allocation25], 4
          %s1238 = int_to_ptr.vmem [resolvable:$true] %s1237
          %1240 = dma.hbm_to_vmem [thread:$0]  %s71, 16, %s1238, [#allocation24]
        $region140: #{two_way_attention_block.1} parent=11 // pred_fallthru
          _
        // Predicated region
        $region141: #{two_way_attention_block.1} parent=11 // pred_check
          %p1241 = pneg %p907
        $region142: #{two_way_attention_block.1} parent=11 // pred_check_branch
          %1243 = sbr.rel (%p1241) target = $region144
        $region143: #{two_way_attention_block.1} parent=11 // pred_region
          %s1245 = ssub.s32 16, 16
          %1246 = vsyncadd [#allocation27], %s1245
          %s1248 = sshll.u32 [#allocation26], 4
          %s1249 = int_to_ptr.vmem [resolvable:$true] %s1248
          %1251 = dma.hbm_to_vmem [thread:$0]  %s73, 16, %s1249, [#allocation27]
        $region144: #{two_way_attention_block.1} parent=11 // pred_fallthru
          _
        // Predicated region
        $region145: #{two_way_attention_block.1} parent=11 // pred_check
          %p1252 = pneg %p928
        $region146: #{two_way_attention_block.1} parent=11 // pred_check_branch
          %1254 = sbr.rel (%p1252) target = $region148
        $region147: #{two_way_attention_block.1} parent=11 // pred_region
          %s1256 = ssub.s32 16, 16
          %1257 = vsyncadd [#allocation27], %s1256
          %s1259 = sshll.u32 [#allocation28], 4
          %s1260 = int_to_ptr.vmem [resolvable:$true] %s1259
          %1262 = dma.hbm_to_vmem [thread:$0]  %s75, 16, %s1260, [#allocation27]
        $region148: #{two_way_attention_block.1} parent=11 // pred_fallthru
          _
        // Predicated region
        $region149: #{two_way_attention_block.1} parent=11 // pred_check
          %p1263 = pneg %p949
        $region150: #{two_way_attention_block.1} parent=11 // pred_check_branch
          %1265 = sbr.rel (%p1263) target = $region152
        $region151: #{two_way_attention_block.1} parent=11 // pred_region
          %s1267 = ssub.s32 16, 16
          %1268 = vsyncadd [#allocation30], %s1267
          %s1270 = sshll.u32 [#allocation29], 4
          %s1271 = int_to_ptr.vmem [resolvable:$true] %s1270
          %1273 = dma.hbm_to_vmem [thread:$0]  %s77, 16, %s1271, [#allocation30]
        $region152: #{two_way_attention_block.1} parent=11 // pred_fallthru
          _
        // Predicated region
        $region153: #{two_way_attention_block.1} parent=11 // pred_check
          %p1274 = pneg %p970
        $region154: #{two_way_attention_block.1} parent=11 // pred_check_branch
          %1276 = sbr.rel (%p1274) target = $region156
        $region155: #{two_way_attention_block.1} parent=11 // pred_region
          %s1278 = ssub.s32 16, 16
          %1279 = vsyncadd [#allocation30], %s1278
          %s1281 = sshll.u32 [#allocation31], 4
          %s1282 = int_to_ptr.vmem [resolvable:$true] %s1281
          %1284 = dma.hbm_to_vmem [thread:$0]  %s79, 16, %s1282, [#allocation30]
        $region156: #{two_way_attention_block.1} parent=11 // pred_fallthru
          _
      $region12: #{two_way_attention_block.1} parent=5 // pred_fallthru
        _
      %p1285 = scmp.lt.s32.totalorder %s110, 2
      // Predicated region
      $region157: #{two_way_attention_block.1} parent=5 // pred_check
        %p1286 = pneg %p1285
      $region158: #{two_way_attention_block.1} parent=5 // pred_check_branch
        %1288 = sbr.rel (%p1286) target = $region160
      $region159: #{two_way_attention_block.1} parent=5 // pred_region
        // Predicated region
        $region161: #{two_way_attention_block.1} parent=159 // pred_check
          %p1289 = pneg %p130
        $region162: #{two_way_attention_block.1} parent=159 // pred_check_branch
          %1291 = sbr.rel (%p1289) target = $region164
        $region163: #{two_way_attention_block.1} parent=159 // pred_region
          %s1292 = sand.u32 %s120, 1
          %s1293 = scalar_lea.sflag [#allocation3], %s1292
          %s1294 = sand.u32 %s120, 1
          %s1295 = smul.addr %s1294, 16
          %s1296 = scalar_lea.vmem [#allocation2], %s1295
          %s1298 = ssub.s32 256, 256
          %1299 = vsyncadd %s1293, %s1298
          %s1300 = smul.addr %s110, 2
          %s1301 = smul.addr %s1300, 128
          %s1302 = scalar_lea.hbm %s1, %s1301
          %s1303 = sshll.u32 %s1296, 4
          %s1304 = int_to_ptr.vmem [resolvable:$true] %s1303
          %1309 = dma.hbm_to_vmem [thread:$0]  %s1302, 256, %s1304, %s1293, 128, 128, 8
        $region164: #{two_way_attention_block.1} parent=159 // pred_fallthru
          _
        // Predicated region
        $region165: #{two_way_attention_block.1} parent=159 // pred_check
          %p1310 = pneg %p156
        $region166: #{two_way_attention_block.1} parent=159 // pred_check_branch
          %1312 = sbr.rel (%p1310) target = $region168
        $region167: #{two_way_attention_block.1} parent=159 // pred_region
          %p1313 = scmp.lt.s32.totalorder %s110, 1
          %s1314 = scalar_select %p1313, %s110, 1
          %s1315 = smul.addr %s1314, 8
          %s1316 = smul.addr %s1315, 8
          %s1317 = scalar_lea.vmem %s3, %s1316
        $region168: #{two_way_attention_block.1} parent=159 // pred_fallthru
          _
        // Predicated region
        $region169: #{two_way_attention_block.1} parent=159 // pred_check
          %p1318 = pneg %p182
        $region170: #{two_way_attention_block.1} parent=159 // pred_check_branch
          %1320 = sbr.rel (%p1318) target = $region172
        $region171: #{two_way_attention_block.1} parent=159 // pred_region
          %s1321 = sand.u32 %s110, 1
          %s1322 = scalar_lea.sflag [#allocation6], %s1321
          %s1323 = sand.u32 %s172, 1
          %s1324 = smul.addr %s1323, 16
          %s1325 = scalar_lea.vmem [#allocation5], %s1324
          %s1327 = ssub.s32 256, 256
          %1328 = vsyncadd %s1322, %s1327
          %s1329 = smul.addr %s110, 2
          %s1330 = smul.addr %s1329, 128
          %s1331 = scalar_lea.hbm %s5, %s1330
          %s1332 = sshll.u32 %s1325, 4
          %s1333 = int_to_ptr.vmem [resolvable:$true] %s1332
          %1338 = dma.hbm_to_vmem [thread:$0]  %s1331, 256, %s1333, %s1322, 128, 128, 8
        $region172: #{two_way_attention_block.1} parent=159 // pred_fallthru
          _
        // Predicated region
        $region173: #{two_way_attention_block.1} parent=159 // pred_check
          %p1339 = pneg %p208
        $region174: #{two_way_attention_block.1} parent=159 // pred_check_branch
          %1341 = sbr.rel (%p1339) target = $region176
        $region175: #{two_way_attention_block.1} parent=159 // pred_region
          %p1342 = scmp.lt.s32.totalorder %s110, 1
          %s1343 = scalar_select %p1342, %s110, 1
          %s1344 = smul.addr %s1343, 8
          %s1345 = smul.addr %s1344, 8
          %s1346 = scalar_lea.vmem %s7, %s1345
        $region176: #{two_way_attention_block.1} parent=159 // pred_fallthru
          _
      $region160: #{two_way_attention_block.1} parent=5 // pred_fallthru
        _
      %p1347 = scmp.le.s32.totalorder 1, %s110
      %p1348 = scmp.lt.s32.totalorder %s110, 3
      %p1349 = pnand %p1347, %p1348
      %p1350 = pneg %p1349
      // Predicated region
      $region177: #{two_way_attention_block.1} parent=5 // pred_check
        _
      $region178: #{two_way_attention_block.1} parent=5 // pred_check_branch
        %1352 = sbr.rel (%p1349) target = $region180
      $region179: #{two_way_attention_block.1} parent=5 // pred_region
        %s1353 = ssub.s32 %s110, 1
        %s1354 = sand.u32 %s123, 1
        %s1355 = scalar_lea.sflag [#allocation3], %s1354
        %s1356 = sand.u32 %s123, 1
        %s1357 = smul.addr %s1356, 16
        %s1358 = scalar_lea.vmem [#allocation2], %s1357
        // Predicated region
        $region181: #{two_way_attention_block.1} parent=179 // pred_check
          %p1359 = pneg %p136
        $region182: #{two_way_attention_block.1} parent=179 // pred_check_branch
          %1361 = sbr.rel (%p1359) target = $region184
        $region183: #{two_way_attention_block.1} parent=179 // pred_region
          %1362 = dma.done %s1355, 256
        $region184: #{two_way_attention_block.1} parent=179 // pred_fallthru
          _
        %s1363 = sand.u32 %s115, 1
        %s1364 = scalar_lea.sflag [#allocation6], %s1363
        %s1365 = sand.u32 %s175, 1
        %s1366 = smul.addr %s1365, 16
        %s1367 = scalar_lea.vmem [#allocation5], %s1366
        // Predicated region
        $region185: #{two_way_attention_block.1} parent=179 // pred_check
          %p1368 = pneg %p188
        $region186: #{two_way_attention_block.1} parent=179 // pred_check_branch
          %1370 = sbr.rel (%p1368) target = $region188
        $region187: #{two_way_attention_block.1} parent=179 // pred_region
          %1371 = dma.done %s1364, 256
        $region188: #{two_way_attention_block.1} parent=179 // pred_fallthru
          _
        // Predicated region
        $region189: #{two_way_attention_block.1} parent=179 // pred_check
          %p1372 = pneg %p508
        $region190: #{two_way_attention_block.1} parent=179 // pred_check_branch
          %1374 = sbr.rel (%p1372) target = $region192
        $region191: #{two_way_attention_block.1} parent=179 // pred_region
          %1375 = dma.done [#allocation6], 16
        $region192: #{two_way_attention_block.1} parent=179 // pred_fallthru
          _
        // Predicated region
        $region193: #{two_way_attention_block.1} parent=179 // pred_check
          %p1376 = pneg %p529
        $region194: #{two_way_attention_block.1} parent=179 // pred_check_branch
          %1378 = sbr.rel (%p1376) target = $region196
        $region195: #{two_way_attention_block.1} parent=179 // pred_region
          %1379 = dma.done [#allocation9], 1024
        $region196: #{two_way_attention_block.1} parent=179 // pred_fallthru
          _
        // Predicated region
        $region197: #{two_way_attention_block.1} parent=179 // pred_check
          %p1380 = pneg %p550
        $region198: #{two_way_attention_block.1} parent=179 // pred_check_branch
          %1382 = sbr.rel (%p1380) target = $region200
        $region199: #{two_way_attention_block.1} parent=179 // pred_region
          %1383 = dma.done [#allocation9], 16
        $region200: #{two_way_attention_block.1} parent=179 // pred_fallthru
          _
        // Predicated region
        $region201: #{two_way_attention_block.1} parent=179 // pred_check
          %p1384 = pneg %p592
        $region202: #{two_way_attention_block.1} parent=179 // pred_check_branch
          %1386 = sbr.rel (%p1384) target = $region204
        $region203: #{two_way_attention_block.1} parent=179 // pred_region
          %1387 = dma.done [#allocation12], 16
        $region204: #{two_way_attention_block.1} parent=179 // pred_fallthru
          _
        // Predicated region
        $region205: #{two_way_attention_block.1} parent=179 // pred_check
          %p1388 = pneg %p634
        $region206: #{two_way_attention_block.1} parent=179 // pred_check_branch
          %1390 = sbr.rel (%p1388) target = $region208
        $region207: #{two_way_attention_block.1} parent=179 // pred_region
          %1391 = dma.done [#allocation12], 16
        $region208: #{two_way_attention_block.1} parent=179 // pred_fallthru
          _
        // Predicated region
        $region209: #{two_way_attention_block.1} parent=179 // pred_check
          %p1392 = pneg %p676
        $region210: #{two_way_attention_block.1} parent=179 // pred_check_branch
          %1394 = sbr.rel (%p1392) target = $region212
        $region211: #{two_way_attention_block.1} parent=179 // pred_region
          %1395 = dma.done [#allocation15], 16
        $region212: #{two_way_attention_block.1} parent=179 // pred_fallthru
          _
        // Predicated region
        $region213: #{two_way_attention_block.1} parent=179 // pred_check
          %p1396 = pneg %p697
        $region214: #{two_way_attention_block.1} parent=179 // pred_check_branch
          %1398 = sbr.rel (%p1396) target = $region216
        $region215: #{two_way_attention_block.1} parent=179 // pred_region
          %1399 = dma.done [#allocation15], 1024
        $region216: #{two_way_attention_block.1} parent=179 // pred_fallthru
          _
        // Predicated region
        $region217: #{two_way_attention_block.1} parent=179 // pred_check
          %p1400 = pneg %p718
        $region218: #{two_way_attention_block.1} parent=179 // pred_check_branch
          %1402 = sbr.rel (%p1400) target = $region220
        $region219: #{two_way_attention_block.1} parent=179 // pred_region
          %1403 = dma.done [#allocation18], 16
        $region220: #{two_way_attention_block.1} parent=179 // pred_fallthru
          _
        // Predicated region
        $region221: #{two_way_attention_block.1} parent=179 // pred_check
          %p1404 = pneg %p802
        $region222: #{two_way_attention_block.1} parent=179 // pred_check_branch
          %1406 = sbr.rel (%p1404) target = $region224
        $region223: #{two_way_attention_block.1} parent=179 // pred_region
          %1407 = dma.done [#allocation18], 16
        $region224: #{two_way_attention_block.1} parent=179 // pred_fallthru
          _
        // Predicated region
        $region225: #{two_way_attention_block.1} parent=179 // pred_check
          %p1408 = pneg %p823
        $region226: #{two_way_attention_block.1} parent=179 // pred_check_branch
          %1410 = sbr.rel (%p1408) target = $region228
        $region227: #{two_way_attention_block.1} parent=179 // pred_region
          %1411 = dma.done [#allocation21], 16
        $region228: #{two_way_attention_block.1} parent=179 // pred_fallthru
          _
        // Predicated region
        $region229: #{two_way_attention_block.1} parent=179 // pred_check
          %p1412 = pneg %p844
        $region230: #{two_way_attention_block.1} parent=179 // pred_check_branch
          %1414 = sbr.rel (%p1412) target = $region232
        $region231: #{two_way_attention_block.1} parent=179 // pred_region
          %1415 = dma.done [#allocation21], 16
        $region232: #{two_way_attention_block.1} parent=179 // pred_fallthru
          _
        // Predicated region
        $region233: #{two_way_attention_block.1} parent=179 // pred_check
          %p1416 = pneg %p865
        $region234: #{two_way_attention_block.1} parent=179 // pred_check_branch
          %1418 = sbr.rel (%p1416) target = $region236
        $region235: #{two_way_attention_block.1} parent=179 // pred_region
          %1419 = dma.done [#allocation24], 16
        $region236: #{two_way_attention_block.1} parent=179 // pred_fallthru
          _
        // Predicated region
        $region237: #{two_way_attention_block.1} parent=179 // pred_check
          %p1420 = pneg %p886
        $region238: #{two_way_attention_block.1} parent=179 // pred_check_branch
          %1422 = sbr.rel (%p1420) target = $region240
        $region239: #{two_way_attention_block.1} parent=179 // pred_region
          %1423 = dma.done [#allocation24], 16
        $region240: #{two_way_attention_block.1} parent=179 // pred_fallthru
          _
        // Predicated region
        $region241: #{two_way_attention_block.1} parent=179 // pred_check
          %p1424 = pneg %p907
        $region242: #{two_way_attention_block.1} parent=179 // pred_check_branch
          %1426 = sbr.rel (%p1424) target = $region244
        $region243: #{two_way_attention_block.1} parent=179 // pred_region
          %1427 = dma.done [#allocation27], 16
        $region244: #{two_way_attention_block.1} parent=179 // pred_fallthru
          _
        // Predicated region
        $region245: #{two_way_attention_block.1} parent=179 // pred_check
          %p1428 = pneg %p928
        $region246: #{two_way_attention_block.1} parent=179 // pred_check_branch
          %1430 = sbr.rel (%p1428) target = $region248
        $region247: #{two_way_attention_block.1} parent=179 // pred_region
          %1431 = dma.done [#allocation27], 16
        $region248: #{two_way_attention_block.1} parent=179 // pred_fallthru
          _
        // Predicated region
        $region249: #{two_way_attention_block.1} parent=179 // pred_check
          %p1432 = pneg %p949
        $region250: #{two_way_attention_block.1} parent=179 // pred_check_branch
          %1434 = sbr.rel (%p1432) target = $region252
        $region251: #{two_way_attention_block.1} parent=179 // pred_region
          %1435 = dma.done [#allocation30], 16
        $region252: #{two_way_attention_block.1} parent=179 // pred_fallthru
          _
        // Predicated region
        $region253: #{two_way_attention_block.1} parent=179 // pred_check
          %p1436 = pneg %p970
        $region254: #{two_way_attention_block.1} parent=179 // pred_check_branch
          %1438 = sbr.rel (%p1436) target = $region256
        $region255: #{two_way_attention_block.1} parent=179 // pred_region
          %1439 = dma.done [#allocation30], 16
        $region256: #{two_way_attention_block.1} parent=179 // pred_fallthru
          _
        %s1440 = sand.u32 %s123, 1
        %s1441 = scalar_lea.sflag [#allocation3], %s1440
        %s1442 = sand.u32 %s123, 1
        %s1443 = smul.addr %s1442, 16
        %s1444 = scalar_lea.vmem [#allocation2], %s1443
        %p1445 = pneg %p136
        %p1446 = pneg %p133
        %p1447 = scmp.lt.s32.totalorder %s115, 1
        %s1448 = scalar_select %p1447, %s115, 1
        %s1449 = smul.addr %s1448, 8
        %s1450 = smul.addr %s1449, 8
        %s1451 = scalar_lea.vmem %s3, %s1450
        %p1452 = pneg %p162
        %p1453 = pneg %p159
        %s1454 = sand.u32 %s115, 1
        %s1455 = scalar_lea.sflag [#allocation6], %s1454
        %s1456 = sand.u32 %s175, 1
        %s1457 = smul.addr %s1456, 16
        %s1458 = scalar_lea.vmem [#allocation5], %s1457
        %p1459 = pneg %p188
        %p1460 = pneg %p185
        %p1461 = scmp.lt.s32.totalorder %s115, 1
        %s1462 = scalar_select %p1461, %s115, 1
        %s1463 = smul.addr %s1462, 8
        %s1464 = smul.addr %s1463, 8
        %s1465 = scalar_lea.vmem %s7, %s1464
        %p1466 = pneg %p214
        %p1467 = pneg %p211
        %p1468 = pneg %p235
        %p1469 = pneg %p232
        %p1470 = pneg %p256
        %p1471 = pneg %p253
        %p1472 = pneg %p277
        %p1473 = pneg %p274
        %p1474 = pneg %p298
        %p1475 = pneg %p295
        %p1476 = pneg %p319
        %p1477 = pneg %p316
        %p1478 = pneg %p340
        %p1479 = pneg %p337
        %p1480 = pneg %p361
        %p1481 = pneg %p358
        %p1482 = pneg %p382
        %p1483 = pneg %p379
        %p1484 = pneg %p403
        %p1485 = pneg %p400
        %p1486 = pneg %p424
        %p1487 = pneg %p421
        %p1488 = pneg %p445
        %p1489 = pneg %p442
        %p1490 = pneg %p466
        %p1491 = pneg %p463
        %p1492 = pneg %p487
        %p1493 = pneg %p484
        %p1494 = pneg %p508
        %p1495 = pneg %p505
        %p1496 = pneg %p529
        %p1497 = pneg %p526
        %p1498 = pneg %p550
        %p1499 = pneg %p547
        %p1500 = pneg %p571
        %p1501 = pneg %p568
        %p1502 = pneg %p592
        %p1503 = pneg %p589
        %p1504 = pneg %p613
        %p1505 = pneg %p610
        %p1506 = pneg %p634
        %p1507 = pneg %p631
        %p1508 = pneg %p655
        %p1509 = pneg %p652
        %p1510 = pneg %p676
        %p1511 = pneg %p673
        %p1512 = pneg %p697
        %p1513 = pneg %p694
        %p1514 = pneg %p718
        %p1515 = pneg %p715
        %p1516 = pneg %p739
        %p1517 = pneg %p736
        %p1518 = pneg %p760
        %p1519 = pneg %p757
        %p1520 = pneg %p781
        %p1521 = pneg %p778
        %p1522 = pneg %p802
        %p1523 = pneg %p799
        %p1524 = pneg %p823
        %p1525 = pneg %p820
        %p1526 = pneg %p844
        %p1527 = pneg %p841
        %p1528 = pneg %p865
        %p1529 = pneg %p862
        %p1530 = pneg %p886
        %p1531 = pneg %p883
        %p1532 = pneg %p907
        %p1533 = pneg %p904
        %p1534 = pneg %p928
        %p1535 = pneg %p925
        %p1536 = pneg %p949
        %p1537 = pneg %p946
        %p1538 = pneg %p970
        %p1539 = pneg %p967
        %p1540 = pneg %p996
        %p1541 = pneg %p993
        %s1542 = sand.u32 %s983, 1
        %s1543 = scalar_lea.sflag [#allocation4], %s1542
        %s1544 = sand.u32 %s983, 1
        %s1545 = smul.addr %s1544, 16
        %s1546 = scalar_lea.vmem [#allocation32], %s1545
        %p1547 = pneg %p1022
        %p1548 = pneg %p1019
        %s1549 = sand.u32 %s1009, 1
        %s1550 = scalar_lea.sflag [#allocation34], %s1549
        %s1551 = sand.u32 %s1009, 1
        %s1552 = smul.addr %s1551, 64
        %s1553 = scalar_lea.vmem [#allocation33], %s1552
        %p1554 = scmp.lt.s32.totalorder %s115, 1
        %s1555 = scalar_select %p1554, %s115, 1
        %s1556 = smul.addr %s1555, 8
        %s1557 = smul.addr %s1556, 8
        %s1558 = scalar_lea.vmem %s3, %s1557
        %p1559 = scmp.lt.s32.totalorder %s115, 1
        %s1560 = scalar_select %p1559, %s115, 1
        %s1561 = smul.addr %s1560, 8
        %s1562 = smul.addr %s1561, 8
        %s1563 = scalar_lea.vmem %s7, %s1562
        %v1565 = vld [vmem:[%s1358] sm:$0xff]
        %v1566 = vld [vmem:[%s1358 + $0x8] sm:$0xff]
        %v1567 = vld [vmem:[%s1558] sm:$0xff]
        %v1568 = vld [vmem:[%s1558 + $0x8] sm:$0xff]
        %v1569 = vld [vmem:[%s1558 + $0x10] sm:$0xff]
        %v1570 = vld [vmem:[%s1558 + $0x18] sm:$0xff]
        %v1571 = vld [vmem:[%s1558 + $0x20] sm:$0xff]
        %v1572 = vld [vmem:[%s1558 + $0x28] sm:$0xff]
        %v1573 = vld [vmem:[%s1558 + $0x30] sm:$0xff]
        %v1574 = vld [vmem:[%s1558 + $0x38] sm:$0xff]
        %v1575 = vld [vmem:[%s1367] sm:$0xff]
        %v1576 = vld [vmem:[%s1367 + $0x8] sm:$0xff]
        %v1577 = vld [vmem:[%s1563] sm:$0xff]
        %v1578 = vld [vmem:[%s1563 + $0x8] sm:$0xff]
        %v1579 = vld [vmem:[%s1563 + $0x10] sm:$0xff]
        %v1580 = vld [vmem:[%s1563 + $0x18] sm:$0xff]
        %v1581 = vld [vmem:[%s1563 + $0x20] sm:$0xff]
        %v1582 = vld [vmem:[%s1563 + $0x28] sm:$0xff]
        %v1583 = vld [vmem:[%s1563 + $0x30] sm:$0xff]
        %v1584 = vld [vmem:[%s1563 + $0x38] sm:$0xff]
        %v1585 = vadd.f32 %v1565, %v1575
        %v1586 = vadd.f32 %v1566, %v1576
        %v1587 = vld [vmem:[%s9] sm:$0xff]
        %v1588 = vld [vmem:[%s9 + $0x8] sm:$0xff]
        %v1589 = vld [vmem:[%s9 + $0x10] sm:$0xff]
        %v1590 = vld [vmem:[%s9 + $0x18] sm:$0xff]
        %v1591 = vld [vmem:[%s9 + $0x20] sm:$0xff]
        %v1592 = vld [vmem:[%s9 + $0x28] sm:$0xff]
        %v1593 = vld [vmem:[%s9 + $0x30] sm:$0xff]
        %v1594 = vld [vmem:[%s9 + $0x38] sm:$0xff]
        %v1595 = vld [vmem:[%s9 + $0x40] sm:$0xff]
        %v1596 = vld [vmem:[%s9 + $0x48] sm:$0xff]
        %v1597 = vld [vmem:[%s9 + $0x50] sm:$0xff]
        %v1598 = vld [vmem:[%s9 + $0x58] sm:$0xff]
        %v1599 = vld [vmem:[%s9 + $0x60] sm:$0xff]
        %v1600 = vld [vmem:[%s9 + $0x68] sm:$0xff]
        %v1601 = vld [vmem:[%s9 + $0x70] sm:$0xff]
        %v1602 = vld [vmem:[%s9 + $0x78] sm:$0xff]
        %v1603 = vpack.c.bf16 %v1586, %v1585
        %v1604 = vpack.c.bf16 %v1588, %v1587
        %v1605 = vpack.c.bf16 %v1590, %v1589
        %v1606 = vpack.c.bf16 %v1592, %v1591
        %v1607 = vpack.c.bf16 %v1594, %v1593
        %v1608 = vpack.c.bf16 %v1596, %v1595
        %v1609 = vpack.c.bf16 %v1598, %v1597
        %v1610 = vpack.c.bf16 %v1600, %v1599
        %v1611 = vpack.c.bf16 %v1602, %v1601
        %v1612 = vld [vmem:[%s11] sm:$0x1]
        %v1614 = vlaneseq
        %v1615 = vshrl.u32 %v1614, 7
        %v1616 = vsub.s32 0, %v1615
        %v1617 = vrot.slane %v1612, %v1616
        %1619 = vmatprep.subr.bf16.mxu0 0
        %1620 = vmatpush1.bf16.msra.mxu0 %v1604
        %1621 = vmatprep.subr.bf16.mxu0 0
        %1622 = vmatpush1.bf16.msra.mxu0 %v1605
        %1623 = vmatprep.subr.bf16.mxu0 0
        %1624 = vmatpush1.bf16.msra.mxu0 %v1606
        %1625 = vmatprep.subr.bf16.mxu0 0
        %1626 = vmatpush1.bf16.msra.mxu0 %v1607
        %1627 = vmatprep.subr.bf16.mxu0 0
        %1628 = vmatpush1.bf16.msra.mxu0 %v1608
        %1629 = vmatprep.subr.bf16.mxu0 0
        %1630 = vmatpush1.bf16.msra.mxu0 %v1609
        %1631 = vmatprep.subr.bf16.mxu0 0
        %1632 = vmatpush1.bf16.msra.mxu0 %v1610
        %1633 = vmatprep.subr.bf16.mxu0 0
        %1634 = vmatpush1.bf16.msra.mxu0 %v1611
        %1635 = vmatprep.subr.bf16.mxu0 0
        %1636 = vmatpush1.bf16.msra.mxu0 0
        %1637 = vmatprep.subr.bf16.mxu0 0
        %1638 = vmatpush1.bf16.msra.mxu0 0
        %1639 = vmatprep.subr.bf16.mxu0 0
        %1640 = vmatpush1.bf16.msra.mxu0 0
        %1641 = vmatprep.subr.bf16.mxu0 0
        %1642 = vmatpush1.bf16.msra.mxu0 0
        %1643 = vmatprep.subr.bf16.mxu0 0
        %1644 = vmatpush1.bf16.msra.mxu0 0
        %1645 = vmatprep.subr.bf16.mxu0 0
        %1646 = vmatpush1.bf16.msra.mxu0 0
        %1647 = vmatprep.subr.bf16.mxu0 0
        %1648 = vmatpush1.bf16.msra.mxu0 0
        %1649 = vmatprep.subr.bf16.mxu0 0
        %1650 = vmatpush1.bf16.msra.mxu0 0
        %1651 = vmatprep.mubr.bf16.mxu0 0
        %1652 = vmatmul.mubr.bf16.gmra.mrb[0].mxu0 %v1603
        %v1653 = vpop.f32.mrb[0].mxu0
        %v1654 = vadd.f32 %v1617, %v1653
        %v1655 = vpop.f32.mrb[0].mxu0
        %v1656 = vpop.f32.mrb[0].mxu0
        %v1657 = vadd.f32 %v1617, %v1656
        %v1658 = vpop.f32.mrb[0].mxu0
        %1659 = vdwg.mxu0
        %v1660 = vld [vmem:[%s13] sm:$0xff]
        %v1661 = vld [vmem:[%s13 + $0x8] sm:$0xff]
        %v1662 = vld [vmem:[%s13 + $0x10] sm:$0xff]
        %v1663 = vld [vmem:[%s13 + $0x18] sm:$0xff]
        %v1664 = vld [vmem:[%s13 + $0x20] sm:$0xff]
        %v1665 = vld [vmem:[%s13 + $0x28] sm:$0xff]
        %v1666 = vld [vmem:[%s13 + $0x30] sm:$0xff]
        %v1667 = vld [vmem:[%s13 + $0x38] sm:$0xff]
        %v1668 = vld [vmem:[%s13 + $0x40] sm:$0xff]
        %v1669 = vld [vmem:[%s13 + $0x48] sm:$0xff]
        %v1670 = vld [vmem:[%s13 + $0x50] sm:$0xff]
        %v1671 = vld [vmem:[%s13 + $0x58] sm:$0xff]
        %v1672 = vld [vmem:[%s13 + $0x60] sm:$0xff]
        %v1673 = vld [vmem:[%s13 + $0x68] sm:$0xff]
        %v1674 = vld [vmem:[%s13 + $0x70] sm:$0xff]
        %v1675 = vld [vmem:[%s13 + $0x78] sm:$0xff]
        %v1676 = vpack.c.bf16 %v1661, %v1660
        %v1677 = vpack.c.bf16 %v1663, %v1662
        %v1678 = vpack.c.bf16 %v1665, %v1664
        %v1679 = vpack.c.bf16 %v1667, %v1666
        %v1680 = vpack.c.bf16 %v1669, %v1668
        %v1681 = vpack.c.bf16 %v1671, %v1670
        %v1682 = vpack.c.bf16 %v1673, %v1672
        %v1683 = vpack.c.bf16 %v1675, %v1674
        %v1684 = vld [vmem:[%s15] sm:$0x1]
        %v1686 = vlaneseq
        %v1687 = vshrl.u32 %v1686, 7
        %v1688 = vsub.s32 0, %v1687
        %v1689 = vrot.slane %v1684, %v1688
        %1691 = vmatprep.subr.bf16.mxu0 0
        %1692 = vmatpush1.bf16.msra.mxu0 %v1676
        %1693 = vmatprep.subr.bf16.mxu0 0
        %1694 = vmatpush1.bf16.msra.mxu0 %v1677
        %1695 = vmatprep.subr.bf16.mxu0 0
        %1696 = vmatpush1.bf16.msra.mxu0 %v1678
        %1697 = vmatprep.subr.bf16.mxu0 0
        %1698 = vmatpush1.bf16.msra.mxu0 %v1679
        %1699 = vmatprep.subr.bf16.mxu0 0
        %1700 = vmatpush1.bf16.msra.mxu0 %v1680
        %1701 = vmatprep.subr.bf16.mxu0 0
        %1702 = vmatpush1.bf16.msra.mxu0 %v1681
        %1703 = vmatprep.subr.bf16.mxu0 0
        %1704 = vmatpush1.bf16.msra.mxu0 %v1682
        %1705 = vmatprep.subr.bf16.mxu0 0
        %1706 = vmatpush1.bf16.msra.mxu0 %v1683
        %1707 = vmatprep.subr.bf16.mxu0 0
        %1708 = vmatpush1.bf16.msra.mxu0 0
        %1709 = vmatprep.subr.bf16.mxu0 0
        %1710 = vmatpush1.bf16.msra.mxu0 0
        %1711 = vmatprep.subr.bf16.mxu0 0
        %1712 = vmatpush1.bf16.msra.mxu0 0
        %1713 = vmatprep.subr.bf16.mxu0 0
        %1714 = vmatpush1.bf16.msra.mxu0 0
        %1715 = vmatprep.subr.bf16.mxu0 0
        %1716 = vmatpush1.bf16.msra.mxu0 0
        %1717 = vmatprep.subr.bf16.mxu0 0
        %1718 = vmatpush1.bf16.msra.mxu0 0
        %1719 = vmatprep.subr.bf16.mxu0 0
        %1720 = vmatpush1.bf16.msra.mxu0 0
        %1721 = vmatprep.subr.bf16.mxu0 0
        %1722 = vmatpush1.bf16.msra.mxu0 0
        %1723 = vmatprep.mubr.bf16.mxu0 0
        %1724 = vmatmul.mubr.bf16.gmra.mrb[0].mxu0 %v1603
        %v1725 = vpop.f32.mrb[0].mxu0
        %v1726 = vadd.f32 %v1689, %v1725
        %v1727 = vpop.f32.mrb[0].mxu0
        %v1728 = vpop.f32.mrb[0].mxu0
        %v1729 = vadd.f32 %v1689, %v1728
        %v1730 = vpop.f32.mrb[0].mxu0
        %1731 = vdwg.mxu0
        %v1732 = vld [vmem:[%s17] sm:$0xff]
        %v1733 = vld [vmem:[%s17 + $0x8] sm:$0xff]
        %v1734 = vld [vmem:[%s17 + $0x10] sm:$0xff]
        %v1735 = vld [vmem:[%s17 + $0x18] sm:$0xff]
        %v1736 = vld [vmem:[%s17 + $0x20] sm:$0xff]
        %v1737 = vld [vmem:[%s17 + $0x28] sm:$0xff]
        %v1738 = vld [vmem:[%s17 + $0x30] sm:$0xff]
        %v1739 = vld [vmem:[%s17 + $0x38] sm:$0xff]
        %v1740 = vld [vmem:[%s17 + $0x40] sm:$0xff]
        %v1741 = vld [vmem:[%s17 + $0x48] sm:$0xff]
        %v1742 = vld [vmem:[%s17 + $0x50] sm:$0xff]
        %v1743 = vld [vmem:[%s17 + $0x58] sm:$0xff]
        %v1744 = vld [vmem:[%s17 + $0x60] sm:$0xff]
        %v1745 = vld [vmem:[%s17 + $0x68] sm:$0xff]
        %v1746 = vld [vmem:[%s17 + $0x70] sm:$0xff]
        %v1747 = vld [vmem:[%s17 + $0x78] sm:$0xff]
        %v1748 = vpack.c.bf16 %v1566, %v1565
        %v1749 = vpack.c.bf16 %v1733, %v1732
        %v1750 = vpack.c.bf16 %v1735, %v1734
        %v1751 = vpack.c.bf16 %v1737, %v1736
        %v1752 = vpack.c.bf16 %v1739, %v1738
        %v1753 = vpack.c.bf16 %v1741, %v1740
        %v1754 = vpack.c.bf16 %v1743, %v1742
        %v1755 = vpack.c.bf16 %v1745, %v1744
        %v1756 = vpack.c.bf16 %v1747, %v1746
        %v1757 = vld [vmem:[%s19] sm:$0x1]
        %v1759 = vlaneseq
        %v1760 = vshrl.u32 %v1759, 7
        %v1761 = vsub.s32 0, %v1760
        %v1762 = vrot.slane %v1757, %v1761
        %1764 = vmatprep.subr.bf16.mxu0 0
        %1765 = vmatpush1.bf16.msra.mxu0 %v1749
        %1766 = vmatprep.subr.bf16.mxu0 0
        %1767 = vmatpush1.bf16.msra.mxu0 %v1750
        %1768 = vmatprep.subr.bf16.mxu0 0
        %1769 = vmatpush1.bf16.msra.mxu0 %v1751
        %1770 = vmatprep.subr.bf16.mxu0 0
        %1771 = vmatpush1.bf16.msra.mxu0 %v1752
        %1772 = vmatprep.subr.bf16.mxu0 0
        %1773 = vmatpush1.bf16.msra.mxu0 %v1753
        %1774 = vmatprep.subr.bf16.mxu0 0
        %1775 = vmatpush1.bf16.msra.mxu0 %v1754
        %1776 = vmatprep.subr.bf16.mxu0 0
        %1777 = vmatpush1.bf16.msra.mxu0 %v1755
        %1778 = vmatprep.subr.bf16.mxu0 0
        %1779 = vmatpush1.bf16.msra.mxu0 %v1756
        %1780 = vmatprep.subr.bf16.mxu0 0
        %1781 = vmatpush1.bf16.msra.mxu0 0
        %1782 = vmatprep.subr.bf16.mxu0 0
        %1783 = vmatpush1.bf16.msra.mxu0 0
        %1784 = vmatprep.subr.bf16.mxu0 0
        %1785 = vmatpush1.bf16.msra.mxu0 0
        %1786 = vmatprep.subr.bf16.mxu0 0
        %1787 = vmatpush1.bf16.msra.mxu0 0
        %1788 = vmatprep.subr.bf16.mxu0 0
        %1789 = vmatpush1.bf16.msra.mxu0 0
        %1790 = vmatprep.subr.bf16.mxu0 0
        %1791 = vmatpush1.bf16.msra.mxu0 0
        %1792 = vmatprep.subr.bf16.mxu0 0
        %1793 = vmatpush1.bf16.msra.mxu0 0
        %1794 = vmatprep.subr.bf16.mxu0 0
        %1795 = vmatpush1.bf16.msra.mxu0 0
        %1796 = vmatprep.mubr.bf16.mxu0 0
        %1797 = vmatmul.mubr.bf16.gmra.mrb[0].mxu0 %v1748
        %v1798 = vpop.f32.mrb[0].mxu0
        %v1799 = vadd.f32 %v1762, %v1798
        %v1800 = vpop.f32.mrb[0].mxu0
        %v1801 = vpop.f32.mrb[0].mxu0
        %v1802 = vadd.f32 %v1762, %v1801
        %v1803 = vpop.f32.mrb[0].mxu0
        %1804 = vdwg.mxu0
        %v1805 = vld [vmem:[%s21] sm:$0xff]
        %v1806 = vld [vmem:[%s21 + $0x8] sm:$0xff]
        %v1807 = vld [vmem:[%s21 + $0x10] sm:$0xff]
        %v1808 = vld [vmem:[%s21 + $0x18] sm:$0xff]
        %v1809 = vld [vmem:[%s21 + $0x20] sm:$0xff]
        %v1810 = vld [vmem:[%s21 + $0x28] sm:$0xff]
        %v1811 = vld [vmem:[%s21 + $0x30] sm:$0xff]
        %v1812 = vld [vmem:[%s21 + $0x38] sm:$0xff]
        %v1813 = vld [vmem:[%s21 + $0x40] sm:$0xff]
        %v1814 = vld [vmem:[%s21 + $0x48] sm:$0xff]
        %v1815 = vld [vmem:[%s21 + $0x50] sm:$0xff]
        %v1816 = vld [vmem:[%s21 + $0x58] sm:$0xff]
        %v1817 = vld [vmem:[%s21 + $0x60] sm:$0xff]
        %v1818 = vld [vmem:[%s21 + $0x68] sm:$0xff]
        %v1819 = vld [vmem:[%s21 + $0x70] sm:$0xff]
        %v1820 = vld [vmem:[%s21 + $0x78] sm:$0xff]
        %v1821 = vpack.c.bf16 %v1806, %v1805
        %v1822 = vpack.c.bf16 %v1808, %v1807
        %v1823 = vpack.c.bf16 %v1810, %v1809
        %v1824 = vpack.c.bf16 %v1812, %v1811
        %v1825 = vpack.c.bf16 %v1814, %v1813
        %v1826 = vpack.c.bf16 %v1816, %v1815
        %v1827 = vpack.c.bf16 %v1818, %v1817
        %v1828 = vpack.c.bf16 %v1820, %v1819
        %v1829 = vld [vmem:[%s23] sm:$0x1]
        %v1831 = vlaneseq
        %v1832 = vshrl.u32 %v1831, 7
        %v1833 = vsub.s32 0, %v1832
        %v1834 = vrot.slane %v1829, %v1833
        %v1836 = vadd.f32 %v1834, 0.0
        %v1837 = vpack.c.bf16 %v1657, %v1654
        %v1838 = vpack.c.bf16 %v1729, %v1726
        %v1839 = vpack.c.bf16 %v1802, %v1799
        %vm1840 = vcmask 261120
        %v1842 = vsel %vm1840, %v1837, 0
        %v1845 = vsel %vm1840, %v1838, 0
        %1847 = vmatprep.subr.bf16.mxu0 0
        %1848 = vmatpush1.bf16.xpose.msra.mxu0 %v1845
        %1849 = vmatprep.subr.bf16.mxu0 0
        %1850 = vmatpush1.bf16.xpose.msra.mxu0 0
        %1851 = vmatprep.subr.bf16.mxu0 0
        %1852 = vmatpush1.bf16.xpose.msra.mxu0 0
        %1853 = vmatprep.subr.bf16.mxu0 0
        %1854 = vmatpush1.bf16.xpose.msra.mxu0 0
        %1855 = vmatprep.subr.bf16.mxu0 0
        %1856 = vmatpush1.bf16.xpose.msra.mxu0 0
        %1857 = vmatprep.subr.bf16.mxu0 0
        %1858 = vmatpush1.bf16.xpose.msra.mxu0 0
        %1859 = vmatprep.subr.bf16.mxu0 0
        %1860 = vmatpush1.bf16.xpose.msra.mxu0 0
        %1861 = vmatprep.subr.bf16.mxu0 0
        %1862 = vmatpush1.bf16.xpose.msra.mxu0 0
        %1863 = vmatprep.subr.bf16.mxu0 0
        %1864 = vmatpush1.bf16.xpose.msra.mxu0 0
        %1865 = vmatprep.subr.bf16.mxu0 0
        %1866 = vmatpush1.bf16.xpose.msra.mxu0 0
        %1867 = vmatprep.subr.bf16.mxu0 0
        %1868 = vmatpush1.bf16.xpose.msra.mxu0 0
        %1869 = vmatprep.subr.bf16.mxu0 0
        %1870 = vmatpush1.bf16.xpose.msra.mxu0 0
        %1871 = vmatprep.subr.bf16.mxu0 0
        %1872 = vmatpush1.bf16.xpose.msra.mxu0 0
        %1873 = vmatprep.subr.bf16.mxu0 0
        %1874 = vmatpush1.bf16.xpose.msra.mxu0 0
        %1875 = vmatprep.subr.bf16.mxu0 0
        %1876 = vmatpush1.bf16.xpose.msra.mxu0 0
        %1877 = vmatprep.subr.bf16.mxu0 0
        %1878 = vmatpush1.bf16.xpose.msra.mxu0 0
        %1879 = vmatprep.mubr.bf16.mxu0 0
        %1880 = vmatmul.mubr.bf16.gmra.mrb[0].mxu0 %v1842
        %v1881 = vpop.f32.mrb[0].mxu0
        %v1882 = vadd.f32 0.0, %v1881
        %v1883 = vpop.f32.mrb[0].mxu0
        %v1884 = vpop.f32.mrb[0].mxu0
        %v1885 = vadd.f32 0.0, %v1884
        %v1886 = vpop.f32.mrb[0].mxu0
        %1887 = vdwg.mxu0
        %v1888 = vmul.f32 %v1882, 0.17677669
        %v1889 = vmul.f32 %v1885, 0.17677669
        %vm1890 = vcmask 130048
        %v1891 = vsel %vm1890, %v1888, -inf
        %1892 = vmax.xlane.f32.xlu0 %v1891
        %v1893 = vpop.xlane.xlu0 %1892
        %v1894 = vsel %vm1890, %v1889, -inf
        %1895 = vmax.xlane.f32.xlu0 %v1894
        %v1896 = vpop.xlane.xlu0 %1895
        %v1897 = vsub.f32 %v1888, %v1893
        %v1898 = vsub.f32 %v1889, %v1896
        %v1899 = vmul.f32 %v1897, 1.442695
        %v1900 = vpow.pop %v1899
        %v1901 = vmul.f32 %v1898, 1.442695
        %v1902 = vpow.pop %v1901
        %v1903 = vsel %vm1890, %v1900, 0.0
        %1904 = vadd.xlane.f32.xlu0 %v1903
        %v1905 = vpop.xlane.xlu0 %1904
        %v1906 = vsel %vm1890, %v1902, 0.0
        %1907 = vadd.xlane.f32.xlu0 %v1906
        %v1908 = vpop.xlane.xlu0 %1907
        %v1909 = vrcp.pop %v1905
        %v1910 = vrcp.pop %v1908
        %v1911 = vmul.f32 %v1900, %v1909
        %v1912 = vmul.f32 %v1902, %v1910
        %v1913 = vpack.c.bf16 %v1912, %v1911
        %v1915 = vsel %vm1890, %v1913, 0
        %1917 = vmatprep.subr.bf16.mxu0 0
        %1918 = vmatpush1.bf16.msra.mxu0 %v1839
        %1919 = vmatprep.subr.bf16.mxu0 0
        %1920 = vmatpush1.bf16.msra.mxu0 0
        %1921 = vmatprep.subr.bf16.mxu0 0
        %1922 = vmatpush1.bf16.msra.mxu0 0
        %1923 = vmatprep.subr.bf16.mxu0 0
        %1924 = vmatpush1.bf16.msra.mxu0 0
        %1925 = vmatprep.subr.bf16.mxu0 0
        %1926 = vmatpush1.bf16.msra.mxu0 0
        %1927 = vmatprep.subr.bf16.mxu0 0
        %1928 = vmatpush1.bf16.msra.mxu0 0
        %1929 = vmatprep.subr.bf16.mxu0 0
        %1930 = vmatpush1.bf16.msra.mxu0 0
        %1931 = vmatprep.subr.bf16.mxu0 0
        %1932 = vmatpush1.bf16.msra.mxu0 0
        %1933 = vmatprep.subr.bf16.mxu0 0
        %1934 = vmatpush1.bf16.msra.mxu0 0
        %1935 = vmatprep.subr.bf16.mxu0 0
        %1936 = vmatpush1.bf16.msra.mxu0 0
        %1937 = vmatprep.subr.bf16.mxu0 0
        %1938 = vmatpush1.bf16.msra.mxu0 0
        %1939 = vmatprep.subr.bf16.mxu0 0
        %1940 = vmatpush1.bf16.msra.mxu0 0
        %1941 = vmatprep.subr.bf16.mxu0 0
        %1942 = vmatpush1.bf16.msra.mxu0 0
        %1943 = vmatprep.subr.bf16.mxu0 0
        %1944 = vmatpush1.bf16.msra.mxu0 0
        %1945 = vmatprep.subr.bf16.mxu0 0
        %1946 = vmatpush1.bf16.msra.mxu0 0
        %1947 = vmatprep.subr.bf16.mxu0 0
        %1948 = vmatpush1.bf16.msra.mxu0 0
        %1949 = vmatprep.mubr.bf16.mxu0 0
        %1950 = vmatmul.mubr.bf16.gmra.mrb[0].mxu0 %v1915
        %v1951 = vpop.f32.mrb[0].mxu0
        %v1952 = vadd.f32 0.0, %v1951
        %v1953 = vpop.f32.mrb[0].mxu0
        %v1954 = vpop.f32.mrb[0].mxu0
        %v1955 = vadd.f32 0.0, %v1954
        %v1956 = vpop.f32.mrb[0].mxu0
        %1957 = vdwg.mxu0
        %v1958 = vpack.c.bf16 %v1955, %v1952
        %v1960 = vsel %vm1840, %v1958, 0
        %1962 = vmatprep.subr.bf16.mxu0 0
        %1963 = vmatpush1.bf16.msra.mxu0 %v1821
        %1964 = vmatprep.subr.bf16.mxu0 0
        %1965 = vmatpush1.bf16.msra.mxu0 %v1822
        %1966 = vmatprep.subr.bf16.mxu0 0
        %1967 = vmatpush1.bf16.msra.mxu0 0
        %1968 = vmatprep.subr.bf16.mxu0 0
        %1969 = vmatpush1.bf16.msra.mxu0 0
        %1970 = vmatprep.subr.bf16.mxu0 0
        %1971 = vmatpush1.bf16.msra.mxu0 0
        %1972 = vmatprep.subr.bf16.mxu0 0
        %1973 = vmatpush1.bf16.msra.mxu0 0
        %1974 = vmatprep.subr.bf16.mxu0 0
        %1975 = vmatpush1.bf16.msra.mxu0 0
        %1976 = vmatprep.subr.bf16.mxu0 0
        %1977 = vmatpush1.bf16.msra.mxu0 0
        %1978 = vmatprep.subr.bf16.mxu0 0
        %1979 = vmatpush1.bf16.msra.mxu0 0
        %1980 = vmatprep.subr.bf16.mxu0 0
        %1981 = vmatpush1.bf16.msra.mxu0 0
        %1982 = vmatprep.subr.bf16.mxu0 0
        %1983 = vmatpush1.bf16.msra.mxu0 0
        %1984 = vmatprep.subr.bf16.mxu0 0
        %1985 = vmatpush1.bf16.msra.mxu0 0
        %1986 = vmatprep.subr.bf16.mxu0 0
        %1987 = vmatpush1.bf16.msra.mxu0 0
        %1988 = vmatprep.subr.bf16.mxu0 0
        %1989 = vmatpush1.bf16.msra.mxu0 0
        %1990 = vmatprep.subr.bf16.mxu0 0
        %1991 = vmatpush1.bf16.msra.mxu0 0
        %1992 = vmatprep.subr.bf16.mxu0 0
        %1993 = vmatpush1.bf16.msra.mxu0 0
        %1994 = vmatprep.mubr.bf16.mxu0 0
        %1995 = vmatmul.mubr.bf16.gmra.mrb[0].mxu0 %v1960
        %v1996 = vpop.f32.mrb[0].mxu0
        %v1997 = vadd.f32 0.0, %v1996
        %v1998 = vpop.f32.mrb[0].mxu0
        %v1999 = vpop.f32.mrb[0].mxu0
        %v2000 = vadd.f32 0.0, %v1999
        %v2001 = vpop.f32.mrb[0].mxu0
        %2002 = vdwg.mxu0
        %v2003 = vadd.f32 %v1836, %v1997
        %v2004 = vadd.f32 %v1836, %v2000
        %2006 = vrot.lane.b32.xlu0 %v1837, 96
        %v2007 = vpop.permute.xlu0 %2006
        %2009 = vrot.lane.b32.xlu0 %v1838, 96
        %v2010 = vpop.permute.xlu0 %2009
        %v2012 = vsel %vm1840, %v2007, 0
        %v2015 = vsel %vm1840, %v2010, 0
        %2017 = vmatprep.subr.bf16.mxu0 0
        %2018 = vmatpush1.bf16.xpose.msra.mxu0 %v2015
        %2019 = vmatprep.subr.bf16.mxu0 0
        %2020 = vmatpush1.bf16.xpose.msra.mxu0 0
        %2021 = vmatprep.subr.bf16.mxu0 0
        %2022 = vmatpush1.bf16.xpose.msra.mxu0 0
        %2023 = vmatprep.subr.bf16.mxu0 0
        %2024 = vmatpush1.bf16.xpose.msra.mxu0 0
        %2025 = vmatprep.subr.bf16.mxu0 0
        %2026 = vmatpush1.bf16.xpose.msra.mxu0 0
        %2027 = vmatprep.subr.bf16.mxu0 0
        %2028 = vmatpush1.bf16.xpose.msra.mxu0 0
        %2029 = vmatprep.subr.bf16.mxu0 0
        %2030 = vmatpush1.bf16.xpose.msra.mxu0 0
        %2031 = vmatprep.subr.bf16.mxu0 0
        %2032 = vmatpush1.bf16.xpose.msra.mxu0 0
        %2033 = vmatprep.subr.bf16.mxu0 0
        %2034 = vmatpush1.bf16.xpose.msra.mxu0 0
        %2035 = vmatprep.subr.bf16.mxu0 0
        %2036 = vmatpush1.bf16.xpose.msra.mxu0 0
        %2037 = vmatprep.subr.bf16.mxu0 0
        %2038 = vmatpush1.bf16.xpose.msra.mxu0 0
        %2039 = vmatprep.subr.bf16.mxu0 0
        %2040 = vmatpush1.bf16.xpose.msra.mxu0 0
        %2041 = vmatprep.subr.bf16.mxu0 0
        %2042 = vmatpush1.bf16.xpose.msra.mxu0 0
        %2043 = vmatprep.subr.bf16.mxu0 0
        %2044 = vmatpush1.bf16.xpose.msra.mxu0 0
        %2045 = vmatprep.subr.bf16.mxu0 0
        %2046 = vmatpush1.bf16.xpose.msra.mxu0 0
        %2047 = vmatprep.subr.bf16.mxu0 0
        %2048 = vmatpush1.bf16.xpose.msra.mxu0 0
        %2049 = vmatprep.mubr.bf16.mxu0 0
        %2050 = vmatmul.mubr.bf16.gmra.mrb[0].mxu0 %v2012
        %v2051 = vpop.f32.mrb[0].mxu0
        %v2052 = vadd.f32 0.0, %v2051
        %v2053 = vpop.f32.mrb[0].mxu0
        %v2054 = vpop.f32.mrb[0].mxu0
        %v2055 = vadd.f32 0.0, %v2054
        %v2056 = vpop.f32.mrb[0].mxu0
        %2057 = vdwg.mxu0
        %v2058 = vmul.f32 %v2052, 0.17677669
        %v2059 = vmul.f32 %v2055, 0.17677669
        %v2060 = vsel %vm1890, %v2058, -inf
        %2061 = vmax.xlane.f32.xlu0 %v2060
        %v2062 = vpop.xlane.xlu0 %2061
        %v2063 = vsel %vm1890, %v2059, -inf
        %2064 = vmax.xlane.f32.xlu0 %v2063
        %v2065 = vpop.xlane.xlu0 %2064
        %v2066 = vsub.f32 %v2058, %v2062
        %v2067 = vsub.f32 %v2059, %v2065
        %v2068 = vmul.f32 %v2066, 1.442695
        %v2069 = vpow.pop %v2068
        %v2070 = vmul.f32 %v2067, 1.442695
        %v2071 = vpow.pop %v2070
        %v2072 = vsel %vm1890, %v2069, 0.0
        %2073 = vadd.xlane.f32.xlu0 %v2072
        %v2074 = vpop.xlane.xlu0 %2073
        %v2075 = vsel %vm1890, %v2071, 0.0
        %2076 = vadd.xlane.f32.xlu0 %v2075
        %v2077 = vpop.xlane.xlu0 %2076
        %v2078 = vrcp.pop %v2074
        %v2079 = vrcp.pop %v2077
        %v2080 = vmul.f32 %v2069, %v2078
        %v2081 = vmul.f32 %v2071, %v2079
        %v2082 = vpack.c.bf16 %v2081, %v2080
        %2084 = vrot.lane.b32.xlu0 %v1839, 96
        %v2085 = vpop.permute.xlu0 %2084
        %v2088 = vsel %vm1890, %v2082, 0
        %2090 = vmatprep.subr.bf16.mxu0 0
        %2091 = vmatpush1.bf16.msra.mxu0 %v2085
        %2092 = vmatprep.subr.bf16.mxu0 0
        %2093 = vmatpush1.bf16.msra.mxu0 0
        %2094 = vmatprep.subr.bf16.mxu0 0
        %2095 = vmatpush1.bf16.msra.mxu0 0
        %2096 = vmatprep.subr.bf16.mxu0 0
        %2097 = vmatpush1.bf16.msra.mxu0 0
        %2098 = vmatprep.subr.bf16.mxu0 0
        %2099 = vmatpush1.bf16.msra.mxu0 0
        %2100 = vmatprep.subr.bf16.mxu0 0
        %2101 = vmatpush1.bf16.msra.mxu0 0
        %2102 = vmatprep.subr.bf16.mxu0 0
        %2103 = vmatpush1.bf16.msra.mxu0 0
        %2104 = vmatprep.subr.bf16.mxu0 0
        %2105 = vmatpush1.bf16.msra.mxu0 0
        %2106 = vmatprep.subr.bf16.mxu0 0
        %2107 = vmatpush1.bf16.msra.mxu0 0
        %2108 = vmatprep.subr.bf16.mxu0 0
        %2109 = vmatpush1.bf16.msra.mxu0 0
        %2110 = vmatprep.subr.bf16.mxu0 0
        %2111 = vmatpush1.bf16.msra.mxu0 0
        %2112 = vmatprep.subr.bf16.mxu0 0
        %2113 = vmatpush1.bf16.msra.mxu0 0
        %2114 = vmatprep.subr.bf16.mxu0 0
        %2115 = vmatpush1.bf16.msra.mxu0 0
        %2116 = vmatprep.subr.bf16.mxu0 0
        %2117 = vmatpush1.bf16.msra.mxu0 0
        %2118 = vmatprep.subr.bf16.mxu0 0
        %2119 = vmatpush1.bf16.msra.mxu0 0
        %2120 = vmatprep.subr.bf16.mxu0 0
        %2121 = vmatpush1.bf16.msra.mxu0 0
        %2122 = vmatprep.mubr.bf16.mxu0 0
        %2123 = vmatmul.mubr.bf16.gmra.mrb[0].mxu0 %v2088
        %v2124 = vpop.f32.mrb[0].mxu0
        %v2125 = vadd.f32 0.0, %v2124
        %v2126 = vpop.f32.mrb[0].mxu0
        %v2127 = vpop.f32.mrb[0].mxu0
        %v2128 = vadd.f32 0.0, %v2127
        %v2129 = vpop.f32.mrb[0].mxu0
        %2130 = vdwg.mxu0
        %v2131 = vpack.c.bf16 %v2128, %v2125
        %v2133 = vsel %vm1840, %v2131, 0
        %2135 = vmatprep.subr.bf16.mxu0 0
        %2136 = vmatpush1.bf16.msra.mxu0 %v1823
        %2137 = vmatprep.subr.bf16.mxu0 0
        %2138 = vmatpush1.bf16.msra.mxu0 %v1824
        %2139 = vmatprep.subr.bf16.mxu0 0
        %2140 = vmatpush1.bf16.msra.mxu0 0
        %2141 = vmatprep.subr.bf16.mxu0 0
        %2142 = vmatpush1.bf16.msra.mxu0 0
        %2143 = vmatprep.subr.bf16.mxu0 0
        %2144 = vmatpush1.bf16.msra.mxu0 0
        %2145 = vmatprep.subr.bf16.mxu0 0
        %2146 = vmatpush1.bf16.msra.mxu0 0
        %2147 = vmatprep.subr.bf16.mxu0 0
        %2148 = vmatpush1.bf16.msra.mxu0 0
        %2149 = vmatprep.subr.bf16.mxu0 0
        %2150 = vmatpush1.bf16.msra.mxu0 0
        %2151 = vmatprep.subr.bf16.mxu0 0
        %2152 = vmatpush1.bf16.msra.mxu0 0
        %2153 = vmatprep.subr.bf16.mxu0 0
        %2154 = vmatpush1.bf16.msra.mxu0 0
        %2155 = vmatprep.subr.bf16.mxu0 0
        %2156 = vmatpush1.bf16.msra.mxu0 0
        %2157 = vmatprep.subr.bf16.mxu0 0
        %2158 = vmatpush1.bf16.msra.mxu0 0
        %2159 = vmatprep.subr.bf16.mxu0 0
        %2160 = vmatpush1.bf16.msra.mxu0 0
        %2161 = vmatprep.subr.bf16.mxu0 0
        %2162 = vmatpush1.bf16.msra.mxu0 0
        %2163 = vmatprep.subr.bf16.mxu0 0
        %2164 = vmatpush1.bf16.msra.mxu0 0
        %2165 = vmatprep.subr.bf16.mxu0 0
        %2166 = vmatpush1.bf16.msra.mxu0 0
        %2167 = vmatprep.mubr.bf16.mxu0 0
        %2168 = vmatmul.mubr.bf16.gmra.mrb[0].mxu0 %v2133
        %v2169 = vpop.f32.mrb[0].mxu0
        %v2170 = vadd.f32 0.0, %v2169
        %v2171 = vpop.f32.mrb[0].mxu0
        %v2172 = vpop.f32.mrb[0].mxu0
        %v2173 = vadd.f32 0.0, %v2172
        %v2174 = vpop.f32.mrb[0].mxu0
        %2175 = vdwg.mxu0
        %v2176 = vadd.f32 %v2003, %v2170
        %v2177 = vadd.f32 %v2004, %v2173
        %2178 = vrot.lane.b32.xlu0 %v1837, 64
        %v2179 = vpop.permute.xlu0 %2178
        %2180 = vrot.lane.b32.xlu0 %v1838, 64
        %v2181 = vpop.permute.xlu0 %2180
        %v2183 = vsel %vm1840, %v2179, 0
        %v2186 = vsel %vm1840, %v2181, 0
        %2188 = vmatprep.subr.bf16.mxu0 0
        %2189 = vmatpush1.bf16.xpose.msra.mxu0 %v2186
        %2190 = vmatprep.subr.bf16.mxu0 0
        %2191 = vmatpush1.bf16.xpose.msra.mxu0 0
        %2192 = vmatprep.subr.bf16.mxu0 0
        %2193 = vmatpush1.bf16.xpose.msra.mxu0 0
        %2194 = vmatprep.subr.bf16.mxu0 0
        %2195 = vmatpush1.bf16.xpose.msra.mxu0 0
        %2196 = vmatprep.subr.bf16.mxu0 0
        %2197 = vmatpush1.bf16.xpose.msra.mxu0 0
        %2198 = vmatprep.subr.bf16.mxu0 0
        %2199 = vmatpush1.bf16.xpose.msra.mxu0 0
        %2200 = vmatprep.subr.bf16.mxu0 0
        %2201 = vmatpush1.bf16.xpose.msra.mxu0 0
        %2202 = vmatprep.subr.bf16.mxu0 0
        %2203 = vmatpush1.bf16.xpose.msra.mxu0 0
        %2204 = vmatprep.subr.bf16.mxu0 0
        %2205 = vmatpush1.bf16.xpose.msra.mxu0 0
        %2206 = vmatprep.subr.bf16.mxu0 0
        %2207 = vmatpush1.bf16.xpose.msra.mxu0 0
        %2208 = vmatprep.subr.bf16.mxu0 0
        %2209 = vmatpush1.bf16.xpose.msra.mxu0 0
        %2210 = vmatprep.subr.bf16.mxu0 0
        %2211 = vmatpush1.bf16.xpose.msra.mxu0 0
        %2212 = vmatprep.subr.bf16.mxu0 0
        %2213 = vmatpush1.bf16.xpose.msra.mxu0 0
        %2214 = vmatprep.subr.bf16.mxu0 0
        %2215 = vmatpush1.bf16.xpose.msra.mxu0 0
        %2216 = vmatprep.subr.bf16.mxu0 0
        %2217 = vmatpush1.bf16.xpose.msra.mxu0 0
        %2218 = vmatprep.subr.bf16.mxu0 0
        %2219 = vmatpush1.bf16.xpose.msra.mxu0 0
        %2220 = vmatprep.mubr.bf16.mxu0 0
        %2221 = vmatmul.mubr.bf16.gmra.mrb[0].mxu0 %v2183
        %v2222 = vpop.f32.mrb[0].mxu0
        %v2223 = vadd.f32 0.0, %v2222
        %v2224 = vpop.f32.mrb[0].mxu0
        %v2225 = vpop.f32.mrb[0].mxu0
        %v2226 = vadd.f32 0.0, %v2225
        %v2227 = vpop.f32.mrb[0].mxu0
        %2228 = vdwg.mxu0
        %v2229 = vmul.f32 %v2223, 0.17677669
        %v2230 = vmul.f32 %v2226, 0.17677669
        %v2231 = vsel %vm1890, %v2229, -inf
        %2232 = vmax.xlane.f32.xlu0 %v2231
        %v2233 = vpop.xlane.xlu0 %2232
        %v2234 = vsel %vm1890, %v2230, -inf
        %2235 = vmax.xlane.f32.xlu0 %v2234
        %v2236 = vpop.xlane.xlu0 %2235
        %v2237 = vsub.f32 %v2229, %v2233
        %v2238 = vsub.f32 %v2230, %v2236
        %v2239 = vmul.f32 %v2237, 1.442695
        %v2240 = vpow.pop %v2239
        %v2241 = vmul.f32 %v2238, 1.442695
        %v2242 = vpow.pop %v2241
        %v2243 = vsel %vm1890, %v2240, 0.0
        %2244 = vadd.xlane.f32.xlu0 %v2243
        %v2245 = vpop.xlane.xlu0 %2244
        %v2246 = vsel %vm1890, %v2242, 0.0
        %2247 = vadd.xlane.f32.xlu0 %v2246
        %v2248 = vpop.xlane.xlu0 %2247
        %v2249 = vrcp.pop %v2245
        %v2250 = vrcp.pop %v2248
        %v2251 = vmul.f32 %v2240, %v2249
        %v2252 = vmul.f32 %v2242, %v2250
        %v2253 = vpack.c.bf16 %v2252, %v2251
        %2254 = vrot.lane.b32.xlu0 %v1839, 64
        %v2255 = vpop.permute.xlu0 %2254
        %v2258 = vsel %vm1890, %v2253, 0
        %2260 = vmatprep.subr.bf16.mxu0 0
        %2261 = vmatpush1.bf16.msra.mxu0 %v2255
        %2262 = vmatprep.subr.bf16.mxu0 0
        %2263 = vmatpush1.bf16.msra.mxu0 0
        %2264 = vmatprep.subr.bf16.mxu0 0
        %2265 = vmatpush1.bf16.msra.mxu0 0
        %2266 = vmatprep.subr.bf16.mxu0 0
        %2267 = vmatpush1.bf16.msra.mxu0 0
        %2268 = vmatprep.subr.bf16.mxu0 0
        %2269 = vmatpush1.bf16.msra.mxu0 0
        %2270 = vmatprep.subr.bf16.mxu0 0
        %2271 = vmatpush1.bf16.msra.mxu0 0
        %2272 = vmatprep.subr.bf16.mxu0 0
        %2273 = vmatpush1.bf16.msra.mxu0 0
        %2274 = vmatprep.subr.bf16.mxu0 0
        %2275 = vmatpush1.bf16.msra.mxu0 0
        %2276 = vmatprep.subr.bf16.mxu0 0
        %2277 = vmatpush1.bf16.msra.mxu0 0
        %2278 = vmatprep.subr.bf16.mxu0 0
        %2279 = vmatpush1.bf16.msra.mxu0 0
        %2280 = vmatprep.subr.bf16.mxu0 0
        %2281 = vmatpush1.bf16.msra.mxu0 0
        %2282 = vmatprep.subr.bf16.mxu0 0
        %2283 = vmatpush1.bf16.msra.mxu0 0
        %2284 = vmatprep.subr.bf16.mxu0 0
        %2285 = vmatpush1.bf16.msra.mxu0 0
        %2286 = vmatprep.subr.bf16.mxu0 0
        %2287 = vmatpush1.bf16.msra.mxu0 0
        %2288 = vmatprep.subr.bf16.mxu0 0
        %2289 = vmatpush1.bf16.msra.mxu0 0
        %2290 = vmatprep.subr.bf16.mxu0 0
        %2291 = vmatpush1.bf16.msra.mxu0 0
        %2292 = vmatprep.mubr.bf16.mxu0 0
        %2293 = vmatmul.mubr.bf16.gmra.mrb[0].mxu0 %v2258
        %v2294 = vpop.f32.mrb[0].mxu0
        %v2295 = vadd.f32 0.0, %v2294
        %v2296 = vpop.f32.mrb[0].mxu0
        %v2297 = vpop.f32.mrb[0].mxu0
        %v2298 = vadd.f32 0.0, %v2297
        %v2299 = vpop.f32.mrb[0].mxu0
        %2300 = vdwg.mxu0
        %v2301 = vpack.c.bf16 %v2298, %v2295
        %v2303 = vsel %vm1840, %v2301, 0
        %2305 = vmatprep.subr.bf16.mxu0 0
        %2306 = vmatpush1.bf16.msra.mxu0 %v1825
        %2307 = vmatprep.subr.bf16.mxu0 0
        %2308 = vmatpush1.bf16.msra.mxu0 %v1826
        %2309 = vmatprep.subr.bf16.mxu0 0
        %2310 = vmatpush1.bf16.msra.mxu0 0
        %2311 = vmatprep.subr.bf16.mxu0 0
        %2312 = vmatpush1.bf16.msra.mxu0 0
        %2313 = vmatprep.subr.bf16.mxu0 0
        %2314 = vmatpush1.bf16.msra.mxu0 0
        %2315 = vmatprep.subr.bf16.mxu0 0
        %2316 = vmatpush1.bf16.msra.mxu0 0
        %2317 = vmatprep.subr.bf16.mxu0 0
        %2318 = vmatpush1.bf16.msra.mxu0 0
        %2319 = vmatprep.subr.bf16.mxu0 0
        %2320 = vmatpush1.bf16.msra.mxu0 0
        %2321 = vmatprep.subr.bf16.mxu0 0
        %2322 = vmatpush1.bf16.msra.mxu0 0
        %2323 = vmatprep.subr.bf16.mxu0 0
        %2324 = vmatpush1.bf16.msra.mxu0 0
        %2325 = vmatprep.subr.bf16.mxu0 0
        %2326 = vmatpush1.bf16.msra.mxu0 0
        %2327 = vmatprep.subr.bf16.mxu0 0
        %2328 = vmatpush1.bf16.msra.mxu0 0
        %2329 = vmatprep.subr.bf16.mxu0 0
        %2330 = vmatpush1.bf16.msra.mxu0 0
        %2331 = vmatprep.subr.bf16.mxu0 0
        %2332 = vmatpush1.bf16.msra.mxu0 0
        %2333 = vmatprep.subr.bf16.mxu0 0
        %2334 = vmatpush1.bf16.msra.mxu0 0
        %2335 = vmatprep.subr.bf16.mxu0 0
        %2336 = vmatpush1.bf16.msra.mxu0 0
        %2337 = vmatprep.mubr.bf16.mxu0 0
        %2338 = vmatmul.mubr.bf16.gmra.mrb[0].mxu0 %v2303
        %v2339 = vpop.f32.mrb[0].mxu0
        %v2340 = vadd.f32 0.0, %v2339
        %v2341 = vpop.f32.mrb[0].mxu0
        %v2342 = vpop.f32.mrb[0].mxu0
        %v2343 = vadd.f32 0.0, %v2342
        %v2344 = vpop.f32.mrb[0].mxu0
        %2345 = vdwg.mxu0
        %v2346 = vadd.f32 %v2176, %v2340
        %v2347 = vadd.f32 %v2177, %v2343
        %2348 = vrot.lane.b32.xlu0 %v1837, 32
        %v2349 = vpop.permute.xlu0 %2348
        %2350 = vrot.lane.b32.xlu0 %v1838, 32
        %v2351 = vpop.permute.xlu0 %2350
        %v2353 = vsel %vm1840, %v2349, 0
        %v2356 = vsel %vm1840, %v2351, 0
        %2358 = vmatprep.subr.bf16.mxu0 0
        %2359 = vmatpush1.bf16.xpose.msra.mxu0 %v2356
        %2360 = vmatprep.subr.bf16.mxu0 0
        %2361 = vmatpush1.bf16.xpose.msra.mxu0 0
        %2362 = vmatprep.subr.bf16.mxu0 0
        %2363 = vmatpush1.bf16.xpose.msra.mxu0 0
        %2364 = vmatprep.subr.bf16.mxu0 0
        %2365 = vmatpush1.bf16.xpose.msra.mxu0 0
        %2366 = vmatprep.subr.bf16.mxu0 0
        %2367 = vmatpush1.bf16.xpose.msra.mxu0 0
        %2368 = vmatprep.subr.bf16.mxu0 0
        %2369 = vmatpush1.bf16.xpose.msra.mxu0 0
        %2370 = vmatprep.subr.bf16.mxu0 0
        %2371 = vmatpush1.bf16.xpose.msra.mxu0 0
        %2372 = vmatprep.subr.bf16.mxu0 0
        %2373 = vmatpush1.bf16.xpose.msra.mxu0 0
        %2374 = vmatprep.subr.bf16.mxu0 0
        %2375 = vmatpush1.bf16.xpose.msra.mxu0 0
        %2376 = vmatprep.subr.bf16.mxu0 0
        %2377 = vmatpush1.bf16.xpose.msra.mxu0 0
        %2378 = vmatprep.subr.bf16.mxu0 0
        %2379 = vmatpush1.bf16.xpose.msra.mxu0 0
        %2380 = vmatprep.subr.bf16.mxu0 0
        %2381 = vmatpush1.bf16.xpose.msra.mxu0 0
        %2382 = vmatprep.subr.bf16.mxu0 0
        %2383 = vmatpush1.bf16.xpose.msra.mxu0 0
        %2384 = vmatprep.subr.bf16.mxu0 0
        %2385 = vmatpush1.bf16.xpose.msra.mxu0 0
        %2386 = vmatprep.subr.bf16.mxu0 0
        %2387 = vmatpush1.bf16.xpose.msra.mxu0 0
        %2388 = vmatprep.subr.bf16.mxu0 0
        %2389 = vmatpush1.bf16.xpose.msra.mxu0 0
        %2390 = vmatprep.mubr.bf16.mxu0 0
        %2391 = vmatmul.mubr.bf16.gmra.mrb[0].mxu0 %v2353
        %v2392 = vpop.f32.mrb[0].mxu0
        %v2393 = vadd.f32 0.0, %v2392
        %v2394 = vpop.f32.mrb[0].mxu0
        %v2395 = vpop.f32.mrb[0].mxu0
        %v2396 = vadd.f32 0.0, %v2395
        %v2397 = vpop.f32.mrb[0].mxu0
        %2398 = vdwg.mxu0
        %v2399 = vmul.f32 %v2393, 0.17677669
        %v2400 = vmul.f32 %v2396, 0.17677669
        %v2401 = vsel %vm1890, %v2399, -inf
        %2402 = vmax.xlane.f32.xlu0 %v2401
        %v2403 = vpop.xlane.xlu0 %2402
        %v2404 = vsel %vm1890, %v2400, -inf
        %2405 = vmax.xlane.f32.xlu0 %v2404
        %v2406 = vpop.xlane.xlu0 %2405
        %v2407 = vsub.f32 %v2399, %v2403
        %v2408 = vsub.f32 %v2400, %v2406
        %v2409 = vmul.f32 %v2407, 1.442695
        %v2410 = vpow.pop %v2409
        %v2411 = vmul.f32 %v2408, 1.442695
        %v2412 = vpow.pop %v2411
        %v2413 = vsel %vm1890, %v2410, 0.0
        %2414 = vadd.xlane.f32.xlu0 %v2413
        %v2415 = vpop.xlane.xlu0 %2414
        %v2416 = vsel %vm1890, %v2412, 0.0
        %2417 = vadd.xlane.f32.xlu0 %v2416
        %v2418 = vpop.xlane.xlu0 %2417
        %v2419 = vrcp.pop %v2415
        %v2420 = vrcp.pop %v2418
        %v2421 = vmul.f32 %v2410, %v2419
        %v2422 = vmul.f32 %v2412, %v2420
        %v2423 = vpack.c.bf16 %v2422, %v2421
        %2424 = vrot.lane.b32.xlu0 %v1839, 32
        %v2425 = vpop.permute.xlu0 %2424
        %v2428 = vsel %vm1890, %v2423, 0
        %2430 = vmatprep.subr.bf16.mxu0 0
        %2431 = vmatpush1.bf16.msra.mxu0 %v2425
        %2432 = vmatprep.subr.bf16.mxu0 0
        %2433 = vmatpush1.bf16.msra.mxu0 0
        %2434 = vmatprep.subr.bf16.mxu0 0
        %2435 = vmatpush1.bf16.msra.mxu0 0
        %2436 = vmatprep.subr.bf16.mxu0 0
        %2437 = vmatpush1.bf16.msra.mxu0 0
        %2438 = vmatprep.subr.bf16.mxu0 0
        %2439 = vmatpush1.bf16.msra.mxu0 0
        %2440 = vmatprep.subr.bf16.mxu0 0
        %2441 = vmatpush1.bf16.msra.mxu0 0
        %2442 = vmatprep.subr.bf16.mxu0 0
        %2443 = vmatpush1.bf16.msra.mxu0 0
        %2444 = vmatprep.subr.bf16.mxu0 0
        %2445 = vmatpush1.bf16.msra.mxu0 0
        %2446 = vmatprep.subr.bf16.mxu0 0
        %2447 = vmatpush1.bf16.msra.mxu0 0
        %2448 = vmatprep.subr.bf16.mxu0 0
        %2449 = vmatpush1.bf16.msra.mxu0 0
        %2450 = vmatprep.subr.bf16.mxu0 0
        %2451 = vmatpush1.bf16.msra.mxu0 0
        %2452 = vmatprep.subr.bf16.mxu0 0
        %2453 = vmatpush1.bf16.msra.mxu0 0
        %2454 = vmatprep.subr.bf16.mxu0 0
        %2455 = vmatpush1.bf16.msra.mxu0 0
        %2456 = vmatprep.subr.bf16.mxu0 0
        %2457 = vmatpush1.bf16.msra.mxu0 0
        %2458 = vmatprep.subr.bf16.mxu0 0
        %2459 = vmatpush1.bf16.msra.mxu0 0
        %2460 = vmatprep.subr.bf16.mxu0 0
        %2461 = vmatpush1.bf16.msra.mxu0 0
        %2462 = vmatprep.mubr.bf16.mxu0 0
        %2463 = vmatmul.mubr.bf16.gmra.mrb[0].mxu0 %v2428
        %v2464 = vpop.f32.mrb[0].mxu0
        %v2465 = vadd.f32 0.0, %v2464
        %v2466 = vpop.f32.mrb[0].mxu0
        %v2467 = vpop.f32.mrb[0].mxu0
        %v2468 = vadd.f32 0.0, %v2467
        %v2469 = vpop.f32.mrb[0].mxu0
        %2470 = vdwg.mxu0
        %v2471 = vpack.c.bf16 %v2468, %v2465
        %v2473 = vsel %vm1840, %v2471, 0
        %2475 = vmatprep.subr.bf16.mxu0 0
        %2476 = vmatpush1.bf16.msra.mxu0 %v1827
        %2477 = vmatprep.subr.bf16.mxu0 0
        %2478 = vmatpush1.bf16.msra.mxu0 %v1828
        %2479 = vmatprep.subr.bf16.mxu0 0
        %2480 = vmatpush1.bf16.msra.mxu0 0
        %2481 = vmatprep.subr.bf16.mxu0 0
        %2482 = vmatpush1.bf16.msra.mxu0 0
        %2483 = vmatprep.subr.bf16.mxu0 0
        %2484 = vmatpush1.bf16.msra.mxu0 0
        %2485 = vmatprep.subr.bf16.mxu0 0
        %2486 = vmatpush1.bf16.msra.mxu0 0
        %2487 = vmatprep.subr.bf16.mxu0 0
        %2488 = vmatpush1.bf16.msra.mxu0 0
        %2489 = vmatprep.subr.bf16.mxu0 0
        %2490 = vmatpush1.bf16.msra.mxu0 0
        %2491 = vmatprep.subr.bf16.mxu0 0
        %2492 = vmatpush1.bf16.msra.mxu0 0
        %2493 = vmatprep.subr.bf16.mxu0 0
        %2494 = vmatpush1.bf16.msra.mxu0 0
        %2495 = vmatprep.subr.bf16.mxu0 0
        %2496 = vmatpush1.bf16.msra.mxu0 0
        %2497 = vmatprep.subr.bf16.mxu0 0
        %2498 = vmatpush1.bf16.msra.mxu0 0
        %2499 = vmatprep.subr.bf16.mxu0 0
        %2500 = vmatpush1.bf16.msra.mxu0 0
        %2501 = vmatprep.subr.bf16.mxu0 0
        %2502 = vmatpush1.bf16.msra.mxu0 0
        %2503 = vmatprep.subr.bf16.mxu0 0
        %2504 = vmatpush1.bf16.msra.mxu0 0
        %2505 = vmatprep.subr.bf16.mxu0 0
        %2506 = vmatpush1.bf16.msra.mxu0 0
        %2507 = vmatprep.mubr.bf16.mxu0 0
        %2508 = vmatmul.mubr.bf16.gmra.mrb[0].mxu0 %v2473
        %v2509 = vpop.f32.mrb[0].mxu0
        %v2510 = vadd.f32 0.0, %v2509
        %v2511 = vpop.f32.mrb[0].mxu0
        %v2512 = vpop.f32.mrb[0].mxu0
        %v2513 = vadd.f32 0.0, %v2512
        %v2514 = vpop.f32.mrb[0].mxu0
        %2515 = vdwg.mxu0
        %v2516 = vadd.f32 %v2346, %v2510
        %v2517 = vadd.f32 %v2347, %v2513
        %v2518 = vadd.f32 %v1565, %v2516
        %v2519 = vadd.f32 %v1566, %v2517
        %v2520 = vld [vmem:[#allocation20] sm:$0x1]
        %v2521 = vld [vmem:[#allocation22] sm:$0x1]
        %2522 = vadd.xlane.f32.xlu0 %v2518
        %v2523 = vpop.xlane.xlu0 %2522
        %2524 = vadd.xlane.f32.xlu0 %v2519
        %v2525 = vpop.xlane.xlu0 %2524
        %v2526 = vrcp.pop 128.0
        %v2527 = vmul.f32 %v2523, %v2526
        %v2528 = vmul.f32 %v2525, %v2526
        %v2529 = vsub.f32 %v2518, %v2527
        %v2530 = vsub.f32 %v2519, %v2528
        %v2531 = vmul.f32 %v2529, %v2529
        %v2532 = vmul.f32 %v2530, %v2530
        %2533 = vadd.xlane.f32.xlu0 %v2531
        %v2534 = vpop.xlane.xlu0 %2533
        %2535 = vadd.xlane.f32.xlu0 %v2532
        %v2536 = vpop.xlane.xlu0 %2535
        %v2537 = vmul.f32 %v2534, %v2526
        %v2538 = vmul.f32 %v2536, %v2526
        %v2539 = vadd.f32 %v2537, 1e-05
        %v2540 = vadd.f32 %v2538, 1e-05
        %v2541 = vrsqrt.pop %v2539
        %v2542 = vrsqrt.pop %v2540
        %v2543 = vmul.f32 %v2529, %v2541
        %v2544 = vmul.f32 %v2530, %v2542
        %v2546 = vlaneseq
        %v2547 = vshrl.u32 %v2546, 7
        %v2548 = vsub.s32 0, %v2547
        %v2549 = vrot.slane %v2520, %v2548
        %v2551 = vmul.f32 %v2543, %v2549
        %v2552 = vmul.f32 %v2544, %v2549
        %v2554 = vlaneseq
        %v2555 = vshrl.u32 %v2554, 7
        %v2556 = vsub.s32 0, %v2555
        %v2557 = vrot.slane %v2521, %v2556
        %v2559 = vadd.f32 %v2551, %v2557
        %v2560 = vadd.f32 %v2552, %v2557
        %v2561 = vadd.f32 %v1567, %v1577
        %v2562 = vadd.f32 %v1568, %v1578
        %v2563 = vadd.f32 %v1569, %v1579
        %v2564 = vadd.f32 %v1570, %v1580
        %v2565 = vadd.f32 %v1571, %v1581
        %v2566 = vadd.f32 %v1572, %v1582
        %v2567 = vadd.f32 %v1573, %v1583
        %v2568 = vadd.f32 %v1574, %v1584
        %v2569 = vadd.f32 %v2559, %v1575
        %v2570 = vadd.f32 %v2560, %v1576
        %v2571 = vld [vmem:[%s25] sm:$0xff]
        %v2572 = vld [vmem:[%s25 + $0x8] sm:$0xff]
        %v2573 = vld [vmem:[%s25 + $0x10] sm:$0xff]
        %v2574 = vld [vmem:[%s25 + $0x18] sm:$0xff]
        %v2575 = vld [vmem:[%s25 + $0x20] sm:$0xff]
        %v2576 = vld [vmem:[%s25 + $0x28] sm:$0xff]
        %v2577 = vld [vmem:[%s25 + $0x30] sm:$0xff]
        %v2578 = vld [vmem:[%s25 + $0x38] sm:$0xff]
        %v2579 = vld [vmem:[%s25 + $0x40] sm:$0xff]
        %v2580 = vld [vmem:[%s25 + $0x48] sm:$0xff]
        %v2581 = vld [vmem:[%s25 + $0x50] sm:$0xff]
        %v2582 = vld [vmem:[%s25 + $0x58] sm:$0xff]
        %v2583 = vld [vmem:[%s25 + $0x60] sm:$0xff]
        %v2584 = vld [vmem:[%s25 + $0x68] sm:$0xff]
        %v2585 = vld [vmem:[%s25 + $0x70] sm:$0xff]
        %v2586 = vld [vmem:[%s25 + $0x78] sm:$0xff]
        %v2587 = vpack.c.bf16 %v2570, %v2569
        %v2588 = vpack.c.bf16 %v2572, %v2571
        %v2589 = vpack.c.bf16 %v2574, %v2573
        %v2590 = vpack.c.bf16 %v2576, %v2575
        %v2591 = vpack.c.bf16 %v2578, %v2577
        %v2592 = vpack.c.bf16 %v2580, %v2579
        %v2593 = vpack.c.bf16 %v2582, %v2581
        %v2594 = vpack.c.bf16 %v2584, %v2583
        %v2595 = vpack.c.bf16 %v2586, %v2585
        %v2596 = vld [vmem:[%s27] sm:$0x1]
        %v2598 = vlaneseq
        %v2599 = vshrl.u32 %v2598, 7
        %v2600 = vsub.s32 0, %v2599
        %v2601 = vrot.slane %v2596, %v2600
        %2603 = vmatprep.subr.bf16.mxu0 0
        %2604 = vmatpush1.bf16.msra.mxu0 %v2588
        %2605 = vmatprep.subr.bf16.mxu0 0
        %2606 = vmatpush1.bf16.msra.mxu0 %v2589
        %2607 = vmatprep.subr.bf16.mxu0 0
        %2608 = vmatpush1.bf16.msra.mxu0 %v2590
        %2609 = vmatprep.subr.bf16.mxu0 0
        %2610 = vmatpush1.bf16.msra.mxu0 %v2591
        %2611 = vmatprep.subr.bf16.mxu0 0
        %2612 = vmatpush1.bf16.msra.mxu0 %v2592
        %2613 = vmatprep.subr.bf16.mxu0 0
        %2614 = vmatpush1.bf16.msra.mxu0 %v2593
        %2615 = vmatprep.subr.bf16.mxu0 0
        %2616 = vmatpush1.bf16.msra.mxu0 %v2594
        %2617 = vmatprep.subr.bf16.mxu0 0
        %2618 = vmatpush1.bf16.msra.mxu0 %v2595
        %2619 = vmatprep.subr.bf16.mxu0 0
        %2620 = vmatpush1.bf16.msra.mxu0 0
        %2621 = vmatprep.subr.bf16.mxu0 0
        %2622 = vmatpush1.bf16.msra.mxu0 0
        %2623 = vmatprep.subr.bf16.mxu0 0
        %2624 = vmatpush1.bf16.msra.mxu0 0
        %2625 = vmatprep.subr.bf16.mxu0 0
        %2626 = vmatpush1.bf16.msra.mxu0 0
        %2627 = vmatprep.subr.bf16.mxu0 0
        %2628 = vmatpush1.bf16.msra.mxu0 0
        %2629 = vmatprep.subr.bf16.mxu0 0
        %2630 = vmatpush1.bf16.msra.mxu0 0
        %2631 = vmatprep.subr.bf16.mxu0 0
        %2632 = vmatpush1.bf16.msra.mxu0 0
        %2633 = vmatprep.subr.bf16.mxu0 0
        %2634 = vmatpush1.bf16.msra.mxu0 0
        %2635 = vmatprep.mubr.bf16.mxu0 0
        %2636 = vmatmul.mubr.bf16.gmra.mrb[0].mxu0 %v2587
        %v2637 = vpop.f32.mrb[0].mxu0
        %v2638 = vadd.f32 %v2601, %v2637
        %v2639 = vpop.f32.mrb[0].mxu0
        %v2640 = vpop.f32.mrb[0].mxu0
        %v2641 = vadd.f32 %v2601, %v2640
        %v2642 = vpop.f32.mrb[0].mxu0
        %2643 = vdwg.mxu0
        %v2644 = vld [vmem:[%s29] sm:$0xff]
        %v2645 = vld [vmem:[%s29 + $0x8] sm:$0xff]
        %v2646 = vld [vmem:[%s29 + $0x10] sm:$0xff]
        %v2647 = vld [vmem:[%s29 + $0x18] sm:$0xff]
        %v2648 = vld [vmem:[%s29 + $0x20] sm:$0xff]
        %v2649 = vld [vmem:[%s29 + $0x28] sm:$0xff]
        %v2650 = vld [vmem:[%s29 + $0x30] sm:$0xff]
        %v2651 = vld [vmem:[%s29 + $0x38] sm:$0xff]
        %v2652 = vld [vmem:[%s29 + $0x40] sm:$0xff]
        %v2653 = vld [vmem:[%s29 + $0x48] sm:$0xff]
        %v2654 = vld [vmem:[%s29 + $0x50] sm:$0xff]
        %v2655 = vld [vmem:[%s29 + $0x58] sm:$0xff]
        %v2656 = vld [vmem:[%s29 + $0x60] sm:$0xff]
        %v2657 = vld [vmem:[%s29 + $0x68] sm:$0xff]
        %v2658 = vld [vmem:[%s29 + $0x70] sm:$0xff]
        %v2659 = vld [vmem:[%s29 + $0x78] sm:$0xff]
        %v2660 = vpack.c.bf16 %v2562, %v2561
        %v2661 = vpack.c.bf16 %v2564, %v2563
        %v2662 = vpack.c.bf16 %v2566, %v2565
        %v2663 = vpack.c.bf16 %v2568, %v2567
        %v2664 = vpack.c.bf16 %v2645, %v2644
        %v2665 = vpack.c.bf16 %v2647, %v2646
        %v2666 = vpack.c.bf16 %v2649, %v2648
        %v2667 = vpack.c.bf16 %v2651, %v2650
        %v2668 = vpack.c.bf16 %v2653, %v2652
        %v2669 = vpack.c.bf16 %v2655, %v2654
        %v2670 = vpack.c.bf16 %v2657, %v2656
        %v2671 = vpack.c.bf16 %v2659, %v2658
        %v2672 = vld [vmem:[%s31] sm:$0x1]
        %v2674 = vlaneseq
        %v2675 = vshrl.u32 %v2674, 7
        %v2676 = vsub.s32 0, %v2675
        %v2677 = vrot.slane %v2672, %v2676
        %2679 = vmatprep.subr.bf16.mxu0 0
        %2680 = vmatpush1.bf16.msra.mxu0 %v2664
        %2681 = vmatprep.subr.bf16.mxu0 0
        %2682 = vmatpush1.bf16.msra.mxu0 %v2665
        %2683 = vmatprep.subr.bf16.mxu0 0
        %2684 = vmatpush1.bf16.msra.mxu0 %v2666
        %2685 = vmatprep.subr.bf16.mxu0 0
        %2686 = vmatpush1.bf16.msra.mxu0 %v2667
        %2687 = vmatprep.subr.bf16.mxu0 0
        %2688 = vmatpush1.bf16.msra.mxu0 %v2668
        %2689 = vmatprep.subr.bf16.mxu0 0
        %2690 = vmatpush1.bf16.msra.mxu0 %v2669
        %2691 = vmatprep.subr.bf16.mxu0 0
        %2692 = vmatpush1.bf16.msra.mxu0 %v2670
        %2693 = vmatprep.subr.bf16.mxu0 0
        %2694 = vmatpush1.bf16.msra.mxu0 %v2671
        %2695 = vmatprep.subr.bf16.mxu0 0
        %2696 = vmatpush1.bf16.msra.mxu0 0
        %2697 = vmatprep.subr.bf16.mxu0 0
        %2698 = vmatpush1.bf16.msra.mxu0 0
        %2699 = vmatprep.subr.bf16.mxu0 0
        %2700 = vmatpush1.bf16.msra.mxu0 0
        %2701 = vmatprep.subr.bf16.mxu0 0
        %2702 = vmatpush1.bf16.msra.mxu0 0
        %2703 = vmatprep.subr.bf16.mxu0 0
        %2704 = vmatpush1.bf16.msra.mxu0 0
        %2705 = vmatprep.subr.bf16.mxu0 0
        %2706 = vmatpush1.bf16.msra.mxu0 0
        %2707 = vmatprep.subr.bf16.mxu0 0
        %2708 = vmatpush1.bf16.msra.mxu0 0
        %2709 = vmatprep.subr.bf16.mxu0 0
        %2710 = vmatpush1.bf16.msra.mxu0 0
        %2711 = vmatprep.mubr.bf16.mxu0 0
        %2712 = vmatmul.mubr.bf16.gmra.mrb[0].mxu0 %v2660
        %v2713 = vpop.f32.mrb[0].mxu0
        %v2714 = vadd.f32 %v2677, %v2713
        %v2715 = vpop.f32.mrb[0].mxu0
        %v2716 = vpop.f32.mrb[0].mxu0
        %v2717 = vadd.f32 %v2677, %v2716
        %v2718 = vpop.f32.mrb[0].mxu0
        %2719 = vmatprep.mubr.bf16.mxu0 0
        %2720 = vmatmul.mubr.bf16.gmra.mrb[0].mxu0 %v2661
        %v2721 = vpop.f32.mrb[0].mxu0
        %v2722 = vadd.f32 %v2677, %v2721
        %v2723 = vpop.f32.mrb[0].mxu0
        %v2724 = vpop.f32.mrb[0].mxu0
        %v2725 = vadd.f32 %v2677, %v2724
        %v2726 = vpop.f32.mrb[0].mxu0
        %2727 = vmatprep.mubr.bf16.mxu0 0
        %2728 = vmatmul.mubr.bf16.gmra.mrb[0].mxu0 %v2662
        %v2729 = vpop.f32.mrb[0].mxu0
        %v2730 = vadd.f32 %v2677, %v2729
        %v2731 = vpop.f32.mrb[0].mxu0
        %v2732 = vpop.f32.mrb[0].mxu0
        %v2733 = vadd.f32 %v2677, %v2732
        %v2734 = vpop.f32.mrb[0].mxu0
        %2735 = vmatprep.mubr.bf16.mxu0 0
        %2736 = vmatmul.mubr.bf16.gmra.mrb[0].mxu0 %v2663
        %v2737 = vpop.f32.mrb[0].mxu0
        %v2738 = vadd.f32 %v2677, %v2737
        %v2739 = vpop.f32.mrb[0].mxu0
        %v2740 = vpop.f32.mrb[0].mxu0
        %v2741 = vadd.f32 %v2677, %v2740
        %v2742 = vpop.f32.mrb[0].mxu0
        %2743 = vdwg.mxu0
        %v2744 = vld [vmem:[%s33] sm:$0xff]
        %v2745 = vld [vmem:[%s33 + $0x8] sm:$0xff]
        %v2746 = vld [vmem:[%s33 + $0x10] sm:$0xff]
        %v2747 = vld [vmem:[%s33 + $0x18] sm:$0xff]
        %v2748 = vld [vmem:[%s33 + $0x20] sm:$0xff]
        %v2749 = vld [vmem:[%s33 + $0x28] sm:$0xff]
        %v2750 = vld [vmem:[%s33 + $0x30] sm:$0xff]
        %v2751 = vld [vmem:[%s33 + $0x38] sm:$0xff]
        %v2752 = vld [vmem:[%s33 + $0x40] sm:$0xff]
        %v2753 = vld [vmem:[%s33 + $0x48] sm:$0xff]
        %v2754 = vld [vmem:[%s33 + $0x50] sm:$0xff]
        %v2755 = vld [vmem:[%s33 + $0x58] sm:$0xff]
        %v2756 = vld [vmem:[%s33 + $0x60] sm:$0xff]
        %v2757 = vld [vmem:[%s33 + $0x68] sm:$0xff]
        %v2758 = vld [vmem:[%s33 + $0x70] sm:$0xff]
        %v2759 = vld [vmem:[%s33 + $0x78] sm:$0xff]
        %v2760 = vpack.c.bf16 %v1568, %v1567
        %v2761 = vpack.c.bf16 %v1570, %v1569
        %v2762 = vpack.c.bf16 %v1572, %v1571
        %v2763 = vpack.c.bf16 %v1574, %v1573
        %v2764 = vpack.c.bf16 %v2745, %v2744
        %v2765 = vpack.c.bf16 %v2747, %v2746
        %v2766 = vpack.c.bf16 %v2749, %v2748
        %v2767 = vpack.c.bf16 %v2751, %v2750
        %v2768 = vpack.c.bf16 %v2753, %v2752
        %v2769 = vpack.c.bf16 %v2755, %v2754
        %v2770 = vpack.c.bf16 %v2757, %v2756
        %v2771 = vpack.c.bf16 %v2759, %v2758
        %v2772 = vld [vmem:[#allocation7] sm:$0x1]
        %v2774 = vlaneseq
        %v2775 = vshrl.u32 %v2774, 7
        %v2776 = vsub.s32 0, %v2775
        %v2777 = vrot.slane %v2772, %v2776
        %2779 = vmatprep.subr.bf16.mxu0 0
        %2780 = vmatpush1.bf16.msra.mxu0 %v2764
        %2781 = vmatprep.subr.bf16.mxu0 0
        %2782 = vmatpush1.bf16.msra.mxu0 %v2765
        %2783 = vmatprep.subr.bf16.mxu0 0
        %2784 = vmatpush1.bf16.msra.mxu0 %v2766
        %2785 = vmatprep.subr.bf16.mxu0 0
        %2786 = vmatpush1.bf16.msra.mxu0 %v2767
        %2787 = vmatprep.subr.bf16.mxu0 0
        %2788 = vmatpush1.bf16.msra.mxu0 %v2768
        %2789 = vmatprep.subr.bf16.mxu0 0
        %2790 = vmatpush1.bf16.msra.mxu0 %v2769
        %2791 = vmatprep.subr.bf16.mxu0 0
        %2792 = vmatpush1.bf16.msra.mxu0 %v2770
        %2793 = vmatprep.subr.bf16.mxu0 0
        %2794 = vmatpush1.bf16.msra.mxu0 %v2771
        %2795 = vmatprep.subr.bf16.mxu0 0
        %2796 = vmatpush1.bf16.msra.mxu0 0
        %2797 = vmatprep.subr.bf16.mxu0 0
        %2798 = vmatpush1.bf16.msra.mxu0 0
        %2799 = vmatprep.subr.bf16.mxu0 0
        %2800 = vmatpush1.bf16.msra.mxu0 0
        %2801 = vmatprep.subr.bf16.mxu0 0
        %2802 = vmatpush1.bf16.msra.mxu0 0
        %2803 = vmatprep.subr.bf16.mxu0 0
        %2804 = vmatpush1.bf16.msra.mxu0 0
        %2805 = vmatprep.subr.bf16.mxu0 0
        %2806 = vmatpush1.bf16.msra.mxu0 0
        %2807 = vmatprep.subr.bf16.mxu0 0
        %2808 = vmatpush1.bf16.msra.mxu0 0
        %2809 = vmatprep.subr.bf16.mxu0 0
        %2810 = vmatpush1.bf16.msra.mxu0 0
        %2811 = vmatprep.mubr.bf16.mxu0 0
        %2812 = vmatmul.mubr.bf16.gmra.mrb[0].mxu0 %v2760
        %v2813 = vpop.f32.mrb[0].mxu0
        %v2814 = vadd.f32 %v2777, %v2813
        %v2815 = vpop.f32.mrb[0].mxu0
        %v2816 = vpop.f32.mrb[0].mxu0
        %v2817 = vadd.f32 %v2777, %v2816
        %v2818 = vpop.f32.mrb[0].mxu0
        %2819 = vmatprep.mubr.bf16.mxu0 0
        %2820 = vmatmul.mubr.bf16.gmra.mrb[0].mxu0 %v2761
        %v2821 = vpop.f32.mrb[0].mxu0
        %v2822 = vadd.f32 %v2777, %v2821
        %v2823 = vpop.f32.mrb[0].mxu0
        %v2824 = vpop.f32.mrb[0].mxu0
        %v2825 = vadd.f32 %v2777, %v2824
        %v2826 = vpop.f32.mrb[0].mxu0
        %2827 = vmatprep.mubr.bf16.mxu0 0
        %2828 = vmatmul.mubr.bf16.gmra.mrb[0].mxu0 %v2762
        %v2829 = vpop.f32.mrb[0].mxu0
        %v2830 = vadd.f32 %v2777, %v2829
        %v2831 = vpop.f32.mrb[0].mxu0
        %v2832 = vpop.f32.mrb[0].mxu0
        %v2833 = vadd.f32 %v2777, %v2832
        %v2834 = vpop.f32.mrb[0].mxu0
        %2835 = vmatprep.mubr.bf16.mxu0 0
        %2836 = vmatmul.mubr.bf16.gmra.mrb[0].mxu0 %v2763
        %v2837 = vpop.f32.mrb[0].mxu0
        %v2838 = vadd.f32 %v2777, %v2837
        %v2839 = vpop.f32.mrb[0].mxu0
        %v2840 = vpop.f32.mrb[0].mxu0
        %v2841 = vadd.f32 %v2777, %v2840
        %v2842 = vpop.f32.mrb[0].mxu0
        %2843 = vdwg.mxu0
        %v2844 = vld [vmem:[#allocation8] sm:$0xff]
        %v2845 = vld [vmem:[#allocation8 + $0x8] sm:$0xff]
        %v2846 = vld [vmem:[#allocation8 + $0x10] sm:$0xff]
        %v2847 = vld [vmem:[#allocation8 + $0x18] sm:$0xff]
        %v2848 = vld [vmem:[#allocation8 + $0x20] sm:$0xff]
        %v2849 = vld [vmem:[#allocation8 + $0x28] sm:$0xff]
        %v2850 = vld [vmem:[#allocation8 + $0x30] sm:$0xff]
        %v2851 = vld [vmem:[#allocation8 + $0x38] sm:$0xff]
        %v2852 = vpack.c.bf16 %v2845, %v2844
        %v2853 = vpack.c.bf16 %v2847, %v2846
        %v2854 = vpack.c.bf16 %v2849, %v2848
        %v2855 = vpack.c.bf16 %v2851, %v2850
        %v2856 = vld [vmem:[#allocation10] sm:$0x1]
        %v2858 = vlaneseq
        %v2859 = vshrl.u32 %v2858, 7
        %v2860 = vsub.s32 0, %v2859
        %v2861 = vrot.slane %v2856, %v2860
        %v2863 = vadd.f32 %v2861, 0.0
        %v2864 = vpack.c.bf16 %v2641, %v2638
        %v2865 = vpack.c.bf16 %v2717, %v2714
        %v2866 = vpack.c.bf16 %v2725, %v2722
        %v2867 = vpack.c.bf16 %v2733, %v2730
        %v2868 = vpack.c.bf16 %v2741, %v2738
        %v2869 = vpack.c.bf16 %v2817, %v2814
        %v2870 = vpack.c.bf16 %v2825, %v2822
        %v2871 = vpack.c.bf16 %v2833, %v2830
        %v2872 = vpack.c.bf16 %v2841, %v2838
        %v2874 = vsel %vm1890, %v2864, 0
        %v2877 = vsel %vm1890, %v2865, 0
        %v2880 = vsel %vm1890, %v2866, 0
        %v2883 = vsel %vm1890, %v2867, 0
        %v2886 = vsel %vm1890, %v2868, 0
        %2888 = vmatprep.subr.bf16.mxu0 0
        %2889 = vmatpush1.bf16.xpose.msra.mxu0 %v2877
        %2890 = vmatprep.subr.bf16.mxu0 0
        %2891 = vmatpush1.bf16.xpose.msra.mxu0 %v2880
        %2892 = vmatprep.subr.bf16.mxu0 0
        %2893 = vmatpush1.bf16.xpose.msra.mxu0 %v2883
        %2894 = vmatprep.subr.bf16.mxu0 0
        %2895 = vmatpush1.bf16.xpose.msra.mxu0 %v2886
        %2896 = vmatprep.subr.bf16.mxu0 0
        %2897 = vmatpush1.bf16.xpose.msra.mxu0 0
        %2898 = vmatprep.subr.bf16.mxu0 0
        %2899 = vmatpush1.bf16.xpose.msra.mxu0 0
        %2900 = vmatprep.subr.bf16.mxu0 0
        %2901 = vmatpush1.bf16.xpose.msra.mxu0 0
        %2902 = vmatprep.subr.bf16.mxu0 0
        %2903 = vmatpush1.bf16.xpose.msra.mxu0 0
        %2904 = vmatprep.subr.bf16.mxu0 0
        %2905 = vmatpush1.bf16.xpose.msra.mxu0 0
        %2906 = vmatprep.subr.bf16.mxu0 0
        %2907 = vmatpush1.bf16.xpose.msra.mxu0 0
        %2908 = vmatprep.subr.bf16.mxu0 0
        %2909 = vmatpush1.bf16.xpose.msra.mxu0 0
        %2910 = vmatprep.subr.bf16.mxu0 0
        %2911 = vmatpush1.bf16.xpose.msra.mxu0 0
        %2912 = vmatprep.subr.bf16.mxu0 0
        %2913 = vmatpush1.bf16.xpose.msra.mxu0 0
        %2914 = vmatprep.subr.bf16.mxu0 0
        %2915 = vmatpush1.bf16.xpose.msra.mxu0 0
        %2916 = vmatprep.subr.bf16.mxu0 0
        %2917 = vmatpush1.bf16.xpose.msra.mxu0 0
        %2918 = vmatprep.subr.bf16.mxu0 0
        %2919 = vmatpush1.bf16.xpose.msra.mxu0 0
        %2920 = vmatprep.mubr.bf16.mxu0 0
        %2921 = vmatmul.mubr.bf16.gmra.mrb[0].mxu0 %v2874
        %v2922 = vpop.f32.mrb[0].mxu0
        %v2923 = vadd.f32 0.0, %v2922
        %v2924 = vpop.f32.mrb[0].mxu0
        %v2925 = vpop.f32.mrb[0].mxu0
        %v2926 = vadd.f32 0.0, %v2925
        %v2927 = vpop.f32.mrb[0].mxu0
        %2928 = vdwg.mxu0
        %v2929 = vmul.f32 %v2923, 0.25
        %v2930 = vmul.f32 %v2926, 0.25
        %vm2931 = vcmask 523264
        %v2932 = vsel %vm2931, %v2929, -inf
        %2933 = vmax.xlane.f32.xlu0 %v2932
        %v2934 = vpop.xlane.xlu0 %2933
        %v2935 = vsel %vm2931, %v2930, -inf
        %2936 = vmax.xlane.f32.xlu0 %v2935
        %v2937 = vpop.xlane.xlu0 %2936
        %v2938 = vsub.f32 %v2929, %v2934
        %v2939 = vsub.f32 %v2930, %v2937
        %v2940 = vmul.f32 %v2938, 1.442695
        %v2941 = vpow.pop %v2940
        %v2942 = vmul.f32 %v2939, 1.442695
        %v2943 = vpow.pop %v2942
        %v2944 = vsel %vm2931, %v2941, 0.0
        %2945 = vadd.xlane.f32.xlu0 %v2944
        %v2946 = vpop.xlane.xlu0 %2945
        %v2947 = vsel %vm2931, %v2943, 0.0
        %2948 = vadd.xlane.f32.xlu0 %v2947
        %v2949 = vpop.xlane.xlu0 %2948
        %v2950 = vrcp.pop %v2946
        %v2951 = vrcp.pop %v2949
        %v2952 = vmul.f32 %v2941, %v2950
        %v2953 = vmul.f32 %v2943, %v2951
        %v2954 = vpack.c.bf16 %v2953, %v2952
        %v2956 = vsel %vm2931, %v2954, 0
        %2958 = vmatprep.subr.bf16.mxu0 0
        %2959 = vmatpush1.bf16.msra.mxu0 %v2869
        %2960 = vmatprep.subr.bf16.mxu0 0
        %2961 = vmatpush1.bf16.msra.mxu0 %v2870
        %2962 = vmatprep.subr.bf16.mxu0 0
        %2963 = vmatpush1.bf16.msra.mxu0 %v2871
        %2964 = vmatprep.subr.bf16.mxu0 0
        %2965 = vmatpush1.bf16.msra.mxu0 %v2872
        %2966 = vmatprep.subr.bf16.mxu0 0
        %2967 = vmatpush1.bf16.msra.mxu0 0
        %2968 = vmatprep.subr.bf16.mxu0 0
        %2969 = vmatpush1.bf16.msra.mxu0 0
        %2970 = vmatprep.subr.bf16.mxu0 0
        %2971 = vmatpush1.bf16.msra.mxu0 0
        %2972 = vmatprep.subr.bf16.mxu0 0
        %2973 = vmatpush1.bf16.msra.mxu0 0
        %2974 = vmatprep.subr.bf16.mxu0 0
        %2975 = vmatpush1.bf16.msra.mxu0 0
        %2976 = vmatprep.subr.bf16.mxu0 0
        %2977 = vmatpush1.bf16.msra.mxu0 0
        %2978 = vmatprep.subr.bf16.mxu0 0
        %2979 = vmatpush1.bf16.msra.mxu0 0
        %2980 = vmatprep.subr.bf16.mxu0 0
        %2981 = vmatpush1.bf16.msra.mxu0 0
        %2982 = vmatprep.subr.bf16.mxu0 0
        %2983 = vmatpush1.bf16.msra.mxu0 0
        %2984 = vmatprep.subr.bf16.mxu0 0
        %2985 = vmatpush1.bf16.msra.mxu0 0
        %2986 = vmatprep.subr.bf16.mxu0 0
        %2987 = vmatpush1.bf16.msra.mxu0 0
        %2988 = vmatprep.subr.bf16.mxu0 0
        %2989 = vmatpush1.bf16.msra.mxu0 0
        %2990 = vmatprep.mubr.bf16.mxu0 0
        %2991 = vmatmul.mubr.bf16.gmra.mrb[0].mxu0 %v2956
        %v2992 = vpop.f32.mrb[0].mxu0
        %v2993 = vadd.f32 0.0, %v2992
        %v2994 = vpop.f32.mrb[0].mxu0
        %v2995 = vpop.f32.mrb[0].mxu0
        %v2996 = vadd.f32 0.0, %v2995
        %v2997 = vpop.f32.mrb[0].mxu0
        %2998 = vdwg.mxu0
        %v2999 = vpack.c.bf16 %v2996, %v2993
        %v3001 = vsel %vm1890, %v2999, 0
        %3003 = vmatprep.subr.bf16.mxu0 0
        %3004 = vmatpush1.bf16.msra.mxu0 %v2852
        %3005 = vmatprep.subr.bf16.mxu0 0
        %3006 = vmatpush1.bf16.msra.mxu0 0
        %3007 = vmatprep.subr.bf16.mxu0 0
        %3008 = vmatpush1.bf16.msra.mxu0 0
        %3009 = vmatprep.subr.bf16.mxu0 0
        %3010 = vmatpush1.bf16.msra.mxu0 0
        %3011 = vmatprep.subr.bf16.mxu0 0
        %3012 = vmatpush1.bf16.msra.mxu0 0
        %3013 = vmatprep.subr.bf16.mxu0 0
        %3014 = vmatpush1.bf16.msra.mxu0 0
        %3015 = vmatprep.subr.bf16.mxu0 0
        %3016 = vmatpush1.bf16.msra.mxu0 0
        %3017 = vmatprep.subr.bf16.mxu0 0
        %3018 = vmatpush1.bf16.msra.mxu0 0
        %3019 = vmatprep.subr.bf16.mxu0 0
        %3020 = vmatpush1.bf16.msra.mxu0 0
        %3021 = vmatprep.subr.bf16.mxu0 0
        %3022 = vmatpush1.bf16.msra.mxu0 0
        %3023 = vmatprep.subr.bf16.mxu0 0
        %3024 = vmatpush1.bf16.msra.mxu0 0
        %3025 = vmatprep.subr.bf16.mxu0 0
        %3026 = vmatpush1.bf16.msra.mxu0 0
        %3027 = vmatprep.subr.bf16.mxu0 0
        %3028 = vmatpush1.bf16.msra.mxu0 0
        %3029 = vmatprep.subr.bf16.mxu0 0
        %3030 = vmatpush1.bf16.msra.mxu0 0
        %3031 = vmatprep.subr.bf16.mxu0 0
        %3032 = vmatpush1.bf16.msra.mxu0 0
        %3033 = vmatprep.subr.bf16.mxu0 0
        %3034 = vmatpush1.bf16.msra.mxu0 0
        %3035 = vmatprep.mubr.bf16.mxu0 0
        %3036 = vmatmul.mubr.bf16.gmra.mrb[0].mxu0 %v3001
        %v3037 = vpop.f32.mrb[0].mxu0
        %v3038 = vadd.f32 0.0, %v3037
        %v3039 = vpop.f32.mrb[0].mxu0
        %v3040 = vpop.f32.mrb[0].mxu0
        %v3041 = vadd.f32 0.0, %v3040
        %v3042 = vpop.f32.mrb[0].mxu0
        %3043 = vdwg.mxu0
        %v3044 = vadd.f32 %v2863, %v3038
        %v3045 = vadd.f32 %v2863, %v3041
        %3047 = vrot.lane.b32.xlu0 %v2864, 112
        %v3048 = vpop.permute.xlu0 %3047
        %3053 = vrot.lane.b32.xlu0 %v2865, 112
        %v3054 = vpop.permute.xlu0 %3053
        %3055 = vrot.lane.b32.xlu0 %v2866, 112
        %v3056 = vpop.permute.xlu0 %3055
        %3057 = vrot.lane.b32.xlu0 %v2867, 112
        %v3058 = vpop.permute.xlu0 %3057
        %3059 = vrot.lane.b32.xlu0 %v2868, 112
        %v3060 = vpop.permute.xlu0 %3059
        %v3062 = vsel %vm1890, %v3048, 0
        %v3065 = vsel %vm1890, %v3054, 0
        %v3068 = vsel %vm1890, %v3056, 0
        %v3071 = vsel %vm1890, %v3058, 0
        %v3074 = vsel %vm1890, %v3060, 0
        %3076 = vmatprep.subr.bf16.mxu0 0
        %3077 = vmatpush1.bf16.xpose.msra.mxu0 %v3065
        %3078 = vmatprep.subr.bf16.mxu0 0
        %3079 = vmatpush1.bf16.xpose.msra.mxu0 %v3068
        %3080 = vmatprep.subr.bf16.mxu0 0
        %3081 = vmatpush1.bf16.xpose.msra.mxu0 %v3071
        %3082 = vmatprep.subr.bf16.mxu0 0
        %3083 = vmatpush1.bf16.xpose.msra.mxu0 %v3074
        %3084 = vmatprep.subr.bf16.mxu0 0
        %3085 = vmatpush1.bf16.xpose.msra.mxu0 0
        %3086 = vmatprep.subr.bf16.mxu0 0
        %3087 = vmatpush1.bf16.xpose.msra.mxu0 0
        %3088 = vmatprep.subr.bf16.mxu0 0
        %3089 = vmatpush1.bf16.xpose.msra.mxu0 0
        %3090 = vmatprep.subr.bf16.mxu0 0
        %3091 = vmatpush1.bf16.xpose.msra.mxu0 0
        %3092 = vmatprep.subr.bf16.mxu0 0
        %3093 = vmatpush1.bf16.xpose.msra.mxu0 0
        %3094 = vmatprep.subr.bf16.mxu0 0
        %3095 = vmatpush1.bf16.xpose.msra.mxu0 0
        %3096 = vmatprep.subr.bf16.mxu0 0
        %3097 = vmatpush1.bf16.xpose.msra.mxu0 0
        %3098 = vmatprep.subr.bf16.mxu0 0
        %3099 = vmatpush1.bf16.xpose.msra.mxu0 0
        %3100 = vmatprep.subr.bf16.mxu0 0
        %3101 = vmatpush1.bf16.xpose.msra.mxu0 0
        %3102 = vmatprep.subr.bf16.mxu0 0
        %3103 = vmatpush1.bf16.xpose.msra.mxu0 0
        %3104 = vmatprep.subr.bf16.mxu0 0
        %3105 = vmatpush1.bf16.xpose.msra.mxu0 0
        %3106 = vmatprep.subr.bf16.mxu0 0
        %3107 = vmatpush1.bf16.xpose.msra.mxu0 0
        %3108 = vmatprep.mubr.bf16.mxu0 0
        %3109 = vmatmul.mubr.bf16.gmra.mrb[0].mxu0 %v3062
        %v3110 = vpop.f32.mrb[0].mxu0
        %v3111 = vadd.f32 0.0, %v3110
        %v3112 = vpop.f32.mrb[0].mxu0
        %v3113 = vpop.f32.mrb[0].mxu0
        %v3114 = vadd.f32 0.0, %v3113
        %v3115 = vpop.f32.mrb[0].mxu0
        %3116 = vdwg.mxu0
        %v3117 = vmul.f32 %v3111, 0.25
        %v3118 = vmul.f32 %v3114, 0.25
        %v3119 = vsel %vm2931, %v3117, -inf
        %3120 = vmax.xlane.f32.xlu0 %v3119
        %v3121 = vpop.xlane.xlu0 %3120
        %v3122 = vsel %vm2931, %v3118, -inf
        %3123 = vmax.xlane.f32.xlu0 %v3122
        %v3124 = vpop.xlane.xlu0 %3123
        %v3125 = vsub.f32 %v3117, %v3121
        %v3126 = vsub.f32 %v3118, %v3124
        %v3127 = vmul.f32 %v3125, 1.442695
        %v3128 = vpow.pop %v3127
        %v3129 = vmul.f32 %v3126, 1.442695
        %v3130 = vpow.pop %v3129
        %v3131 = vsel %vm2931, %v3128, 0.0
        %3132 = vadd.xlane.f32.xlu0 %v3131
        %v3133 = vpop.xlane.xlu0 %3132
        %v3134 = vsel %vm2931, %v3130, 0.0
        %3135 = vadd.xlane.f32.xlu0 %v3134
        %v3136 = vpop.xlane.xlu0 %3135
        %v3137 = vrcp.pop %v3133
        %v3138 = vrcp.pop %v3136
        %v3139 = vmul.f32 %v3128, %v3137
        %v3140 = vmul.f32 %v3130, %v3138
        %v3141 = vpack.c.bf16 %v3140, %v3139
        %3146 = vrot.lane.b32.xlu0 %v2869, 112
        %v3147 = vpop.permute.xlu0 %3146
        %3148 = vrot.lane.b32.xlu0 %v2870, 112
        %v3149 = vpop.permute.xlu0 %3148
        %3150 = vrot.lane.b32.xlu0 %v2871, 112
        %v3151 = vpop.permute.xlu0 %3150
        %3152 = vrot.lane.b32.xlu0 %v2872, 112
        %v3153 = vpop.permute.xlu0 %3152
        %v3159 = vsel %vm2931, %v3141, 0
        %3161 = vmatprep.subr.bf16.mxu0 0
        %3162 = vmatpush1.bf16.msra.mxu0 %v3147
        %3163 = vmatprep.subr.bf16.mxu0 0
        %3164 = vmatpush1.bf16.msra.mxu0 %v3149
        %3165 = vmatprep.subr.bf16.mxu0 0
        %3166 = vmatpush1.bf16.msra.mxu0 %v3151
        %3167 = vmatprep.subr.bf16.mxu0 0
        %3168 = vmatpush1.bf16.msra.mxu0 %v3153
        %3169 = vmatprep.subr.bf16.mxu0 0
        %3170 = vmatpush1.bf16.msra.mxu0 0
        %3171 = vmatprep.subr.bf16.mxu0 0
        %3172 = vmatpush1.bf16.msra.mxu0 0
        %3173 = vmatprep.subr.bf16.mxu0 0
        %3174 = vmatpush1.bf16.msra.mxu0 0
        %3175 = vmatprep.subr.bf16.mxu0 0
        %3176 = vmatpush1.bf16.msra.mxu0 0
        %3177 = vmatprep.subr.bf16.mxu0 0
        %3178 = vmatpush1.bf16.msra.mxu0 0
        %3179 = vmatprep.subr.bf16.mxu0 0
        %3180 = vmatpush1.bf16.msra.mxu0 0
        %3181 = vmatprep.subr.bf16.mxu0 0
        %3182 = vmatpush1.bf16.msra.mxu0 0
        %3183 = vmatprep.subr.bf16.mxu0 0
        %3184 = vmatpush1.bf16.msra.mxu0 0
        %3185 = vmatprep.subr.bf16.mxu0 0
        %3186 = vmatpush1.bf16.msra.mxu0 0
        %3187 = vmatprep.subr.bf16.mxu0 0
        %3188 = vmatpush1.bf16.msra.mxu0 0
        %3189 = vmatprep.subr.bf16.mxu0 0
        %3190 = vmatpush1.bf16.msra.mxu0 0
        %3191 = vmatprep.subr.bf16.mxu0 0
        %3192 = vmatpush1.bf16.msra.mxu0 0
        %3193 = vmatprep.mubr.bf16.mxu0 0
        %3194 = vmatmul.mubr.bf16.gmra.mrb[0].mxu0 %v3159
        %v3195 = vpop.f32.mrb[0].mxu0
        %v3196 = vadd.f32 0.0, %v3195
        %v3197 = vpop.f32.mrb[0].mxu0
        %v3198 = vpop.f32.mrb[0].mxu0
        %v3199 = vadd.f32 0.0, %v3198
        %v3200 = vpop.f32.mrb[0].mxu0
        %3201 = vdwg.mxu0
        %v3202 = vpack.c.bf16 %v3199, %v3196
        %v3204 = vsel %vm1890, %v3202, 0
        %3206 = vmatprep.subr.bf16.mxu0 0
        %3207 = vmatpush1.bf16.msra.mxu0 %v2853
        %3208 = vmatprep.subr.bf16.mxu0 0
        %3209 = vmatpush1.bf16.msra.mxu0 0
        %3210 = vmatprep.subr.bf16.mxu0 0
        %3211 = vmatpush1.bf16.msra.mxu0 0
        %3212 = vmatprep.subr.bf16.mxu0 0
        %3213 = vmatpush1.bf16.msra.mxu0 0
        %3214 = vmatprep.subr.bf16.mxu0 0
        %3215 = vmatpush1.bf16.msra.mxu0 0
        %3216 = vmatprep.subr.bf16.mxu0 0
        %3217 = vmatpush1.bf16.msra.mxu0 0
        %3218 = vmatprep.subr.bf16.mxu0 0
        %3219 = vmatpush1.bf16.msra.mxu0 0
        %3220 = vmatprep.subr.bf16.mxu0 0
        %3221 = vmatpush1.bf16.msra.mxu0 0
        %3222 = vmatprep.subr.bf16.mxu0 0
        %3223 = vmatpush1.bf16.msra.mxu0 0
        %3224 = vmatprep.subr.bf16.mxu0 0
        %3225 = vmatpush1.bf16.msra.mxu0 0
        %3226 = vmatprep.subr.bf16.mxu0 0
        %3227 = vmatpush1.bf16.msra.mxu0 0
        %3228 = vmatprep.subr.bf16.mxu0 0
        %3229 = vmatpush1.bf16.msra.mxu0 0
        %3230 = vmatprep.subr.bf16.mxu0 0
        %3231 = vmatpush1.bf16.msra.mxu0 0
        %3232 = vmatprep.subr.bf16.mxu0 0
        %3233 = vmatpush1.bf16.msra.mxu0 0
        %3234 = vmatprep.subr.bf16.mxu0 0
        %3235 = vmatpush1.bf16.msra.mxu0 0
        %3236 = vmatprep.subr.bf16.mxu0 0
        %3237 = vmatpush1.bf16.msra.mxu0 0
        %3238 = vmatprep.mubr.bf16.mxu0 0
        %3239 = vmatmul.mubr.bf16.gmra.mrb[0].mxu0 %v3204
        %v3240 = vpop.f32.mrb[0].mxu0
        %v3241 = vadd.f32 0.0, %v3240
        %v3242 = vpop.f32.mrb[0].mxu0
        %v3243 = vpop.f32.mrb[0].mxu0
        %v3244 = vadd.f32 0.0, %v3243
        %v3245 = vpop.f32.mrb[0].mxu0
        %3246 = vdwg.mxu0
        %v3247 = vadd.f32 %v3044, %v3241
        %v3248 = vadd.f32 %v3045, %v3244
        %3249 = vrot.lane.b32.xlu0 %v2864, 96
        %v3250 = vpop.permute.xlu0 %3249
        %3251 = vrot.lane.b32.xlu0 %v2865, 96
        %v3252 = vpop.permute.xlu0 %3251
        %3253 = vrot.lane.b32.xlu0 %v2866, 96
        %v3254 = vpop.permute.xlu0 %3253
        %3255 = vrot.lane.b32.xlu0 %v2867, 96
        %v3256 = vpop.permute.xlu0 %3255
        %3257 = vrot.lane.b32.xlu0 %v2868, 96
        %v3258 = vpop.permute.xlu0 %3257
        %v3260 = vsel %vm1890, %v3250, 0
        %v3263 = vsel %vm1890, %v3252, 0
        %v3266 = vsel %vm1890, %v3254, 0
        %v3269 = vsel %vm1890, %v3256, 0
        %v3272 = vsel %vm1890, %v3258, 0
        %3274 = vmatprep.subr.bf16.mxu0 0
        %3275 = vmatpush1.bf16.xpose.msra.mxu0 %v3263
        %3276 = vmatprep.subr.bf16.mxu0 0
        %3277 = vmatpush1.bf16.xpose.msra.mxu0 %v3266
        %3278 = vmatprep.subr.bf16.mxu0 0
        %3279 = vmatpush1.bf16.xpose.msra.mxu0 %v3269
        %3280 = vmatprep.subr.bf16.mxu0 0
        %3281 = vmatpush1.bf16.xpose.msra.mxu0 %v3272
        %3282 = vmatprep.subr.bf16.mxu0 0
        %3283 = vmatpush1.bf16.xpose.msra.mxu0 0
        %3284 = vmatprep.subr.bf16.mxu0 0
        %3285 = vmatpush1.bf16.xpose.msra.mxu0 0
        %3286 = vmatprep.subr.bf16.mxu0 0
        %3287 = vmatpush1.bf16.xpose.msra.mxu0 0
        %3288 = vmatprep.subr.bf16.mxu0 0
        %3289 = vmatpush1.bf16.xpose.msra.mxu0 0
        %3290 = vmatprep.subr.bf16.mxu0 0
        %3291 = vmatpush1.bf16.xpose.msra.mxu0 0
        %3292 = vmatprep.subr.bf16.mxu0 0
        %3293 = vmatpush1.bf16.xpose.msra.mxu0 0
        %3294 = vmatprep.subr.bf16.mxu0 0
        %3295 = vmatpush1.bf16.xpose.msra.mxu0 0
        %3296 = vmatprep.subr.bf16.mxu0 0
        %3297 = vmatpush1.bf16.xpose.msra.mxu0 0
        %3298 = vmatprep.subr.bf16.mxu0 0
        %3299 = vmatpush1.bf16.xpose.msra.mxu0 0
        %3300 = vmatprep.subr.bf16.mxu0 0
        %3301 = vmatpush1.bf16.xpose.msra.mxu0 0
        %3302 = vmatprep.subr.bf16.mxu0 0
        %3303 = vmatpush1.bf16.xpose.msra.mxu0 0
        %3304 = vmatprep.subr.bf16.mxu0 0
        %3305 = vmatpush1.bf16.xpose.msra.mxu0 0
        %3306 = vmatprep.mubr.bf16.mxu0 0
        %3307 = vmatmul.mubr.bf16.gmra.mrb[0].mxu0 %v3260
        %v3308 = vpop.f32.mrb[0].mxu0
        %v3309 = vadd.f32 0.0, %v3308
        %v3310 = vpop.f32.mrb[0].mxu0
        %v3311 = vpop.f32.mrb[0].mxu0
        %v3312 = vadd.f32 0.0, %v3311
        %v3313 = vpop.f32.mrb[0].mxu0
        %3314 = vdwg.mxu0
        %v3315 = vmul.f32 %v3309, 0.25
        %v3316 = vmul.f32 %v3312, 0.25
        %v3317 = vsel %vm2931, %v3315, -inf
        %3318 = vmax.xlane.f32.xlu0 %v3317
        %v3319 = vpop.xlane.xlu0 %3318
        %v3320 = vsel %vm2931, %v3316, -inf
        %3321 = vmax.xlane.f32.xlu0 %v3320
        %v3322 = vpop.xlane.xlu0 %3321
        %v3323 = vsub.f32 %v3315, %v3319
        %v3324 = vsub.f32 %v3316, %v3322
        %v3325 = vmul.f32 %v3323, 1.442695
        %v3326 = vpow.pop %v3325
        %v3327 = vmul.f32 %v3324, 1.442695
        %v3328 = vpow.pop %v3327
        %v3329 = vsel %vm2931, %v3326, 0.0
        %3330 = vadd.xlane.f32.xlu0 %v3329
        %v3331 = vpop.xlane.xlu0 %3330
        %v3332 = vsel %vm2931, %v3328, 0.0
        %3333 = vadd.xlane.f32.xlu0 %v3332
        %v3334 = vpop.xlane.xlu0 %3333
        %v3335 = vrcp.pop %v3331
        %v3336 = vrcp.pop %v3334
        %v3337 = vmul.f32 %v3326, %v3335
        %v3338 = vmul.f32 %v3328, %v3336
        %v3339 = vpack.c.bf16 %v3338, %v3337
        %3340 = vrot.lane.b32.xlu0 %v2869, 96
        %v3341 = vpop.permute.xlu0 %3340
        %3342 = vrot.lane.b32.xlu0 %v2870, 96
        %v3343 = vpop.permute.xlu0 %3342
        %3344 = vrot.lane.b32.xlu0 %v2871, 96
        %v3345 = vpop.permute.xlu0 %3344
        %3346 = vrot.lane.b32.xlu0 %v2872, 96
        %v3347 = vpop.permute.xlu0 %3346
        %v3353 = vsel %vm2931, %v3339, 0
        %3355 = vmatprep.subr.bf16.mxu0 0
        %3356 = vmatpush1.bf16.msra.mxu0 %v3341
        %3357 = vmatprep.subr.bf16.mxu0 0
        %3358 = vmatpush1.bf16.msra.mxu0 %v3343
        %3359 = vmatprep.subr.bf16.mxu0 0
        %3360 = vmatpush1.bf16.msra.mxu0 %v3345
        %3361 = vmatprep.subr.bf16.mxu0 0
        %3362 = vmatpush1.bf16.msra.mxu0 %v3347
        %3363 = vmatprep.subr.bf16.mxu0 0
        %3364 = vmatpush1.bf16.msra.mxu0 0
        %3365 = vmatprep.subr.bf16.mxu0 0
        %3366 = vmatpush1.bf16.msra.mxu0 0
        %3367 = vmatprep.subr.bf16.mxu0 0
        %3368 = vmatpush1.bf16.msra.mxu0 0
        %3369 = vmatprep.subr.bf16.mxu0 0
        %3370 = vmatpush1.bf16.msra.mxu0 0
        %3371 = vmatprep.subr.bf16.mxu0 0
        %3372 = vmatpush1.bf16.msra.mxu0 0
        %3373 = vmatprep.subr.bf16.mxu0 0
        %3374 = vmatpush1.bf16.msra.mxu0 0
        %3375 = vmatprep.subr.bf16.mxu0 0
        %3376 = vmatpush1.bf16.msra.mxu0 0
        %3377 = vmatprep.subr.bf16.mxu0 0
        %3378 = vmatpush1.bf16.msra.mxu0 0
        %3379 = vmatprep.subr.bf16.mxu0 0
        %3380 = vmatpush1.bf16.msra.mxu0 0
        %3381 = vmatprep.subr.bf16.mxu0 0
        %3382 = vmatpush1.bf16.msra.mxu0 0
        %3383 = vmatprep.subr.bf16.mxu0 0
        %3384 = vmatpush1.bf16.msra.mxu0 0
        %3385 = vmatprep.subr.bf16.mxu0 0
        %3386 = vmatpush1.bf16.msra.mxu0 0
        %3387 = vmatprep.mubr.bf16.mxu0 0
        %3388 = vmatmul.mubr.bf16.gmra.mrb[0].mxu0 %v3353
        %v3389 = vpop.f32.mrb[0].mxu0
        %v3390 = vadd.f32 0.0, %v3389
        %v3391 = vpop.f32.mrb[0].mxu0
        %v3392 = vpop.f32.mrb[0].mxu0
        %v3393 = vadd.f32 0.0, %v3392
        %v3394 = vpop.f32.mrb[0].mxu0
        %3395 = vdwg.mxu0
        %v3396 = vpack.c.bf16 %v3393, %v3390
        %v3398 = vsel %vm1890, %v3396, 0
        %3400 = vmatprep.subr.bf16.mxu0 0
        %3401 = vmatpush1.bf16.msra.mxu0 %v2854
        %3402 = vmatprep.subr.bf16.mxu0 0
        %3403 = vmatpush1.bf16.msra.mxu0 0
        %3404 = vmatprep.subr.bf16.mxu0 0
        %3405 = vmatpush1.bf16.msra.mxu0 0
        %3406 = vmatprep.subr.bf16.mxu0 0
        %3407 = vmatpush1.bf16.msra.mxu0 0
        %3408 = vmatprep.subr.bf16.mxu0 0
        %3409 = vmatpush1.bf16.msra.mxu0 0
        %3410 = vmatprep.subr.bf16.mxu0 0
        %3411 = vmatpush1.bf16.msra.mxu0 0
        %3412 = vmatprep.subr.bf16.mxu0 0
        %3413 = vmatpush1.bf16.msra.mxu0 0
        %3414 = vmatprep.subr.bf16.mxu0 0
        %3415 = vmatpush1.bf16.msra.mxu0 0
        %3416 = vmatprep.subr.bf16.mxu0 0
        %3417 = vmatpush1.bf16.msra.mxu0 0
        %3418 = vmatprep.subr.bf16.mxu0 0
        %3419 = vmatpush1.bf16.msra.mxu0 0
        %3420 = vmatprep.subr.bf16.mxu0 0
        %3421 = vmatpush1.bf16.msra.mxu0 0
        %3422 = vmatprep.subr.bf16.mxu0 0
        %3423 = vmatpush1.bf16.msra.mxu0 0
        %3424 = vmatprep.subr.bf16.mxu0 0
        %3425 = vmatpush1.bf16.msra.mxu0 0
        %3426 = vmatprep.subr.bf16.mxu0 0
        %3427 = vmatpush1.bf16.msra.mxu0 0
        %3428 = vmatprep.subr.bf16.mxu0 0
        %3429 = vmatpush1.bf16.msra.mxu0 0
        %3430 = vmatprep.subr.bf16.mxu0 0
        %3431 = vmatpush1.bf16.msra.mxu0 0
        %3432 = vmatprep.mubr.bf16.mxu0 0
        %3433 = vmatmul.mubr.bf16.gmra.mrb[0].mxu0 %v3398
        %v3434 = vpop.f32.mrb[0].mxu0
        %v3435 = vadd.f32 0.0, %v3434
        %v3436 = vpop.f32.mrb[0].mxu0
        %v3437 = vpop.f32.mrb[0].mxu0
        %v3438 = vadd.f32 0.0, %v3437
        %v3439 = vpop.f32.mrb[0].mxu0
        %3440 = vdwg.mxu0
        %v3441 = vadd.f32 %v3247, %v3435
        %v3442 = vadd.f32 %v3248, %v3438
        %3443 = vrot.lane.b32.xlu0 %v2864, 80
        %v3444 = vpop.permute.xlu0 %3443
        %3445 = vrot.lane.b32.xlu0 %v2865, 80
        %v3446 = vpop.permute.xlu0 %3445
        %3447 = vrot.lane.b32.xlu0 %v2866, 80
        %v3448 = vpop.permute.xlu0 %3447
        %3449 = vrot.lane.b32.xlu0 %v2867, 80
        %v3450 = vpop.permute.xlu0 %3449
        %3451 = vrot.lane.b32.xlu0 %v2868, 80
        %v3452 = vpop.permute.xlu0 %3451
        %v3454 = vsel %vm1890, %v3444, 0
        %v3457 = vsel %vm1890, %v3446, 0
        %v3460 = vsel %vm1890, %v3448, 0
        %v3463 = vsel %vm1890, %v3450, 0
        %v3466 = vsel %vm1890, %v3452, 0
        %3468 = vmatprep.subr.bf16.mxu0 0
        %3469 = vmatpush1.bf16.xpose.msra.mxu0 %v3457
        %3470 = vmatprep.subr.bf16.mxu0 0
        %3471 = vmatpush1.bf16.xpose.msra.mxu0 %v3460
        %3472 = vmatprep.subr.bf16.mxu0 0
        %3473 = vmatpush1.bf16.xpose.msra.mxu0 %v3463
        %3474 = vmatprep.subr.bf16.mxu0 0
        %3475 = vmatpush1.bf16.xpose.msra.mxu0 %v3466
        %3476 = vmatprep.subr.bf16.mxu0 0
        %3477 = vmatpush1.bf16.xpose.msra.mxu0 0
        %3478 = vmatprep.subr.bf16.mxu0 0
        %3479 = vmatpush1.bf16.xpose.msra.mxu0 0
        %3480 = vmatprep.subr.bf16.mxu0 0
        %3481 = vmatpush1.bf16.xpose.msra.mxu0 0
        %3482 = vmatprep.subr.bf16.mxu0 0
        %3483 = vmatpush1.bf16.xpose.msra.mxu0 0
        %3484 = vmatprep.subr.bf16.mxu0 0
        %3485 = vmatpush1.bf16.xpose.msra.mxu0 0
        %3486 = vmatprep.subr.bf16.mxu0 0
        %3487 = vmatpush1.bf16.xpose.msra.mxu0 0
        %3488 = vmatprep.subr.bf16.mxu0 0
        %3489 = vmatpush1.bf16.xpose.msra.mxu0 0
        %3490 = vmatprep.subr.bf16.mxu0 0
        %3491 = vmatpush1.bf16.xpose.msra.mxu0 0
        %3492 = vmatprep.subr.bf16.mxu0 0
        %3493 = vmatpush1.bf16.xpose.msra.mxu0 0
        %3494 = vmatprep.subr.bf16.mxu0 0
        %3495 = vmatpush1.bf16.xpose.msra.mxu0 0
        %3496 = vmatprep.subr.bf16.mxu0 0
        %3497 = vmatpush1.bf16.xpose.msra.mxu0 0
        %3498 = vmatprep.subr.bf16.mxu0 0
        %3499 = vmatpush1.bf16.xpose.msra.mxu0 0
        %3500 = vmatprep.mubr.bf16.mxu0 0
        %3501 = vmatmul.mubr.bf16.gmra.mrb[0].mxu0 %v3454
        %v3502 = vpop.f32.mrb[0].mxu0
        %v3503 = vadd.f32 0.0, %v3502
        %v3504 = vpop.f32.mrb[0].mxu0
        %v3505 = vpop.f32.mrb[0].mxu0
        %v3506 = vadd.f32 0.0, %v3505
        %v3507 = vpop.f32.mrb[0].mxu0
        %3508 = vdwg.mxu0
        %v3509 = vmul.f32 %v3503, 0.25
        %v3510 = vmul.f32 %v3506, 0.25
        %v3511 = vsel %vm2931, %v3509, -inf
        %3512 = vmax.xlane.f32.xlu0 %v3511
        %v3513 = vpop.xlane.xlu0 %3512
        %v3514 = vsel %vm2931, %v3510, -inf
        %3515 = vmax.xlane.f32.xlu0 %v3514
        %v3516 = vpop.xlane.xlu0 %3515
        %v3517 = vsub.f32 %v3509, %v3513
        %v3518 = vsub.f32 %v3510, %v3516
        %v3519 = vmul.f32 %v3517, 1.442695
        %v3520 = vpow.pop %v3519
        %v3521 = vmul.f32 %v3518, 1.442695
        %v3522 = vpow.pop %v3521
        %v3523 = vsel %vm2931, %v3520, 0.0
        %3524 = vadd.xlane.f32.xlu0 %v3523
        %v3525 = vpop.xlane.xlu0 %3524
        %v3526 = vsel %vm2931, %v3522, 0.0
        %3527 = vadd.xlane.f32.xlu0 %v3526
        %v3528 = vpop.xlane.xlu0 %3527
        %v3529 = vrcp.pop %v3525
        %v3530 = vrcp.pop %v3528
        %v3531 = vmul.f32 %v3520, %v3529
        %v3532 = vmul.f32 %v3522, %v3530
        %v3533 = vpack.c.bf16 %v3532, %v3531
        %3534 = vrot.lane.b32.xlu0 %v2869, 80
        %v3535 = vpop.permute.xlu0 %3534
        %3536 = vrot.lane.b32.xlu0 %v2870, 80
        %v3537 = vpop.permute.xlu0 %3536
        %3538 = vrot.lane.b32.xlu0 %v2871, 80
        %v3539 = vpop.permute.xlu0 %3538
        %3540 = vrot.lane.b32.xlu0 %v2872, 80
        %v3541 = vpop.permute.xlu0 %3540
        %v3547 = vsel %vm2931, %v3533, 0
        %3549 = vmatprep.subr.bf16.mxu0 0
        %3550 = vmatpush1.bf16.msra.mxu0 %v3535
        %3551 = vmatprep.subr.bf16.mxu0 0
        %3552 = vmatpush1.bf16.msra.mxu0 %v3537
        %3553 = vmatprep.subr.bf16.mxu0 0
        %3554 = vmatpush1.bf16.msra.mxu0 %v3539
        %3555 = vmatprep.subr.bf16.mxu0 0
        %3556 = vmatpush1.bf16.msra.mxu0 %v3541
        %3557 = vmatprep.subr.bf16.mxu0 0
        %3558 = vmatpush1.bf16.msra.mxu0 0
        %3559 = vmatprep.subr.bf16.mxu0 0
        %3560 = vmatpush1.bf16.msra.mxu0 0
        %3561 = vmatprep.subr.bf16.mxu0 0
        %3562 = vmatpush1.bf16.msra.mxu0 0
        %3563 = vmatprep.subr.bf16.mxu0 0
        %3564 = vmatpush1.bf16.msra.mxu0 0
        %3565 = vmatprep.subr.bf16.mxu0 0
        %3566 = vmatpush1.bf16.msra.mxu0 0
        %3567 = vmatprep.subr.bf16.mxu0 0
        %3568 = vmatpush1.bf16.msra.mxu0 0
        %3569 = vmatprep.subr.bf16.mxu0 0
        %3570 = vmatpush1.bf16.msra.mxu0 0
        %3571 = vmatprep.subr.bf16.mxu0 0
        %3572 = vmatpush1.bf16.msra.mxu0 0
        %3573 = vmatprep.subr.bf16.mxu0 0
        %3574 = vmatpush1.bf16.msra.mxu0 0
        %3575 = vmatprep.subr.bf16.mxu0 0
        %3576 = vmatpush1.bf16.msra.mxu0 0
        %3577 = vmatprep.subr.bf16.mxu0 0
        %3578 = vmatpush1.bf16.msra.mxu0 0
        %3579 = vmatprep.subr.bf16.mxu0 0
        %3580 = vmatpush1.bf16.msra.mxu0 0
        %3581 = vmatprep.mubr.bf16.mxu0 0
        %3582 = vmatmul.mubr.bf16.gmra.mrb[0].mxu0 %v3547
        %v3583 = vpop.f32.mrb[0].mxu0
        %v3584 = vadd.f32 0.0, %v3583
        %v3585 = vpop.f32.mrb[0].mxu0
        %v3586 = vpop.f32.mrb[0].mxu0
        %v3587 = vadd.f32 0.0, %v3586
        %v3588 = vpop.f32.mrb[0].mxu0
        %3589 = vdwg.mxu0
        %v3590 = vpack.c.bf16 %v3587, %v3584
        %v3592 = vsel %vm1890, %v3590, 0
        %3594 = vmatprep.subr.bf16.mxu0 0
        %3595 = vmatpush1.bf16.msra.mxu0 %v2855
        %3596 = vmatprep.subr.bf16.mxu0 0
        %3597 = vmatpush1.bf16.msra.mxu0 0
        %3598 = vmatprep.subr.bf16.mxu0 0
        %3599 = vmatpush1.bf16.msra.mxu0 0
        %3600 = vmatprep.subr.bf16.mxu0 0
        %3601 = vmatpush1.bf16.msra.mxu0 0
        %3602 = vmatprep.subr.bf16.mxu0 0
        %3603 = vmatpush1.bf16.msra.mxu0 0
        %3604 = vmatprep.subr.bf16.mxu0 0
        %3605 = vmatpush1.bf16.msra.mxu0 0
        %3606 = vmatprep.subr.bf16.mxu0 0
        %3607 = vmatpush1.bf16.msra.mxu0 0
        %3608 = vmatprep.subr.bf16.mxu0 0
        %3609 = vmatpush1.bf16.msra.mxu0 0
        %3610 = vmatprep.subr.bf16.mxu0 0
        %3611 = vmatpush1.bf16.msra.mxu0 0
        %3612 = vmatprep.subr.bf16.mxu0 0
        %3613 = vmatpush1.bf16.msra.mxu0 0
        %3614 = vmatprep.subr.bf16.mxu0 0
        %3615 = vmatpush1.bf16.msra.mxu0 0
        %3616 = vmatprep.subr.bf16.mxu0 0
        %3617 = vmatpush1.bf16.msra.mxu0 0
        %3618 = vmatprep.subr.bf16.mxu0 0
        %3619 = vmatpush1.bf16.msra.mxu0 0
        %3620 = vmatprep.subr.bf16.mxu0 0
        %3621 = vmatpush1.bf16.msra.mxu0 0
        %3622 = vmatprep.subr.bf16.mxu0 0
        %3623 = vmatpush1.bf16.msra.mxu0 0
        %3624 = vmatprep.subr.bf16.mxu0 0
        %3625 = vmatpush1.bf16.msra.mxu0 0
        %3626 = vmatprep.mubr.bf16.mxu0 0
        %3627 = vmatmul.mubr.bf16.gmra.mrb[0].mxu0 %v3592
        %v3628 = vpop.f32.mrb[0].mxu0
        %v3629 = vadd.f32 0.0, %v3628
        %v3630 = vpop.f32.mrb[0].mxu0
        %v3631 = vpop.f32.mrb[0].mxu0
        %v3632 = vadd.f32 0.0, %v3631
        %v3633 = vpop.f32.mrb[0].mxu0
        %3634 = vdwg.mxu0
        %v3635 = vadd.f32 %v3441, %v3629
        %v3636 = vadd.f32 %v3442, %v3632
        %v3637 = vadd.f32 %v2559, %v3635
        %v3638 = vadd.f32 %v2560, %v3636
        %v3639 = vld [vmem:[#allocation23] sm:$0x1]
        %v3640 = vld [vmem:[#allocation25] sm:$0x1]
        %3641 = vadd.xlane.f32.xlu0 %v3637
        %v3642 = vpop.xlane.xlu0 %3641
        %3643 = vadd.xlane.f32.xlu0 %v3638
        %v3644 = vpop.xlane.xlu0 %3643
        %v3645 = vmul.f32 %v3642, %v2526
        %v3646 = vmul.f32 %v3644, %v2526
        %v3647 = vsub.f32 %v3637, %v3645
        %v3648 = vsub.f32 %v3638, %v3646
        %v3649 = vmul.f32 %v3647, %v3647
        %v3650 = vmul.f32 %v3648, %v3648
        %3651 = vadd.xlane.f32.xlu0 %v3649
        %v3652 = vpop.xlane.xlu0 %3651
        %3653 = vadd.xlane.f32.xlu0 %v3650
        %v3654 = vpop.xlane.xlu0 %3653
        %v3655 = vmul.f32 %v3652, %v2526
        %v3656 = vmul.f32 %v3654, %v2526
        %v3657 = vadd.f32 %v3655, 1e-05
        %v3658 = vadd.f32 %v3656, 1e-05
        %v3659 = vrsqrt.pop %v3657
        %v3660 = vrsqrt.pop %v3658
        %v3661 = vmul.f32 %v3647, %v3659
        %v3662 = vmul.f32 %v3648, %v3660
        %v3664 = vlaneseq
        %v3665 = vshrl.u32 %v3664, 7
        %v3666 = vsub.s32 0, %v3665
        %v3667 = vrot.slane %v3639, %v3666
        %v3669 = vmul.f32 %v3661, %v3667
        %v3670 = vmul.f32 %v3662, %v3667
        %v3672 = vlaneseq
        %v3673 = vshrl.u32 %v3672, 7
        %v3674 = vsub.s32 0, %v3673
        %v3675 = vrot.slane %v3640, %v3674
        %v3677 = vadd.f32 %v3669, %v3675
        %v3678 = vadd.f32 %v3670, %v3675
        %v3679 = vld [vmem:[%s57] sm:$0xff]
        %v3680 = vld [vmem:[%s57 + $0x8] sm:$0xff]
        %v3681 = vld [vmem:[%s57 + $0x10] sm:$0xff]
        %v3682 = vld [vmem:[%s57 + $0x18] sm:$0xff]
        %v3683 = vld [vmem:[%s57 + $0x20] sm:$0xff]
        %v3684 = vld [vmem:[%s57 + $0x28] sm:$0xff]
        %v3685 = vld [vmem:[%s57 + $0x30] sm:$0xff]
        %v3686 = vld [vmem:[%s57 + $0x38] sm:$0xff]
        %v3687 = vld [vmem:[%s57 + $0x40] sm:$0xff]
        %v3688 = vld [vmem:[%s57 + $0x48] sm:$0xff]
        %v3689 = vld [vmem:[%s57 + $0x50] sm:$0xff]
        %v3690 = vld [vmem:[%s57 + $0x58] sm:$0xff]
        %v3691 = vld [vmem:[%s57 + $0x60] sm:$0xff]
        %v3692 = vld [vmem:[%s57 + $0x68] sm:$0xff]
        %v3693 = vld [vmem:[%s57 + $0x70] sm:$0xff]
        %v3694 = vld [vmem:[%s57 + $0x78] sm:$0xff]
        %v3695 = vld [vmem:[%s57 + $0x80] sm:$0xff]
        %v3696 = vld [vmem:[%s57 + $0x88] sm:$0xff]
        %v3697 = vld [vmem:[%s57 + $0x90] sm:$0xff]
        %v3698 = vld [vmem:[%s57 + $0x98] sm:$0xff]
        %v3699 = vld [vmem:[%s57 + $0xa0] sm:$0xff]
        %v3700 = vld [vmem:[%s57 + $0xa8] sm:$0xff]
        %v3701 = vld [vmem:[%s57 + $0xb0] sm:$0xff]
        %v3702 = vld [vmem:[%s57 + $0xb8] sm:$0xff]
        %v3703 = vld [vmem:[%s57 + $0xc0] sm:$0xff]
        %v3704 = vld [vmem:[%s57 + $0xc8] sm:$0xff]
        %v3705 = vld [vmem:[%s57 + $0xd0] sm:$0xff]
        %v3706 = vld [vmem:[%s57 + $0xd8] sm:$0xff]
        %v3707 = vld [vmem:[%s57 + $0xe0] sm:$0xff]
        %v3708 = vld [vmem:[%s57 + $0xe8] sm:$0xff]
        %v3709 = vld [vmem:[%s57 + $0xf0] sm:$0xff]
        %v3710 = vld [vmem:[%s57 + $0xf8] sm:$0xff]
        %v3711 = vpack.c.bf16 %v3678, %v3677
        %v3712 = vpack.c.bf16 %v3681, %v3679
        %v3713 = vpack.c.bf16 %v3682, %v3680
        %v3714 = vpack.c.bf16 %v3685, %v3683
        %v3715 = vpack.c.bf16 %v3686, %v3684
        %v3716 = vpack.c.bf16 %v3689, %v3687
        %v3717 = vpack.c.bf16 %v3690, %v3688
        %v3718 = vpack.c.bf16 %v3693, %v3691
        %v3719 = vpack.c.bf16 %v3694, %v3692
        %v3720 = vpack.c.bf16 %v3697, %v3695
        %v3721 = vpack.c.bf16 %v3698, %v3696
        %v3722 = vpack.c.bf16 %v3701, %v3699
        %v3723 = vpack.c.bf16 %v3702, %v3700
        %v3724 = vpack.c.bf16 %v3705, %v3703
        %v3725 = vpack.c.bf16 %v3706, %v3704
        %v3726 = vpack.c.bf16 %v3709, %v3707
        %v3727 = vpack.c.bf16 %v3710, %v3708
        %v3728 = vld [vmem:[%s59] sm:$0x3]
        %v3730 = vlaneseq
        %v3731 = vshrl.u32 %v3730, 7
        %v3732 = vsub.s32 0, %v3731
        %v3733 = vrot.slane %v3728, %v3732
        %v3734 = vlaneseq
        %v3735 = vshrl.u32 %v3734, 7
        %v3736 = vsub.s32 1, %v3735
        %v3737 = vrot.slane %v3728, %v3736
        %3740 = vmatprep.subr.bf16.mxu0 %v3713
        %3741 = vmatpush1.bf16.msra.mxu0 %v3712
        %3742 = vmatprep.subr.bf16.mxu0 %v3715
        %3743 = vmatpush1.bf16.msra.mxu0 %v3714
        %3744 = vmatprep.subr.bf16.mxu0 %v3717
        %3745 = vmatpush1.bf16.msra.mxu0 %v3716
        %3746 = vmatprep.subr.bf16.mxu0 %v3719
        %3747 = vmatpush1.bf16.msra.mxu0 %v3718
        %3748 = vmatprep.subr.bf16.mxu0 %v3721
        %3749 = vmatpush1.bf16.msra.mxu0 %v3720
        %3750 = vmatprep.subr.bf16.mxu0 %v3723
        %3751 = vmatpush1.bf16.msra.mxu0 %v3722
        %3752 = vmatprep.subr.bf16.mxu0 %v3725
        %3753 = vmatpush1.bf16.msra.mxu0 %v3724
        %3754 = vmatprep.subr.bf16.mxu0 %v3727
        %3755 = vmatpush1.bf16.msra.mxu0 %v3726
        %3756 = vmatprep.subr.bf16.mxu0 0
        %3757 = vmatpush1.bf16.msra.mxu0 0
        %3758 = vmatprep.subr.bf16.mxu0 0
        %3759 = vmatpush1.bf16.msra.mxu0 0
        %3760 = vmatprep.subr.bf16.mxu0 0
        %3761 = vmatpush1.bf16.msra.mxu0 0
        %3762 = vmatprep.subr.bf16.mxu0 0
        %3763 = vmatpush1.bf16.msra.mxu0 0
        %3764 = vmatprep.subr.bf16.mxu0 0
        %3765 = vmatpush1.bf16.msra.mxu0 0
        %3766 = vmatprep.subr.bf16.mxu0 0
        %3767 = vmatpush1.bf16.msra.mxu0 0
        %3768 = vmatprep.subr.bf16.mxu0 0
        %3769 = vmatpush1.bf16.msra.mxu0 0
        %3770 = vmatprep.subr.bf16.mxu0 0
        %3771 = vmatpush1.bf16.msra.mxu0 0
        %3772 = vmatprep.mubr.bf16.mxu0 0
        %3773 = vmatmul.mubr.bf16.gmra.mrb[0].mxu0 %v3711
        %v3774 = vpop.f32.mrb[0].mxu0
        %v3775 = vadd.f32 %v3733, %v3774
        %v3776 = vpop.f32.mrb[0].mxu0
        %v3777 = vadd.f32 %v3737, %v3776
        %v3778 = vpop.f32.mrb[0].mxu0
        %v3779 = vadd.f32 %v3733, %v3778
        %v3780 = vpop.f32.mrb[0].mxu0
        %v3781 = vadd.f32 %v3737, %v3780
        %3782 = vdwg.mxu0
        %v3783 = vmax.f32 %v3775, 0.0
        %v3784 = vmax.f32 %v3777, 0.0
        %v3785 = vmax.f32 %v3779, 0.0
        %v3786 = vmax.f32 %v3781, 0.0
        %v3787 = vld [vmem:[%s61] sm:$0xff]
        %v3788 = vld [vmem:[%s61 + $0x8] sm:$0xff]
        %v3789 = vld [vmem:[%s61 + $0x10] sm:$0xff]
        %v3790 = vld [vmem:[%s61 + $0x18] sm:$0xff]
        %v3791 = vld [vmem:[%s61 + $0x20] sm:$0xff]
        %v3792 = vld [vmem:[%s61 + $0x28] sm:$0xff]
        %v3793 = vld [vmem:[%s61 + $0x30] sm:$0xff]
        %v3794 = vld [vmem:[%s61 + $0x38] sm:$0xff]
        %v3795 = vld [vmem:[%s61 + $0x40] sm:$0xff]
        %v3796 = vld [vmem:[%s61 + $0x48] sm:$0xff]
        %v3797 = vld [vmem:[%s61 + $0x50] sm:$0xff]
        %v3798 = vld [vmem:[%s61 + $0x58] sm:$0xff]
        %v3799 = vld [vmem:[%s61 + $0x60] sm:$0xff]
        %v3800 = vld [vmem:[%s61 + $0x68] sm:$0xff]
        %v3801 = vld [vmem:[%s61 + $0x70] sm:$0xff]
        %v3802 = vld [vmem:[%s61 + $0x78] sm:$0xff]
        %v3803 = vld [vmem:[%s61 + $0x80] sm:$0xff]
        %v3804 = vld [vmem:[%s61 + $0x88] sm:$0xff]
        %v3805 = vld [vmem:[%s61 + $0x90] sm:$0xff]
        %v3806 = vld [vmem:[%s61 + $0x98] sm:$0xff]
        %v3807 = vld [vmem:[%s61 + $0xa0] sm:$0xff]
        %v3808 = vld [vmem:[%s61 + $0xa8] sm:$0xff]
        %v3809 = vld [vmem:[%s61 + $0xb0] sm:$0xff]
        %v3810 = vld [vmem:[%s61 + $0xb8] sm:$0xff]
        %v3811 = vld [vmem:[%s61 + $0xc0] sm:$0xff]
        %v3812 = vld [vmem:[%s61 + $0xc8] sm:$0xff]
        %v3813 = vld [vmem:[%s61 + $0xd0] sm:$0xff]
        %v3814 = vld [vmem:[%s61 + $0xd8] sm:$0xff]
        %v3815 = vld [vmem:[%s61 + $0xe0] sm:$0xff]
        %v3816 = vld [vmem:[%s61 + $0xe8] sm:$0xff]
        %v3817 = vld [vmem:[%s61 + $0xf0] sm:$0xff]
        %v3818 = vld [vmem:[%s61 + $0xf8] sm:$0xff]
        %v3819 = vpack.c.bf16 %v3785, %v3783
        %v3820 = vpack.c.bf16 %v3786, %v3784
        %v3821 = vpack.c.bf16 %v3788, %v3787
        %v3822 = vpack.c.bf16 %v3790, %v3789
        %v3823 = vpack.c.bf16 %v3792, %v3791
        %v3824 = vpack.c.bf16 %v3794, %v3793
        %v3825 = vpack.c.bf16 %v3796, %v3795
        %v3826 = vpack.c.bf16 %v3798, %v3797
        %v3827 = vpack.c.bf16 %v3800, %v3799
        %v3828 = vpack.c.bf16 %v3802, %v3801
        %v3829 = vpack.c.bf16 %v3804, %v3803
        %v3830 = vpack.c.bf16 %v3806, %v3805
        %v3831 = vpack.c.bf16 %v3808, %v3807
        %v3832 = vpack.c.bf16 %v3810, %v3809
        %v3833 = vpack.c.bf16 %v3812, %v3811
        %v3834 = vpack.c.bf16 %v3814, %v3813
        %v3835 = vpack.c.bf16 %v3816, %v3815
        %v3836 = vpack.c.bf16 %v3818, %v3817
        %3837 = vmatprep.subr.bf16.mxu0 0
        %3838 = vmatpush1.bf16.msra.mxu0 %v3821
        %3839 = vmatprep.subr.bf16.mxu0 0
        %3840 = vmatpush1.bf16.msra.mxu0 %v3822
        %3841 = vmatprep.subr.bf16.mxu0 0
        %3842 = vmatpush1.bf16.msra.mxu0 %v3823
        %3843 = vmatprep.subr.bf16.mxu0 0
        %3844 = vmatpush1.bf16.msra.mxu0 %v3824
        %3845 = vmatprep.subr.bf16.mxu0 0
        %3846 = vmatpush1.bf16.msra.mxu0 %v3825
        %3847 = vmatprep.subr.bf16.mxu0 0
        %3848 = vmatpush1.bf16.msra.mxu0 %v3826
        %3849 = vmatprep.subr.bf16.mxu0 0
        %3850 = vmatpush1.bf16.msra.mxu0 %v3827
        %3851 = vmatprep.subr.bf16.mxu0 0
        %3852 = vmatpush1.bf16.msra.mxu0 %v3828
        %3853 = vmatprep.subr.bf16.mxu0 0
        %3854 = vmatpush1.bf16.msra.mxu0 %v3829
        %3855 = vmatprep.subr.bf16.mxu0 0
        %3856 = vmatpush1.bf16.msra.mxu0 %v3830
        %3857 = vmatprep.subr.bf16.mxu0 0
        %3858 = vmatpush1.bf16.msra.mxu0 %v3831
        %3859 = vmatprep.subr.bf16.mxu0 0
        %3860 = vmatpush1.bf16.msra.mxu0 %v3832
        %3861 = vmatprep.subr.bf16.mxu0 0
        %3862 = vmatpush1.bf16.msra.mxu0 %v3833
        %3863 = vmatprep.subr.bf16.mxu0 0
        %3864 = vmatpush1.bf16.msra.mxu0 %v3834
        %3865 = vmatprep.subr.bf16.mxu0 0
        %3866 = vmatpush1.bf16.msra.mxu0 %v3835
        %3867 = vmatprep.subr.bf16.mxu0 0
        %3868 = vmatpush1.bf16.msra.mxu0 %v3836
        %3869 = vmatprep.mubr.bf16.mxu0 %v3820
        %3870 = vmatmul.mubr.bf16.gmra.mrb[0].mxu0 %v3819
        %v3871 = vpop.f32.mrb[0].mxu0
        %v3872 = vadd.f32 0.0, %v3871
        %v3873 = vpop.f32.mrb[0].mxu0
        %v3874 = vpop.f32.mrb[0].mxu0
        %v3875 = vadd.f32 0.0, %v3874
        %v3876 = vpop.f32.mrb[0].mxu0
        %3877 = vdwg.mxu0
        %v3878 = vadd.f32 %v3677, %v3872
        %v3879 = vadd.f32 %v3678, %v3875
        %v3880 = vld [vmem:[#allocation19] sm:$0x1]
        %v3882 = vlaneseq
        %v3883 = vshrl.u32 %v3882, 7
        %v3884 = vsub.s32 0, %v3883
        %v3885 = vrot.slane %v3880, %v3884
        %v3887 = vadd.f32 %v3878, %v3885
        %v3888 = vadd.f32 %v3879, %v3885
        %v3889 = vld [vmem:[#allocation26] sm:$0x1]
        %v3890 = vld [vmem:[#allocation28] sm:$0x1]
        %3891 = vadd.xlane.f32.xlu0 %v3887
        %v3892 = vpop.xlane.xlu0 %3891
        %3893 = vadd.xlane.f32.xlu0 %v3888
        %v3894 = vpop.xlane.xlu0 %3893
        %v3895 = vmul.f32 %v3892, %v2526
        %v3896 = vmul.f32 %v3894, %v2526
        %v3897 = vsub.f32 %v3887, %v3895
        %v3898 = vsub.f32 %v3888, %v3896
        %v3899 = vmul.f32 %v3897, %v3897
        %v3900 = vmul.f32 %v3898, %v3898
        %3901 = vadd.xlane.f32.xlu0 %v3899
        %v3902 = vpop.xlane.xlu0 %3901
        %3903 = vadd.xlane.f32.xlu0 %v3900
        %v3904 = vpop.xlane.xlu0 %3903
        %v3905 = vmul.f32 %v3902, %v2526
        %v3906 = vmul.f32 %v3904, %v2526
        %v3907 = vadd.f32 %v3905, 1e-05
        %v3908 = vadd.f32 %v3906, 1e-05
        %v3909 = vrsqrt.pop %v3907
        %v3910 = vrsqrt.pop %v3908
        %v3911 = vmul.f32 %v3897, %v3909
        %v3912 = vmul.f32 %v3898, %v3910
        %v3914 = vlaneseq
        %v3915 = vshrl.u32 %v3914, 7
        %v3916 = vsub.s32 0, %v3915
        %v3917 = vrot.slane %v3889, %v3916
        %v3919 = vmul.f32 %v3911, %v3917
        %v3920 = vmul.f32 %v3912, %v3917
        %v3922 = vlaneseq
        %v3923 = vshrl.u32 %v3922, 7
        %v3924 = vsub.s32 0, %v3923
        %v3925 = vrot.slane %v3890, %v3924
        %v3927 = vadd.f32 %v3919, %v3925
        %v3928 = vadd.f32 %v3920, %v3925
        %v3929 = vadd.f32 %v3927, %v1575
        %v3930 = vadd.f32 %v3928, %v1576
        %v3931 = vld [vmem:[%s41] sm:$0xff]
        %v3932 = vld [vmem:[%s41 + $0x8] sm:$0xff]
        %v3933 = vld [vmem:[%s41 + $0x10] sm:$0xff]
        %v3934 = vld [vmem:[%s41 + $0x18] sm:$0xff]
        %v3935 = vld [vmem:[%s41 + $0x20] sm:$0xff]
        %v3936 = vld [vmem:[%s41 + $0x28] sm:$0xff]
        %v3937 = vld [vmem:[%s41 + $0x30] sm:$0xff]
        %v3938 = vld [vmem:[%s41 + $0x38] sm:$0xff]
        %v3939 = vld [vmem:[%s41 + $0x40] sm:$0xff]
        %v3940 = vld [vmem:[%s41 + $0x48] sm:$0xff]
        %v3941 = vld [vmem:[%s41 + $0x50] sm:$0xff]
        %v3942 = vld [vmem:[%s41 + $0x58] sm:$0xff]
        %v3943 = vld [vmem:[%s41 + $0x60] sm:$0xff]
        %v3944 = vld [vmem:[%s41 + $0x68] sm:$0xff]
        %v3945 = vld [vmem:[%s41 + $0x70] sm:$0xff]
        %v3946 = vld [vmem:[%s41 + $0x78] sm:$0xff]
        %v3947 = vpack.c.bf16 %v3932, %v3931
        %v3948 = vpack.c.bf16 %v3934, %v3933
        %v3949 = vpack.c.bf16 %v3936, %v3935
        %v3950 = vpack.c.bf16 %v3938, %v3937
        %v3951 = vpack.c.bf16 %v3940, %v3939
        %v3952 = vpack.c.bf16 %v3942, %v3941
        %v3953 = vpack.c.bf16 %v3944, %v3943
        %v3954 = vpack.c.bf16 %v3946, %v3945
        %v3955 = vld [vmem:[#allocation11] sm:$0x1]
        %v3957 = vlaneseq
        %v3958 = vshrl.u32 %v3957, 7
        %v3959 = vsub.s32 0, %v3958
        %v3960 = vrot.slane %v3955, %v3959
        %3962 = vmatprep.subr.bf16.mxu0 0
        %3963 = vmatpush1.bf16.msra.mxu0 %v3947
        %3964 = vmatprep.subr.bf16.mxu0 0
        %3965 = vmatpush1.bf16.msra.mxu0 %v3948
        %3966 = vmatprep.subr.bf16.mxu0 0
        %3967 = vmatpush1.bf16.msra.mxu0 %v3949
        %3968 = vmatprep.subr.bf16.mxu0 0
        %3969 = vmatpush1.bf16.msra.mxu0 %v3950
        %3970 = vmatprep.subr.bf16.mxu0 0
        %3971 = vmatpush1.bf16.msra.mxu0 %v3951
        %3972 = vmatprep.subr.bf16.mxu0 0
        %3973 = vmatpush1.bf16.msra.mxu0 %v3952
        %3974 = vmatprep.subr.bf16.mxu0 0
        %3975 = vmatpush1.bf16.msra.mxu0 %v3953
        %3976 = vmatprep.subr.bf16.mxu0 0
        %3977 = vmatpush1.bf16.msra.mxu0 %v3954
        %3978 = vmatprep.subr.bf16.mxu0 0
        %3979 = vmatpush1.bf16.msra.mxu0 0
        %3980 = vmatprep.subr.bf16.mxu0 0
        %3981 = vmatpush1.bf16.msra.mxu0 0
        %3982 = vmatprep.subr.bf16.mxu0 0
        %3983 = vmatpush1.bf16.msra.mxu0 0
        %3984 = vmatprep.subr.bf16.mxu0 0
        %3985 = vmatpush1.bf16.msra.mxu0 0
        %3986 = vmatprep.subr.bf16.mxu0 0
        %3987 = vmatpush1.bf16.msra.mxu0 0
        %3988 = vmatprep.subr.bf16.mxu0 0
        %3989 = vmatpush1.bf16.msra.mxu0 0
        %3990 = vmatprep.subr.bf16.mxu0 0
        %3991 = vmatpush1.bf16.msra.mxu0 0
        %3992 = vmatprep.subr.bf16.mxu0 0
        %3993 = vmatpush1.bf16.msra.mxu0 0
        %3994 = vmatprep.mubr.bf16.mxu0 0
        %3995 = vmatmul.mubr.bf16.gmra.mrb[0].mxu0 %v2660
        %v3996 = vpop.f32.mrb[0].mxu0
        %v3997 = vadd.f32 %v3960, %v3996
        %v3998 = vpop.f32.mrb[0].mxu0
        %v3999 = vpop.f32.mrb[0].mxu0
        %v4000 = vadd.f32 %v3960, %v3999
        %v4001 = vpop.f32.mrb[0].mxu0
        %4002 = vmatprep.mubr.bf16.mxu0 0
        %4003 = vmatmul.mubr.bf16.gmra.mrb[0].mxu0 %v2661
        %v4004 = vpop.f32.mrb[0].mxu0
        %v4005 = vadd.f32 %v3960, %v4004
        %v4006 = vpop.f32.mrb[0].mxu0
        %v4007 = vpop.f32.mrb[0].mxu0
        %v4008 = vadd.f32 %v3960, %v4007
        %v4009 = vpop.f32.mrb[0].mxu0
        %4010 = vmatprep.mubr.bf16.mxu0 0
        %4011 = vmatmul.mubr.bf16.gmra.mrb[0].mxu0 %v2662
        %v4012 = vpop.f32.mrb[0].mxu0
        %v4013 = vadd.f32 %v3960, %v4012
        %v4014 = vpop.f32.mrb[0].mxu0
        %v4015 = vpop.f32.mrb[0].mxu0
        %v4016 = vadd.f32 %v3960, %v4015
        %v4017 = vpop.f32.mrb[0].mxu0
        %4018 = vmatprep.mubr.bf16.mxu0 0
        %4019 = vmatmul.mubr.bf16.gmra.mrb[0].mxu0 %v2663
        %v4020 = vpop.f32.mrb[0].mxu0
        %v4021 = vadd.f32 %v3960, %v4020
        %v4022 = vpop.f32.mrb[0].mxu0
        %v4023 = vpop.f32.mrb[0].mxu0
        %v4024 = vadd.f32 %v3960, %v4023
        %v4025 = vpop.f32.mrb[0].mxu0
        %4026 = vdwg.mxu0
        %v4027 = vld [vmem:[%s45] sm:$0xff]
        %v4028 = vld [vmem:[%s45 + $0x8] sm:$0xff]
        %v4029 = vld [vmem:[%s45 + $0x10] sm:$0xff]
        %v4030 = vld [vmem:[%s45 + $0x18] sm:$0xff]
        %v4031 = vld [vmem:[%s45 + $0x20] sm:$0xff]
        %v4032 = vld [vmem:[%s45 + $0x28] sm:$0xff]
        %v4033 = vld [vmem:[%s45 + $0x30] sm:$0xff]
        %v4034 = vld [vmem:[%s45 + $0x38] sm:$0xff]
        %v4035 = vld [vmem:[%s45 + $0x40] sm:$0xff]
        %v4036 = vld [vmem:[%s45 + $0x48] sm:$0xff]
        %v4037 = vld [vmem:[%s45 + $0x50] sm:$0xff]
        %v4038 = vld [vmem:[%s45 + $0x58] sm:$0xff]
        %v4039 = vld [vmem:[%s45 + $0x60] sm:$0xff]
        %v4040 = vld [vmem:[%s45 + $0x68] sm:$0xff]
        %v4041 = vld [vmem:[%s45 + $0x70] sm:$0xff]
        %v4042 = vld [vmem:[%s45 + $0x78] sm:$0xff]
        %v4043 = vpack.c.bf16 %v3930, %v3929
        %v4044 = vpack.c.bf16 %v4028, %v4027
        %v4045 = vpack.c.bf16 %v4030, %v4029
        %v4046 = vpack.c.bf16 %v4032, %v4031
        %v4047 = vpack.c.bf16 %v4034, %v4033
        %v4048 = vpack.c.bf16 %v4036, %v4035
        %v4049 = vpack.c.bf16 %v4038, %v4037
        %v4050 = vpack.c.bf16 %v4040, %v4039
        %v4051 = vpack.c.bf16 %v4042, %v4041
        %v4052 = vld [vmem:[#allocation13] sm:$0x1]
        %v4054 = vlaneseq
        %v4055 = vshrl.u32 %v4054, 7
        %v4056 = vsub.s32 0, %v4055
        %v4057 = vrot.slane %v4052, %v4056
        %4059 = vmatprep.subr.bf16.mxu0 0
        %4060 = vmatpush1.bf16.msra.mxu0 %v4044
        %4061 = vmatprep.subr.bf16.mxu0 0
        %4062 = vmatpush1.bf16.msra.mxu0 %v4045
        %4063 = vmatprep.subr.bf16.mxu0 0
        %4064 = vmatpush1.bf16.msra.mxu0 %v4046
        %4065 = vmatprep.subr.bf16.mxu0 0
        %4066 = vmatpush1.bf16.msra.mxu0 %v4047
        %4067 = vmatprep.subr.bf16.mxu0 0
        %4068 = vmatpush1.bf16.msra.mxu0 %v4048
        %4069 = vmatprep.subr.bf16.mxu0 0
        %4070 = vmatpush1.bf16.msra.mxu0 %v4049
        %4071 = vmatprep.subr.bf16.mxu0 0
        %4072 = vmatpush1.bf16.msra.mxu0 %v4050
        %4073 = vmatprep.subr.bf16.mxu0 0
        %4074 = vmatpush1.bf16.msra.mxu0 %v4051
        %4075 = vmatprep.subr.bf16.mxu0 0
        %4076 = vmatpush1.bf16.msra.mxu0 0
        %4077 = vmatprep.subr.bf16.mxu0 0
        %4078 = vmatpush1.bf16.msra.mxu0 0
        %4079 = vmatprep.subr.bf16.mxu0 0
        %4080 = vmatpush1.bf16.msra.mxu0 0
        %4081 = vmatprep.subr.bf16.mxu0 0
        %4082 = vmatpush1.bf16.msra.mxu0 0
        %4083 = vmatprep.subr.bf16.mxu0 0
        %4084 = vmatpush1.bf16.msra.mxu0 0
        %4085 = vmatprep.subr.bf16.mxu0 0
        %4086 = vmatpush1.bf16.msra.mxu0 0
        %4087 = vmatprep.subr.bf16.mxu0 0
        %4088 = vmatpush1.bf16.msra.mxu0 0
        %4089 = vmatprep.subr.bf16.mxu0 0
        %4090 = vmatpush1.bf16.msra.mxu0 0
        %4091 = vmatprep.mubr.bf16.mxu0 0
        %4092 = vmatmul.mubr.bf16.gmra.mrb[0].mxu0 %v4043
        %v4093 = vpop.f32.mrb[0].mxu0
        %v4094 = vadd.f32 %v4057, %v4093
        %v4095 = vpop.f32.mrb[0].mxu0
        %v4096 = vpop.f32.mrb[0].mxu0
        %v4097 = vadd.f32 %v4057, %v4096
        %v4098 = vpop.f32.mrb[0].mxu0
        %4099 = vdwg.mxu0
        %v4100 = vld [vmem:[%s49] sm:$0xff]
        %v4101 = vld [vmem:[%s49 + $0x8] sm:$0xff]
        %v4102 = vld [vmem:[%s49 + $0x10] sm:$0xff]
        %v4103 = vld [vmem:[%s49 + $0x18] sm:$0xff]
        %v4104 = vld [vmem:[%s49 + $0x20] sm:$0xff]
        %v4105 = vld [vmem:[%s49 + $0x28] sm:$0xff]
        %v4106 = vld [vmem:[%s49 + $0x30] sm:$0xff]
        %v4107 = vld [vmem:[%s49 + $0x38] sm:$0xff]
        %v4108 = vld [vmem:[%s49 + $0x40] sm:$0xff]
        %v4109 = vld [vmem:[%s49 + $0x48] sm:$0xff]
        %v4110 = vld [vmem:[%s49 + $0x50] sm:$0xff]
        %v4111 = vld [vmem:[%s49 + $0x58] sm:$0xff]
        %v4112 = vld [vmem:[%s49 + $0x60] sm:$0xff]
        %v4113 = vld [vmem:[%s49 + $0x68] sm:$0xff]
        %v4114 = vld [vmem:[%s49 + $0x70] sm:$0xff]
        %v4115 = vld [vmem:[%s49 + $0x78] sm:$0xff]
        %v4116 = vpack.c.bf16 %v3928, %v3927
        %v4117 = vpack.c.bf16 %v4101, %v4100
        %v4118 = vpack.c.bf16 %v4103, %v4102
        %v4119 = vpack.c.bf16 %v4105, %v4104
        %v4120 = vpack.c.bf16 %v4107, %v4106
        %v4121 = vpack.c.bf16 %v4109, %v4108
        %v4122 = vpack.c.bf16 %v4111, %v4110
        %v4123 = vpack.c.bf16 %v4113, %v4112
        %v4124 = vpack.c.bf16 %v4115, %v4114
        %v4125 = vld [vmem:[#allocation14] sm:$0x1]
        %v4127 = vlaneseq
        %v4128 = vshrl.u32 %v4127, 7
        %v4129 = vsub.s32 0, %v4128
        %v4130 = vrot.slane %v4125, %v4129
        %4132 = vmatprep.subr.bf16.mxu0 0
        %4133 = vmatpush1.bf16.msra.mxu0 %v4117
        %4134 = vmatprep.subr.bf16.mxu0 0
        %4135 = vmatpush1.bf16.msra.mxu0 %v4118
        %4136 = vmatprep.subr.bf16.mxu0 0
        %4137 = vmatpush1.bf16.msra.mxu0 %v4119
        %4138 = vmatprep.subr.bf16.mxu0 0
        %4139 = vmatpush1.bf16.msra.mxu0 %v4120
        %4140 = vmatprep.subr.bf16.mxu0 0
        %4141 = vmatpush1.bf16.msra.mxu0 %v4121
        %4142 = vmatprep.subr.bf16.mxu0 0
        %4143 = vmatpush1.bf16.msra.mxu0 %v4122
        %4144 = vmatprep.subr.bf16.mxu0 0
        %4145 = vmatpush1.bf16.msra.mxu0 %v4123
        %4146 = vmatprep.subr.bf16.mxu0 0
        %4147 = vmatpush1.bf16.msra.mxu0 %v4124
        %4148 = vmatprep.subr.bf16.mxu0 0
        %4149 = vmatpush1.bf16.msra.mxu0 0
        %4150 = vmatprep.subr.bf16.mxu0 0
        %4151 = vmatpush1.bf16.msra.mxu0 0
        %4152 = vmatprep.subr.bf16.mxu0 0
        %4153 = vmatpush1.bf16.msra.mxu0 0
        %4154 = vmatprep.subr.bf16.mxu0 0
        %4155 = vmatpush1.bf16.msra.mxu0 0
        %4156 = vmatprep.subr.bf16.mxu0 0
        %4157 = vmatpush1.bf16.msra.mxu0 0
        %4158 = vmatprep.subr.bf16.mxu0 0
        %4159 = vmatpush1.bf16.msra.mxu0 0
        %4160 = vmatprep.subr.bf16.mxu0 0
        %4161 = vmatpush1.bf16.msra.mxu0 0
        %4162 = vmatprep.subr.bf16.mxu0 0
        %4163 = vmatpush1.bf16.msra.mxu0 0
        %4164 = vmatprep.mubr.bf16.mxu0 0
        %4165 = vmatmul.mubr.bf16.gmra.mrb[0].mxu0 %v4116
        %v4166 = vpop.f32.mrb[0].mxu0
        %v4167 = vadd.f32 %v4130, %v4166
        %v4168 = vpop.f32.mrb[0].mxu0
        %v4169 = vpop.f32.mrb[0].mxu0
        %v4170 = vadd.f32 %v4130, %v4169
        %v4171 = vpop.f32.mrb[0].mxu0
        %4172 = vdwg.mxu0
        %v4173 = vld [vmem:[#allocation16] sm:$0xff]
        %v4174 = vld [vmem:[#allocation16 + $0x8] sm:$0xff]
        %v4175 = vld [vmem:[#allocation16 + $0x10] sm:$0xff]
        %v4176 = vld [vmem:[#allocation16 + $0x18] sm:$0xff]
        %v4177 = vld [vmem:[#allocation16 + $0x20] sm:$0xff]
        %v4178 = vld [vmem:[#allocation16 + $0x28] sm:$0xff]
        %v4179 = vld [vmem:[#allocation16 + $0x30] sm:$0xff]
        %v4180 = vld [vmem:[#allocation16 + $0x38] sm:$0xff]
        %v4181 = vpack.c.bf16 %v4174, %v4173
        %v4182 = vpack.c.bf16 %v4176, %v4175
        %v4183 = vpack.c.bf16 %v4178, %v4177
        %v4184 = vpack.c.bf16 %v4180, %v4179
        %v4185 = vld [vmem:[#allocation17] sm:$0x1]
        %v4187 = vlaneseq
        %v4188 = vshrl.u32 %v4187, 7
        %v4189 = vsub.s32 0, %v4188
        %v4190 = vrot.slane %v4185, %v4189
        %v4192 = vadd.f32 %v4190, 0.0
        %v4193 = vpack.c.bf16 %v4000, %v3997
        %v4194 = vpack.c.bf16 %v4008, %v4005
        %v4195 = vpack.c.bf16 %v4016, %v4013
        %v4196 = vpack.c.bf16 %v4024, %v4021
        %v4197 = vpack.c.bf16 %v4097, %v4094
        %v4198 = vpack.c.bf16 %v4170, %v4167
        %v4200 = vsel %vm1890, %v4193, 0
        %v4203 = vsel %vm1890, %v4194, 0
        %v4206 = vsel %vm1890, %v4195, 0
        %v4209 = vsel %vm1890, %v4196, 0
        %v4212 = vsel %vm1890, %v4197, 0
        %4214 = vmatprep.subr.bf16.mxu0 0
        %4215 = vmatpush1.bf16.xpose.msra.mxu0 %v4212
        %4216 = vmatprep.subr.bf16.mxu0 0
        %4217 = vmatpush1.bf16.xpose.msra.mxu0 0
        %4218 = vmatprep.subr.bf16.mxu0 0
        %4219 = vmatpush1.bf16.xpose.msra.mxu0 0
        %4220 = vmatprep.subr.bf16.mxu0 0
        %4221 = vmatpush1.bf16.xpose.msra.mxu0 0
        %4222 = vmatprep.subr.bf16.mxu0 0
        %4223 = vmatpush1.bf16.xpose.msra.mxu0 0
        %4224 = vmatprep.subr.bf16.mxu0 0
        %4225 = vmatpush1.bf16.xpose.msra.mxu0 0
        %4226 = vmatprep.subr.bf16.mxu0 0
        %4227 = vmatpush1.bf16.xpose.msra.mxu0 0
        %4228 = vmatprep.subr.bf16.mxu0 0
        %4229 = vmatpush1.bf16.xpose.msra.mxu0 0
        %4230 = vmatprep.subr.bf16.mxu0 0
        %4231 = vmatpush1.bf16.xpose.msra.mxu0 0
        %4232 = vmatprep.subr.bf16.mxu0 0
        %4233 = vmatpush1.bf16.xpose.msra.mxu0 0
        %4234 = vmatprep.subr.bf16.mxu0 0
        %4235 = vmatpush1.bf16.xpose.msra.mxu0 0
        %4236 = vmatprep.subr.bf16.mxu0 0
        %4237 = vmatpush1.bf16.xpose.msra.mxu0 0
        %4238 = vmatprep.subr.bf16.mxu0 0
        %4239 = vmatpush1.bf16.xpose.msra.mxu0 0
        %4240 = vmatprep.subr.bf16.mxu0 0
        %4241 = vmatpush1.bf16.xpose.msra.mxu0 0
        %4242 = vmatprep.subr.bf16.mxu0 0
        %4243 = vmatpush1.bf16.xpose.msra.mxu0 0
        %4244 = vmatprep.subr.bf16.mxu0 0
        %4245 = vmatpush1.bf16.xpose.msra.mxu0 0
        %4246 = vmatprep.mubr.bf16.mxu0 0
        %4247 = vmatmul.mubr.bf16.gmra.mrb[0].mxu0 %v4200
        %v4248 = vpop.f32.mrb[0].mxu0
        %v4249 = vadd.f32 0.0, %v4248
        %v4250 = vpop.f32.mrb[0].mxu0
        %v4251 = vpop.f32.mrb[0].mxu0
        %v4252 = vadd.f32 0.0, %v4251
        %v4253 = vpop.f32.mrb[0].mxu0
        %4254 = vmatprep.mubr.bf16.mxu0 0
        %4255 = vmatmul.mubr.bf16.gmra.mrb[0].mxu0 %v4203
        %v4256 = vpop.f32.mrb[0].mxu0
        %v4257 = vadd.f32 0.0, %v4256
        %v4258 = vpop.f32.mrb[0].mxu0
        %v4259 = vpop.f32.mrb[0].mxu0
        %v4260 = vadd.f32 0.0, %v4259
        %v4261 = vpop.f32.mrb[0].mxu0
        %4262 = vmatprep.mubr.bf16.mxu0 0
        %4263 = vmatmul.mubr.bf16.gmra.mrb[0].mxu0 %v4206
        %v4264 = vpop.f32.mrb[0].mxu0
        %v4265 = vadd.f32 0.0, %v4264
        %v4266 = vpop.f32.mrb[0].mxu0
        %v4267 = vpop.f32.mrb[0].mxu0
        %v4268 = vadd.f32 0.0, %v4267
        %v4269 = vpop.f32.mrb[0].mxu0
        %4270 = vmatprep.mubr.bf16.mxu0 0
        %4271 = vmatmul.mubr.bf16.gmra.mrb[0].mxu0 %v4209
        %v4272 = vpop.f32.mrb[0].mxu0
        %v4273 = vadd.f32 0.0, %v4272
        %v4274 = vpop.f32.mrb[0].mxu0
        %v4275 = vpop.f32.mrb[0].mxu0
        %v4276 = vadd.f32 0.0, %v4275
        %v4277 = vpop.f32.mrb[0].mxu0
        %4278 = vdwg.mxu0
        %v4279 = vmul.f32 %v4249, 0.25
        %v4280 = vmul.f32 %v4252, 0.25
        %v4281 = vmul.f32 %v4257, 0.25
        %v4282 = vmul.f32 %v4260, 0.25
        %v4283 = vmul.f32 %v4265, 0.25
        %v4284 = vmul.f32 %v4268, 0.25
        %v4285 = vmul.f32 %v4273, 0.25
        %v4286 = vmul.f32 %v4276, 0.25
        %v4287 = vsel %vm1890, %v4279, -inf
        %4288 = vmax.xlane.f32.xlu0 %v4287
        %v4289 = vpop.xlane.xlu0 %4288
        %v4290 = vsel %vm1890, %v4280, -inf
        %4291 = vmax.xlane.f32.xlu0 %v4290
        %v4292 = vpop.xlane.xlu0 %4291
        %v4293 = vsel %vm1890, %v4281, -inf
        %4294 = vmax.xlane.f32.xlu0 %v4293
        %v4295 = vpop.xlane.xlu0 %4294
        %v4296 = vsel %vm1890, %v4282, -inf
        %4297 = vmax.xlane.f32.xlu0 %v4296
        %v4298 = vpop.xlane.xlu0 %4297
        %v4299 = vsel %vm1890, %v4283, -inf
        %4300 = vmax.xlane.f32.xlu0 %v4299
        %v4301 = vpop.xlane.xlu0 %4300
        %v4302 = vsel %vm1890, %v4284, -inf
        %4303 = vmax.xlane.f32.xlu0 %v4302
        %v4304 = vpop.xlane.xlu0 %4303
        %v4305 = vsel %vm1890, %v4285, -inf
        %4306 = vmax.xlane.f32.xlu0 %v4305
        %v4307 = vpop.xlane.xlu0 %4306
        %v4308 = vsel %vm1890, %v4286, -inf
        %4309 = vmax.xlane.f32.xlu0 %v4308
        %v4310 = vpop.xlane.xlu0 %4309
        %v4311 = vsub.f32 %v4279, %v4289
        %v4312 = vsub.f32 %v4280, %v4292
        %v4313 = vsub.f32 %v4281, %v4295
        %v4314 = vsub.f32 %v4282, %v4298
        %v4315 = vsub.f32 %v4283, %v4301
        %v4316 = vsub.f32 %v4284, %v4304
        %v4317 = vsub.f32 %v4285, %v4307
        %v4318 = vsub.f32 %v4286, %v4310
        %v4319 = vmul.f32 %v4311, 1.442695
        %v4320 = vpow.pop %v4319
        %v4321 = vmul.f32 %v4312, 1.442695
        %v4322 = vpow.pop %v4321
        %v4323 = vmul.f32 %v4313, 1.442695
        %v4324 = vpow.pop %v4323
        %v4325 = vmul.f32 %v4314, 1.442695
        %v4326 = vpow.pop %v4325
        %v4327 = vmul.f32 %v4315, 1.442695
        %v4328 = vpow.pop %v4327
        %v4329 = vmul.f32 %v4316, 1.442695
        %v4330 = vpow.pop %v4329
        %v4331 = vmul.f32 %v4317, 1.442695
        %v4332 = vpow.pop %v4331
        %v4333 = vmul.f32 %v4318, 1.442695
        %v4334 = vpow.pop %v4333
        %v4335 = vsel %vm1890, %v4320, 0.0
        %4336 = vadd.xlane.f32.xlu0 %v4335
        %v4337 = vpop.xlane.xlu0 %4336
        %v4338 = vsel %vm1890, %v4322, 0.0
        %4339 = vadd.xlane.f32.xlu0 %v4338
        %v4340 = vpop.xlane.xlu0 %4339
        %v4341 = vsel %vm1890, %v4324, 0.0
        %4342 = vadd.xlane.f32.xlu0 %v4341
        %v4343 = vpop.xlane.xlu0 %4342
        %v4344 = vsel %vm1890, %v4326, 0.0
        %4345 = vadd.xlane.f32.xlu0 %v4344
        %v4346 = vpop.xlane.xlu0 %4345
        %v4347 = vsel %vm1890, %v4328, 0.0
        %4348 = vadd.xlane.f32.xlu0 %v4347
        %v4349 = vpop.xlane.xlu0 %4348
        %v4350 = vsel %vm1890, %v4330, 0.0
        %4351 = vadd.xlane.f32.xlu0 %v4350
        %v4352 = vpop.xlane.xlu0 %4351
        %v4353 = vsel %vm1890, %v4332, 0.0
        %4354 = vadd.xlane.f32.xlu0 %v4353
        %v4355 = vpop.xlane.xlu0 %4354
        %v4356 = vsel %vm1890, %v4334, 0.0
        %4357 = vadd.xlane.f32.xlu0 %v4356
        %v4358 = vpop.xlane.xlu0 %4357
        %v4359 = vrcp.pop %v4337
        %v4360 = vrcp.pop %v4340
        %v4361 = vrcp.pop %v4343
        %v4362 = vrcp.pop %v4346
        %v4363 = vrcp.pop %v4349
        %v4364 = vrcp.pop %v4352
        %v4365 = vrcp.pop %v4355
        %v4366 = vrcp.pop %v4358
        %v4367 = vmul.f32 %v4320, %v4359
        %v4368 = vmul.f32 %v4322, %v4360
        %v4369 = vmul.f32 %v4324, %v4361
        %v4370 = vmul.f32 %v4326, %v4362
        %v4371 = vmul.f32 %v4328, %v4363
        %v4372 = vmul.f32 %v4330, %v4364
        %v4373 = vmul.f32 %v4332, %v4365
        %v4374 = vmul.f32 %v4334, %v4366
        %v4375 = vpack.c.bf16 %v4368, %v4367
        %v4376 = vpack.c.bf16 %v4370, %v4369
        %v4377 = vpack.c.bf16 %v4372, %v4371
        %v4378 = vpack.c.bf16 %v4374, %v4373
        %v4380 = vsel %vm1890, %v4375, 0
        %v4383 = vsel %vm1890, %v4376, 0
        %v4386 = vsel %vm1890, %v4377, 0
        %v4389 = vsel %vm1890, %v4378, 0
        %4391 = vmatprep.subr.bf16.mxu0 0
        %4392 = vmatpush1.bf16.msra.mxu0 %v4198
        %4393 = vmatprep.subr.bf16.mxu0 0
        %4394 = vmatpush1.bf16.msra.mxu0 0
        %4395 = vmatprep.subr.bf16.mxu0 0
        %4396 = vmatpush1.bf16.msra.mxu0 0
        %4397 = vmatprep.subr.bf16.mxu0 0
        %4398 = vmatpush1.bf16.msra.mxu0 0
        %4399 = vmatprep.subr.bf16.mxu0 0
        %4400 = vmatpush1.bf16.msra.mxu0 0
        %4401 = vmatprep.subr.bf16.mxu0 0
        %4402 = vmatpush1.bf16.msra.mxu0 0
        %4403 = vmatprep.subr.bf16.mxu0 0
        %4404 = vmatpush1.bf16.msra.mxu0 0
        %4405 = vmatprep.subr.bf16.mxu0 0
        %4406 = vmatpush1.bf16.msra.mxu0 0
        %4407 = vmatprep.subr.bf16.mxu0 0
        %4408 = vmatpush1.bf16.msra.mxu0 0
        %4409 = vmatprep.subr.bf16.mxu0 0
        %4410 = vmatpush1.bf16.msra.mxu0 0
        %4411 = vmatprep.subr.bf16.mxu0 0
        %4412 = vmatpush1.bf16.msra.mxu0 0
        %4413 = vmatprep.subr.bf16.mxu0 0
        %4414 = vmatpush1.bf16.msra.mxu0 0
        %4415 = vmatprep.subr.bf16.mxu0 0
        %4416 = vmatpush1.bf16.msra.mxu0 0
        %4417 = vmatprep.subr.bf16.mxu0 0
        %4418 = vmatpush1.bf16.msra.mxu0 0
        %4419 = vmatprep.subr.bf16.mxu0 0
        %4420 = vmatpush1.bf16.msra.mxu0 0
        %4421 = vmatprep.subr.bf16.mxu0 0
        %4422 = vmatpush1.bf16.msra.mxu0 0
        %4423 = vmatprep.mubr.bf16.mxu0 0
        %4424 = vmatmul.mubr.bf16.gmra.mrb[0].mxu0 %v4380
        %v4425 = vpop.f32.mrb[0].mxu0
        %v4426 = vadd.f32 0.0, %v4425
        %v4427 = vpop.f32.mrb[0].mxu0
        %v4428 = vpop.f32.mrb[0].mxu0
        %v4429 = vadd.f32 0.0, %v4428
        %v4430 = vpop.f32.mrb[0].mxu0
        %4431 = vmatprep.mubr.bf16.mxu0 0
        %4432 = vmatmul.mubr.bf16.gmra.mrb[0].mxu0 %v4383
        %v4433 = vpop.f32.mrb[0].mxu0
        %v4434 = vadd.f32 0.0, %v4433
        %v4435 = vpop.f32.mrb[0].mxu0
        %v4436 = vpop.f32.mrb[0].mxu0
        %v4437 = vadd.f32 0.0, %v4436
        %v4438 = vpop.f32.mrb[0].mxu0
        %4439 = vmatprep.mubr.bf16.mxu0 0
        %4440 = vmatmul.mubr.bf16.gmra.mrb[0].mxu0 %v4386
        %v4441 = vpop.f32.mrb[0].mxu0
        %v4442 = vadd.f32 0.0, %v4441
        %v4443 = vpop.f32.mrb[0].mxu0
        %v4444 = vpop.f32.mrb[0].mxu0
        %v4445 = vadd.f32 0.0, %v4444
        %v4446 = vpop.f32.mrb[0].mxu0
        %4447 = vmatprep.mubr.bf16.mxu0 0
        %4448 = vmatmul.mubr.bf16.gmra.mrb[0].mxu0 %v4389
        %v4449 = vpop.f32.mrb[0].mxu0
        %v4450 = vadd.f32 0.0, %v4449
        %v4451 = vpop.f32.mrb[0].mxu0
        %v4452 = vpop.f32.mrb[0].mxu0
        %v4453 = vadd.f32 0.0, %v4452
        %v4454 = vpop.f32.mrb[0].mxu0
        %4455 = vdwg.mxu0
        %v4456 = vpack.c.bf16 %v4429, %v4426
        %v4457 = vpack.c.bf16 %v4437, %v4434
        %v4458 = vpack.c.bf16 %v4445, %v4442
        %v4459 = vpack.c.bf16 %v4453, %v4450
        %v4461 = vsel %vm1890, %v4456, 0
        %v4464 = vsel %vm1890, %v4457, 0
        %v4467 = vsel %vm1890, %v4458, 0
        %v4470 = vsel %vm1890, %v4459, 0
        %4472 = vmatprep.subr.bf16.mxu0 0
        %4473 = vmatpush1.bf16.msra.mxu0 %v4181
        %4474 = vmatprep.subr.bf16.mxu0 0
        %4475 = vmatpush1.bf16.msra.mxu0 0
        %4476 = vmatprep.subr.bf16.mxu0 0
        %4477 = vmatpush1.bf16.msra.mxu0 0
        %4478 = vmatprep.subr.bf16.mxu0 0
        %4479 = vmatpush1.bf16.msra.mxu0 0
        %4480 = vmatprep.subr.bf16.mxu0 0
        %4481 = vmatpush1.bf16.msra.mxu0 0
        %4482 = vmatprep.subr.bf16.mxu0 0
        %4483 = vmatpush1.bf16.msra.mxu0 0
        %4484 = vmatprep.subr.bf16.mxu0 0
        %4485 = vmatpush1.bf16.msra.mxu0 0
        %4486 = vmatprep.subr.bf16.mxu0 0
        %4487 = vmatpush1.bf16.msra.mxu0 0
        %4488 = vmatprep.subr.bf16.mxu0 0
        %4489 = vmatpush1.bf16.msra.mxu0 0
        %4490 = vmatprep.subr.bf16.mxu0 0
        %4491 = vmatpush1.bf16.msra.mxu0 0
        %4492 = vmatprep.subr.bf16.mxu0 0
        %4493 = vmatpush1.bf16.msra.mxu0 0
        %4494 = vmatprep.subr.bf16.mxu0 0
        %4495 = vmatpush1.bf16.msra.mxu0 0
        %4496 = vmatprep.subr.bf16.mxu0 0
        %4497 = vmatpush1.bf16.msra.mxu0 0
        %4498 = vmatprep.subr.bf16.mxu0 0
        %4499 = vmatpush1.bf16.msra.mxu0 0
        %4500 = vmatprep.subr.bf16.mxu0 0
        %4501 = vmatpush1.bf16.msra.mxu0 0
        %4502 = vmatprep.subr.bf16.mxu0 0
        %4503 = vmatpush1.bf16.msra.mxu0 0
        %4504 = vmatprep.mubr.bf16.mxu0 0
        %4505 = vmatmul.mubr.bf16.gmra.mrb[0].mxu0 %v4461
        %v4506 = vpop.f32.mrb[0].mxu0
        %v4507 = vadd.f32 0.0, %v4506
        %v4508 = vpop.f32.mrb[0].mxu0
        %v4509 = vpop.f32.mrb[0].mxu0
        %v4510 = vadd.f32 0.0, %v4509
        %v4511 = vpop.f32.mrb[0].mxu0
        %4512 = vmatprep.mubr.bf16.mxu0 0
        %4513 = vmatmul.mubr.bf16.gmra.mrb[0].mxu0 %v4464
        %v4514 = vpop.f32.mrb[0].mxu0
        %v4515 = vadd.f32 0.0, %v4514
        %v4516 = vpop.f32.mrb[0].mxu0
        %v4517 = vpop.f32.mrb[0].mxu0
        %v4518 = vadd.f32 0.0, %v4517
        %v4519 = vpop.f32.mrb[0].mxu0
        %4520 = vmatprep.mubr.bf16.mxu0 0
        %4521 = vmatmul.mubr.bf16.gmra.mrb[0].mxu0 %v4467
        %v4522 = vpop.f32.mrb[0].mxu0
        %v4523 = vadd.f32 0.0, %v4522
        %v4524 = vpop.f32.mrb[0].mxu0
        %v4525 = vpop.f32.mrb[0].mxu0
        %v4526 = vadd.f32 0.0, %v4525
        %v4527 = vpop.f32.mrb[0].mxu0
        %4528 = vmatprep.mubr.bf16.mxu0 0
        %4529 = vmatmul.mubr.bf16.gmra.mrb[0].mxu0 %v4470
        %v4530 = vpop.f32.mrb[0].mxu0
        %v4531 = vadd.f32 0.0, %v4530
        %v4532 = vpop.f32.mrb[0].mxu0
        %v4533 = vpop.f32.mrb[0].mxu0
        %v4534 = vadd.f32 0.0, %v4533
        %v4535 = vpop.f32.mrb[0].mxu0
        %4536 = vdwg.mxu0
        %v4537 = vadd.f32 %v4192, %v4507
        %v4538 = vadd.f32 %v4192, %v4510
        %v4539 = vadd.f32 %v4192, %v4515
        %v4540 = vadd.f32 %v4192, %v4518
        %v4541 = vadd.f32 %v4192, %v4523
        %v4542 = vadd.f32 %v4192, %v4526
        %v4543 = vadd.f32 %v4192, %v4531
        %v4544 = vadd.f32 %v4192, %v4534
        %4549 = vrot.lane.b32.xlu0 %v4193, 112
        %v4550 = vpop.permute.xlu0 %4549
        %4551 = vrot.lane.b32.xlu0 %v4194, 112
        %v4552 = vpop.permute.xlu0 %4551
        %4553 = vrot.lane.b32.xlu0 %v4195, 112
        %v4554 = vpop.permute.xlu0 %4553
        %4555 = vrot.lane.b32.xlu0 %v4196, 112
        %v4556 = vpop.permute.xlu0 %4555
        %4558 = vrot.lane.b32.xlu0 %v4197, 112
        %v4559 = vpop.permute.xlu0 %4558
        %v4561 = vsel %vm1890, %v4550, 0
        %v4564 = vsel %vm1890, %v4552, 0
        %v4567 = vsel %vm1890, %v4554, 0
        %v4570 = vsel %vm1890, %v4556, 0
        %v4573 = vsel %vm1890, %v4559, 0
        %4575 = vmatprep.subr.bf16.mxu0 0
        %4576 = vmatpush1.bf16.xpose.msra.mxu0 %v4573
        %4577 = vmatprep.subr.bf16.mxu0 0
        %4578 = vmatpush1.bf16.xpose.msra.mxu0 0
        %4579 = vmatprep.subr.bf16.mxu0 0
        %4580 = vmatpush1.bf16.xpose.msra.mxu0 0
        %4581 = vmatprep.subr.bf16.mxu0 0
        %4582 = vmatpush1.bf16.xpose.msra.mxu0 0
        %4583 = vmatprep.subr.bf16.mxu0 0
        %4584 = vmatpush1.bf16.xpose.msra.mxu0 0
        %4585 = vmatprep.subr.bf16.mxu0 0
        %4586 = vmatpush1.bf16.xpose.msra.mxu0 0
        %4587 = vmatprep.subr.bf16.mxu0 0
        %4588 = vmatpush1.bf16.xpose.msra.mxu0 0
        %4589 = vmatprep.subr.bf16.mxu0 0
        %4590 = vmatpush1.bf16.xpose.msra.mxu0 0
        %4591 = vmatprep.subr.bf16.mxu0 0
        %4592 = vmatpush1.bf16.xpose.msra.mxu0 0
        %4593 = vmatprep.subr.bf16.mxu0 0
        %4594 = vmatpush1.bf16.xpose.msra.mxu0 0
        %4595 = vmatprep.subr.bf16.mxu0 0
        %4596 = vmatpush1.bf16.xpose.msra.mxu0 0
        %4597 = vmatprep.subr.bf16.mxu0 0
        %4598 = vmatpush1.bf16.xpose.msra.mxu0 0
        %4599 = vmatprep.subr.bf16.mxu0 0
        %4600 = vmatpush1.bf16.xpose.msra.mxu0 0
        %4601 = vmatprep.subr.bf16.mxu0 0
        %4602 = vmatpush1.bf16.xpose.msra.mxu0 0
        %4603 = vmatprep.subr.bf16.mxu0 0
        %4604 = vmatpush1.bf16.xpose.msra.mxu0 0
        %4605 = vmatprep.subr.bf16.mxu0 0
        %4606 = vmatpush1.bf16.xpose.msra.mxu0 0
        %4607 = vmatprep.mubr.bf16.mxu0 0
        %4608 = vmatmul.mubr.bf16.gmra.mrb[0].mxu0 %v4561
        %v4609 = vpop.f32.mrb[0].mxu0
        %v4610 = vadd.f32 0.0, %v4609
        %v4611 = vpop.f32.mrb[0].mxu0
        %v4612 = vpop.f32.mrb[0].mxu0
        %v4613 = vadd.f32 0.0, %v4612
        %v4614 = vpop.f32.mrb[0].mxu0
        %4615 = vmatprep.mubr.bf16.mxu0 0
        %4616 = vmatmul.mubr.bf16.gmra.mrb[0].mxu0 %v4564
        %v4617 = vpop.f32.mrb[0].mxu0
        %v4618 = vadd.f32 0.0, %v4617
        %v4619 = vpop.f32.mrb[0].mxu0
        %v4620 = vpop.f32.mrb[0].mxu0
        %v4621 = vadd.f32 0.0, %v4620
        %v4622 = vpop.f32.mrb[0].mxu0
        %4623 = vmatprep.mubr.bf16.mxu0 0
        %4624 = vmatmul.mubr.bf16.gmra.mrb[0].mxu0 %v4567
        %v4625 = vpop.f32.mrb[0].mxu0
        %v4626 = vadd.f32 0.0, %v4625
        %v4627 = vpop.f32.mrb[0].mxu0
        %v4628 = vpop.f32.mrb[0].mxu0
        %v4629 = vadd.f32 0.0, %v4628
        %v4630 = vpop.f32.mrb[0].mxu0
        %4631 = vmatprep.mubr.bf16.mxu0 0
        %4632 = vmatmul.mubr.bf16.gmra.mrb[0].mxu0 %v4570
        %v4633 = vpop.f32.mrb[0].mxu0
        %v4634 = vadd.f32 0.0, %v4633
        %v4635 = vpop.f32.mrb[0].mxu0
        %v4636 = vpop.f32.mrb[0].mxu0
        %v4637 = vadd.f32 0.0, %v4636
        %v4638 = vpop.f32.mrb[0].mxu0
        %4639 = vdwg.mxu0
        %v4640 = vmul.f32 %v4610, 0.25
        %v4641 = vmul.f32 %v4613, 0.25
        %v4642 = vmul.f32 %v4618, 0.25
        %v4643 = vmul.f32 %v4621, 0.25
        %v4644 = vmul.f32 %v4626, 0.25
        %v4645 = vmul.f32 %v4629, 0.25
        %v4646 = vmul.f32 %v4634, 0.25
        %v4647 = vmul.f32 %v4637, 0.25
        %v4648 = vsel %vm1890, %v4640, -inf
        %4649 = vmax.xlane.f32.xlu0 %v4648
        %v4650 = vpop.xlane.xlu0 %4649
        %v4651 = vsel %vm1890, %v4641, -inf
        %4652 = vmax.xlane.f32.xlu0 %v4651
        %v4653 = vpop.xlane.xlu0 %4652
        %v4654 = vsel %vm1890, %v4642, -inf
        %4655 = vmax.xlane.f32.xlu0 %v4654
        %v4656 = vpop.xlane.xlu0 %4655
        %v4657 = vsel %vm1890, %v4643, -inf
        %4658 = vmax.xlane.f32.xlu0 %v4657
        %v4659 = vpop.xlane.xlu0 %4658
        %v4660 = vsel %vm1890, %v4644, -inf
        %4661 = vmax.xlane.f32.xlu0 %v4660
        %v4662 = vpop.xlane.xlu0 %4661
        %v4663 = vsel %vm1890, %v4645, -inf
        %4664 = vmax.xlane.f32.xlu0 %v4663
        %v4665 = vpop.xlane.xlu0 %4664
        %v4666 = vsel %vm1890, %v4646, -inf
        %4667 = vmax.xlane.f32.xlu0 %v4666
        %v4668 = vpop.xlane.xlu0 %4667
        %v4669 = vsel %vm1890, %v4647, -inf
        %4670 = vmax.xlane.f32.xlu0 %v4669
        %v4671 = vpop.xlane.xlu0 %4670
        %v4672 = vsub.f32 %v4640, %v4650
        %v4673 = vsub.f32 %v4641, %v4653
        %v4674 = vsub.f32 %v4642, %v4656
        %v4675 = vsub.f32 %v4643, %v4659
        %v4676 = vsub.f32 %v4644, %v4662
        %v4677 = vsub.f32 %v4645, %v4665
        %v4678 = vsub.f32 %v4646, %v4668
        %v4679 = vsub.f32 %v4647, %v4671
        %v4680 = vmul.f32 %v4672, 1.442695
        %v4681 = vpow.pop %v4680
        %v4682 = vmul.f32 %v4673, 1.442695
        %v4683 = vpow.pop %v4682
        %v4684 = vmul.f32 %v4674, 1.442695
        %v4685 = vpow.pop %v4684
        %v4686 = vmul.f32 %v4675, 1.442695
        %v4687 = vpow.pop %v4686
        %v4688 = vmul.f32 %v4676, 1.442695
        %v4689 = vpow.pop %v4688
        %v4690 = vmul.f32 %v4677, 1.442695
        %v4691 = vpow.pop %v4690
        %v4692 = vmul.f32 %v4678, 1.442695
        %v4693 = vpow.pop %v4692
        %v4694 = vmul.f32 %v4679, 1.442695
        %v4695 = vpow.pop %v4694
        %v4696 = vsel %vm1890, %v4681, 0.0
        %4697 = vadd.xlane.f32.xlu0 %v4696
        %v4698 = vpop.xlane.xlu0 %4697
        %v4699 = vsel %vm1890, %v4683, 0.0
        %4700 = vadd.xlane.f32.xlu0 %v4699
        %v4701 = vpop.xlane.xlu0 %4700
        %v4702 = vsel %vm1890, %v4685, 0.0
        %4703 = vadd.xlane.f32.xlu0 %v4702
        %v4704 = vpop.xlane.xlu0 %4703
        %v4705 = vsel %vm1890, %v4687, 0.0
        %4706 = vadd.xlane.f32.xlu0 %v4705
        %v4707 = vpop.xlane.xlu0 %4706
        %v4708 = vsel %vm1890, %v4689, 0.0
        %4709 = vadd.xlane.f32.xlu0 %v4708
        %v4710 = vpop.xlane.xlu0 %4709
        %v4711 = vsel %vm1890, %v4691, 0.0
        %4712 = vadd.xlane.f32.xlu0 %v4711
        %v4713 = vpop.xlane.xlu0 %4712
        %v4714 = vsel %vm1890, %v4693, 0.0
        %4715 = vadd.xlane.f32.xlu0 %v4714
        %v4716 = vpop.xlane.xlu0 %4715
        %v4717 = vsel %vm1890, %v4695, 0.0
        %4718 = vadd.xlane.f32.xlu0 %v4717
        %v4719 = vpop.xlane.xlu0 %4718
        %v4720 = vrcp.pop %v4698
        %v4721 = vrcp.pop %v4701
        %v4722 = vrcp.pop %v4704
        %v4723 = vrcp.pop %v4707
        %v4724 = vrcp.pop %v4710
        %v4725 = vrcp.pop %v4713
        %v4726 = vrcp.pop %v4716
        %v4727 = vrcp.pop %v4719
        %v4728 = vmul.f32 %v4681, %v4720
        %v4729 = vmul.f32 %v4683, %v4721
        %v4730 = vmul.f32 %v4685, %v4722
        %v4731 = vmul.f32 %v4687, %v4723
        %v4732 = vmul.f32 %v4689, %v4724
        %v4733 = vmul.f32 %v4691, %v4725
        %v4734 = vmul.f32 %v4693, %v4726
        %v4735 = vmul.f32 %v4695, %v4727
        %v4736 = vpack.c.bf16 %v4729, %v4728
        %v4737 = vpack.c.bf16 %v4731, %v4730
        %v4738 = vpack.c.bf16 %v4733, %v4732
        %v4739 = vpack.c.bf16 %v4735, %v4734
        %4741 = vrot.lane.b32.xlu0 %v4198, 112
        %v4742 = vpop.permute.xlu0 %4741
        %v4745 = vsel %vm1890, %v4736, 0
        %v4748 = vsel %vm1890, %v4737, 0
        %v4751 = vsel %vm1890, %v4738, 0
        %v4754 = vsel %vm1890, %v4739, 0
        %4756 = vmatprep.subr.bf16.mxu0 0
        %4757 = vmatpush1.bf16.msra.mxu0 %v4742
        %4758 = vmatprep.subr.bf16.mxu0 0
        %4759 = vmatpush1.bf16.msra.mxu0 0
        %4760 = vmatprep.subr.bf16.mxu0 0
        %4761 = vmatpush1.bf16.msra.mxu0 0
        %4762 = vmatprep.subr.bf16.mxu0 0
        %4763 = vmatpush1.bf16.msra.mxu0 0
        %4764 = vmatprep.subr.bf16.mxu0 0
        %4765 = vmatpush1.bf16.msra.mxu0 0
        %4766 = vmatprep.subr.bf16.mxu0 0
        %4767 = vmatpush1.bf16.msra.mxu0 0
        %4768 = vmatprep.subr.bf16.mxu0 0
        %4769 = vmatpush1.bf16.msra.mxu0 0
        %4770 = vmatprep.subr.bf16.mxu0 0
        %4771 = vmatpush1.bf16.msra.mxu0 0
        %4772 = vmatprep.subr.bf16.mxu0 0
        %4773 = vmatpush1.bf16.msra.mxu0 0
        %4774 = vmatprep.subr.bf16.mxu0 0
        %4775 = vmatpush1.bf16.msra.mxu0 0
        %4776 = vmatprep.subr.bf16.mxu0 0
        %4777 = vmatpush1.bf16.msra.mxu0 0
        %4778 = vmatprep.subr.bf16.mxu0 0
        %4779 = vmatpush1.bf16.msra.mxu0 0
        %4780 = vmatprep.subr.bf16.mxu0 0
        %4781 = vmatpush1.bf16.msra.mxu0 0
        %4782 = vmatprep.subr.bf16.mxu0 0
        %4783 = vmatpush1.bf16.msra.mxu0 0
        %4784 = vmatprep.subr.bf16.mxu0 0
        %4785 = vmatpush1.bf16.msra.mxu0 0
        %4786 = vmatprep.subr.bf16.mxu0 0
        %4787 = vmatpush1.bf16.msra.mxu0 0
        %4788 = vmatprep.mubr.bf16.mxu0 0
        %4789 = vmatmul.mubr.bf16.gmra.mrb[0].mxu0 %v4745
        %v4790 = vpop.f32.mrb[0].mxu0
        %v4791 = vadd.f32 0.0, %v4790
        %v4792 = vpop.f32.mrb[0].mxu0
        %v4793 = vpop.f32.mrb[0].mxu0
        %v4794 = vadd.f32 0.0, %v4793
        %v4795 = vpop.f32.mrb[0].mxu0
        %4796 = vmatprep.mubr.bf16.mxu0 0
        %4797 = vmatmul.mubr.bf16.gmra.mrb[0].mxu0 %v4748
        %v4798 = vpop.f32.mrb[0].mxu0
        %v4799 = vadd.f32 0.0, %v4798
        %v4800 = vpop.f32.mrb[0].mxu0
        %v4801 = vpop.f32.mrb[0].mxu0
        %v4802 = vadd.f32 0.0, %v4801
        %v4803 = vpop.f32.mrb[0].mxu0
        %4804 = vmatprep.mubr.bf16.mxu0 0
        %4805 = vmatmul.mubr.bf16.gmra.mrb[0].mxu0 %v4751
        %v4806 = vpop.f32.mrb[0].mxu0
        %v4807 = vadd.f32 0.0, %v4806
        %v4808 = vpop.f32.mrb[0].mxu0
        %v4809 = vpop.f32.mrb[0].mxu0
        %v4810 = vadd.f32 0.0, %v4809
        %v4811 = vpop.f32.mrb[0].mxu0
        %4812 = vmatprep.mubr.bf16.mxu0 0
        %4813 = vmatmul.mubr.bf16.gmra.mrb[0].mxu0 %v4754
        %v4814 = vpop.f32.mrb[0].mxu0
        %v4815 = vadd.f32 0.0, %v4814
        %v4816 = vpop.f32.mrb[0].mxu0
        %v4817 = vpop.f32.mrb[0].mxu0
        %v4818 = vadd.f32 0.0, %v4817
        %v4819 = vpop.f32.mrb[0].mxu0
        %4820 = vdwg.mxu0
        %v4821 = vpack.c.bf16 %v4794, %v4791
        %v4822 = vpack.c.bf16 %v4802, %v4799
        %v4823 = vpack.c.bf16 %v4810, %v4807
        %v4824 = vpack.c.bf16 %v4818, %v4815
        %v4826 = vsel %vm1890, %v4821, 0
        %v4829 = vsel %vm1890, %v4822, 0
        %v4832 = vsel %vm1890, %v4823, 0
        %v4835 = vsel %vm1890, %v4824, 0
        %4837 = vmatprep.subr.bf16.mxu0 0
        %4838 = vmatpush1.bf16.msra.mxu0 %v4182
        %4839 = vmatprep.subr.bf16.mxu0 0
        %4840 = vmatpush1.bf16.msra.mxu0 0
        %4841 = vmatprep.subr.bf16.mxu0 0
        %4842 = vmatpush1.bf16.msra.mxu0 0
        %4843 = vmatprep.subr.bf16.mxu0 0
        %4844 = vmatpush1.bf16.msra.mxu0 0
        %4845 = vmatprep.subr.bf16.mxu0 0
        %4846 = vmatpush1.bf16.msra.mxu0 0
        %4847 = vmatprep.subr.bf16.mxu0 0
        %4848 = vmatpush1.bf16.msra.mxu0 0
        %4849 = vmatprep.subr.bf16.mxu0 0
        %4850 = vmatpush1.bf16.msra.mxu0 0
        %4851 = vmatprep.subr.bf16.mxu0 0
        %4852 = vmatpush1.bf16.msra.mxu0 0
        %4853 = vmatprep.subr.bf16.mxu0 0
        %4854 = vmatpush1.bf16.msra.mxu0 0
        %4855 = vmatprep.subr.bf16.mxu0 0
        %4856 = vmatpush1.bf16.msra.mxu0 0
        %4857 = vmatprep.subr.bf16.mxu0 0
        %4858 = vmatpush1.bf16.msra.mxu0 0
        %4859 = vmatprep.subr.bf16.mxu0 0
        %4860 = vmatpush1.bf16.msra.mxu0 0
        %4861 = vmatprep.subr.bf16.mxu0 0
        %4862 = vmatpush1.bf16.msra.mxu0 0
        %4863 = vmatprep.subr.bf16.mxu0 0
        %4864 = vmatpush1.bf16.msra.mxu0 0
        %4865 = vmatprep.subr.bf16.mxu0 0
        %4866 = vmatpush1.bf16.msra.mxu0 0
        %4867 = vmatprep.subr.bf16.mxu0 0
        %4868 = vmatpush1.bf16.msra.mxu0 0
        %4869 = vmatprep.mubr.bf16.mxu0 0
        %4870 = vmatmul.mubr.bf16.gmra.mrb[0].mxu0 %v4826
        %v4871 = vpop.f32.mrb[0].mxu0
        %v4872 = vadd.f32 0.0, %v4871
        %v4873 = vpop.f32.mrb[0].mxu0
        %v4874 = vpop.f32.mrb[0].mxu0
        %v4875 = vadd.f32 0.0, %v4874
        %v4876 = vpop.f32.mrb[0].mxu0
        %4877 = vmatprep.mubr.bf16.mxu0 0
        %4878 = vmatmul.mubr.bf16.gmra.mrb[0].mxu0 %v4829
        %v4879 = vpop.f32.mrb[0].mxu0
        %v4880 = vadd.f32 0.0, %v4879
        %v4881 = vpop.f32.mrb[0].mxu0
        %v4882 = vpop.f32.mrb[0].mxu0
        %v4883 = vadd.f32 0.0, %v4882
        %v4884 = vpop.f32.mrb[0].mxu0
        %4885 = vmatprep.mubr.bf16.mxu0 0
        %4886 = vmatmul.mubr.bf16.gmra.mrb[0].mxu0 %v4832
        %v4887 = vpop.f32.mrb[0].mxu0
        %v4888 = vadd.f32 0.0, %v4887
        %v4889 = vpop.f32.mrb[0].mxu0
        %v4890 = vpop.f32.mrb[0].mxu0
        %v4891 = vadd.f32 0.0, %v4890
        %v4892 = vpop.f32.mrb[0].mxu0
        %4893 = vmatprep.mubr.bf16.mxu0 0
        %4894 = vmatmul.mubr.bf16.gmra.mrb[0].mxu0 %v4835
        %v4895 = vpop.f32.mrb[0].mxu0
        %v4896 = vadd.f32 0.0, %v4895
        %v4897 = vpop.f32.mrb[0].mxu0
        %v4898 = vpop.f32.mrb[0].mxu0
        %v4899 = vadd.f32 0.0, %v4898
        %v4900 = vpop.f32.mrb[0].mxu0
        %4901 = vdwg.mxu0
        %v4902 = vadd.f32 %v4537, %v4872
        %v4903 = vadd.f32 %v4538, %v4875
        %v4904 = vadd.f32 %v4539, %v4880
        %v4905 = vadd.f32 %v4540, %v4883
        %v4906 = vadd.f32 %v4541, %v4888
        %v4907 = vadd.f32 %v4542, %v4891
        %v4908 = vadd.f32 %v4543, %v4896
        %v4909 = vadd.f32 %v4544, %v4899
        %4910 = vrot.lane.b32.xlu0 %v4193, 96
        %v4911 = vpop.permute.xlu0 %4910
        %4912 = vrot.lane.b32.xlu0 %v4194, 96
        %v4913 = vpop.permute.xlu0 %4912
        %4914 = vrot.lane.b32.xlu0 %v4195, 96
        %v4915 = vpop.permute.xlu0 %4914
        %4916 = vrot.lane.b32.xlu0 %v4196, 96
        %v4917 = vpop.permute.xlu0 %4916
        %4918 = vrot.lane.b32.xlu0 %v4197, 96
        %v4919 = vpop.permute.xlu0 %4918
        %v4921 = vsel %vm1890, %v4911, 0
        %v4924 = vsel %vm1890, %v4913, 0
        %v4927 = vsel %vm1890, %v4915, 0
        %v4930 = vsel %vm1890, %v4917, 0
        %v4933 = vsel %vm1890, %v4919, 0
        %4935 = vmatprep.subr.bf16.mxu0 0
        %4936 = vmatpush1.bf16.xpose.msra.mxu0 %v4933
        %4937 = vmatprep.subr.bf16.mxu0 0
        %4938 = vmatpush1.bf16.xpose.msra.mxu0 0
        %4939 = vmatprep.subr.bf16.mxu0 0
        %4940 = vmatpush1.bf16.xpose.msra.mxu0 0
        %4941 = vmatprep.subr.bf16.mxu0 0
        %4942 = vmatpush1.bf16.xpose.msra.mxu0 0
        %4943 = vmatprep.subr.bf16.mxu0 0
        %4944 = vmatpush1.bf16.xpose.msra.mxu0 0
        %4945 = vmatprep.subr.bf16.mxu0 0
        %4946 = vmatpush1.bf16.xpose.msra.mxu0 0
        %4947 = vmatprep.subr.bf16.mxu0 0
        %4948 = vmatpush1.bf16.xpose.msra.mxu0 0
        %4949 = vmatprep.subr.bf16.mxu0 0
        %4950 = vmatpush1.bf16.xpose.msra.mxu0 0
        %4951 = vmatprep.subr.bf16.mxu0 0
        %4952 = vmatpush1.bf16.xpose.msra.mxu0 0
        %4953 = vmatprep.subr.bf16.mxu0 0
        %4954 = vmatpush1.bf16.xpose.msra.mxu0 0
        %4955 = vmatprep.subr.bf16.mxu0 0
        %4956 = vmatpush1.bf16.xpose.msra.mxu0 0
        %4957 = vmatprep.subr.bf16.mxu0 0
        %4958 = vmatpush1.bf16.xpose.msra.mxu0 0
        %4959 = vmatprep.subr.bf16.mxu0 0
        %4960 = vmatpush1.bf16.xpose.msra.mxu0 0
        %4961 = vmatprep.subr.bf16.mxu0 0
        %4962 = vmatpush1.bf16.xpose.msra.mxu0 0
        %4963 = vmatprep.subr.bf16.mxu0 0
        %4964 = vmatpush1.bf16.xpose.msra.mxu0 0
        %4965 = vmatprep.subr.bf16.mxu0 0
        %4966 = vmatpush1.bf16.xpose.msra.mxu0 0
        %4967 = vmatprep.mubr.bf16.mxu0 0
        %4968 = vmatmul.mubr.bf16.gmra.mrb[0].mxu0 %v4921
        %v4969 = vpop.f32.mrb[0].mxu0
        %v4970 = vadd.f32 0.0, %v4969
        %v4971 = vpop.f32.mrb[0].mxu0
        %v4972 = vpop.f32.mrb[0].mxu0
        %v4973 = vadd.f32 0.0, %v4972
        %v4974 = vpop.f32.mrb[0].mxu0
        %4975 = vmatprep.mubr.bf16.mxu0 0
        %4976 = vmatmul.mubr.bf16.gmra.mrb[0].mxu0 %v4924
        %v4977 = vpop.f32.mrb[0].mxu0
        %v4978 = vadd.f32 0.0, %v4977
        %v4979 = vpop.f32.mrb[0].mxu0
        %v4980 = vpop.f32.mrb[0].mxu0
        %v4981 = vadd.f32 0.0, %v4980
        %v4982 = vpop.f32.mrb[0].mxu0
        %4983 = vmatprep.mubr.bf16.mxu0 0
        %4984 = vmatmul.mubr.bf16.gmra.mrb[0].mxu0 %v4927
        %v4985 = vpop.f32.mrb[0].mxu0
        %v4986 = vadd.f32 0.0, %v4985
        %v4987 = vpop.f32.mrb[0].mxu0
        %v4988 = vpop.f32.mrb[0].mxu0
        %v4989 = vadd.f32 0.0, %v4988
        %v4990 = vpop.f32.mrb[0].mxu0
        %4991 = vmatprep.mubr.bf16.mxu0 0
        %4992 = vmatmul.mubr.bf16.gmra.mrb[0].mxu0 %v4930
        %v4993 = vpop.f32.mrb[0].mxu0
        %v4994 = vadd.f32 0.0, %v4993
        %v4995 = vpop.f32.mrb[0].mxu0
        %v4996 = vpop.f32.mrb[0].mxu0
        %v4997 = vadd.f32 0.0, %v4996
        %v4998 = vpop.f32.mrb[0].mxu0
        %4999 = vdwg.mxu0
        %v5000 = vmul.f32 %v4970, 0.25
        %v5001 = vmul.f32 %v4973, 0.25
        %v5002 = vmul.f32 %v4978, 0.25
        %v5003 = vmul.f32 %v4981, 0.25
        %v5004 = vmul.f32 %v4986, 0.25
        %v5005 = vmul.f32 %v4989, 0.25
        %v5006 = vmul.f32 %v4994, 0.25
        %v5007 = vmul.f32 %v4997, 0.25
        %v5008 = vsel %vm1890, %v5000, -inf
        %5009 = vmax.xlane.f32.xlu0 %v5008
        %v5010 = vpop.xlane.xlu0 %5009
        %v5011 = vsel %vm1890, %v5001, -inf
        %5012 = vmax.xlane.f32.xlu0 %v5011
        %v5013 = vpop.xlane.xlu0 %5012
        %v5014 = vsel %vm1890, %v5002, -inf
        %5015 = vmax.xlane.f32.xlu0 %v5014
        %v5016 = vpop.xlane.xlu0 %5015
        %v5017 = vsel %vm1890, %v5003, -inf
        %5018 = vmax.xlane.f32.xlu0 %v5017
        %v5019 = vpop.xlane.xlu0 %5018
        %v5020 = vsel %vm1890, %v5004, -inf
        %5021 = vmax.xlane.f32.xlu0 %v5020
        %v5022 = vpop.xlane.xlu0 %5021
        %v5023 = vsel %vm1890, %v5005, -inf
        %5024 = vmax.xlane.f32.xlu0 %v5023
        %v5025 = vpop.xlane.xlu0 %5024
        %v5026 = vsel %vm1890, %v5006, -inf
        %5027 = vmax.xlane.f32.xlu0 %v5026
        %v5028 = vpop.xlane.xlu0 %5027
        %v5029 = vsel %vm1890, %v5007, -inf
        %5030 = vmax.xlane.f32.xlu0 %v5029
        %v5031 = vpop.xlane.xlu0 %5030
        %v5032 = vsub.f32 %v5000, %v5010
        %v5033 = vsub.f32 %v5001, %v5013
        %v5034 = vsub.f32 %v5002, %v5016
        %v5035 = vsub.f32 %v5003, %v5019
        %v5036 = vsub.f32 %v5004, %v5022
        %v5037 = vsub.f32 %v5005, %v5025
        %v5038 = vsub.f32 %v5006, %v5028
        %v5039 = vsub.f32 %v5007, %v5031
        %v5040 = vmul.f32 %v5032, 1.442695
        %v5041 = vpow.pop %v5040
        %v5042 = vmul.f32 %v5033, 1.442695
        %v5043 = vpow.pop %v5042
        %v5044 = vmul.f32 %v5034, 1.442695
        %v5045 = vpow.pop %v5044
        %v5046 = vmul.f32 %v5035, 1.442695
        %v5047 = vpow.pop %v5046
        %v5048 = vmul.f32 %v5036, 1.442695
        %v5049 = vpow.pop %v5048
        %v5050 = vmul.f32 %v5037, 1.442695
        %v5051 = vpow.pop %v5050
        %v5052 = vmul.f32 %v5038, 1.442695
        %v5053 = vpow.pop %v5052
        %v5054 = vmul.f32 %v5039, 1.442695
        %v5055 = vpow.pop %v5054
        %v5056 = vsel %vm1890, %v5041, 0.0
        %5057 = vadd.xlane.f32.xlu0 %v5056
        %v5058 = vpop.xlane.xlu0 %5057
        %v5059 = vsel %vm1890, %v5043, 0.0
        %5060 = vadd.xlane.f32.xlu0 %v5059
        %v5061 = vpop.xlane.xlu0 %5060
        %v5062 = vsel %vm1890, %v5045, 0.0
        %5063 = vadd.xlane.f32.xlu0 %v5062
        %v5064 = vpop.xlane.xlu0 %5063
        %v5065 = vsel %vm1890, %v5047, 0.0
        %5066 = vadd.xlane.f32.xlu0 %v5065
        %v5067 = vpop.xlane.xlu0 %5066
        %v5068 = vsel %vm1890, %v5049, 0.0
        %5069 = vadd.xlane.f32.xlu0 %v5068
        %v5070 = vpop.xlane.xlu0 %5069
        %v5071 = vsel %vm1890, %v5051, 0.0
        %5072 = vadd.xlane.f32.xlu0 %v5071
        %v5073 = vpop.xlane.xlu0 %5072
        %v5074 = vsel %vm1890, %v5053, 0.0
        %5075 = vadd.xlane.f32.xlu0 %v5074
        %v5076 = vpop.xlane.xlu0 %5075
        %v5077 = vsel %vm1890, %v5055, 0.0
        %5078 = vadd.xlane.f32.xlu0 %v5077
        %v5079 = vpop.xlane.xlu0 %5078
        %v5080 = vrcp.pop %v5058
        %v5081 = vrcp.pop %v5061
        %v5082 = vrcp.pop %v5064
        %v5083 = vrcp.pop %v5067
        %v5084 = vrcp.pop %v5070
        %v5085 = vrcp.pop %v5073
        %v5086 = vrcp.pop %v5076
        %v5087 = vrcp.pop %v5079
        %v5088 = vmul.f32 %v5041, %v5080
        %v5089 = vmul.f32 %v5043, %v5081
        %v5090 = vmul.f32 %v5045, %v5082
        %v5091 = vmul.f32 %v5047, %v5083
        %v5092 = vmul.f32 %v5049, %v5084
        %v5093 = vmul.f32 %v5051, %v5085
        %v5094 = vmul.f32 %v5053, %v5086
        %v5095 = vmul.f32 %v5055, %v5087
        %v5096 = vpack.c.bf16 %v5089, %v5088
        %v5097 = vpack.c.bf16 %v5091, %v5090
        %v5098 = vpack.c.bf16 %v5093, %v5092
        %v5099 = vpack.c.bf16 %v5095, %v5094
        %5100 = vrot.lane.b32.xlu0 %v4198, 96
        %v5101 = vpop.permute.xlu0 %5100
        %v5104 = vsel %vm1890, %v5096, 0
        %v5107 = vsel %vm1890, %v5097, 0
        %v5110 = vsel %vm1890, %v5098, 0
        %v5113 = vsel %vm1890, %v5099, 0
        %5115 = vmatprep.subr.bf16.mxu0 0
        %5116 = vmatpush1.bf16.msra.mxu0 %v5101
        %5117 = vmatprep.subr.bf16.mxu0 0
        %5118 = vmatpush1.bf16.msra.mxu0 0
        %5119 = vmatprep.subr.bf16.mxu0 0
        %5120 = vmatpush1.bf16.msra.mxu0 0
        %5121 = vmatprep.subr.bf16.mxu0 0
        %5122 = vmatpush1.bf16.msra.mxu0 0
        %5123 = vmatprep.subr.bf16.mxu0 0
        %5124 = vmatpush1.bf16.msra.mxu0 0
        %5125 = vmatprep.subr.bf16.mxu0 0
        %5126 = vmatpush1.bf16.msra.mxu0 0
        %5127 = vmatprep.subr.bf16.mxu0 0
        %5128 = vmatpush1.bf16.msra.mxu0 0
        %5129 = vmatprep.subr.bf16.mxu0 0
        %5130 = vmatpush1.bf16.msra.mxu0 0
        %5131 = vmatprep.subr.bf16.mxu0 0
        %5132 = vmatpush1.bf16.msra.mxu0 0
        %5133 = vmatprep.subr.bf16.mxu0 0
        %5134 = vmatpush1.bf16.msra.mxu0 0
        %5135 = vmatprep.subr.bf16.mxu0 0
        %5136 = vmatpush1.bf16.msra.mxu0 0
        %5137 = vmatprep.subr.bf16.mxu0 0
        %5138 = vmatpush1.bf16.msra.mxu0 0
        %5139 = vmatprep.subr.bf16.mxu0 0
        %5140 = vmatpush1.bf16.msra.mxu0 0
        %5141 = vmatprep.subr.bf16.mxu0 0
        %5142 = vmatpush1.bf16.msra.mxu0 0
        %5143 = vmatprep.subr.bf16.mxu0 0
        %5144 = vmatpush1.bf16.msra.mxu0 0
        %5145 = vmatprep.subr.bf16.mxu0 0
        %5146 = vmatpush1.bf16.msra.mxu0 0
        %5147 = vmatprep.mubr.bf16.mxu0 0
        %5148 = vmatmul.mubr.bf16.gmra.mrb[0].mxu0 %v5104
        %v5149 = vpop.f32.mrb[0].mxu0
        %v5150 = vadd.f32 0.0, %v5149
        %v5151 = vpop.f32.mrb[0].mxu0
        %v5152 = vpop.f32.mrb[0].mxu0
        %v5153 = vadd.f32 0.0, %v5152
        %v5154 = vpop.f32.mrb[0].mxu0
        %5155 = vmatprep.mubr.bf16.mxu0 0
        %5156 = vmatmul.mubr.bf16.gmra.mrb[0].mxu0 %v5107
        %v5157 = vpop.f32.mrb[0].mxu0
        %v5158 = vadd.f32 0.0, %v5157
        %v5159 = vpop.f32.mrb[0].mxu0
        %v5160 = vpop.f32.mrb[0].mxu0
        %v5161 = vadd.f32 0.0, %v5160
        %v5162 = vpop.f32.mrb[0].mxu0
        %5163 = vmatprep.mubr.bf16.mxu0 0
        %5164 = vmatmul.mubr.bf16.gmra.mrb[0].mxu0 %v5110
        %v5165 = vpop.f32.mrb[0].mxu0
        %v5166 = vadd.f32 0.0, %v5165
        %v5167 = vpop.f32.mrb[0].mxu0
        %v5168 = vpop.f32.mrb[0].mxu0
        %v5169 = vadd.f32 0.0, %v5168
        %v5170 = vpop.f32.mrb[0].mxu0
        %5171 = vmatprep.mubr.bf16.mxu0 0
        %5172 = vmatmul.mubr.bf16.gmra.mrb[0].mxu0 %v5113
        %v5173 = vpop.f32.mrb[0].mxu0
        %v5174 = vadd.f32 0.0, %v5173
        %v5175 = vpop.f32.mrb[0].mxu0
        %v5176 = vpop.f32.mrb[0].mxu0
        %v5177 = vadd.f32 0.0, %v5176
        %v5178 = vpop.f32.mrb[0].mxu0
        %5179 = vdwg.mxu0
        %v5180 = vpack.c.bf16 %v5153, %v5150
        %v5181 = vpack.c.bf16 %v5161, %v5158
        %v5182 = vpack.c.bf16 %v5169, %v5166
        %v5183 = vpack.c.bf16 %v5177, %v5174
        %v5185 = vsel %vm1890, %v5180, 0
        %v5188 = vsel %vm1890, %v5181, 0
        %v5191 = vsel %vm1890, %v5182, 0
        %v5194 = vsel %vm1890, %v5183, 0
        %5196 = vmatprep.subr.bf16.mxu0 0
        %5197 = vmatpush1.bf16.msra.mxu0 %v4183
        %5198 = vmatprep.subr.bf16.mxu0 0
        %5199 = vmatpush1.bf16.msra.mxu0 0
        %5200 = vmatprep.subr.bf16.mxu0 0
        %5201 = vmatpush1.bf16.msra.mxu0 0
        %5202 = vmatprep.subr.bf16.mxu0 0
        %5203 = vmatpush1.bf16.msra.mxu0 0
        %5204 = vmatprep.subr.bf16.mxu0 0
        %5205 = vmatpush1.bf16.msra.mxu0 0
        %5206 = vmatprep.subr.bf16.mxu0 0
        %5207 = vmatpush1.bf16.msra.mxu0 0
        %5208 = vmatprep.subr.bf16.mxu0 0
        %5209 = vmatpush1.bf16.msra.mxu0 0
        %5210 = vmatprep.subr.bf16.mxu0 0
        %5211 = vmatpush1.bf16.msra.mxu0 0
        %5212 = vmatprep.subr.bf16.mxu0 0
        %5213 = vmatpush1.bf16.msra.mxu0 0
        %5214 = vmatprep.subr.bf16.mxu0 0
        %5215 = vmatpush1.bf16.msra.mxu0 0
        %5216 = vmatprep.subr.bf16.mxu0 0
        %5217 = vmatpush1.bf16.msra.mxu0 0
        %5218 = vmatprep.subr.bf16.mxu0 0
        %5219 = vmatpush1.bf16.msra.mxu0 0
        %5220 = vmatprep.subr.bf16.mxu0 0
        %5221 = vmatpush1.bf16.msra.mxu0 0
        %5222 = vmatprep.subr.bf16.mxu0 0
        %5223 = vmatpush1.bf16.msra.mxu0 0
        %5224 = vmatprep.subr.bf16.mxu0 0
        %5225 = vmatpush1.bf16.msra.mxu0 0
        %5226 = vmatprep.subr.bf16.mxu0 0
        %5227 = vmatpush1.bf16.msra.mxu0 0
        %5228 = vmatprep.mubr.bf16.mxu0 0
        %5229 = vmatmul.mubr.bf16.gmra.mrb[0].mxu0 %v5185
        %v5230 = vpop.f32.mrb[0].mxu0
        %v5231 = vadd.f32 0.0, %v5230
        %v5232 = vpop.f32.mrb[0].mxu0
        %v5233 = vpop.f32.mrb[0].mxu0
        %v5234 = vadd.f32 0.0, %v5233
        %v5235 = vpop.f32.mrb[0].mxu0
        %5236 = vmatprep.mubr.bf16.mxu0 0
        %5237 = vmatmul.mubr.bf16.gmra.mrb[0].mxu0 %v5188
        %v5238 = vpop.f32.mrb[0].mxu0
        %v5239 = vadd.f32 0.0, %v5238
        %v5240 = vpop.f32.mrb[0].mxu0
        %v5241 = vpop.f32.mrb[0].mxu0
        %v5242 = vadd.f32 0.0, %v5241
        %v5243 = vpop.f32.mrb[0].mxu0
        %5244 = vmatprep.mubr.bf16.mxu0 0
        %5245 = vmatmul.mubr.bf16.gmra.mrb[0].mxu0 %v5191
        %v5246 = vpop.f32.mrb[0].mxu0
        %v5247 = vadd.f32 0.0, %v5246
        %v5248 = vpop.f32.mrb[0].mxu0
        %v5249 = vpop.f32.mrb[0].mxu0
        %v5250 = vadd.f32 0.0, %v5249
        %v5251 = vpop.f32.mrb[0].mxu0
        %5252 = vmatprep.mubr.bf16.mxu0 0
        %5253 = vmatmul.mubr.bf16.gmra.mrb[0].mxu0 %v5194
        %v5254 = vpop.f32.mrb[0].mxu0
        %v5255 = vadd.f32 0.0, %v5254
        %v5256 = vpop.f32.mrb[0].mxu0
        %v5257 = vpop.f32.mrb[0].mxu0
        %v5258 = vadd.f32 0.0, %v5257
        %v5259 = vpop.f32.mrb[0].mxu0
        %5260 = vdwg.mxu0
        %v5261 = vadd.f32 %v4902, %v5231
        %v5262 = vadd.f32 %v4903, %v5234
        %v5263 = vadd.f32 %v4904, %v5239
        %v5264 = vadd.f32 %v4905, %v5242
        %v5265 = vadd.f32 %v4906, %v5247
        %v5266 = vadd.f32 %v4907, %v5250
        %v5267 = vadd.f32 %v4908, %v5255
        %v5268 = vadd.f32 %v4909, %v5258
        %5269 = vrot.lane.b32.xlu0 %v4193, 80
        %v5270 = vpop.permute.xlu0 %5269
        %5271 = vrot.lane.b32.xlu0 %v4194, 80
        %v5272 = vpop.permute.xlu0 %5271
        %5273 = vrot.lane.b32.xlu0 %v4195, 80
        %v5274 = vpop.permute.xlu0 %5273
        %5275 = vrot.lane.b32.xlu0 %v4196, 80
        %v5276 = vpop.permute.xlu0 %5275
        %5277 = vrot.lane.b32.xlu0 %v4197, 80
        %v5278 = vpop.permute.xlu0 %5277
        %v5280 = vsel %vm1890, %v5270, 0
        %v5283 = vsel %vm1890, %v5272, 0
        %v5286 = vsel %vm1890, %v5274, 0
        %v5289 = vsel %vm1890, %v5276, 0
        %v5292 = vsel %vm1890, %v5278, 0
        %5294 = vmatprep.subr.bf16.mxu0 0
        %5295 = vmatpush1.bf16.xpose.msra.mxu0 %v5292
        %5296 = vmatprep.subr.bf16.mxu0 0
        %5297 = vmatpush1.bf16.xpose.msra.mxu0 0
        %5298 = vmatprep.subr.bf16.mxu0 0
        %5299 = vmatpush1.bf16.xpose.msra.mxu0 0
        %5300 = vmatprep.subr.bf16.mxu0 0
        %5301 = vmatpush1.bf16.xpose.msra.mxu0 0
        %5302 = vmatprep.subr.bf16.mxu0 0
        %5303 = vmatpush1.bf16.xpose.msra.mxu0 0
        %5304 = vmatprep.subr.bf16.mxu0 0
        %5305 = vmatpush1.bf16.xpose.msra.mxu0 0
        %5306 = vmatprep.subr.bf16.mxu0 0
        %5307 = vmatpush1.bf16.xpose.msra.mxu0 0
        %5308 = vmatprep.subr.bf16.mxu0 0
        %5309 = vmatpush1.bf16.xpose.msra.mxu0 0
        %5310 = vmatprep.subr.bf16.mxu0 0
        %5311 = vmatpush1.bf16.xpose.msra.mxu0 0
        %5312 = vmatprep.subr.bf16.mxu0 0
        %5313 = vmatpush1.bf16.xpose.msra.mxu0 0
        %5314 = vmatprep.subr.bf16.mxu0 0
        %5315 = vmatpush1.bf16.xpose.msra.mxu0 0
        %5316 = vmatprep.subr.bf16.mxu0 0
        %5317 = vmatpush1.bf16.xpose.msra.mxu0 0
        %5318 = vmatprep.subr.bf16.mxu0 0
        %5319 = vmatpush1.bf16.xpose.msra.mxu0 0
        %5320 = vmatprep.subr.bf16.mxu0 0
        %5321 = vmatpush1.bf16.xpose.msra.mxu0 0
        %5322 = vmatprep.subr.bf16.mxu0 0
        %5323 = vmatpush1.bf16.xpose.msra.mxu0 0
        %5324 = vmatprep.subr.bf16.mxu0 0
        %5325 = vmatpush1.bf16.xpose.msra.mxu0 0
        %5326 = vmatprep.mubr.bf16.mxu0 0
        %5327 = vmatmul.mubr.bf16.gmra.mrb[0].mxu0 %v5280
        %v5328 = vpop.f32.mrb[0].mxu0
        %v5329 = vadd.f32 0.0, %v5328
        %v5330 = vpop.f32.mrb[0].mxu0
        %v5331 = vpop.f32.mrb[0].mxu0
        %v5332 = vadd.f32 0.0, %v5331
        %v5333 = vpop.f32.mrb[0].mxu0
        %5334 = vmatprep.mubr.bf16.mxu0 0
        %5335 = vmatmul.mubr.bf16.gmra.mrb[0].mxu0 %v5283
        %v5336 = vpop.f32.mrb[0].mxu0
        %v5337 = vadd.f32 0.0, %v5336
        %v5338 = vpop.f32.mrb[0].mxu0
        %v5339 = vpop.f32.mrb[0].mxu0
        %v5340 = vadd.f32 0.0, %v5339
        %v5341 = vpop.f32.mrb[0].mxu0
        %5342 = vmatprep.mubr.bf16.mxu0 0
        %5343 = vmatmul.mubr.bf16.gmra.mrb[0].mxu0 %v5286
        %v5344 = vpop.f32.mrb[0].mxu0
        %v5345 = vadd.f32 0.0, %v5344
        %v5346 = vpop.f32.mrb[0].mxu0
        %v5347 = vpop.f32.mrb[0].mxu0
        %v5348 = vadd.f32 0.0, %v5347
        %v5349 = vpop.f32.mrb[0].mxu0
        %5350 = vmatprep.mubr.bf16.mxu0 0
        %5351 = vmatmul.mubr.bf16.gmra.mrb[0].mxu0 %v5289
        %v5352 = vpop.f32.mrb[0].mxu0
        %v5353 = vadd.f32 0.0, %v5352
        %v5354 = vpop.f32.mrb[0].mxu0
        %v5355 = vpop.f32.mrb[0].mxu0
        %v5356 = vadd.f32 0.0, %v5355
        %v5357 = vpop.f32.mrb[0].mxu0
        %5358 = vdwg.mxu0
        %v5359 = vmul.f32 %v5329, 0.25
        %v5360 = vmul.f32 %v5332, 0.25
        %v5361 = vmul.f32 %v5337, 0.25
        %v5362 = vmul.f32 %v5340, 0.25
        %v5363 = vmul.f32 %v5345, 0.25
        %v5364 = vmul.f32 %v5348, 0.25
        %v5365 = vmul.f32 %v5353, 0.25
        %v5366 = vmul.f32 %v5356, 0.25
        %v5367 = vsel %vm1890, %v5359, -inf
        %5368 = vmax.xlane.f32.xlu0 %v5367
        %v5369 = vpop.xlane.xlu0 %5368
        %v5370 = vsel %vm1890, %v5360, -inf
        %5371 = vmax.xlane.f32.xlu0 %v5370
        %v5372 = vpop.xlane.xlu0 %5371
        %v5373 = vsel %vm1890, %v5361, -inf
        %5374 = vmax.xlane.f32.xlu0 %v5373
        %v5375 = vpop.xlane.xlu0 %5374
        %v5376 = vsel %vm1890, %v5362, -inf
        %5377 = vmax.xlane.f32.xlu0 %v5376
        %v5378 = vpop.xlane.xlu0 %5377
        %v5379 = vsel %vm1890, %v5363, -inf
        %5380 = vmax.xlane.f32.xlu0 %v5379
        %v5381 = vpop.xlane.xlu0 %5380
        %v5382 = vsel %vm1890, %v5364, -inf
        %5383 = vmax.xlane.f32.xlu0 %v5382
        %v5384 = vpop.xlane.xlu0 %5383
        %v5385 = vsel %vm1890, %v5365, -inf
        %5386 = vmax.xlane.f32.xlu0 %v5385
        %v5387 = vpop.xlane.xlu0 %5386
        %v5388 = vsel %vm1890, %v5366, -inf
        %5389 = vmax.xlane.f32.xlu0 %v5388
        %v5390 = vpop.xlane.xlu0 %5389
        %v5391 = vsub.f32 %v5359, %v5369
        %v5392 = vsub.f32 %v5360, %v5372
        %v5393 = vsub.f32 %v5361, %v5375
        %v5394 = vsub.f32 %v5362, %v5378
        %v5395 = vsub.f32 %v5363, %v5381
        %v5396 = vsub.f32 %v5364, %v5384
        %v5397 = vsub.f32 %v5365, %v5387
        %v5398 = vsub.f32 %v5366, %v5390
        %v5399 = vmul.f32 %v5391, 1.442695
        %v5400 = vpow.pop %v5399
        %v5401 = vmul.f32 %v5392, 1.442695
        %v5402 = vpow.pop %v5401
        %v5403 = vmul.f32 %v5393, 1.442695
        %v5404 = vpow.pop %v5403
        %v5405 = vmul.f32 %v5394, 1.442695
        %v5406 = vpow.pop %v5405
        %v5407 = vmul.f32 %v5395, 1.442695
        %v5408 = vpow.pop %v5407
        %v5409 = vmul.f32 %v5396, 1.442695
        %v5410 = vpow.pop %v5409
        %v5411 = vmul.f32 %v5397, 1.442695
        %v5412 = vpow.pop %v5411
        %v5413 = vmul.f32 %v5398, 1.442695
        %v5414 = vpow.pop %v5413
        %v5415 = vsel %vm1890, %v5400, 0.0
        %5416 = vadd.xlane.f32.xlu0 %v5415
        %v5417 = vpop.xlane.xlu0 %5416
        %v5418 = vsel %vm1890, %v5402, 0.0
        %5419 = vadd.xlane.f32.xlu0 %v5418
        %v5420 = vpop.xlane.xlu0 %5419
        %v5421 = vsel %vm1890, %v5404, 0.0
        %5422 = vadd.xlane.f32.xlu0 %v5421
        %v5423 = vpop.xlane.xlu0 %5422
        %v5424 = vsel %vm1890, %v5406, 0.0
        %5425 = vadd.xlane.f32.xlu0 %v5424
        %v5426 = vpop.xlane.xlu0 %5425
        %v5427 = vsel %vm1890, %v5408, 0.0
        %5428 = vadd.xlane.f32.xlu0 %v5427
        %v5429 = vpop.xlane.xlu0 %5428
        %v5430 = vsel %vm1890, %v5410, 0.0
        %5431 = vadd.xlane.f32.xlu0 %v5430
        %v5432 = vpop.xlane.xlu0 %5431
        %v5433 = vsel %vm1890, %v5412, 0.0
        %5434 = vadd.xlane.f32.xlu0 %v5433
        %v5435 = vpop.xlane.xlu0 %5434
        %v5436 = vsel %vm1890, %v5414, 0.0
        %5437 = vadd.xlane.f32.xlu0 %v5436
        %v5438 = vpop.xlane.xlu0 %5437
        %v5439 = vrcp.pop %v5417
        %v5440 = vrcp.pop %v5420
        %v5441 = vrcp.pop %v5423
        %v5442 = vrcp.pop %v5426
        %v5443 = vrcp.pop %v5429
        %v5444 = vrcp.pop %v5432
        %v5445 = vrcp.pop %v5435
        %v5446 = vrcp.pop %v5438
        %v5447 = vmul.f32 %v5400, %v5439
        %v5448 = vmul.f32 %v5402, %v5440
        %v5449 = vmul.f32 %v5404, %v5441
        %v5450 = vmul.f32 %v5406, %v5442
        %v5451 = vmul.f32 %v5408, %v5443
        %v5452 = vmul.f32 %v5410, %v5444
        %v5453 = vmul.f32 %v5412, %v5445
        %v5454 = vmul.f32 %v5414, %v5446
        %v5455 = vpack.c.bf16 %v5448, %v5447
        %v5456 = vpack.c.bf16 %v5450, %v5449
        %v5457 = vpack.c.bf16 %v5452, %v5451
        %v5458 = vpack.c.bf16 %v5454, %v5453
        %5459 = vrot.lane.b32.xlu0 %v4198, 80
        %v5460 = vpop.permute.xlu0 %5459
        %v5463 = vsel %vm1890, %v5455, 0
        %v5466 = vsel %vm1890, %v5456, 0
        %v5469 = vsel %vm1890, %v5457, 0
        %v5472 = vsel %vm1890, %v5458, 0
        %5474 = vmatprep.subr.bf16.mxu0 0
        %5475 = vmatpush1.bf16.msra.mxu0 %v5460
        %5476 = vmatprep.subr.bf16.mxu0 0
        %5477 = vmatpush1.bf16.msra.mxu0 0
        %5478 = vmatprep.subr.bf16.mxu0 0
        %5479 = vmatpush1.bf16.msra.mxu0 0
        %5480 = vmatprep.subr.bf16.mxu0 0
        %5481 = vmatpush1.bf16.msra.mxu0 0
        %5482 = vmatprep.subr.bf16.mxu0 0
        %5483 = vmatpush1.bf16.msra.mxu0 0
        %5484 = vmatprep.subr.bf16.mxu0 0
        %5485 = vmatpush1.bf16.msra.mxu0 0
        %5486 = vmatprep.subr.bf16.mxu0 0
        %5487 = vmatpush1.bf16.msra.mxu0 0
        %5488 = vmatprep.subr.bf16.mxu0 0
        %5489 = vmatpush1.bf16.msra.mxu0 0
        %5490 = vmatprep.subr.bf16.mxu0 0
        %5491 = vmatpush1.bf16.msra.mxu0 0
        %5492 = vmatprep.subr.bf16.mxu0 0
        %5493 = vmatpush1.bf16.msra.mxu0 0
        %5494 = vmatprep.subr.bf16.mxu0 0
        %5495 = vmatpush1.bf16.msra.mxu0 0
        %5496 = vmatprep.subr.bf16.mxu0 0
        %5497 = vmatpush1.bf16.msra.mxu0 0
        %5498 = vmatprep.subr.bf16.mxu0 0
        %5499 = vmatpush1.bf16.msra.mxu0 0
        %5500 = vmatprep.subr.bf16.mxu0 0
        %5501 = vmatpush1.bf16.msra.mxu0 0
        %5502 = vmatprep.subr.bf16.mxu0 0
        %5503 = vmatpush1.bf16.msra.mxu0 0
        %5504 = vmatprep.subr.bf16.mxu0 0
        %5505 = vmatpush1.bf16.msra.mxu0 0
        %5506 = vmatprep.mubr.bf16.mxu0 0
        %5507 = vmatmul.mubr.bf16.gmra.mrb[0].mxu0 %v5463
        %v5508 = vpop.f32.mrb[0].mxu0
        %v5509 = vadd.f32 0.0, %v5508
        %v5510 = vpop.f32.mrb[0].mxu0
        %v5511 = vpop.f32.mrb[0].mxu0
        %v5512 = vadd.f32 0.0, %v5511
        %v5513 = vpop.f32.mrb[0].mxu0
        %5514 = vmatprep.mubr.bf16.mxu0 0
        %5515 = vmatmul.mubr.bf16.gmra.mrb[0].mxu0 %v5466
        %v5516 = vpop.f32.mrb[0].mxu0
        %v5517 = vadd.f32 0.0, %v5516
        %v5518 = vpop.f32.mrb[0].mxu0
        %v5519 = vpop.f32.mrb[0].mxu0
        %v5520 = vadd.f32 0.0, %v5519
        %v5521 = vpop.f32.mrb[0].mxu0
        %5522 = vmatprep.mubr.bf16.mxu0 0
        %5523 = vmatmul.mubr.bf16.gmra.mrb[0].mxu0 %v5469
        %v5524 = vpop.f32.mrb[0].mxu0
        %v5525 = vadd.f32 0.0, %v5524
        %v5526 = vpop.f32.mrb[0].mxu0
        %v5527 = vpop.f32.mrb[0].mxu0
        %v5528 = vadd.f32 0.0, %v5527
        %v5529 = vpop.f32.mrb[0].mxu0
        %5530 = vmatprep.mubr.bf16.mxu0 0
        %5531 = vmatmul.mubr.bf16.gmra.mrb[0].mxu0 %v5472
        %v5532 = vpop.f32.mrb[0].mxu0
        %v5533 = vadd.f32 0.0, %v5532
        %v5534 = vpop.f32.mrb[0].mxu0
        %v5535 = vpop.f32.mrb[0].mxu0
        %v5536 = vadd.f32 0.0, %v5535
        %v5537 = vpop.f32.mrb[0].mxu0
        %5538 = vdwg.mxu0
        %v5539 = vpack.c.bf16 %v5512, %v5509
        %v5540 = vpack.c.bf16 %v5520, %v5517
        %v5541 = vpack.c.bf16 %v5528, %v5525
        %v5542 = vpack.c.bf16 %v5536, %v5533
        %v5544 = vsel %vm1890, %v5539, 0
        %v5547 = vsel %vm1890, %v5540, 0
        %v5550 = vsel %vm1890, %v5541, 0
        %v5553 = vsel %vm1890, %v5542, 0
        %5555 = vmatprep.subr.bf16.mxu0 0
        %5556 = vmatpush1.bf16.msra.mxu0 %v4184
        %5557 = vmatprep.subr.bf16.mxu0 0
        %5558 = vmatpush1.bf16.msra.mxu0 0
        %5559 = vmatprep.subr.bf16.mxu0 0
        %5560 = vmatpush1.bf16.msra.mxu0 0
        %5561 = vmatprep.subr.bf16.mxu0 0
        %5562 = vmatpush1.bf16.msra.mxu0 0
        %5563 = vmatprep.subr.bf16.mxu0 0
        %5564 = vmatpush1.bf16.msra.mxu0 0
        %5565 = vmatprep.subr.bf16.mxu0 0
        %5566 = vmatpush1.bf16.msra.mxu0 0
        %5567 = vmatprep.subr.bf16.mxu0 0
        %5568 = vmatpush1.bf16.msra.mxu0 0
        %5569 = vmatprep.subr.bf16.mxu0 0
        %5570 = vmatpush1.bf16.msra.mxu0 0
        %5571 = vmatprep.subr.bf16.mxu0 0
        %5572 = vmatpush1.bf16.msra.mxu0 0
        %5573 = vmatprep.subr.bf16.mxu0 0
        %5574 = vmatpush1.bf16.msra.mxu0 0
        %5575 = vmatprep.subr.bf16.mxu0 0
        %5576 = vmatpush1.bf16.msra.mxu0 0
        %5577 = vmatprep.subr.bf16.mxu0 0
        %5578 = vmatpush1.bf16.msra.mxu0 0
        %5579 = vmatprep.subr.bf16.mxu0 0
        %5580 = vmatpush1.bf16.msra.mxu0 0
        %5581 = vmatprep.subr.bf16.mxu0 0
        %5582 = vmatpush1.bf16.msra.mxu0 0
        %5583 = vmatprep.subr.bf16.mxu0 0
        %5584 = vmatpush1.bf16.msra.mxu0 0
        %5585 = vmatprep.subr.bf16.mxu0 0
        %5586 = vmatpush1.bf16.msra.mxu0 0
        %5587 = vmatprep.mubr.bf16.mxu0 0
        %5588 = vmatmul.mubr.bf16.gmra.mrb[0].mxu0 %v5544
        %v5589 = vpop.f32.mrb[0].mxu0
        %v5590 = vadd.f32 0.0, %v5589
        %v5591 = vpop.f32.mrb[0].mxu0
        %v5592 = vpop.f32.mrb[0].mxu0
        %v5593 = vadd.f32 0.0, %v5592
        %v5594 = vpop.f32.mrb[0].mxu0
        %5595 = vmatprep.mubr.bf16.mxu0 0
        %5596 = vmatmul.mubr.bf16.gmra.mrb[0].mxu0 %v5547
        %v5597 = vpop.f32.mrb[0].mxu0
        %v5598 = vadd.f32 0.0, %v5597
        %v5599 = vpop.f32.mrb[0].mxu0
        %v5600 = vpop.f32.mrb[0].mxu0
        %v5601 = vadd.f32 0.0, %v5600
        %v5602 = vpop.f32.mrb[0].mxu0
        %5603 = vmatprep.mubr.bf16.mxu0 0
        %5604 = vmatmul.mubr.bf16.gmra.mrb[0].mxu0 %v5550
        %v5605 = vpop.f32.mrb[0].mxu0
        %v5606 = vadd.f32 0.0, %v5605
        %v5607 = vpop.f32.mrb[0].mxu0
        %v5608 = vpop.f32.mrb[0].mxu0
        %v5609 = vadd.f32 0.0, %v5608
        %v5610 = vpop.f32.mrb[0].mxu0
        %5611 = vmatprep.mubr.bf16.mxu0 0
        %5612 = vmatmul.mubr.bf16.gmra.mrb[0].mxu0 %v5553
        %v5613 = vpop.f32.mrb[0].mxu0
        %v5614 = vadd.f32 0.0, %v5613
        %v5615 = vpop.f32.mrb[0].mxu0
        %v5616 = vpop.f32.mrb[0].mxu0
        %v5617 = vadd.f32 0.0, %v5616
        %v5618 = vpop.f32.mrb[0].mxu0
        %5619 = vdwg.mxu0
        %v5620 = vadd.f32 %v5261, %v5590
        %v5621 = vadd.f32 %v5262, %v5593
        %v5622 = vadd.f32 %v5263, %v5598
        %v5623 = vadd.f32 %v5264, %v5601
        %v5624 = vadd.f32 %v5265, %v5606
        %v5625 = vadd.f32 %v5266, %v5609
        %v5626 = vadd.f32 %v5267, %v5614
        %v5627 = vadd.f32 %v5268, %v5617
        %v5628 = vadd.f32 %v1567, %v5620
        %v5629 = vadd.f32 %v1568, %v5621
        %v5630 = vadd.f32 %v1569, %v5622
        %v5631 = vadd.f32 %v1570, %v5623
        %v5632 = vadd.f32 %v1571, %v5624
        %v5633 = vadd.f32 %v1572, %v5625
        %v5634 = vadd.f32 %v1573, %v5626
        %v5635 = vadd.f32 %v1574, %v5627
        %v5636 = vld [vmem:[#allocation29] sm:$0x1]
        %v5637 = vld [vmem:[#allocation31] sm:$0x1]
        %5638 = vadd.xlane.f32.xlu0 %v5628
        %v5639 = vpop.xlane.xlu0 %5638
        %5640 = vadd.xlane.f32.xlu0 %v5629
        %v5641 = vpop.xlane.xlu0 %5640
        %5642 = vadd.xlane.f32.xlu0 %v5630
        %v5643 = vpop.xlane.xlu0 %5642
        %5644 = vadd.xlane.f32.xlu0 %v5631
        %v5645 = vpop.xlane.xlu0 %5644
        %5646 = vadd.xlane.f32.xlu0 %v5632
        %v5647 = vpop.xlane.xlu0 %5646
        %5648 = vadd.xlane.f32.xlu0 %v5633
        %v5649 = vpop.xlane.xlu0 %5648
        %5650 = vadd.xlane.f32.xlu0 %v5634
        %v5651 = vpop.xlane.xlu0 %5650
        %5652 = vadd.xlane.f32.xlu0 %v5635
        %v5653 = vpop.xlane.xlu0 %5652
        %v5654 = vmul.f32 %v5639, %v2526
        %v5655 = vmul.f32 %v5641, %v2526
        %v5656 = vmul.f32 %v5643, %v2526
        %v5657 = vmul.f32 %v5645, %v2526
        %v5658 = vmul.f32 %v5647, %v2526
        %v5659 = vmul.f32 %v5649, %v2526
        %v5660 = vmul.f32 %v5651, %v2526
        %v5661 = vmul.f32 %v5653, %v2526
        %v5662 = vsub.f32 %v5628, %v5654
        %v5663 = vsub.f32 %v5629, %v5655
        %v5664 = vsub.f32 %v5630, %v5656
        %v5665 = vsub.f32 %v5631, %v5657
        %v5666 = vsub.f32 %v5632, %v5658
        %v5667 = vsub.f32 %v5633, %v5659
        %v5668 = vsub.f32 %v5634, %v5660
        %v5669 = vsub.f32 %v5635, %v5661
        %v5670 = vmul.f32 %v5662, %v5662
        %v5671 = vmul.f32 %v5663, %v5663
        %v5672 = vmul.f32 %v5664, %v5664
        %v5673 = vmul.f32 %v5665, %v5665
        %v5674 = vmul.f32 %v5666, %v5666
        %v5675 = vmul.f32 %v5667, %v5667
        %v5676 = vmul.f32 %v5668, %v5668
        %v5677 = vmul.f32 %v5669, %v5669
        %5678 = vadd.xlane.f32.xlu0 %v5670
        %v5679 = vpop.xlane.xlu0 %5678
        %5680 = vadd.xlane.f32.xlu0 %v5671
        %v5681 = vpop.xlane.xlu0 %5680
        %5682 = vadd.xlane.f32.xlu0 %v5672
        %v5683 = vpop.xlane.xlu0 %5682
        %5684 = vadd.xlane.f32.xlu0 %v5673
        %v5685 = vpop.xlane.xlu0 %5684
        %5686 = vadd.xlane.f32.xlu0 %v5674
        %v5687 = vpop.xlane.xlu0 %5686
        %5688 = vadd.xlane.f32.xlu0 %v5675
        %v5689 = vpop.xlane.xlu0 %5688
        %5690 = vadd.xlane.f32.xlu0 %v5676
        %v5691 = vpop.xlane.xlu0 %5690
        %5692 = vadd.xlane.f32.xlu0 %v5677
        %v5693 = vpop.xlane.xlu0 %5692
        %v5694 = vmul.f32 %v5679, %v2526
        %v5695 = vmul.f32 %v5681, %v2526
        %v5696 = vmul.f32 %v5683, %v2526
        %v5697 = vmul.f32 %v5685, %v2526
        %v5698 = vmul.f32 %v5687, %v2526
        %v5699 = vmul.f32 %v5689, %v2526
        %v5700 = vmul.f32 %v5691, %v2526
        %v5701 = vmul.f32 %v5693, %v2526
        %v5702 = vadd.f32 %v5694, 1e-05
        %v5703 = vadd.f32 %v5695, 1e-05
        %v5704 = vadd.f32 %v5696, 1e-05
        %v5705 = vadd.f32 %v5697, 1e-05
        %v5706 = vadd.f32 %v5698, 1e-05
        %v5707 = vadd.f32 %v5699, 1e-05
        %v5708 = vadd.f32 %v5700, 1e-05
        %v5709 = vadd.f32 %v5701, 1e-05
        %v5710 = vrsqrt.pop %v5702
        %v5711 = vrsqrt.pop %v5703
        %v5712 = vrsqrt.pop %v5704
        %v5713 = vrsqrt.pop %v5705
        %v5714 = vrsqrt.pop %v5706
        %v5715 = vrsqrt.pop %v5707
        %v5716 = vrsqrt.pop %v5708
        %v5717 = vrsqrt.pop %v5709
        %v5718 = vmul.f32 %v5662, %v5710
        %v5719 = vmul.f32 %v5663, %v5711
        %v5720 = vmul.f32 %v5664, %v5712
        %v5721 = vmul.f32 %v5665, %v5713
        %v5722 = vmul.f32 %v5666, %v5714
        %v5723 = vmul.f32 %v5667, %v5715
        %v5724 = vmul.f32 %v5668, %v5716
        %v5725 = vmul.f32 %v5669, %v5717
        %v5727 = vlaneseq
        %v5728 = vshrl.u32 %v5727, 7
        %v5729 = vsub.s32 0, %v5728
        %v5730 = vrot.slane %v5636, %v5729
        %v5732 = vmul.f32 %v5718, %v5730
        %v5733 = vmul.f32 %v5719, %v5730
        %v5734 = vmul.f32 %v5720, %v5730
        %v5735 = vmul.f32 %v5721, %v5730
        %v5736 = vmul.f32 %v5722, %v5730
        %v5737 = vmul.f32 %v5723, %v5730
        %v5738 = vmul.f32 %v5724, %v5730
        %v5739 = vmul.f32 %v5725, %v5730
        %v5741 = vlaneseq
        %v5742 = vshrl.u32 %v5741, 7
        %v5743 = vsub.s32 0, %v5742
        %v5744 = vrot.slane %v5637, %v5743
        %v5746 = vadd.f32 %v5732, %v5744
        %v5747 = vadd.f32 %v5733, %v5744
        %v5748 = vadd.f32 %v5734, %v5744
        %v5749 = vadd.f32 %v5735, %v5744
        %v5750 = vadd.f32 %v5736, %v5744
        %v5751 = vadd.f32 %v5737, %v5744
        %v5752 = vadd.f32 %v5738, %v5744
        %v5753 = vadd.f32 %v5739, %v5744
        %5754 = vst [vmem:[%s1546] sm:$0xff] %v3927
        %5755 = vst [vmem:[%s1546 + $0x8] sm:$0xff] %v3928
        %5756 = vst [vmem:[%s1553] sm:$0xff] %v5746
        %5757 = vst [vmem:[%s1553 + $0x8] sm:$0xff] %v5747
        %5758 = vst [vmem:[%s1553 + $0x10] sm:$0xff] %v5748
        %5759 = vst [vmem:[%s1553 + $0x18] sm:$0xff] %v5749
        %5760 = vst [vmem:[%s1553 + $0x20] sm:$0xff] %v5750
        %5761 = vst [vmem:[%s1553 + $0x28] sm:$0xff] %v5751
        %5762 = vst [vmem:[%s1553 + $0x30] sm:$0xff] %v5752
        %5763 = vst [vmem:[%s1553 + $0x38] sm:$0xff] %v5753
        %s5764 = sand.u32 %s983, 1
        %s5765 = scalar_lea.sflag [#allocation4], %s5764
        %s5766 = sand.u32 %s983, 1
        %s5767 = smul.addr %s5766, 16
        %s5768 = scalar_lea.vmem [#allocation32], %s5767
        %s5769 = sand.u32 %s1009, 1
        %s5770 = scalar_lea.sflag [#allocation34], %s5769
        %s5771 = sand.u32 %s1009, 1
        %s5772 = smul.addr %s5771, 64
        %s5773 = scalar_lea.vmem [#allocation33], %s5772
        // Predicated region
        $region257: #{two_way_attention_block.1} parent=179 // pred_check
          %p5774 = pneg %p993
        $region258: #{two_way_attention_block.1} parent=179 // pred_check_branch
          %5776 = sbr.rel (%p5774) target = $region260
        $region259: #{two_way_attention_block.1} parent=179 // pred_region
          %s5778 = ssub.s32 256, 256
          %5779 = vsyncadd %s5765, %s5778
          %s5780 = smul.addr %s115, 2
          %s5781 = smul.addr %s5780, 128
          %s5782 = scalar_lea.hbm %s81, %s5781
          %s5783 = sshll.u32 %s5768, 4
          %s5784 = int_to_ptr.vmem [resolvable:$true] %s5783
          %5789 = dma.vmem_to_hbm [thread:$0]  %s5784, 256, %s5782, %s5765, 128, 128, 8
        $region260: #{two_way_attention_block.1} parent=179 // pred_fallthru
          _
        // Predicated region
        $region261: #{two_way_attention_block.1} parent=179 // pred_check
          %p5790 = pneg %p1019
        $region262: #{two_way_attention_block.1} parent=179 // pred_check_branch
          %5792 = sbr.rel (%p5790) target = $region264
        $region263: #{two_way_attention_block.1} parent=179 // pred_region
          %s5794 = ssub.s32 1024, 1024
          %5795 = vsyncadd %s5770, %s5794
          %s5796 = smul.addr %s115, 8
          %s5797 = smul.addr %s5796, 128
          %s5798 = scalar_lea.hbm %s83, %s5797
          %s5799 = sshll.u32 %s5773, 4
          %s5800 = int_to_ptr.vmem [resolvable:$true] %s5799
          %5805 = dma.vmem_to_hbm [thread:$0]  %s5800, 1024, %s5798, %s5770, 128, 128, 8
        $region264: #{two_way_attention_block.1} parent=179 // pred_fallthru
          _
      $region180: #{two_way_attention_block.1} parent=5 // pred_fallthru
        _
      %p5806 = scmp.le.s32.totalorder 2, %s110
      // Predicated region
      $region265: #{two_way_attention_block.1} parent=5 // pred_check
        %p5807 = pneg %p5806
      $region266: #{two_way_attention_block.1} parent=5 // pred_check_branch
        %5809 = sbr.rel (%p5807) target = $region268
      $region267: #{two_way_attention_block.1} parent=5 // pred_region
        %s5810 = ssub.s32 %s110, 2
        // Predicated region
        $region269: #{two_way_attention_block.1} parent=267 // pred_check
          %p5811 = pneg %p999
        $region270: #{two_way_attention_block.1} parent=267 // pred_check_branch
          %5813 = sbr.rel (%p5811) target = $region272
        $region271: #{two_way_attention_block.1} parent=267 // pred_region
          %s5814 = sand.u32 %s984, 1
          %s5815 = scalar_lea.sflag [#allocation4], %s5814
          %s5816 = sand.u32 %s984, 1
          %s5817 = smul.addr %s5816, 16
          %s5818 = scalar_lea.vmem [#allocation32], %s5817
          %5819 = dma.done %s5815, 256
        $region272: #{two_way_attention_block.1} parent=267 // pred_fallthru
          _
        // Predicated region
        $region273: #{two_way_attention_block.1} parent=267 // pred_check
          %p5820 = pneg %p1025
        $region274: #{two_way_attention_block.1} parent=267 // pred_check_branch
          %5822 = sbr.rel (%p5820) target = $region276
        $region275: #{two_way_attention_block.1} parent=267 // pred_region
          %s5823 = sand.u32 %s1010, 1
          %s5824 = scalar_lea.sflag [#allocation34], %s5823
          %s5825 = sand.u32 %s1010, 1
          %s5826 = smul.addr %s5825, 64
          %s5827 = scalar_lea.vmem [#allocation33], %s5826
          %5828 = dma.done %s5824, 1024
        $region276: #{two_way_attention_block.1} parent=267 // pred_fallthru
          _
      $region268: #{two_way_attention_block.1} parent=5 // pred_fallthru
        _
    $region6: #{two_way_attention_block.1} parent=1 // loop_footer
      %s114 = sadd.s32 1, %s110
    $region7: #{two_way_attention_block.1} parent=1 // loop_footer_branch
      %109 = sbr.rel target = $region3
    $region8: #{two_way_attention_block.1} parent=1 // loop_exit
      _
    %5829 = vsyncpa [#allocation3], 1
    %s5830 = scalar_lea.sflag [#allocation3], 1
    %5831 = vsyncpa %s5830, 1
    %5832 = vsyncpa [#allocation6], 1
    %s5833 = scalar_lea.sflag [#allocation6], 1
    %5834 = vsyncpa %s5833, 1
    %5835 = vsyncpa [#allocation9], 1
    %5836 = vsyncpa [#allocation12], 1
    %5837 = vsyncpa [#allocation15], 1
    %5838 = vsyncpa [#allocation18], 1
    %5839 = vsyncpa [#allocation21], 1
    %5840 = vsyncpa [#allocation24], 1
    %5841 = vsyncpa [#allocation27], 1
    %5842 = vsyncpa [#allocation30], 1
    %5843 = vsyncpa [#allocation4], 1
    %s5844 = scalar_lea.sflag [#allocation4], 1
    %5845 = vsyncpa %s5844, 1
    %5846 = vsyncpa [#allocation34], 1
    %s5847 = scalar_lea.sflag [#allocation34], 1
    %5848 = vsyncpa %s5847, 1

</llo_original>
